<compile_context>
chip_gen: v5e
topology: v5e:2x2
jax: 0.10.0
libtpu: 0.0.40
codegen_flags: <defaults>
</compile_context>

<pallas_src>
import functools

import jax
import jax.numpy as jnp
from jax import lax
from jax.experimental import pallas as pl
from jax.experimental.pallas import tpu as pltpu


def _round_up(x, m):
    return ((x + m - 1) // m) * m


def _cdiv(a, b):
    return (a + b - 1) // b


def _num_tensorcores():
    """2 on megacore parts (v7x), else 1.  Only affects tiling, never correctness."""
    try:
        kind = jax.devices()[0].device_kind.lower().replace(" ", "")
        return 2 if "7" in kind else 1
    except Exception:  # pragma: no cover
        return 1


def _pick_tiles(m, num_tcs):
    """Grid-step count and lane tile for a layer with `m` pooled positions.

    Single-TC parts get ONE step per layer (kernel is HBM-DMA bound, extra steps
    are ~0.35us pure overhead each); megacore parts get `num_tcs` steps so both
    TensorCores get a full 128-lane tile."""
    ntiles = num_tcs if (num_tcs > 1 and m >= 128 * num_tcs) else 1
    tm = max(128, _round_up(_cdiv(m, ntiles), 128))
    return ntiles, tm


def _convlayer_kernel(a_ref, w_ref, sh_ref, o_ref, *, cout):
    """Fused Conv2d(3x3, valid) + BatchNorm(eval) + MaxPool2d(2,2) + ReLU.

    a_ref : (4*K, tm)      bf16  pool-branch-stacked im2col patches (K = 9*Cin)
    w_ref : (4*Cout, 4*K)  bf16  block-diagonal (W^T * bn_scale), one block/branch
    sh_ref: (Cout, 1)      f32   conv_bias*scale + bn_shift, applied AFTER the max
    o_ref : (Cout, tm)           pooled + ReLU'd output (lane-dense store)
    """
    # one long MXU stream per grid step (all 4 pool branches in one dot)
    y = jnp.dot(w_ref[...], a_ref[...], preferred_element_type=jnp.float32)
    # 2x2 max-pool == max over the 4 branch sublane-blocks (32-row slices)
    m = jnp.maximum(jnp.maximum(y[0 * cout:1 * cout], y[1 * cout:2 * cout]),
                    jnp.maximum(y[2 * cout:3 * cout], y[3 * cout:4 * cout]))
    # per-channel shift commutes with max -> applied once on the (Cout, tm) result
    o_ref[...] = jnp.maximum(m + sh_ref[...], 0.0).astype(o_ref.dtype)


def conv_layer(x_cnhw, p, out_dtype):
    """One ConvLayer on a channel-major activation.

    x_cnhw: (Cin, N, H, W) bf16 -> (Cout, N, (H-2)//2, (W-2)//2) `out_dtype`.
    """
    Cin, N, H, W = x_cnhw.shape
    Hout, Wout = H - 2, W - 2
    Hp, Wp = Hout // 2, Wout // 2
    Cout = p["sh"].shape[0]
    K = 9 * Cin
    M = N * Hp * Wp

    ntiles, tm = _pick_tiles(M, _num_tensorcores())
    Mpad = ntiles * tm

    # --- glue: branch-stacked im2col, no transposes, one bf16 pad -------------
    # Channel-major layout means every patch row is a strided slice of x; rows
    # come out already ordered (branch, dy, dx, cin), so reshape(4K, M) is a view.
    shifted = [[x_cnhw[:, :, a:a + 2 * Hp:2, b:b + 2 * Wp:2] for b in range(4)]
               for a in range(4)]                              # 16 distinct slices
    slabs = [shifted[pp + dy][qq + dx]
             for pp in range(2) for qq in range(2)
             for dy in range(3) for dx in range(3)]            # 36 x (Cin,N,Hp,Wp)
    a_op = jnp.stack(slabs, axis=0).reshape(4 * K, M)
    a_op = jnp.pad(a_op, ((0, 0), (0, Mpad - M)))

    out = pl.pallas_call(
        functools.partial(_convlayer_kernel, cout=Cout),
        out_shape=jax.ShapeDtypeStruct((Cout, Mpad), out_dtype),
        grid=(ntiles,),
        in_specs=[pl.BlockSpec((4 * K, tm), lambda i: (0, i)),
                  pl.BlockSpec((4 * Cout, 4 * K), lambda i: (0, 0)),
                  pl.BlockSpec((Cout, 1), lambda i: (0, 0))],
        out_specs=pl.BlockSpec((Cout, tm), lambda i: (0, i)),
        compiler_params=pltpu.CompilerParams(
            dimension_semantics=("parallel",),
            # peak VMEM use is a few MiB; 32 MiB is safe on v5e/v6e/v7x
            vmem_limit_bytes=32 * 1024 * 1024),
    )(a_op, p["wbd"], p["sh"])

    # drop padded columns, keep channel-major layout for the next layer
    return out[:, :M].reshape(Cout, N, Hp, Wp)


def client_model_forward(x_nchw, params):
    # NCHW -> channel-major (C, N, H, W); cast to bf16 once (the MXU operand dtype).
    x = jnp.transpose(x_nchw, (1, 0, 2, 3)).astype(jnp.bfloat16)
    nlayers = len(params["layers"])
    for li, lp in enumerate(params["layers"]):
        out_dtype = jnp.float32 if li == nlayers - 1 else jnp.bfloat16
        x = conv_layer(x, lp, out_dtype)
    # x: (32, N, 3, 3) f32; torch.flatten(x, 1) on NCHW == channel-major flatten
    feats = jnp.transpose(x, (1, 0, 2, 3)).reshape(x.shape[1], -1)
    # FC kept in plain jnp per perf review: at (N=2, 288) @ (288, num_classes) a
    # pallas_call dispatch + a fully lane-masked (2,2) store costs more than the math.
    return feats @ params["fc"]["w"] + params["fc"]["b"][0]


def init_params(key, num_classes):
    # Deterministic synthetic parameters (shapes from the module __init__).
    # TODO(synk): BatchNorm uses eval-mode semantics (running stats folded into the
    # conv weight / post-max shift); train-mode batch statistics are not computed.
    chans = [(3, 32), (32, 32), (32, 32), (32, 32)]
    eps = 1e-5
    layers = []
    for cin, cout in chans:
        key, kw, kb, kg, kbe, km, kv = jax.random.split(key, 7)
        fan_in = 9 * cin
        w = jax.random.normal(kw, (3, 3, cin, cout), jnp.float32) / jnp.sqrt(fan_in)
        b = jax.random.normal(kb, (cout,), jnp.float32) * 0.05
        gamma = jax.random.uniform(kg, (cout,), jnp.float32, 0.5, 1.5)
        beta = jax.random.normal(kbe, (cout,), jnp.float32) * 0.05
        rmean = jax.random.normal(km, (cout,), jnp.float32) * 0.05
        rvar = jax.random.uniform(kv, (cout,), jnp.float32, 0.5, 1.5)
        scale = gamma / jnp.sqrt(rvar + eps)
        shift = beta - rmean * scale
        k9 = 9 * cin
        # BN scale folded into the transposed bf16 MXU weight; the 4 pool branches
        # are packed block-diagonally so the layer is one (4*Cout,4K)x(4K,tm) dot.
        wt = (w.reshape(k9, cout) * scale[None, :]).T            # (Cout, K) f32
        wbd = jnp.zeros((4 * cout, 4 * k9), jnp.float32)
        for br in range(4):
            wbd = wbd.at[br * cout:(br + 1) * cout, br * k9:(br + 1) * k9].set(wt)
        layers.append(dict(
            w=w,                                     # (3,3,Cin,Cout) HWIO (reference)
            b=b.reshape(1, cout),
            scale=scale.reshape(1, cout),
            shift=shift.reshape(1, cout),
            wbd=wbd.astype(jnp.bfloat16),            # (4*Cout, 4*K) bf16 MXU operand
            sh=(b * scale + shift).reshape(cout, 1)))  # post-max per-channel shift
    key, kfw, kfb = jax.random.split(key, 3)
    fw = jax.random.normal(kfw, (32 * 9, num_classes), jnp.float32) / jnp.sqrt(32 * 9)
    fb = jax.random.normal(kfb, (num_classes,), jnp.float32) * 0.05
    return dict(layers=layers, fc=dict(w=fw, b=fb.reshape(1, num_classes)))


def reference_forward(x_nchw, params):
    # Pure-JAX f32 reference of the PyTorch forward (eval-mode BN).
    x = jnp.transpose(x_nchw, (0, 2, 3, 1))
    for lp in params["layers"]:
        y = lax.conv_general_dilated(
            x, lp["w"], (1, 1), "VALID",
            dimension_numbers=("NHWC", "HWIO", "NHWC"),
            precision=lax.Precision.HIGHEST) + lp["b"][0]
        y = y * lp["scale"][0] + lp["shift"][0]
        y = lax.reduce_window(y, -jnp.inf, lax.max,
                              (1, 2, 2, 1), (1, 2, 2, 1), "VALID")
        x = jnp.maximum(y, 0.0)
    x = jnp.transpose(x, (0, 3, 1, 2)).reshape(x.shape[0], -1)
    return x @ params["fc"]["w"] + params["fc"]["b"][0]


if __name__ == "__main__":
    num_classes = 2
    key = jax.random.PRNGKey(0)
    kx, kp = jax.random.split(key)
    # fc expects 32*9 features => input spatial 84x84 with 3 channels
    # (84 -conv-> 82 -pool-> 41 -> 39 -> 19 -> 17 -> 8 -> 6 -> 3).
    x = jax.random.normal(kx, (2, 3, 84, 84), jnp.float32)
    params = init_params(kp, num_classes)

    fwd = jax.jit(client_model_forward)   # jit so the im2col glue fuses per layer
    logits = jax.block_until_ready(fwd(x, params))

    ref = reference_forward(x, params)
    err = float(jnp.max(jnp.abs(logits - ref)))
    assert logits.shape == (2, num_classes)
    assert err < 5e-2, f"mismatch vs reference: {err}"
    print("KERNEL_OK")
</pallas_src>

<mosaic_0001>
module attributes {stable_mosaic.version = 11 : i64} {
  func.func @_convlayer_kernel(%arg0: i32, %arg1: memref<108x3456xbf16, #tpu.memory_space<vmem>>, %arg2: memref<128x108xbf16, #tpu.memory_space<vmem>>, %arg3: memref<32x1xf32, #tpu.memory_space<vmem>>, %arg4: memref<32x3456xbf16, #tpu.memory_space<vmem>>) attributes {dimension_semantics = [#tpu.dimension_semantics<parallel>], iteration_bounds = array<i64: 1>, scalar_prefetch = 0 : i64, scratch_operands = 0 : i64, tpu.core_type = #tpu.core_type<tc>, window_params = [{transform_indices = @transform_0, window_bounds = array<i64: 108, 3456>}, {pipeline_mode = #tpu.pipeline_mode<synchronous>, transform_indices = @transform_1, window_bounds = array<i64: 128, 108>}, {pipeline_mode = #tpu.pipeline_mode<synchronous>, transform_indices = @transform_2, window_bounds = array<i64: 32, 1>}, {transform_indices = @transform_3, window_bounds = array<i64: 32, 3456>}]} {
    %c0 = arith.constant 0 : index
    %c0_0 = arith.constant 0 : index
    %0 = vector.load %arg2[%c0, %c0_0] : memref<128x108xbf16, #tpu.memory_space<vmem>>, vector<128x108xbf16>
    %c0_1 = arith.constant 0 : index
    %c0_2 = arith.constant 0 : index
    %1 = vector.load %arg1[%c0_1, %c0_2] : memref<108x3456xbf16, #tpu.memory_space<vmem>>, vector<108x3456xbf16>
    %cst = arith.constant dense<0.000000e+00> : vector<128x3456xf32>
    %2 = tpu.matmul %0, %1, %cst {dimension_numbers = #tpu.dot_dimension_numbers<[1], [0], [0], [1], [0, 0, 1, 1], [], []>} : vector<128x108xbf16>, vector<108x3456xbf16>, vector<128x3456xf32> -> vector<128x3456xf32>
    %3 = vector.extract_strided_slice %2 {offsets = [0, 0], sizes = [32, 3456], strides = [1, 1]} : vector<128x3456xf32> to vector<32x3456xf32>
    %4 = vector.extract_strided_slice %2 {offsets = [32, 0], sizes = [32, 3456], strides = [1, 1]} : vector<128x3456xf32> to vector<32x3456xf32>
    %5 = arith.maximumf %3, %4 : vector<32x3456xf32>
    %6 = vector.extract_strided_slice %2 {offsets = [64, 0], sizes = [32, 3456], strides = [1, 1]} : vector<128x3456xf32> to vector<32x3456xf32>
    %7 = vector.extract_strided_slice %2 {offsets = [96, 0], sizes = [32, 3456], strides = [1, 1]} : vector<128x3456xf32> to vector<32x3456xf32>
    %8 = arith.maximumf %6, %7 : vector<32x3456xf32>
    %9 = arith.maximumf %5, %8 : vector<32x3456xf32>
    %c0_3 = arith.constant 0 : index
    %c0_4 = arith.constant 0 : index
    %10 = vector.load %arg3[%c0_3, %c0_4] : memref<32x1xf32, #tpu.memory_space<vmem>>, vector<32x1xf32>
    %11 = vector.broadcast %10 : vector<32x1xf32> to vector<32x3456xf32>
    %12 = arith.addf %9, %11 : vector<32x3456xf32>
    %cst_5 = arith.constant 0.000000e+00 : f32
    %13 = vector.broadcast %cst_5 : f32 to vector<32x3456xf32>
    %14 = arith.maximumf %12, %13 : vector<32x3456xf32>
    %15 = arith.truncf %14 : vector<32x3456xf32> to vector<32x3456xbf16>
    %c0_6 = arith.constant 0 : index
    %c0_7 = arith.constant 0 : index
    %16 = vector.load %arg4[%c0_6, %c0_7] : memref<32x3456xbf16, #tpu.memory_space<vmem>>, vector<32x3456xbf16>
    tpu.vector_store %arg4[%c0_6, %c0_7], %15 {strides = array<i32>} : memref<32x3456xbf16, #tpu.memory_space<vmem>>, vector<32x3456xbf16>,
    return
  }
  func.func @transform_0(%arg0: i32) -> (i32, i32) {
    %c0_i32 = arith.constant 0 : i32
    %c0_i32_0 = arith.constant 0 : i32
    return %c0_i32, %arg0 : i32, i32
  }
  func.func @transform_1(%arg0: i32) -> (i32, i32) {
    %c0_i32 = arith.constant 0 : i32
    %c0_i32_0 = arith.constant 0 : i32
    %c0_i32_1 = arith.constant 0 : i32
    return %c0_i32, %c0_i32_0 : i32, i32
  }
  func.func @transform_2(%arg0: i32) -> (i32, i32) {
    %c0_i32 = arith.constant 0 : i32
    %c0_i32_0 = arith.constant 0 : i32
    %c0_i32_1 = arith.constant 0 : i32
    return %c0_i32, %c0_i32_0 : i32, i32
  }
  func.func @transform_3(%arg0: i32) -> (i32, i32) {
    %c0_i32 = arith.constant 0 : i32
    %c0_i32_0 = arith.constant 0 : i32
    return %c0_i32, %arg0 : i32, i32
  }
}

module attributes {stable_mosaic.version = 11 : i64} {
  func.func @_convlayer_kernel(%arg0: i32, %arg1: memref<1152x768xbf16, #tpu.memory_space<vmem>>, %arg2: memref<128x1152xbf16, #tpu.memory_space<vmem>>, %arg3: memref<32x1xf32, #tpu.memory_space<vmem>>, %arg4: memref<32x768xbf16, #tpu.memory_space<vmem>>) attributes {dimension_semantics = [#tpu.dimension_semantics<parallel>], iteration_bounds = array<i64: 1>, scalar_prefetch = 0 : i64, scratch_operands = 0 : i64, tpu.core_type = #tpu.core_type<tc>, window_params = [{transform_indices = @transform_0, window_bounds = array<i64: 1152, 768>}, {pipeline_mode = #tpu.pipeline_mode<synchronous>, transform_indices = @transform_1, window_bounds = array<i64: 128, 1152>}, {pipeline_mode = #tpu.pipeline_mode<synchronous>, transform_indices = @transform_2, window_bounds = array<i64: 32, 1>}, {transform_indices = @transform_3, window_bounds = array<i64: 32, 768>}]} {
    %c0 = arith.constant 0 : index
    %c0_0 = arith.constant 0 : index
    %0 = vector.load %arg2[%c0, %c0_0] : memref<128x1152xbf16, #tpu.memory_space<vmem>>, vector<128x1152xbf16>
    %c0_1 = arith.constant 0 : index
    %c0_2 = arith.constant 0 : index
    %1 = vector.load %arg1[%c0_1, %c0_2] : memref<1152x768xbf16, #tpu.memory_space<vmem>>, vector<1152x768xbf16>
    %cst = arith.constant dense<0.000000e+00> : vector<128x768xf32>
    %2 = tpu.matmul %0, %1, %cst {dimension_numbers = #tpu.dot_dimension_numbers<[1], [0], [0], [1], [0, 0, 1, 1], [], []>} : vector<128x1152xbf16>, vector<1152x768xbf16>, vector<128x768xf32> -> vector<128x768xf32>
    %3 = vector.extract_strided_slice %2 {offsets = [0, 0], sizes = [32, 768], strides = [1, 1]} : vector<128x768xf32> to vector<32x768xf32>
    %4 = vector.extract_strided_slice %2 {offsets = [32, 0], sizes = [32, 768], strides = [1, 1]} : vector<128x768xf32> to vector<32x768xf32>
    %5 = arith.maximumf %3, %4 : vector<32x768xf32>
    %6 = vector.extract_strided_slice %2 {offsets = [64, 0], sizes = [32, 768], strides = [1, 1]} : vector<128x768xf32> to vector<32x768xf32>
    %7 = vector.extract_strided_slice %2 {offsets = [96, 0], sizes = [32, 768], strides = [1, 1]} : vector<128x768xf32> to vector<32x768xf32>
    %8 = arith.maximumf %6, %7 : vector<32x768xf32>
    %9 = arith.maximumf %5, %8 : vector<32x768xf32>
    %c0_3 = arith.constant 0 : index
    %c0_4 = arith.constant 0 : index
    %10 = vector.load %arg3[%c0_3, %c0_4] : memref<32x1xf32, #tpu.memory_space<vmem>>, vector<32x1xf32>
    %11 = vector.broadcast %10 : vector<32x1xf32> to vector<32x768xf32>
    %12 = arith.addf %9, %11 : vector<32x768xf32>
    %cst_5 = arith.constant 0.000000e+00 : f32
    %13 = vector.broadcast %cst_5 : f32 to vector<32x768xf32>
    %14 = arith.maximumf %12, %13 : vector<32x768xf32>
    %15 = arith.truncf %14 : vector<32x768xf32> to vector<32x768xbf16>
    %c0_6 = arith.constant 0 : index
    %c0_7 = arith.constant 0 : index
    %16 = vector.load %arg4[%c0_6, %c0_7] : memref<32x768xbf16, #tpu.memory_space<vmem>>, vector<32x768xbf16>
    tpu.vector_store %arg4[%c0_6, %c0_7], %15 {strides = array<i32>} : memref<32x768xbf16, #tpu.memory_space<vmem>>, vector<32x768xbf16>,
    return
  }
  func.func @transform_0(%arg0: i32) -> (i32, i32) {
    %c0_i32 = arith.constant 0 : i32
    %c0_i32_0 = arith.constant 0 : i32
    return %c0_i32, %arg0 : i32, i32
  }
  func.func @transform_1(%arg0: i32) -> (i32, i32) {
    %c0_i32 = arith.constant 0 : i32
    %c0_i32_0 = arith.constant 0 : i32
    %c0_i32_1 = arith.constant 0 : i32
    return %c0_i32, %c0_i32_0 : i32, i32
  }
  func.func @transform_2(%arg0: i32) -> (i32, i32) {
    %c0_i32 = arith.constant 0 : i32
    %c0_i32_0 = arith.constant 0 : i32
    %c0_i32_1 = arith.constant 0 : i32
    return %c0_i32, %c0_i32_0 : i32, i32
  }
  func.func @transform_3(%arg0: i32) -> (i32, i32) {
    %c0_i32 = arith.constant 0 : i32
    %c0_i32_0 = arith.constant 0 : i32
    return %c0_i32, %arg0 : i32, i32
  }
}

module attributes {stable_mosaic.version = 11 : i64} {
  func.func @_convlayer_kernel(%arg0: i32, %arg1: memref<1152x128xbf16, #tpu.memory_space<vmem>>, %arg2: memref<128x1152xbf16, #tpu.memory_space<vmem>>, %arg3: memref<32x1xf32, #tpu.memory_space<vmem>>, %arg4: memref<32x128xbf16, #tpu.memory_space<vmem>>) attributes {dimension_semantics = [#tpu.dimension_semantics<parallel>], iteration_bounds = array<i64: 1>, scalar_prefetch = 0 : i64, scratch_operands = 0 : i64, tpu.core_type = #tpu.core_type<tc>, window_params = [{transform_indices = @transform_0, window_bounds = array<i64: 1152, 128>}, {pipeline_mode = #tpu.pipeline_mode<synchronous>, transform_indices = @transform_1, window_bounds = array<i64: 128, 1152>}, {pipeline_mode = #tpu.pipeline_mode<synchronous>, transform_indices = @transform_2, window_bounds = array<i64: 32, 1>}, {transform_indices = @transform_3, window_bounds = array<i64: 32, 128>}]} {
    %c0 = arith.constant 0 : index
    %c0_0 = arith.constant 0 : index
    %0 = vector.load %arg2[%c0, %c0_0] : memref<128x1152xbf16, #tpu.memory_space<vmem>>, vector<128x1152xbf16>
    %c0_1 = arith.constant 0 : index
    %c0_2 = arith.constant 0 : index
    %1 = vector.load %arg1[%c0_1, %c0_2] : memref<1152x128xbf16, #tpu.memory_space<vmem>>, vector<1152x128xbf16>
    %cst = arith.constant dense<0.000000e+00> : vector<128x128xf32>
    %2 = tpu.matmul %0, %1, %cst {dimension_numbers = #tpu.dot_dimension_numbers<[1], [0], [0], [1], [0, 0, 1, 1], [], []>} : vector<128x1152xbf16>, vector<1152x128xbf16>, vector<128x128xf32> -> vector<128x128xf32>
    %3 = vector.extract_strided_slice %2 {offsets = [0, 0], sizes = [32, 128], strides = [1, 1]} : vector<128x128xf32> to vector<32x128xf32>
    %4 = vector.extract_strided_slice %2 {offsets = [32, 0], sizes = [32, 128], strides = [1, 1]} : vector<128x128xf32> to vector<32x128xf32>
    %5 = arith.maximumf %3, %4 : vector<32x128xf32>
    %6 = vector.extract_strided_slice %2 {offsets = [64, 0], sizes = [32, 128], strides = [1, 1]} : vector<128x128xf32> to vector<32x128xf32>
    %7 = vector.extract_strided_slice %2 {offsets = [96, 0], sizes = [32, 128], strides = [1, 1]} : vector<128x128xf32> to vector<32x128xf32>
    %8 = arith.maximumf %6, %7 : vector<32x128xf32>
    %9 = arith.maximumf %5, %8 : vector<32x128xf32>
    %c0_3 = arith.constant 0 : index
    %c0_4 = arith.constant 0 : index
    %10 = vector.load %arg3[%c0_3, %c0_4] : memref<32x1xf32, #tpu.memory_space<vmem>>, vector<32x1xf32>
    %11 = vector.broadcast %10 : vector<32x1xf32> to vector<32x128xf32>
    %12 = arith.addf %9, %11 : vector<32x128xf32>
    %cst_5 = arith.constant 0.000000e+00 : f32
    %13 = vector.broadcast %cst_5 : f32 to vector<32x128xf32>
    %14 = arith.maximumf %12, %13 : vector<32x128xf32>
    %15 = arith.truncf %14 : vector<32x128xf32> to vector<32x128xbf16>
    %c0_6 = arith.constant 0 : index
    %c0_7 = arith.constant 0 : index
    %16 = vector.load %arg4[%c0_6, %c0_7] : memref<32x128xbf16, #tpu.memory_space<vmem>>, vector<32x128xbf16>
    tpu.vector_store %arg4[%c0_6, %c0_7], %15 {strides = array<i32>} : memref<32x128xbf16, #tpu.memory_space<vmem>>, vector<32x128xbf16>,
    return
  }
  func.func @transform_0(%arg0: i32) -> (i32, i32) {
    %c0_i32 = arith.constant 0 : i32
    %c0_i32_0 = arith.constant 0 : i32
    return %c0_i32, %arg0 : i32, i32
  }
  func.func @transform_1(%arg0: i32) -> (i32, i32) {
    %c0_i32 = arith.constant 0 : i32
    %c0_i32_0 = arith.constant 0 : i32
    %c0_i32_1 = arith.constant 0 : i32
    return %c0_i32, %c0_i32_0 : i32, i32
  }
  func.func @transform_2(%arg0: i32) -> (i32, i32) {
    %c0_i32 = arith.constant 0 : i32
    %c0_i32_0 = arith.constant 0 : i32
    %c0_i32_1 = arith.constant 0 : i32
    return %c0_i32, %c0_i32_0 : i32, i32
  }
  func.func @transform_3(%arg0: i32) -> (i32, i32) {
    %c0_i32 = arith.constant 0 : i32
    %c0_i32_0 = arith.constant 0 : i32
    return %c0_i32, %arg0 : i32, i32
  }
}

module attributes {stable_mosaic.version = 11 : i64} {
  func.func @_convlayer_kernel(%arg0: i32, %arg1: memref<1152x128xbf16, #tpu.memory_space<vmem>>, %arg2: memref<128x1152xbf16, #tpu.memory_space<vmem>>, %arg3: memref<32x1xf32, #tpu.memory_space<vmem>>, %arg4: memref<32x128xf32, #tpu.memory_space<vmem>>) attributes {dimension_semantics = [#tpu.dimension_semantics<parallel>], iteration_bounds = array<i64: 1>, scalar_prefetch = 0 : i64, scratch_operands = 0 : i64, tpu.core_type = #tpu.core_type<tc>, window_params = [{transform_indices = @transform_0, window_bounds = array<i64: 1152, 128>}, {pipeline_mode = #tpu.pipeline_mode<synchronous>, transform_indices = @transform_1, window_bounds = array<i64: 128, 1152>}, {pipeline_mode = #tpu.pipeline_mode<synchronous>, transform_indices = @transform_2, window_bounds = array<i64: 32, 1>}, {transform_indices = @transform_3, window_bounds = array<i64: 32, 128>}]} {
    %c0 = arith.constant 0 : index
    %c0_0 = arith.constant 0 : index
    %0 = vector.load %arg2[%c0, %c0_0] : memref<128x1152xbf16, #tpu.memory_space<vmem>>, vector<128x1152xbf16>
    %c0_1 = arith.constant 0 : index
    %c0_2 = arith.constant 0 : index
    %1 = vector.load %arg1[%c0_1, %c0_2] : memref<1152x128xbf16, #tpu.memory_space<vmem>>, vector<1152x128xbf16>
    %cst = arith.constant dense<0.000000e+00> : vector<128x128xf32>
    %2 = tpu.matmul %0, %1, %cst {dimension_numbers = #tpu.dot_dimension_numbers<[1], [0], [0], [1], [0, 0, 1, 1], [], []>} : vector<128x1152xbf16>, vector<1152x128xbf16>, vector<128x128xf32> -> vector<128x128xf32>
    %3 = vector.extract_strided_slice %2 {offsets = [0, 0], sizes = [32, 128], strides = [1, 1]} : vector<128x128xf32> to vector<32x128xf32>
    %4 = vector.extract_strided_slice %2 {offsets = [32, 0], sizes = [32, 128], strides = [1, 1]} : vector<128x128xf32> to vector<32x128xf32>
    %5 = arith.maximumf %3, %4 : vector<32x128xf32>
    %6 = vector.extract_strided_slice %2 {offsets = [64, 0], sizes = [32, 128], strides = [1, 1]} : vector<128x128xf32> to vector<32x128xf32>
    %7 = vector.extract_strided_slice %2 {offsets = [96, 0], sizes = [32, 128], strides = [1, 1]} : vector<128x128xf32> to vector<32x128xf32>
    %8 = arith.maximumf %6, %7 : vector<32x128xf32>
    %9 = arith.maximumf %5, %8 : vector<32x128xf32>
    %c0_3 = arith.constant 0 : index
    %c0_4 = arith.constant 0 : index
    %10 = vector.load %arg3[%c0_3, %c0_4] : memref<32x1xf32, #tpu.memory_space<vmem>>, vector<32x1xf32>
    %11 = vector.broadcast %10 : vector<32x1xf32> to vector<32x128xf32>
    %12 = arith.addf %9, %11 : vector<32x128xf32>
    %cst_5 = arith.constant 0.000000e+00 : f32
    %13 = vector.broadcast %cst_5 : f32 to vector<32x128xf32>
    %14 = arith.maximumf %12, %13 : vector<32x128xf32>
    %c0_6 = arith.constant 0 : index
    %c0_7 = arith.constant 0 : index
    %15 = vector.load %arg4[%c0_6, %c0_7] : memref<32x128xf32, #tpu.memory_space<vmem>>, vector<32x128xf32>
    tpu.vector_store %arg4[%c0_6, %c0_7], %14 {strides = array<i32>} : memref<32x128xf32, #tpu.memory_space<vmem>>, vector<32x128xf32>,
    return
  }
  func.func @transform_0(%arg0: i32) -> (i32, i32) {
    %c0_i32 = arith.constant 0 : i32
    %c0_i32_0 = arith.constant 0 : i32
    return %c0_i32, %arg0 : i32, i32
  }
  func.func @transform_1(%arg0: i32) -> (i32, i32) {
    %c0_i32 = arith.constant 0 : i32
    %c0_i32_0 = arith.constant 0 : i32
    %c0_i32_1 = arith.constant 0 : i32
    return %c0_i32, %c0_i32_0 : i32, i32
  }
  func.func @transform_2(%arg0: i32) -> (i32, i32) {
    %c0_i32 = arith.constant 0 : i32
    %c0_i32_0 = arith.constant 0 : i32
    %c0_i32_1 = arith.constant 0 : i32
    return %c0_i32, %c0_i32_0 : i32, i32
  }
  func.func @transform_3(%arg0: i32) -> (i32, i32) {
    %c0_i32 = arith.constant 0 : i32
    %c0_i32_0 = arith.constant 0 : i32
    return %c0_i32, %arg0 : i32, i32
  }
}

</mosaic_0001>

<llo_original>
// kernel: client_model_forward.4
$region0: #{client_model_forward.4}
  #allocation0 [shape = 'u32[]', space=smem, size = 0x4, offset = 0x4, fixed_abs, tag = 'smem constant byte address 0x4 - core index']
  #allocation1 [shape = 'u32[72,128]{1,0:T(1,128)}', space=vmem, size = 0x9000, scoped, tag = 'internal scratch']
  %s0 = inlined_call_operand.vmem [shape: bf16[108,3456], index: 0, kind: input, shape index: {}]
  %s1 = inlined_call_operand.vmem [shape: bf16[128,108], index: 1, kind: input, shape index: {}]
  %s2 = inlined_call_operand.vmem [shape: f32[32,1], index: 2, kind: input, shape index: {}]
  %s3 = inlined_call_operand.vmem [shape: bf16[32,3456], index: 3, kind: output, shape index: {}]
  %s4 = sld [smem:[#allocation0]]
  $region22: #{client_model_forward.4} parent=0
    _
  %s6 = ssub.s32 1, %s4
  %s7 = scalar_select 0, %s6, %s4
  // Predicated region
  $region2: #{client_model_forward.4} parent=0 // pred_check
    _
  $region3: #{client_model_forward.4} parent=0 // pred_check_branch
    %9 = sbr.rel (0) target = $region5
  $region4: #{client_model_forward.4} parent=0 // pred_region
    _
  $region5: #{client_model_forward.4} parent=0 // pred_fallthru
    _
  // Predicated region
  $region6: #{client_model_forward.4} parent=0 // pred_check
    _
  $region7: #{client_model_forward.4} parent=0 // pred_check_branch
    %11 = sbr.rel (0) target = $region9
  $region8: #{client_model_forward.4} parent=0 // pred_region
    _
  $region9: #{client_model_forward.4} parent=0 // pred_fallthru
    _
  // Predicated region
  $region10: #{client_model_forward.4} parent=0 // pred_check
    _
  $region11: #{client_model_forward.4} parent=0 // pred_check_branch
    %13 = sbr.rel (0) target = $region13
  $region12: #{client_model_forward.4} parent=0 // pred_region
    _
  $region13: #{client_model_forward.4} parent=0 // pred_fallthru
    _
  %v15 = vld [vmem:[%s1] sm:$0xf]
  %v16 = vld [vmem:[%s1 + $0x4] sm:$0xf]
  %v17 = vld [vmem:[%s1 + $0x8] sm:$0xf]
  %v18 = vld [vmem:[%s1 + $0xc] sm:$0xf]
  %v19 = vld [vmem:[%s1 + $0x10] sm:$0xf]
  %v20 = vld [vmem:[%s1 + $0x14] sm:$0xf]
  %v21 = vld [vmem:[%s1 + $0x18] sm:$0xf]
  %v22 = vld [vmem:[%s1 + $0x1c] sm:$0xf]
  %v23 = vld [vmem:[%s1 + $0x20] sm:$0xf]
  %v24 = vld [vmem:[%s1 + $0x24] sm:$0xf]
  %v25 = vld [vmem:[%s1 + $0x28] sm:$0xf]
  %v26 = vld [vmem:[%s1 + $0x2c] sm:$0xf]
  %v27 = vld [vmem:[%s1 + $0x30] sm:$0xf]
  %v28 = vld [vmem:[%s1 + $0x34] sm:$0xf]
  %v29 = vld [vmem:[%s1 + $0x38] sm:$0xf]
  %v30 = vld [vmem:[%s1 + $0x3c] sm:$0xf]
  %v31 = vld [vmem:[%s0] sm:$0xff]
  %v32 = vld [vmem:[%s0 + $0x8] sm:$0xff]
  %v33 = vld [vmem:[%s0 + $0x10] sm:$0xff]
  %v34 = vld [vmem:[%s0 + $0x18] sm:$0xff]
  %v35 = vld [vmem:[%s0 + $0x20] sm:$0xff]
  %v36 = vld [vmem:[%s0 + $0x28] sm:$0xff]
  %v37 = vld [vmem:[%s0 + $0x30] sm:$0xff]
  %v38 = vld [vmem:[%s0 + $0x38] sm:$0xff]
  %v39 = vld [vmem:[%s0 + $0x40] sm:$0xff]
  %v40 = vld [vmem:[%s0 + $0x48] sm:$0xff]
  %v41 = vld [vmem:[%s0 + $0x50] sm:$0xff]
  %v42 = vld [vmem:[%s0 + $0x58] sm:$0xff]
  %v43 = vld [vmem:[%s0 + $0x60] sm:$0xff]
  %v44 = vld [vmem:[%s0 + $0x68] sm:$0xf]
  %v45 = vld [vmem:[%s0 + $0x6c] sm:$0xff]
  %v46 = vld [vmem:[%s0 + $0x74] sm:$0xff]
  %v47 = vld [vmem:[%s0 + $0x7c] sm:$0xff]
  %v48 = vld [vmem:[%s0 + $0x84] sm:$0xff]
  %v49 = vld [vmem:[%s0 + $0x8c] sm:$0xff]
  %v50 = vld [vmem:[%s0 + $0x94] sm:$0xff]
  %v51 = vld [vmem:[%s0 + $0x9c] sm:$0xff]
  %v52 = vld [vmem:[%s0 + $0xa4] sm:$0xff]
  %v53 = vld [vmem:[%s0 + $0xac] sm:$0xff]
  %v54 = vld [vmem:[%s0 + $0xb4] sm:$0xff]
  %v55 = vld [vmem:[%s0 + $0xbc] sm:$0xff]
  %v56 = vld [vmem:[%s0 + $0xc4] sm:$0xff]
  %v57 = vld [vmem:[%s0 + $0xcc] sm:$0xff]
  %v58 = vld [vmem:[%s0 + $0xd4] sm:$0xf]
  %v59 = vld [vmem:[%s0 + $0xd8] sm:$0xff]
  %v60 = vld [vmem:[%s0 + $0xe0] sm:$0xff]
  %v61 = vld [vmem:[%s0 + $0xe8] sm:$0xff]
  %v62 = vld [vmem:[%s0 + $0xf0] sm:$0xff]
  %v63 = vld [vmem:[%s0 + $0xf8] sm:$0xff]
  %v64 = vld [vmem:[%s0 + $0x100] sm:$0xff]
  %v65 = vld [vmem:[%s0 + $0x108] sm:$0xff]
  %v66 = vld [vmem:[%s0 + $0x110] sm:$0xff]
  %v67 = vld [vmem:[%s0 + $0x118] sm:$0xff]
  %v68 = vld [vmem:[%s0 + $0x120] sm:$0xff]
  %v69 = vld [vmem:[%s0 + $0x128] sm:$0xff]
  %v70 = vld [vmem:[%s0 + $0x130] sm:$0xff]
  %v71 = vld [vmem:[%s0 + $0x138] sm:$0xff]
  %v72 = vld [vmem:[%s0 + $0x140] sm:$0xf]
  %v73 = vld [vmem:[%s0 + $0x144] sm:$0xff]
  %v74 = vld [vmem:[%s0 + $0x14c] sm:$0xff]
  %v75 = vld [vmem:[%s0 + $0x154] sm:$0xff]
  %v76 = vld [vmem:[%s0 + $0x15c] sm:$0xff]
  %v77 = vld [vmem:[%s0 + $0x164] sm:$0xff]
  %v78 = vld [vmem:[%s0 + $0x16c] sm:$0xff]
  %v79 = vld [vmem:[%s0 + $0x174] sm:$0xff]
  %v80 = vld [vmem:[%s0 + $0x17c] sm:$0xff]
  %v81 = vld [vmem:[%s0 + $0x184] sm:$0xff]
  %v82 = vld [vmem:[%s0 + $0x18c] sm:$0xff]
  %v83 = vld [vmem:[%s0 + $0x194] sm:$0xff]
  %v84 = vld [vmem:[%s0 + $0x19c] sm:$0xff]
  %v85 = vld [vmem:[%s0 + $0x1a4] sm:$0xff]
  %v86 = vld [vmem:[%s0 + $0x1ac] sm:$0xf]
  %v87 = vld [vmem:[%s0 + $0x1b0] sm:$0xff]
  %v88 = vld [vmem:[%s0 + $0x1b8] sm:$0xff]
  %v89 = vld [vmem:[%s0 + $0x1c0] sm:$0xff]
  %v90 = vld [vmem:[%s0 + $0x1c8] sm:$0xff]
  %v91 = vld [vmem:[%s0 + $0x1d0] sm:$0xff]
  %v92 = vld [vmem:[%s0 + $0x1d8] sm:$0xff]
  %v93 = vld [vmem:[%s0 + $0x1e0] sm:$0xff]
  %v94 = vld [vmem:[%s0 + $0x1e8] sm:$0xff]
  %v95 = vld [vmem:[%s0 + $0x1f0] sm:$0xff]
  %v96 = vld [vmem:[%s0 + $0x1f8] sm:$0xff]
  %v97 = vld [vmem:[%s0 + $0x200] sm:$0xff]
  %v98 = vld [vmem:[%s0 + $0x208] sm:$0xff]
  %v99 = vld [vmem:[%s0 + $0x210] sm:$0xff]
  %v100 = vld [vmem:[%s0 + $0x218] sm:$0xf]
  %v101 = vld [vmem:[%s0 + $0x21c] sm:$0xff]
  %v102 = vld [vmem:[%s0 + $0x224] sm:$0xff]
  %v103 = vld [vmem:[%s0 + $0x22c] sm:$0xff]
  %v104 = vld [vmem:[%s0 + $0x234] sm:$0xff]
  %v105 = vld [vmem:[%s0 + $0x23c] sm:$0xff]
  %v106 = vld [vmem:[%s0 + $0x244] sm:$0xff]
  %v107 = vld [vmem:[%s0 + $0x24c] sm:$0xff]
  %v108 = vld [vmem:[%s0 + $0x254] sm:$0xff]
  %v109 = vld [vmem:[%s0 + $0x25c] sm:$0xff]
  %v110 = vld [vmem:[%s0 + $0x264] sm:$0xff]
  %v111 = vld [vmem:[%s0 + $0x26c] sm:$0xff]
  %v112 = vld [vmem:[%s0 + $0x274] sm:$0xff]
  %v113 = vld [vmem:[%s0 + $0x27c] sm:$0xff]
  %v114 = vld [vmem:[%s0 + $0x284] sm:$0xf]
  %v115 = vld [vmem:[%s0 + $0x288] sm:$0xff]
  %v116 = vld [vmem:[%s0 + $0x290] sm:$0xff]
  %v117 = vld [vmem:[%s0 + $0x298] sm:$0xff]
  %v118 = vld [vmem:[%s0 + $0x2a0] sm:$0xff]
  %v119 = vld [vmem:[%s0 + $0x2a8] sm:$0xff]
  %v120 = vld [vmem:[%s0 + $0x2b0] sm:$0xff]
  %v121 = vld [vmem:[%s0 + $0x2b8] sm:$0xff]
  %v122 = vld [vmem:[%s0 + $0x2c0] sm:$0xff]
  %v123 = vld [vmem:[%s0 + $0x2c8] sm:$0xff]
  %v124 = vld [vmem:[%s0 + $0x2d0] sm:$0xff]
  %v125 = vld [vmem:[%s0 + $0x2d8] sm:$0xff]
  %v126 = vld [vmem:[%s0 + $0x2e0] sm:$0xff]
  %v127 = vld [vmem:[%s0 + $0x2e8] sm:$0xff]
  %v128 = vld [vmem:[%s0 + $0x2f0] sm:$0xf]
  %v129 = vld [vmem:[%s0 + $0x2f4] sm:$0xff]
  %v130 = vld [vmem:[%s0 + $0x2fc] sm:$0xff]
  %v131 = vld [vmem:[%s0 + $0x304] sm:$0xff]
  %v132 = vld [vmem:[%s0 + $0x30c] sm:$0xff]
  %v133 = vld [vmem:[%s0 + $0x314] sm:$0xff]
  %v134 = vld [vmem:[%s0 + $0x31c] sm:$0xff]
  %v135 = vld [vmem:[%s0 + $0x324] sm:$0xff]
  %v136 = vld [vmem:[%s0 + $0x32c] sm:$0xff]
  %v137 = vld [vmem:[%s0 + $0x334] sm:$0xff]
  %v138 = vld [vmem:[%s0 + $0x33c] sm:$0xff]
  %v139 = vld [vmem:[%s0 + $0x344] sm:$0xff]
  %v140 = vld [vmem:[%s0 + $0x34c] sm:$0xff]
  %v141 = vld [vmem:[%s0 + $0x354] sm:$0xff]
  %v142 = vld [vmem:[%s0 + $0x35c] sm:$0xf]
  %v143 = vld [vmem:[%s0 + $0x360] sm:$0xff]
  %v144 = vld [vmem:[%s0 + $0x368] sm:$0xff]
  %v145 = vld [vmem:[%s0 + $0x370] sm:$0xff]
  %v146 = vld [vmem:[%s0 + $0x378] sm:$0xff]
  %v147 = vld [vmem:[%s0 + $0x380] sm:$0xff]
  %v148 = vld [vmem:[%s0 + $0x388] sm:$0xff]
  %v149 = vld [vmem:[%s0 + $0x390] sm:$0xff]
  %v150 = vld [vmem:[%s0 + $0x398] sm:$0xff]
  %v151 = vld [vmem:[%s0 + $0x3a0] sm:$0xff]
  %v152 = vld [vmem:[%s0 + $0x3a8] sm:$0xff]
  %v153 = vld [vmem:[%s0 + $0x3b0] sm:$0xff]
  %v154 = vld [vmem:[%s0 + $0x3b8] sm:$0xff]
  %v155 = vld [vmem:[%s0 + $0x3c0] sm:$0xff]
  %v156 = vld [vmem:[%s0 + $0x3c8] sm:$0xf]
  %v157 = vld [vmem:[%s0 + $0x3cc] sm:$0xff]
  %v158 = vld [vmem:[%s0 + $0x3d4] sm:$0xff]
  %v159 = vld [vmem:[%s0 + $0x3dc] sm:$0xff]
  %v160 = vld [vmem:[%s0 + $0x3e4] sm:$0xff]
  %v161 = vld [vmem:[%s0 + $0x3ec] sm:$0xff]
  %v162 = vld [vmem:[%s0 + $0x3f4] sm:$0xff]
  %v163 = vld [vmem:[%s0 + $0x3fc] sm:$0xff]
  %v164 = vld [vmem:[%s0 + $0x404] sm:$0xff]
  %v165 = vld [vmem:[%s0 + $0x40c] sm:$0xff]
  %v166 = vld [vmem:[%s0 + $0x414] sm:$0xff]
  %v167 = vld [vmem:[%s0 + $0x41c] sm:$0xff]
  %v168 = vld [vmem:[%s0 + $0x424] sm:$0xff]
  %v169 = vld [vmem:[%s0 + $0x42c] sm:$0xff]
  %v170 = vld [vmem:[%s0 + $0x434] sm:$0xf]
  %v171 = vld [vmem:[%s0 + $0x438] sm:$0xff]
  %v172 = vld [vmem:[%s0 + $0x440] sm:$0xff]
  %v173 = vld [vmem:[%s0 + $0x448] sm:$0xff]
  %v174 = vld [vmem:[%s0 + $0x450] sm:$0xff]
  %v175 = vld [vmem:[%s0 + $0x458] sm:$0xff]
  %v176 = vld [vmem:[%s0 + $0x460] sm:$0xff]
  %v177 = vld [vmem:[%s0 + $0x468] sm:$0xff]
  %v178 = vld [vmem:[%s0 + $0x470] sm:$0xff]
  %v179 = vld [vmem:[%s0 + $0x478] sm:$0xff]
  %v180 = vld [vmem:[%s0 + $0x480] sm:$0xff]
  %v181 = vld [vmem:[%s0 + $0x488] sm:$0xff]
  %v182 = vld [vmem:[%s0 + $0x490] sm:$0xff]
  %v183 = vld [vmem:[%s0 + $0x498] sm:$0xff]
  %v184 = vld [vmem:[%s0 + $0x4a0] sm:$0xf]
  %v185 = vld [vmem:[%s0 + $0x4a4] sm:$0xff]
  %v186 = vld [vmem:[%s0 + $0x4ac] sm:$0xff]
  %v187 = vld [vmem:[%s0 + $0x4b4] sm:$0xff]
  %v188 = vld [vmem:[%s0 + $0x4bc] sm:$0xff]
  %v189 = vld [vmem:[%s0 + $0x4c4] sm:$0xff]
  %v190 = vld [vmem:[%s0 + $0x4cc] sm:$0xff]
  %v191 = vld [vmem:[%s0 + $0x4d4] sm:$0xff]
  %v192 = vld [vmem:[%s0 + $0x4dc] sm:$0xff]
  %v193 = vld [vmem:[%s0 + $0x4e4] sm:$0xff]
  %v194 = vld [vmem:[%s0 + $0x4ec] sm:$0xff]
  %v195 = vld [vmem:[%s0 + $0x4f4] sm:$0xff]
  %v196 = vld [vmem:[%s0 + $0x4fc] sm:$0xff]
  %v197 = vld [vmem:[%s0 + $0x504] sm:$0xff]
  %v198 = vld [vmem:[%s0 + $0x50c] sm:$0xf]
  %v199 = vld [vmem:[%s0 + $0x510] sm:$0xff]
  %v200 = vld [vmem:[%s0 + $0x518] sm:$0xff]
  %v201 = vld [vmem:[%s0 + $0x520] sm:$0xff]
  %v202 = vld [vmem:[%s0 + $0x528] sm:$0xff]
  %v203 = vld [vmem:[%s0 + $0x530] sm:$0xff]
  %v204 = vld [vmem:[%s0 + $0x538] sm:$0xff]
  %v205 = vld [vmem:[%s0 + $0x540] sm:$0xff]
  %v206 = vld [vmem:[%s0 + $0x548] sm:$0xff]
  %v207 = vld [vmem:[%s0 + $0x550] sm:$0xff]
  %v208 = vld [vmem:[%s0 + $0x558] sm:$0xff]
  %v209 = vld [vmem:[%s0 + $0x560] sm:$0xff]
  %v210 = vld [vmem:[%s0 + $0x568] sm:$0xff]
  %v211 = vld [vmem:[%s0 + $0x570] sm:$0xff]
  %v212 = vld [vmem:[%s0 + $0x578] sm:$0xf]
  %v213 = vld [vmem:[%s0 + $0x57c] sm:$0x33]
  %v214 = vld [vmem:[%s0 + $0x584] sm:$0x33]
  %v215 = vld [vmem:[%s0 + $0x58c] sm:$0x33]
  %v216 = vld [vmem:[%s0 + $0x594] sm:$0x33]
  %v217 = vld [vmem:[%s0 + $0x59c] sm:$0x33]
  %v218 = vld [vmem:[%s0 + $0x5a4] sm:$0x33]
  %v219 = vld [vmem:[%s0 + $0x5ac] sm:$0x33]
  %v220 = vld [vmem:[%s0 + $0x5b4] sm:$0x33]
  %v221 = vld [vmem:[%s0 + $0x5bc] sm:$0x33]
  %v222 = vld [vmem:[%s0 + $0x5c4] sm:$0x33]
  %v223 = vld [vmem:[%s0 + $0x5cc] sm:$0x33]
  %v224 = vld [vmem:[%s0 + $0x5d4] sm:$0x33]
  %v225 = vld [vmem:[%s0 + $0x5dc] sm:$0x33]
  %v226 = vld [vmem:[%s0 + $0x5e4] sm:$0x3]
  %v243 = vunpack.c.l.b16 %v15
  %v244 = vunpack.c.l.b16 %v16
  %v245 = vunpack.c.l.b16 %v17
  %v246 = vunpack.c.l.b16 %v18
  %v247 = vunpack.c.l.b16 %v19
  %v248 = vunpack.c.l.b16 %v20
  %v249 = vunpack.c.l.b16 %v21
  %v250 = vunpack.c.l.b16 %v22
  %v251 = vunpack.c.l.b16 %v23
  %v252 = vunpack.c.l.b16 %v24
  %v253 = vunpack.c.l.b16 %v25
  %v254 = vunpack.c.l.b16 %v26
  %v255 = vunpack.c.l.b16 %v27
  %v256 = vunpack.c.l.b16 %v28
  %v257 = vunpack.c.l.b16 %v29
  %v258 = vunpack.c.l.b16 %v30
  %v259 = vpack.c.b16 %v244, %v243
  %v260 = vpack.c.b16 %v246, %v245
  %v261 = vpack.c.b16 %v248, %v247
  %v262 = vpack.c.b16 %v250, %v249
  %v263 = vpack.c.b16 %v252, %v251
  %v264 = vpack.c.b16 %v254, %v253
  %v265 = vpack.c.b16 %v256, %v255
  %v266 = vpack.c.b16 %v258, %v257
  %v463 = vunpack.c.l.b16 %v31
  %v464 = vunpack.c.h.b16 %v31
  %v465 = vunpack.c.l.b16 %v32
  %v466 = vunpack.c.h.b16 %v32
  %v467 = vunpack.c.l.b16 %v33
  %v468 = vunpack.c.h.b16 %v33
  %v469 = vunpack.c.l.b16 %v34
  %v470 = vunpack.c.h.b16 %v34
  %v471 = vunpack.c.l.b16 %v35
  %v472 = vunpack.c.h.b16 %v35
  %v473 = vunpack.c.l.b16 %v36
  %v474 = vunpack.c.h.b16 %v36
  %v475 = vunpack.c.l.b16 %v37
  %v476 = vunpack.c.h.b16 %v37
  %v477 = vunpack.c.l.b16 %v38
  %v478 = vunpack.c.h.b16 %v38
  %v479 = vunpack.c.l.b16 %v39
  %v480 = vunpack.c.h.b16 %v39
  %v481 = vunpack.c.l.b16 %v40
  %v482 = vunpack.c.h.b16 %v40
  %v483 = vunpack.c.l.b16 %v41
  %v484 = vunpack.c.h.b16 %v41
  %v485 = vunpack.c.l.b16 %v42
  %v486 = vunpack.c.h.b16 %v42
  %v487 = vunpack.c.l.b16 %v43
  %v488 = vunpack.c.h.b16 %v43
  %v489 = vunpack.c.l.b16 %v44
  %v490 = vunpack.c.l.b16 %v45
  %v491 = vunpack.c.h.b16 %v45
  %v492 = vunpack.c.l.b16 %v46
  %v493 = vunpack.c.h.b16 %v46
  %v494 = vunpack.c.l.b16 %v47
  %v495 = vunpack.c.h.b16 %v47
  %v496 = vunpack.c.l.b16 %v48
  %v497 = vunpack.c.h.b16 %v48
  %v498 = vunpack.c.l.b16 %v49
  %v499 = vunpack.c.h.b16 %v49
  %v500 = vunpack.c.l.b16 %v50
  %v501 = vunpack.c.h.b16 %v50
  %v502 = vunpack.c.l.b16 %v51
  %v503 = vunpack.c.h.b16 %v51
  %v504 = vunpack.c.l.b16 %v52
  %v505 = vunpack.c.h.b16 %v52
  %v506 = vunpack.c.l.b16 %v53
  %v507 = vunpack.c.h.b16 %v53
  %v508 = vunpack.c.l.b16 %v54
  %v509 = vunpack.c.h.b16 %v54
  %v510 = vunpack.c.l.b16 %v55
  %v511 = vunpack.c.h.b16 %v55
  %v512 = vunpack.c.l.b16 %v56
  %v513 = vunpack.c.h.b16 %v56
  %v514 = vunpack.c.l.b16 %v57
  %v515 = vunpack.c.h.b16 %v57
  %v516 = vunpack.c.l.b16 %v58
  %v517 = vunpack.c.l.b16 %v59
  %v518 = vunpack.c.h.b16 %v59
  %v519 = vunpack.c.l.b16 %v60
  %v520 = vunpack.c.h.b16 %v60
  %v521 = vunpack.c.l.b16 %v61
  %v522 = vunpack.c.h.b16 %v61
  %v523 = vunpack.c.l.b16 %v62
  %v524 = vunpack.c.h.b16 %v62
  %v525 = vunpack.c.l.b16 %v63
  %v526 = vunpack.c.h.b16 %v63
  %v527 = vunpack.c.l.b16 %v64
  %v528 = vunpack.c.h.b16 %v64
  %v529 = vunpack.c.l.b16 %v65
  %v530 = vunpack.c.h.b16 %v65
  %v531 = vunpack.c.l.b16 %v66
  %v532 = vunpack.c.h.b16 %v66
  %v533 = vunpack.c.l.b16 %v67
  %v534 = vunpack.c.h.b16 %v67
  %v535 = vunpack.c.l.b16 %v68
  %v536 = vunpack.c.h.b16 %v68
  %v537 = vunpack.c.l.b16 %v69
  %v538 = vunpack.c.h.b16 %v69
  %v539 = vunpack.c.l.b16 %v70
  %v540 = vunpack.c.h.b16 %v70
  %v541 = vunpack.c.l.b16 %v71
  %v542 = vunpack.c.h.b16 %v71
  %v543 = vunpack.c.l.b16 %v72
  %v544 = vunpack.c.l.b16 %v73
  %v545 = vunpack.c.h.b16 %v73
  %v546 = vunpack.c.l.b16 %v74
  %v547 = vunpack.c.h.b16 %v74
  %v548 = vunpack.c.l.b16 %v75
  %v549 = vunpack.c.h.b16 %v75
  %v550 = vunpack.c.l.b16 %v76
  %v551 = vunpack.c.h.b16 %v76
  %v552 = vunpack.c.l.b16 %v77
  %v553 = vunpack.c.h.b16 %v77
  %v554 = vunpack.c.l.b16 %v78
  %v555 = vunpack.c.h.b16 %v78
  %v556 = vunpack.c.l.b16 %v79
  %v557 = vunpack.c.h.b16 %v79
  %v558 = vunpack.c.l.b16 %v80
  %v559 = vunpack.c.h.b16 %v80
  %v560 = vunpack.c.l.b16 %v81
  %v561 = vunpack.c.h.b16 %v81
  %v562 = vunpack.c.l.b16 %v82
  %v563 = vunpack.c.h.b16 %v82
  %v564 = vunpack.c.l.b16 %v83
  %v565 = vunpack.c.h.b16 %v83
  %v566 = vunpack.c.l.b16 %v84
  %v567 = vunpack.c.h.b16 %v84
  %v568 = vunpack.c.l.b16 %v85
  %v569 = vunpack.c.h.b16 %v85
  %v570 = vunpack.c.l.b16 %v86
  %v571 = vunpack.c.l.b16 %v87
  %v572 = vunpack.c.h.b16 %v87
  %v573 = vunpack.c.l.b16 %v88
  %v574 = vunpack.c.h.b16 %v88
  %v575 = vunpack.c.l.b16 %v89
  %v576 = vunpack.c.h.b16 %v89
  %v577 = vunpack.c.l.b16 %v90
  %v578 = vunpack.c.h.b16 %v90
  %v579 = vunpack.c.l.b16 %v91
  %v580 = vunpack.c.h.b16 %v91
  %v581 = vunpack.c.l.b16 %v92
  %v582 = vunpack.c.h.b16 %v92
  %v583 = vunpack.c.l.b16 %v93
  %v584 = vunpack.c.h.b16 %v93
  %v585 = vunpack.c.l.b16 %v94
  %v586 = vunpack.c.h.b16 %v94
  %v587 = vunpack.c.l.b16 %v95
  %v588 = vunpack.c.h.b16 %v95
  %v589 = vunpack.c.l.b16 %v96
  %v590 = vunpack.c.h.b16 %v96
  %v591 = vunpack.c.l.b16 %v97
  %v592 = vunpack.c.h.b16 %v97
  %v593 = vunpack.c.l.b16 %v98
  %v594 = vunpack.c.h.b16 %v98
  %v595 = vunpack.c.l.b16 %v99
  %v596 = vunpack.c.h.b16 %v99
  %v597 = vunpack.c.l.b16 %v100
  %v598 = vunpack.c.l.b16 %v101
  %v599 = vunpack.c.h.b16 %v101
  %v600 = vunpack.c.l.b16 %v102
  %v601 = vunpack.c.h.b16 %v102
  %v602 = vunpack.c.l.b16 %v103
  %v603 = vunpack.c.h.b16 %v103
  %v604 = vunpack.c.l.b16 %v104
  %v605 = vunpack.c.h.b16 %v104
  %v606 = vunpack.c.l.b16 %v105
  %v607 = vunpack.c.h.b16 %v105
  %v608 = vunpack.c.l.b16 %v106
  %v609 = vunpack.c.h.b16 %v106
  %v610 = vunpack.c.l.b16 %v107
  %v611 = vunpack.c.h.b16 %v107
  %v612 = vunpack.c.l.b16 %v108
  %v613 = vunpack.c.h.b16 %v108
  %v614 = vunpack.c.l.b16 %v109
  %v615 = vunpack.c.h.b16 %v109
  %v616 = vunpack.c.l.b16 %v110
  %v617 = vunpack.c.h.b16 %v110
  %v618 = vunpack.c.l.b16 %v111
  %v619 = vunpack.c.h.b16 %v111
  %v620 = vunpack.c.l.b16 %v112
  %v621 = vunpack.c.h.b16 %v112
  %v622 = vunpack.c.l.b16 %v113
  %v623 = vunpack.c.h.b16 %v113
  %v624 = vunpack.c.l.b16 %v114
  %v625 = vunpack.c.l.b16 %v115
  %v626 = vunpack.c.h.b16 %v115
  %v627 = vunpack.c.l.b16 %v116
  %v628 = vunpack.c.h.b16 %v116
  %v629 = vunpack.c.l.b16 %v117
  %v630 = vunpack.c.h.b16 %v117
  %v631 = vunpack.c.l.b16 %v118
  %v632 = vunpack.c.h.b16 %v118
  %v633 = vunpack.c.l.b16 %v119
  %v634 = vunpack.c.h.b16 %v119
  %v635 = vunpack.c.l.b16 %v120
  %v636 = vunpack.c.h.b16 %v120
  %v637 = vunpack.c.l.b16 %v121
  %v638 = vunpack.c.h.b16 %v121
  %v639 = vunpack.c.l.b16 %v122
  %v640 = vunpack.c.h.b16 %v122
  %v641 = vunpack.c.l.b16 %v123
  %v642 = vunpack.c.h.b16 %v123
  %v643 = vunpack.c.l.b16 %v124
  %v644 = vunpack.c.h.b16 %v124
  %v645 = vunpack.c.l.b16 %v125
  %v646 = vunpack.c.h.b16 %v125
  %v647 = vunpack.c.l.b16 %v126
  %v648 = vunpack.c.h.b16 %v126
  %v649 = vunpack.c.l.b16 %v127
  %v650 = vunpack.c.h.b16 %v127
  %v651 = vunpack.c.l.b16 %v128
  %v652 = vunpack.c.l.b16 %v129
  %v653 = vunpack.c.h.b16 %v129
  %v654 = vunpack.c.l.b16 %v130
  %v655 = vunpack.c.h.b16 %v130
  %v656 = vunpack.c.l.b16 %v131
  %v657 = vunpack.c.h.b16 %v131
  %v658 = vunpack.c.l.b16 %v132
  %v659 = vunpack.c.h.b16 %v132
  %v660 = vunpack.c.l.b16 %v133
  %v661 = vunpack.c.h.b16 %v133
  %v662 = vunpack.c.l.b16 %v134
  %v663 = vunpack.c.h.b16 %v134
  %v664 = vunpack.c.l.b16 %v135
  %v665 = vunpack.c.h.b16 %v135
  %v666 = vunpack.c.l.b16 %v136
  %v667 = vunpack.c.h.b16 %v136
  %v668 = vunpack.c.l.b16 %v137
  %v669 = vunpack.c.h.b16 %v137
  %v670 = vunpack.c.l.b16 %v138
  %v671 = vunpack.c.h.b16 %v138
  %v672 = vunpack.c.l.b16 %v139
  %v673 = vunpack.c.h.b16 %v139
  %v674 = vunpack.c.l.b16 %v140
  %v675 = vunpack.c.h.b16 %v140
  %v676 = vunpack.c.l.b16 %v141
  %v677 = vunpack.c.h.b16 %v141
  %v678 = vunpack.c.l.b16 %v142
  %v679 = vunpack.c.l.b16 %v143
  %v680 = vunpack.c.h.b16 %v143
  %v681 = vunpack.c.l.b16 %v144
  %v682 = vunpack.c.h.b16 %v144
  %v683 = vunpack.c.l.b16 %v145
  %v684 = vunpack.c.h.b16 %v145
  %v685 = vunpack.c.l.b16 %v146
  %v686 = vunpack.c.h.b16 %v146
  %v687 = vunpack.c.l.b16 %v147
  %v688 = vunpack.c.h.b16 %v147
  %v689 = vunpack.c.l.b16 %v148
  %v690 = vunpack.c.h.b16 %v148
  %v691 = vunpack.c.l.b16 %v149
  %v692 = vunpack.c.h.b16 %v149
  %v693 = vunpack.c.l.b16 %v150
  %v694 = vunpack.c.h.b16 %v150
  %v695 = vunpack.c.l.b16 %v151
  %v696 = vunpack.c.h.b16 %v151
  %v697 = vunpack.c.l.b16 %v152
  %v698 = vunpack.c.h.b16 %v152
  %v699 = vunpack.c.l.b16 %v153
  %v700 = vunpack.c.h.b16 %v153
  %v701 = vunpack.c.l.b16 %v154
  %v702 = vunpack.c.h.b16 %v154
  %v703 = vunpack.c.l.b16 %v155
  %v704 = vunpack.c.h.b16 %v155
  %v705 = vunpack.c.l.b16 %v156
  %v706 = vunpack.c.l.b16 %v157
  %v707 = vunpack.c.h.b16 %v157
  %v708 = vunpack.c.l.b16 %v158
  %v709 = vunpack.c.h.b16 %v158
  %v710 = vunpack.c.l.b16 %v159
  %v711 = vunpack.c.h.b16 %v159
  %v712 = vunpack.c.l.b16 %v160
  %v713 = vunpack.c.h.b16 %v160
  %v714 = vunpack.c.l.b16 %v161
  %v715 = vunpack.c.h.b16 %v161
  %v716 = vunpack.c.l.b16 %v162
  %v717 = vunpack.c.h.b16 %v162
  %v718 = vunpack.c.l.b16 %v163
  %v719 = vunpack.c.h.b16 %v163
  %v720 = vunpack.c.l.b16 %v164
  %v721 = vunpack.c.h.b16 %v164
  %v722 = vunpack.c.l.b16 %v165
  %v723 = vunpack.c.h.b16 %v165
  %v724 = vunpack.c.l.b16 %v166
  %v725 = vunpack.c.h.b16 %v166
  %v726 = vunpack.c.l.b16 %v167
  %v727 = vunpack.c.h.b16 %v167
  %v728 = vunpack.c.l.b16 %v168
  %v729 = vunpack.c.h.b16 %v168
  %v730 = vunpack.c.l.b16 %v169
  %v731 = vunpack.c.h.b16 %v169
  %v732 = vunpack.c.l.b16 %v170
  %v733 = vunpack.c.l.b16 %v171
  %v734 = vunpack.c.h.b16 %v171
  %v735 = vunpack.c.l.b16 %v172
  %v736 = vunpack.c.h.b16 %v172
  %v737 = vunpack.c.l.b16 %v173
  %v738 = vunpack.c.h.b16 %v173
  %v739 = vunpack.c.l.b16 %v174
  %v740 = vunpack.c.h.b16 %v174
  %v741 = vunpack.c.l.b16 %v175
  %v742 = vunpack.c.h.b16 %v175
  %v743 = vunpack.c.l.b16 %v176
  %v744 = vunpack.c.h.b16 %v176
  %v745 = vunpack.c.l.b16 %v177
  %v746 = vunpack.c.h.b16 %v177
  %v747 = vunpack.c.l.b16 %v178
  %v748 = vunpack.c.h.b16 %v178
  %v749 = vunpack.c.l.b16 %v179
  %v750 = vunpack.c.h.b16 %v179
  %v751 = vunpack.c.l.b16 %v180
  %v752 = vunpack.c.h.b16 %v180
  %v753 = vunpack.c.l.b16 %v181
  %v754 = vunpack.c.h.b16 %v181
  %v755 = vunpack.c.l.b16 %v182
  %v756 = vunpack.c.h.b16 %v182
  %v757 = vunpack.c.l.b16 %v183
  %v758 = vunpack.c.h.b16 %v183
  %v759 = vunpack.c.l.b16 %v184
  %v760 = vunpack.c.l.b16 %v185
  %v761 = vunpack.c.h.b16 %v185
  %v762 = vunpack.c.l.b16 %v186
  %v763 = vunpack.c.h.b16 %v186
  %v764 = vunpack.c.l.b16 %v187
  %v765 = vunpack.c.h.b16 %v187
  %v766 = vunpack.c.l.b16 %v188
  %v767 = vunpack.c.h.b16 %v188
  %v768 = vunpack.c.l.b16 %v189
  %v769 = vunpack.c.h.b16 %v189
  %v770 = vunpack.c.l.b16 %v190
  %v771 = vunpack.c.h.b16 %v190
  %v772 = vunpack.c.l.b16 %v191
  %v773 = vunpack.c.h.b16 %v191
  %v774 = vunpack.c.l.b16 %v192
  %v775 = vunpack.c.h.b16 %v192
  %v776 = vunpack.c.l.b16 %v193
  %v777 = vunpack.c.h.b16 %v193
  %v778 = vunpack.c.l.b16 %v194
  %v779 = vunpack.c.h.b16 %v194
  %v780 = vunpack.c.l.b16 %v195
  %v781 = vunpack.c.h.b16 %v195
  %v782 = vunpack.c.l.b16 %v196
  %v783 = vunpack.c.h.b16 %v196
  %v784 = vunpack.c.l.b16 %v197
  %v785 = vunpack.c.h.b16 %v197
  %v786 = vunpack.c.l.b16 %v198
  %v787 = vunpack.c.l.b16 %v199
  %v788 = vunpack.c.h.b16 %v199
  %v789 = vunpack.c.l.b16 %v200
  %v790 = vunpack.c.h.b16 %v200
  %v791 = vunpack.c.l.b16 %v201
  %v792 = vunpack.c.h.b16 %v201
  %v793 = vunpack.c.l.b16 %v202
  %v794 = vunpack.c.h.b16 %v202
  %v795 = vunpack.c.l.b16 %v203
  %v796 = vunpack.c.h.b16 %v203
  %v797 = vunpack.c.l.b16 %v204
  %v798 = vunpack.c.h.b16 %v204
  %v799 = vunpack.c.l.b16 %v205
  %v800 = vunpack.c.h.b16 %v205
  %v801 = vunpack.c.l.b16 %v206
  %v802 = vunpack.c.h.b16 %v206
  %v803 = vunpack.c.l.b16 %v207
  %v804 = vunpack.c.h.b16 %v207
  %v805 = vunpack.c.l.b16 %v208
  %v806 = vunpack.c.h.b16 %v208
  %v807 = vunpack.c.l.b16 %v209
  %v808 = vunpack.c.h.b16 %v209
  %v809 = vunpack.c.l.b16 %v210
  %v810 = vunpack.c.h.b16 %v210
  %v811 = vunpack.c.l.b16 %v211
  %v812 = vunpack.c.h.b16 %v211
  %v813 = vunpack.c.l.b16 %v212
  %v814 = vunpack.c.l.b16 %v213
  %v815 = vunpack.c.h.b16 %v213
  %v816 = vunpack.c.l.b16 %v214
  %v817 = vunpack.c.h.b16 %v214
  %v818 = vunpack.c.l.b16 %v215
  %v819 = vunpack.c.h.b16 %v215
  %v820 = vunpack.c.l.b16 %v216
  %v821 = vunpack.c.h.b16 %v216
  %v822 = vunpack.c.l.b16 %v217
  %v823 = vunpack.c.h.b16 %v217
  %v824 = vunpack.c.l.b16 %v218
  %v825 = vunpack.c.h.b16 %v218
  %v826 = vunpack.c.l.b16 %v219
  %v827 = vunpack.c.h.b16 %v219
  %v828 = vunpack.c.l.b16 %v220
  %v829 = vunpack.c.h.b16 %v220
  %v830 = vunpack.c.l.b16 %v221
  %v831 = vunpack.c.h.b16 %v221
  %v832 = vunpack.c.l.b16 %v222
  %v833 = vunpack.c.h.b16 %v222
  %v834 = vunpack.c.l.b16 %v223
  %v835 = vunpack.c.h.b16 %v223
  %v836 = vunpack.c.l.b16 %v224
  %v837 = vunpack.c.h.b16 %v224
  %v838 = vunpack.c.l.b16 %v225
  %v839 = vunpack.c.h.b16 %v225
  %v840 = vunpack.c.l.b16 %v226
  %v841 = vpack.c.b16 %v490, %v463
  %v842 = vpack.c.b16 %v491, %v464
  %v843 = vpack.c.b16 %v492, %v465
  %v844 = vpack.c.b16 %v493, %v466
  %v845 = vpack.c.b16 %v494, %v467
  %v846 = vpack.c.b16 %v495, %v468
  %v847 = vpack.c.b16 %v496, %v469
  %v848 = vpack.c.b16 %v497, %v470
  %v849 = vpack.c.b16 %v498, %v471
  %v850 = vpack.c.b16 %v499, %v472
  %v851 = vpack.c.b16 %v500, %v473
  %v852 = vpack.c.b16 %v501, %v474
  %v853 = vpack.c.b16 %v502, %v475
  %v854 = vpack.c.b16 %v503, %v476
  %v855 = vpack.c.b16 %v504, %v477
  %v856 = vpack.c.b16 %v505, %v478
  %v857 = vpack.c.b16 %v506, %v479
  %v858 = vpack.c.b16 %v507, %v480
  %v859 = vpack.c.b16 %v508, %v481
  %v860 = vpack.c.b16 %v509, %v482
  %v861 = vpack.c.b16 %v510, %v483
  %v862 = vpack.c.b16 %v511, %v484
  %v863 = vpack.c.b16 %v512, %v485
  %v864 = vpack.c.b16 %v513, %v486
  %v865 = vpack.c.b16 %v514, %v487
  %v866 = vpack.c.b16 %v515, %v488
  %v867 = vpack.c.b16 %v516, %v489
  %v868 = vpack.c.b16 %v544, %v517
  %v869 = vpack.c.b16 %v545, %v518
  %v870 = vpack.c.b16 %v546, %v519
  %v871 = vpack.c.b16 %v547, %v520
  %v872 = vpack.c.b16 %v548, %v521
  %v873 = vpack.c.b16 %v549, %v522
  %v874 = vpack.c.b16 %v550, %v523
  %v875 = vpack.c.b16 %v551, %v524
  %v876 = vpack.c.b16 %v552, %v525
  %v877 = vpack.c.b16 %v553, %v526
  %v878 = vpack.c.b16 %v554, %v527
  %v879 = vpack.c.b16 %v555, %v528
  %v880 = vpack.c.b16 %v556, %v529
  %v881 = vpack.c.b16 %v557, %v530
  %v882 = vpack.c.b16 %v558, %v531
  %v883 = vpack.c.b16 %v559, %v532
  %v884 = vpack.c.b16 %v560, %v533
  %v885 = vpack.c.b16 %v561, %v534
  %v886 = vpack.c.b16 %v562, %v535
  %v887 = vpack.c.b16 %v563, %v536
  %v888 = vpack.c.b16 %v564, %v537
  %v889 = vpack.c.b16 %v565, %v538
  %v890 = vpack.c.b16 %v566, %v539
  %v891 = vpack.c.b16 %v567, %v540
  %v892 = vpack.c.b16 %v568, %v541
  %v893 = vpack.c.b16 %v569, %v542
  %v894 = vpack.c.b16 %v570, %v543
  %v895 = vpack.c.b16 %v598, %v571
  %v896 = vpack.c.b16 %v599, %v572
  %v897 = vpack.c.b16 %v600, %v573
  %v898 = vpack.c.b16 %v601, %v574
  %v899 = vpack.c.b16 %v602, %v575
  %v900 = vpack.c.b16 %v603, %v576
  %v901 = vpack.c.b16 %v604, %v577
  %v902 = vpack.c.b16 %v605, %v578
  %v903 = vpack.c.b16 %v606, %v579
  %v904 = vpack.c.b16 %v607, %v580
  %v905 = vpack.c.b16 %v608, %v581
  %v906 = vpack.c.b16 %v609, %v582
  %v907 = vpack.c.b16 %v610, %v583
  %v908 = vpack.c.b16 %v611, %v584
  %v909 = vpack.c.b16 %v612, %v585
  %v910 = vpack.c.b16 %v613, %v586
  %v911 = vpack.c.b16 %v614, %v587
  %v912 = vpack.c.b16 %v615, %v588
  %v913 = vpack.c.b16 %v616, %v589
  %v914 = vpack.c.b16 %v617, %v590
  %v915 = vpack.c.b16 %v618, %v591
  %v916 = vpack.c.b16 %v619, %v592
  %v917 = vpack.c.b16 %v620, %v593
  %v918 = vpack.c.b16 %v621, %v594
  %v919 = vpack.c.b16 %v622, %v595
  %v920 = vpack.c.b16 %v623, %v596
  %v921 = vpack.c.b16 %v624, %v597
  %v922 = vpack.c.b16 %v652, %v625
  %v923 = vpack.c.b16 %v653, %v626
  %v924 = vpack.c.b16 %v654, %v627
  %v925 = vpack.c.b16 %v655, %v628
  %v926 = vpack.c.b16 %v656, %v629
  %v927 = vpack.c.b16 %v657, %v630
  %v928 = vpack.c.b16 %v658, %v631
  %v929 = vpack.c.b16 %v659, %v632
  %v930 = vpack.c.b16 %v660, %v633
  %v931 = vpack.c.b16 %v661, %v634
  %v932 = vpack.c.b16 %v662, %v635
  %v933 = vpack.c.b16 %v663, %v636
  %v934 = vpack.c.b16 %v664, %v637
  %v935 = vpack.c.b16 %v665, %v638
  %v936 = vpack.c.b16 %v666, %v639
  %v937 = vpack.c.b16 %v667, %v640
  %v938 = vpack.c.b16 %v668, %v641
  %v939 = vpack.c.b16 %v669, %v642
  %v940 = vpack.c.b16 %v670, %v643
  %v941 = vpack.c.b16 %v671, %v644
  %v942 = vpack.c.b16 %v672, %v645
  %v943 = vpack.c.b16 %v673, %v646
  %v944 = vpack.c.b16 %v674, %v647
  %v945 = vpack.c.b16 %v675, %v648
  %v946 = vpack.c.b16 %v676, %v649
  %v947 = vpack.c.b16 %v677, %v650
  %v948 = vpack.c.b16 %v678, %v651
  %v949 = vpack.c.b16 %v706, %v679
  %v950 = vpack.c.b16 %v707, %v680
  %v951 = vpack.c.b16 %v708, %v681
  %v952 = vpack.c.b16 %v709, %v682
  %v953 = vpack.c.b16 %v710, %v683
  %v954 = vpack.c.b16 %v711, %v684
  %v955 = vpack.c.b16 %v712, %v685
  %v956 = vpack.c.b16 %v713, %v686
  %v957 = vpack.c.b16 %v714, %v687
  %v958 = vpack.c.b16 %v715, %v688
  %v959 = vpack.c.b16 %v716, %v689
  %v960 = vpack.c.b16 %v717, %v690
  %v961 = vpack.c.b16 %v718, %v691
  %v962 = vpack.c.b16 %v719, %v692
  %v963 = vpack.c.b16 %v720, %v693
  %v964 = vpack.c.b16 %v721, %v694
  %v965 = vpack.c.b16 %v722, %v695
  %v966 = vpack.c.b16 %v723, %v696
  %v967 = vpack.c.b16 %v724, %v697
  %v968 = vpack.c.b16 %v725, %v698
  %v969 = vpack.c.b16 %v726, %v699
  %v970 = vpack.c.b16 %v727, %v700
  %v971 = vpack.c.b16 %v728, %v701
  %v972 = vpack.c.b16 %v729, %v702
  %v973 = vpack.c.b16 %v730, %v703
  %v974 = vpack.c.b16 %v731, %v704
  %v975 = vpack.c.b16 %v732, %v705
  %v976 = vpack.c.b16 %v760, %v733
  %v977 = vpack.c.b16 %v761, %v734
  %v978 = vpack.c.b16 %v762, %v735
  %v979 = vpack.c.b16 %v763, %v736
  %v980 = vpack.c.b16 %v764, %v737
  %v981 = vpack.c.b16 %v765, %v738
  %v982 = vpack.c.b16 %v766, %v739
  %v983 = vpack.c.b16 %v767, %v740
  %v984 = vpack.c.b16 %v768, %v741
  %v985 = vpack.c.b16 %v769, %v742
  %v986 = vpack.c.b16 %v770, %v743
  %v987 = vpack.c.b16 %v771, %v744
  %v988 = vpack.c.b16 %v772, %v745
  %v989 = vpack.c.b16 %v773, %v746
  %v990 = vpack.c.b16 %v774, %v747
  %v991 = vpack.c.b16 %v775, %v748
  %v992 = vpack.c.b16 %v776, %v749
  %v993 = vpack.c.b16 %v777, %v750
  %v994 = vpack.c.b16 %v778, %v751
  %v995 = vpack.c.b16 %v779, %v752
  %v996 = vpack.c.b16 %v780, %v753
  %v997 = vpack.c.b16 %v781, %v754
  %v998 = vpack.c.b16 %v782, %v755
  %v999 = vpack.c.b16 %v783, %v756
  %v1000 = vpack.c.b16 %v784, %v757
  %v1001 = vpack.c.b16 %v785, %v758
  %v1002 = vpack.c.b16 %v786, %v759
  %v1003 = vpack.c.b16 %v814, %v787
  %v1004 = vpack.c.b16 %v815, %v788
  %v1005 = vpack.c.b16 %v816, %v789
  %v1006 = vpack.c.b16 %v817, %v790
  %v1007 = vpack.c.b16 %v818, %v791
  %v1008 = vpack.c.b16 %v819, %v792
  %v1009 = vpack.c.b16 %v820, %v793
  %v1010 = vpack.c.b16 %v821, %v794
  %v1011 = vpack.c.b16 %v822, %v795
  %v1012 = vpack.c.b16 %v823, %v796
  %v1013 = vpack.c.b16 %v824, %v797
  %v1014 = vpack.c.b16 %v825, %v798
  %v1015 = vpack.c.b16 %v826, %v799
  %v1016 = vpack.c.b16 %v827, %v800
  %v1017 = vpack.c.b16 %v828, %v801
  %v1018 = vpack.c.b16 %v829, %v802
  %v1019 = vpack.c.b16 %v830, %v803
  %v1020 = vpack.c.b16 %v831, %v804
  %v1021 = vpack.c.b16 %v832, %v805
  %v1022 = vpack.c.b16 %v833, %v806
  %v1023 = vpack.c.b16 %v834, %v807
  %v1024 = vpack.c.b16 %v835, %v808
  %v1025 = vpack.c.b16 %v836, %v809
  %v1026 = vpack.c.b16 %v837, %v810
  %v1027 = vpack.c.b16 %v838, %v811
  %v1028 = vpack.c.b16 %v839, %v812
  %v1029 = vpack.c.b16 %v840, %v813
  %vm1192 = vcmask 883712
  %v1194 = vsel %vm1192, %v259, 0
  %v1197 = vsel %vm1192, %v260, 0
  %v1200 = vsel %vm1192, %v261, 0
  %v1203 = vsel %vm1192, %v262, 0
  %v1206 = vsel %vm1192, %v263, 0
  %v1209 = vsel %vm1192, %v264, 0
  %v1212 = vsel %vm1192, %v265, 0
  %v1215 = vsel %vm1192, %v266, 0
  %vm1217 = vcmask 1045504
  %v1219 = vsel %vm1217, %v1003, 0
  %v1222 = vsel %vm1217, %v1004, 0
  %v1225 = vsel %vm1217, %v1005, 0
  %v1228 = vsel %vm1217, %v1006, 0
  %v1231 = vsel %vm1217, %v1007, 0
  %v1234 = vsel %vm1217, %v1008, 0
  %v1237 = vsel %vm1217, %v1009, 0
  %v1240 = vsel %vm1217, %v1010, 0
  %v1243 = vsel %vm1217, %v1011, 0
  %v1246 = vsel %vm1217, %v1012, 0
  %v1249 = vsel %vm1217, %v1013, 0
  %v1252 = vsel %vm1217, %v1014, 0
  %v1255 = vsel %vm1217, %v1015, 0
  %v1258 = vsel %vm1217, %v1016, 0
  %v1261 = vsel %vm1217, %v1017, 0
  %v1264 = vsel %vm1217, %v1018, 0
  %v1267 = vsel %vm1217, %v1019, 0
  %v1270 = vsel %vm1217, %v1020, 0
  %v1273 = vsel %vm1217, %v1021, 0
  %v1276 = vsel %vm1217, %v1022, 0
  %v1279 = vsel %vm1217, %v1023, 0
  %v1282 = vsel %vm1217, %v1024, 0
  %v1285 = vsel %vm1217, %v1025, 0
  %v1288 = vsel %vm1217, %v1026, 0
  %v1291 = vsel %vm1217, %v1027, 0
  %v1294 = vsel %vm1217, %v1028, 0
  %v1297 = vsel %vm1217, %v1029, 0
  %1299 = vmatpush.bf16.msra.mxu0 0
  %1300 = vmatpush.bf16.msra.mxu0 %v1219
  %1301 = vmatpush.bf16.msra.mxu0 %v976
  %1302 = vmatpush.bf16.msra.mxu0 %v949
  %1303 = vmatpush.bf16.msra.mxu0 %v922
  %1304 = vmatpush.bf16.msra.mxu0 %v895
  %1305 = vmatpush.bf16.msra.mxu0 %v868
  %1306 = vmatpush.bf16.msra.mxu0 %v841
  %1307 = vmatmul.bf16.gmra.mxu0 %v1194
  %v1308 = vpop.f32.mrf.mxu0
  %v1309 = vadd.f32 0.0, %v1308
  %v1310 = vpop.f32.mrf.mxu0
  %v1311 = vadd.f32 0.0, %v1310
  %1312 = vmatmul.bf16.gmra.mxu0 %v1197
  %v1313 = vpop.f32.mrf.mxu0
  %v1314 = vadd.f32 0.0, %v1313
  %v1315 = vpop.f32.mrf.mxu0
  %v1316 = vadd.f32 0.0, %v1315
  %1317 = vmatmul.bf16.gmra.mxu0 %v1200
  %v1318 = vpop.f32.mrf.mxu0
  %v1319 = vadd.f32 0.0, %v1318
  %v1320 = vpop.f32.mrf.mxu0
  %v1321 = vadd.f32 0.0, %v1320
  %1322 = vmatmul.bf16.gmra.mxu0 %v1203
  %v1323 = vpop.f32.mrf.mxu0
  %v1324 = vadd.f32 0.0, %v1323
  %v1325 = vpop.f32.mrf.mxu0
  %v1326 = vadd.f32 0.0, %v1325
  %1327 = vmatmul.bf16.gmra.mxu0 %v1206
  %v1328 = vpop.f32.mrf.mxu0
  %v1329 = vadd.f32 0.0, %v1328
  %v1330 = vpop.f32.mrf.mxu0
  %v1331 = vadd.f32 0.0, %v1330
  %1332 = vmatmul.bf16.gmra.mxu0 %v1209
  %v1333 = vpop.f32.mrf.mxu0
  %v1334 = vadd.f32 0.0, %v1333
  %v1335 = vpop.f32.mrf.mxu0
  %v1336 = vadd.f32 0.0, %v1335
  %1337 = vmatmul.bf16.gmra.mxu0 %v1212
  %v1338 = vpop.f32.mrf.mxu0
  %v1339 = vadd.f32 0.0, %v1338
  %v1340 = vpop.f32.mrf.mxu0
  %v1341 = vadd.f32 0.0, %v1340
  %1342 = vmatmul.bf16.gmra.mxu0 %v1215
  %v1343 = vpop.f32.mrf.mxu0
  %v1344 = vadd.f32 0.0, %v1343
  %v1345 = vpop.f32.mrf.mxu0
  %v1346 = vadd.f32 0.0, %v1345
  %1347 = vdwg.mxu0
  %1348 = vmatpush.bf16.msra.mxu0 0
  %1349 = vmatpush.bf16.msra.mxu0 %v1222
  %1350 = vmatpush.bf16.msra.mxu0 %v977
  %1351 = vmatpush.bf16.msra.mxu0 %v950
  %1352 = vmatpush.bf16.msra.mxu0 %v923
  %1353 = vmatpush.bf16.msra.mxu0 %v896
  %1354 = vmatpush.bf16.msra.mxu0 %v869
  %1355 = vmatpush.bf16.msra.mxu0 %v842
  %1356 = vmatmul.bf16.gmra.mxu0 %v1194
  %v1357 = vpop.f32.mrf.mxu0
  %v1358 = vadd.f32 0.0, %v1357
  %v1359 = vpop.f32.mrf.mxu0
  %v1360 = vadd.f32 0.0, %v1359
  %1361 = vmatmul.bf16.gmra.mxu0 %v1197
  %v1362 = vpop.f32.mrf.mxu0
  %v1363 = vadd.f32 0.0, %v1362
  %v1364 = vpop.f32.mrf.mxu0
  %v1365 = vadd.f32 0.0, %v1364
  %1366 = vmatmul.bf16.gmra.mxu0 %v1200
  %v1367 = vpop.f32.mrf.mxu0
  %v1368 = vadd.f32 0.0, %v1367
  %v1369 = vpop.f32.mrf.mxu0
  %v1370 = vadd.f32 0.0, %v1369
  %1371 = vmatmul.bf16.gmra.mxu0 %v1203
  %v1372 = vpop.f32.mrf.mxu0
  %v1373 = vadd.f32 0.0, %v1372
  %v1374 = vpop.f32.mrf.mxu0
  %v1375 = vadd.f32 0.0, %v1374
  %1376 = vmatmul.bf16.gmra.mxu0 %v1206
  %v1377 = vpop.f32.mrf.mxu0
  %v1378 = vadd.f32 0.0, %v1377
  %v1379 = vpop.f32.mrf.mxu0
  %v1380 = vadd.f32 0.0, %v1379
  %1381 = vmatmul.bf16.gmra.mxu0 %v1209
  %v1382 = vpop.f32.mrf.mxu0
  %v1383 = vadd.f32 0.0, %v1382
  %v1384 = vpop.f32.mrf.mxu0
  %v1385 = vadd.f32 0.0, %v1384
  %1386 = vmatmul.bf16.gmra.mxu0 %v1212
  %v1387 = vpop.f32.mrf.mxu0
  %v1388 = vadd.f32 0.0, %v1387
  %v1389 = vpop.f32.mrf.mxu0
  %v1390 = vadd.f32 0.0, %v1389
  %1391 = vmatmul.bf16.gmra.mxu0 %v1215
  %v1392 = vpop.f32.mrf.mxu0
  %v1393 = vadd.f32 0.0, %v1392
  %v1394 = vpop.f32.mrf.mxu0
  %v1395 = vadd.f32 0.0, %v1394
  %1396 = vdwg.mxu0
  %1397 = vmatpush.bf16.msra.mxu0 0
  %1398 = vmatpush.bf16.msra.mxu0 %v1225
  %1399 = vmatpush.bf16.msra.mxu0 %v978
  %1400 = vmatpush.bf16.msra.mxu0 %v951
  %1401 = vmatpush.bf16.msra.mxu0 %v924
  %1402 = vmatpush.bf16.msra.mxu0 %v897
  %1403 = vmatpush.bf16.msra.mxu0 %v870
  %1404 = vmatpush.bf16.msra.mxu0 %v843
  %1405 = vmatmul.bf16.gmra.mxu0 %v1194
  %v1406 = vpop.f32.mrf.mxu0
  %v1407 = vadd.f32 0.0, %v1406
  %v1408 = vpop.f32.mrf.mxu0
  %v1409 = vadd.f32 0.0, %v1408
  %1410 = vmatmul.bf16.gmra.mxu0 %v1197
  %v1411 = vpop.f32.mrf.mxu0
  %v1412 = vadd.f32 0.0, %v1411
  %v1413 = vpop.f32.mrf.mxu0
  %v1414 = vadd.f32 0.0, %v1413
  %1415 = vmatmul.bf16.gmra.mxu0 %v1200
  %v1416 = vpop.f32.mrf.mxu0
  %v1417 = vadd.f32 0.0, %v1416
  %v1418 = vpop.f32.mrf.mxu0
  %v1419 = vadd.f32 0.0, %v1418
  %1420 = vmatmul.bf16.gmra.mxu0 %v1203
  %v1421 = vpop.f32.mrf.mxu0
  %v1422 = vadd.f32 0.0, %v1421
  %v1423 = vpop.f32.mrf.mxu0
  %v1424 = vadd.f32 0.0, %v1423
  %1425 = vmatmul.bf16.gmra.mxu0 %v1206
  %v1426 = vpop.f32.mrf.mxu0
  %v1427 = vadd.f32 0.0, %v1426
  %v1428 = vpop.f32.mrf.mxu0
  %v1429 = vadd.f32 0.0, %v1428
  %1430 = vmatmul.bf16.gmra.mxu0 %v1209
  %v1431 = vpop.f32.mrf.mxu0
  %v1432 = vadd.f32 0.0, %v1431
  %v1433 = vpop.f32.mrf.mxu0
  %v1434 = vadd.f32 0.0, %v1433
  %1435 = vmatmul.bf16.gmra.mxu0 %v1212
  %v1436 = vpop.f32.mrf.mxu0
  %v1437 = vadd.f32 0.0, %v1436
  %v1438 = vpop.f32.mrf.mxu0
  %v1439 = vadd.f32 0.0, %v1438
  %1440 = vmatmul.bf16.gmra.mxu0 %v1215
  %v1441 = vpop.f32.mrf.mxu0
  %v1442 = vadd.f32 0.0, %v1441
  %v1443 = vpop.f32.mrf.mxu0
  %v1444 = vadd.f32 0.0, %v1443
  %1445 = vdwg.mxu0
  %1446 = vmatpush.bf16.msra.mxu0 0
  %1447 = vmatpush.bf16.msra.mxu0 %v1228
  %1448 = vmatpush.bf16.msra.mxu0 %v979
  %1449 = vmatpush.bf16.msra.mxu0 %v952
  %1450 = vmatpush.bf16.msra.mxu0 %v925
  %1451 = vmatpush.bf16.msra.mxu0 %v898
  %1452 = vmatpush.bf16.msra.mxu0 %v871
  %1453 = vmatpush.bf16.msra.mxu0 %v844
  %1454 = vmatmul.bf16.gmra.mxu0 %v1194
  %v1455 = vpop.f32.mrf.mxu0
  %v1456 = vadd.f32 0.0, %v1455
  %v1457 = vpop.f32.mrf.mxu0
  %v1458 = vadd.f32 0.0, %v1457
  %1459 = vmatmul.bf16.gmra.mxu0 %v1197
  %v1460 = vpop.f32.mrf.mxu0
  %v1461 = vadd.f32 0.0, %v1460
  %v1462 = vpop.f32.mrf.mxu0
  %v1463 = vadd.f32 0.0, %v1462
  %1464 = vmatmul.bf16.gmra.mxu0 %v1200
  %v1465 = vpop.f32.mrf.mxu0
  %v1466 = vadd.f32 0.0, %v1465
  %v1467 = vpop.f32.mrf.mxu0
  %v1468 = vadd.f32 0.0, %v1467
  %1469 = vmatmul.bf16.gmra.mxu0 %v1203
  %v1470 = vpop.f32.mrf.mxu0
  %v1471 = vadd.f32 0.0, %v1470
  %v1472 = vpop.f32.mrf.mxu0
  %v1473 = vadd.f32 0.0, %v1472
  %1474 = vmatmul.bf16.gmra.mxu0 %v1206
  %v1475 = vpop.f32.mrf.mxu0
  %v1476 = vadd.f32 0.0, %v1475
  %v1477 = vpop.f32.mrf.mxu0
  %v1478 = vadd.f32 0.0, %v1477
  %1479 = vmatmul.bf16.gmra.mxu0 %v1209
  %v1480 = vpop.f32.mrf.mxu0
  %v1481 = vadd.f32 0.0, %v1480
  %v1482 = vpop.f32.mrf.mxu0
  %v1483 = vadd.f32 0.0, %v1482
  %1484 = vmatmul.bf16.gmra.mxu0 %v1212
  %v1485 = vpop.f32.mrf.mxu0
  %v1486 = vadd.f32 0.0, %v1485
  %v1487 = vpop.f32.mrf.mxu0
  %v1488 = vadd.f32 0.0, %v1487
  %1489 = vmatmul.bf16.gmra.mxu0 %v1215
  %v1490 = vpop.f32.mrf.mxu0
  %v1491 = vadd.f32 0.0, %v1490
  %v1492 = vpop.f32.mrf.mxu0
  %v1493 = vadd.f32 0.0, %v1492
  %1494 = vdwg.mxu0
  %1495 = vmatpush.bf16.msra.mxu0 0
  %1496 = vmatpush.bf16.msra.mxu0 %v1231
  %1497 = vmatpush.bf16.msra.mxu0 %v980
  %1498 = vmatpush.bf16.msra.mxu0 %v953
  %1499 = vmatpush.bf16.msra.mxu0 %v926
  %1500 = vmatpush.bf16.msra.mxu0 %v899
  %1501 = vmatpush.bf16.msra.mxu0 %v872
  %1502 = vmatpush.bf16.msra.mxu0 %v845
  %1503 = vmatmul.bf16.gmra.mxu0 %v1194
  %v1504 = vpop.f32.mrf.mxu0
  %v1505 = vadd.f32 0.0, %v1504
  %v1506 = vpop.f32.mrf.mxu0
  %v1507 = vadd.f32 0.0, %v1506
  %1508 = vmatmul.bf16.gmra.mxu0 %v1197
  %v1509 = vpop.f32.mrf.mxu0
  %v1510 = vadd.f32 0.0, %v1509
  %v1511 = vpop.f32.mrf.mxu0
  %v1512 = vadd.f32 0.0, %v1511
  %1513 = vmatmul.bf16.gmra.mxu0 %v1200
  %v1514 = vpop.f32.mrf.mxu0
  %v1515 = vadd.f32 0.0, %v1514
  %v1516 = vpop.f32.mrf.mxu0
  %v1517 = vadd.f32 0.0, %v1516
  %1518 = vmatmul.bf16.gmra.mxu0 %v1203
  %v1519 = vpop.f32.mrf.mxu0
  %v1520 = vadd.f32 0.0, %v1519
  %v1521 = vpop.f32.mrf.mxu0
  %v1522 = vadd.f32 0.0, %v1521
  %1523 = vmatmul.bf16.gmra.mxu0 %v1206
  %v1524 = vpop.f32.mrf.mxu0
  %v1525 = vadd.f32 0.0, %v1524
  %v1526 = vpop.f32.mrf.mxu0
  %v1527 = vadd.f32 0.0, %v1526
  %1528 = vmatmul.bf16.gmra.mxu0 %v1209
  %v1529 = vpop.f32.mrf.mxu0
  %v1530 = vadd.f32 0.0, %v1529
  %v1531 = vpop.f32.mrf.mxu0
  %v1532 = vadd.f32 0.0, %v1531
  %1533 = vmatmul.bf16.gmra.mxu0 %v1212
  %v1534 = vpop.f32.mrf.mxu0
  %v1535 = vadd.f32 0.0, %v1534
  %v1536 = vpop.f32.mrf.mxu0
  %v1537 = vadd.f32 0.0, %v1536
  %1538 = vmatmul.bf16.gmra.mxu0 %v1215
  %v1539 = vpop.f32.mrf.mxu0
  %v1540 = vadd.f32 0.0, %v1539
  %v1541 = vpop.f32.mrf.mxu0
  %v1542 = vadd.f32 0.0, %v1541
  %1543 = vdwg.mxu0
  %1544 = vmatpush.bf16.msra.mxu0 0
  %1545 = vmatpush.bf16.msra.mxu0 %v1234
  %1546 = vmatpush.bf16.msra.mxu0 %v981
  %1547 = vmatpush.bf16.msra.mxu0 %v954
  %1548 = vmatpush.bf16.msra.mxu0 %v927
  %1549 = vmatpush.bf16.msra.mxu0 %v900
  %1550 = vmatpush.bf16.msra.mxu0 %v873
  %1551 = vmatpush.bf16.msra.mxu0 %v846
  %1552 = vmatmul.bf16.gmra.mxu0 %v1194
  %v1553 = vpop.f32.mrf.mxu0
  %v1554 = vadd.f32 0.0, %v1553
  %v1555 = vpop.f32.mrf.mxu0
  %v1556 = vadd.f32 0.0, %v1555
  %1557 = vmatmul.bf16.gmra.mxu0 %v1197
  %v1558 = vpop.f32.mrf.mxu0
  %v1559 = vadd.f32 0.0, %v1558
  %v1560 = vpop.f32.mrf.mxu0
  %v1561 = vadd.f32 0.0, %v1560
  %1562 = vmatmul.bf16.gmra.mxu0 %v1200
  %v1563 = vpop.f32.mrf.mxu0
  %v1564 = vadd.f32 0.0, %v1563
  %v1565 = vpop.f32.mrf.mxu0
  %v1566 = vadd.f32 0.0, %v1565
  %1567 = vmatmul.bf16.gmra.mxu0 %v1203
  %v1568 = vpop.f32.mrf.mxu0
  %v1569 = vadd.f32 0.0, %v1568
  %v1570 = vpop.f32.mrf.mxu0
  %v1571 = vadd.f32 0.0, %v1570
  %1572 = vmatmul.bf16.gmra.mxu0 %v1206
  %v1573 = vpop.f32.mrf.mxu0
  %v1574 = vadd.f32 0.0, %v1573
  %v1575 = vpop.f32.mrf.mxu0
  %v1576 = vadd.f32 0.0, %v1575
  %1577 = vmatmul.bf16.gmra.mxu0 %v1209
  %v1578 = vpop.f32.mrf.mxu0
  %v1579 = vadd.f32 0.0, %v1578
  %v1580 = vpop.f32.mrf.mxu0
  %v1581 = vadd.f32 0.0, %v1580
  %1582 = vmatmul.bf16.gmra.mxu0 %v1212
  %v1583 = vpop.f32.mrf.mxu0
  %v1584 = vadd.f32 0.0, %v1583
  %v1585 = vpop.f32.mrf.mxu0
  %v1586 = vadd.f32 0.0, %v1585
  %1587 = vmatmul.bf16.gmra.mxu0 %v1215
  %v1588 = vpop.f32.mrf.mxu0
  %v1589 = vadd.f32 0.0, %v1588
  %v1590 = vpop.f32.mrf.mxu0
  %v1591 = vadd.f32 0.0, %v1590
  %1592 = vdwg.mxu0
  %1593 = vmatpush.bf16.msra.mxu0 0
  %1594 = vmatpush.bf16.msra.mxu0 %v1237
  %1595 = vmatpush.bf16.msra.mxu0 %v982
  %1596 = vmatpush.bf16.msra.mxu0 %v955
  %1597 = vmatpush.bf16.msra.mxu0 %v928
  %1598 = vmatpush.bf16.msra.mxu0 %v901
  %1599 = vmatpush.bf16.msra.mxu0 %v874
  %1600 = vmatpush.bf16.msra.mxu0 %v847
  %1601 = vmatmul.bf16.gmra.mxu0 %v1194
  %v1602 = vpop.f32.mrf.mxu0
  %v1603 = vadd.f32 0.0, %v1602
  %v1604 = vpop.f32.mrf.mxu0
  %v1605 = vadd.f32 0.0, %v1604
  %1606 = vmatmul.bf16.gmra.mxu0 %v1197
  %v1607 = vpop.f32.mrf.mxu0
  %v1608 = vadd.f32 0.0, %v1607
  %v1609 = vpop.f32.mrf.mxu0
  %v1610 = vadd.f32 0.0, %v1609
  %1611 = vmatmul.bf16.gmra.mxu0 %v1200
  %v1612 = vpop.f32.mrf.mxu0
  %v1613 = vadd.f32 0.0, %v1612
  %v1614 = vpop.f32.mrf.mxu0
  %v1615 = vadd.f32 0.0, %v1614
  %1616 = vmatmul.bf16.gmra.mxu0 %v1203
  %v1617 = vpop.f32.mrf.mxu0
  %v1618 = vadd.f32 0.0, %v1617
  %v1619 = vpop.f32.mrf.mxu0
  %v1620 = vadd.f32 0.0, %v1619
  %1621 = vmatmul.bf16.gmra.mxu0 %v1206
  %v1622 = vpop.f32.mrf.mxu0
  %v1623 = vadd.f32 0.0, %v1622
  %v1624 = vpop.f32.mrf.mxu0
  %v1625 = vadd.f32 0.0, %v1624
  %1626 = vmatmul.bf16.gmra.mxu0 %v1209
  %v1627 = vpop.f32.mrf.mxu0
  %v1628 = vadd.f32 0.0, %v1627
  %v1629 = vpop.f32.mrf.mxu0
  %v1630 = vadd.f32 0.0, %v1629
  %1631 = vmatmul.bf16.gmra.mxu0 %v1212
  %v1632 = vpop.f32.mrf.mxu0
  %v1633 = vadd.f32 0.0, %v1632
  %v1634 = vpop.f32.mrf.mxu0
  %v1635 = vadd.f32 0.0, %v1634
  %1636 = vmatmul.bf16.gmra.mxu0 %v1215
  %v1637 = vpop.f32.mrf.mxu0
  %v1638 = vadd.f32 0.0, %v1637
  %v1639 = vpop.f32.mrf.mxu0
  %v1640 = vadd.f32 0.0, %v1639
  %1641 = vdwg.mxu0
  %1642 = vmatpush.bf16.msra.mxu0 0
  %1643 = vmatpush.bf16.msra.mxu0 %v1240
  %1644 = vmatpush.bf16.msra.mxu0 %v983
  %1645 = vmatpush.bf16.msra.mxu0 %v956
  %1646 = vmatpush.bf16.msra.mxu0 %v929
  %1647 = vmatpush.bf16.msra.mxu0 %v902
  %1648 = vmatpush.bf16.msra.mxu0 %v875
  %1649 = vmatpush.bf16.msra.mxu0 %v848
  %1650 = vmatmul.bf16.gmra.mxu0 %v1194
  %v1651 = vpop.f32.mrf.mxu0
  %v1652 = vadd.f32 0.0, %v1651
  %v1653 = vpop.f32.mrf.mxu0
  %v1654 = vadd.f32 0.0, %v1653
  %1655 = vmatmul.bf16.gmra.mxu0 %v1197
  %v1656 = vpop.f32.mrf.mxu0
  %v1657 = vadd.f32 0.0, %v1656
  %v1658 = vpop.f32.mrf.mxu0
  %v1659 = vadd.f32 0.0, %v1658
  %1660 = vmatmul.bf16.gmra.mxu0 %v1200
  %v1661 = vpop.f32.mrf.mxu0
  %v1662 = vadd.f32 0.0, %v1661
  %v1663 = vpop.f32.mrf.mxu0
  %v1664 = vadd.f32 0.0, %v1663
  %1665 = vmatmul.bf16.gmra.mxu0 %v1203
  %v1666 = vpop.f32.mrf.mxu0
  %v1667 = vadd.f32 0.0, %v1666
  %v1668 = vpop.f32.mrf.mxu0
  %v1669 = vadd.f32 0.0, %v1668
  %1670 = vmatmul.bf16.gmra.mxu0 %v1206
  %v1671 = vpop.f32.mrf.mxu0
  %v1672 = vadd.f32 0.0, %v1671
  %v1673 = vpop.f32.mrf.mxu0
  %v1674 = vadd.f32 0.0, %v1673
  %1675 = vmatmul.bf16.gmra.mxu0 %v1209
  %v1676 = vpop.f32.mrf.mxu0
  %v1677 = vadd.f32 0.0, %v1676
  %v1678 = vpop.f32.mrf.mxu0
  %v1679 = vadd.f32 0.0, %v1678
  %1680 = vmatmul.bf16.gmra.mxu0 %v1212
  %v1681 = vpop.f32.mrf.mxu0
  %v1682 = vadd.f32 0.0, %v1681
  %v1683 = vpop.f32.mrf.mxu0
  %v1684 = vadd.f32 0.0, %v1683
  %1685 = vmatmul.bf16.gmra.mxu0 %v1215
  %v1686 = vpop.f32.mrf.mxu0
  %v1687 = vadd.f32 0.0, %v1686
  %v1688 = vpop.f32.mrf.mxu0
  %v1689 = vadd.f32 0.0, %v1688
  %1690 = vdwg.mxu0
  %1691 = vmatpush.bf16.msra.mxu0 0
  %1692 = vmatpush.bf16.msra.mxu0 %v1243
  %1693 = vmatpush.bf16.msra.mxu0 %v984
  %1694 = vmatpush.bf16.msra.mxu0 %v957
  %1695 = vmatpush.bf16.msra.mxu0 %v930
  %1696 = vmatpush.bf16.msra.mxu0 %v903
  %1697 = vmatpush.bf16.msra.mxu0 %v876
  %1698 = vmatpush.bf16.msra.mxu0 %v849
  %1699 = vmatmul.bf16.gmra.mxu0 %v1194
  %v1700 = vpop.f32.mrf.mxu0
  %v1701 = vadd.f32 0.0, %v1700
  %v1702 = vpop.f32.mrf.mxu0
  %v1703 = vadd.f32 0.0, %v1702
  %1704 = vmatmul.bf16.gmra.mxu0 %v1197
  %v1705 = vpop.f32.mrf.mxu0
  %v1706 = vadd.f32 0.0, %v1705
  %v1707 = vpop.f32.mrf.mxu0
  %v1708 = vadd.f32 0.0, %v1707
  %1709 = vmatmul.bf16.gmra.mxu0 %v1200
  %v1710 = vpop.f32.mrf.mxu0
  %v1711 = vadd.f32 0.0, %v1710
  %v1712 = vpop.f32.mrf.mxu0
  %v1713 = vadd.f32 0.0, %v1712
  %1714 = vmatmul.bf16.gmra.mxu0 %v1203
  %v1715 = vpop.f32.mrf.mxu0
  %v1716 = vadd.f32 0.0, %v1715
  %v1717 = vpop.f32.mrf.mxu0
  %v1718 = vadd.f32 0.0, %v1717
  %1719 = vmatmul.bf16.gmra.mxu0 %v1206
  %v1720 = vpop.f32.mrf.mxu0
  %v1721 = vadd.f32 0.0, %v1720
  %v1722 = vpop.f32.mrf.mxu0
  %v1723 = vadd.f32 0.0, %v1722
  %1724 = vmatmul.bf16.gmra.mxu0 %v1209
  %v1725 = vpop.f32.mrf.mxu0
  %v1726 = vadd.f32 0.0, %v1725
  %v1727 = vpop.f32.mrf.mxu0
  %v1728 = vadd.f32 0.0, %v1727
  %1729 = vmatmul.bf16.gmra.mxu0 %v1212
  %v1730 = vpop.f32.mrf.mxu0
  %v1731 = vadd.f32 0.0, %v1730
  %v1732 = vpop.f32.mrf.mxu0
  %v1733 = vadd.f32 0.0, %v1732
  %1734 = vmatmul.bf16.gmra.mxu0 %v1215
  %v1735 = vpop.f32.mrf.mxu0
  %v1736 = vadd.f32 0.0, %v1735
  %v1737 = vpop.f32.mrf.mxu0
  %v1738 = vadd.f32 0.0, %v1737
  %1739 = vdwg.mxu0
  %1740 = vmatpush.bf16.msra.mxu0 0
  %1741 = vmatpush.bf16.msra.mxu0 %v1246
  %1742 = vmatpush.bf16.msra.mxu0 %v985
  %1743 = vmatpush.bf16.msra.mxu0 %v958
  %1744 = vmatpush.bf16.msra.mxu0 %v931
  %1745 = vmatpush.bf16.msra.mxu0 %v904
  %1746 = vmatpush.bf16.msra.mxu0 %v877
  %1747 = vmatpush.bf16.msra.mxu0 %v850
  %1748 = vmatmul.bf16.gmra.mxu0 %v1194
  %v1749 = vpop.f32.mrf.mxu0
  %v1750 = vadd.f32 0.0, %v1749
  %v1751 = vpop.f32.mrf.mxu0
  %v1752 = vadd.f32 0.0, %v1751
  %1753 = vmatmul.bf16.gmra.mxu0 %v1197
  %v1754 = vpop.f32.mrf.mxu0
  %v1755 = vadd.f32 0.0, %v1754
  %v1756 = vpop.f32.mrf.mxu0
  %v1757 = vadd.f32 0.0, %v1756
  %1758 = vmatmul.bf16.gmra.mxu0 %v1200
  %v1759 = vpop.f32.mrf.mxu0
  %v1760 = vadd.f32 0.0, %v1759
  %v1761 = vpop.f32.mrf.mxu0
  %v1762 = vadd.f32 0.0, %v1761
  %1763 = vmatmul.bf16.gmra.mxu0 %v1203
  %v1764 = vpop.f32.mrf.mxu0
  %v1765 = vadd.f32 0.0, %v1764
  %v1766 = vpop.f32.mrf.mxu0
  %v1767 = vadd.f32 0.0, %v1766
  %1768 = vmatmul.bf16.gmra.mxu0 %v1206
  %v1769 = vpop.f32.mrf.mxu0
  %v1770 = vadd.f32 0.0, %v1769
  %v1771 = vpop.f32.mrf.mxu0
  %v1772 = vadd.f32 0.0, %v1771
  %1773 = vmatmul.bf16.gmra.mxu0 %v1209
  %v1774 = vpop.f32.mrf.mxu0
  %v1775 = vadd.f32 0.0, %v1774
  %v1776 = vpop.f32.mrf.mxu0
  %v1777 = vadd.f32 0.0, %v1776
  %1778 = vmatmul.bf16.gmra.mxu0 %v1212
  %v1779 = vpop.f32.mrf.mxu0
  %v1780 = vadd.f32 0.0, %v1779
  %v1781 = vpop.f32.mrf.mxu0
  %v1782 = vadd.f32 0.0, %v1781
  %1783 = vmatmul.bf16.gmra.mxu0 %v1215
  %v1784 = vpop.f32.mrf.mxu0
  %v1785 = vadd.f32 0.0, %v1784
  %v1786 = vpop.f32.mrf.mxu0
  %v1787 = vadd.f32 0.0, %v1786
  %1788 = vdwg.mxu0
  %1789 = vmatpush.bf16.msra.mxu0 0
  %1790 = vmatpush.bf16.msra.mxu0 %v1249
  %1791 = vmatpush.bf16.msra.mxu0 %v986
  %1792 = vmatpush.bf16.msra.mxu0 %v959
  %1793 = vmatpush.bf16.msra.mxu0 %v932
  %1794 = vmatpush.bf16.msra.mxu0 %v905
  %1795 = vmatpush.bf16.msra.mxu0 %v878
  %1796 = vmatpush.bf16.msra.mxu0 %v851
  %1797 = vmatmul.bf16.gmra.mxu0 %v1194
  %v1798 = vpop.f32.mrf.mxu0
  %v1799 = vadd.f32 0.0, %v1798
  %v1800 = vpop.f32.mrf.mxu0
  %v1801 = vadd.f32 0.0, %v1800
  %1802 = vmatmul.bf16.gmra.mxu0 %v1197
  %v1803 = vpop.f32.mrf.mxu0
  %v1804 = vadd.f32 0.0, %v1803
  %v1805 = vpop.f32.mrf.mxu0
  %v1806 = vadd.f32 0.0, %v1805
  %1807 = vmatmul.bf16.gmra.mxu0 %v1200
  %v1808 = vpop.f32.mrf.mxu0
  %v1809 = vadd.f32 0.0, %v1808
  %v1810 = vpop.f32.mrf.mxu0
  %v1811 = vadd.f32 0.0, %v1810
  %1812 = vmatmul.bf16.gmra.mxu0 %v1203
  %v1813 = vpop.f32.mrf.mxu0
  %v1814 = vadd.f32 0.0, %v1813
  %v1815 = vpop.f32.mrf.mxu0
  %v1816 = vadd.f32 0.0, %v1815
  %1817 = vmatmul.bf16.gmra.mxu0 %v1206
  %v1818 = vpop.f32.mrf.mxu0
  %v1819 = vadd.f32 0.0, %v1818
  %v1820 = vpop.f32.mrf.mxu0
  %v1821 = vadd.f32 0.0, %v1820
  %1822 = vmatmul.bf16.gmra.mxu0 %v1209
  %v1823 = vpop.f32.mrf.mxu0
  %v1824 = vadd.f32 0.0, %v1823
  %v1825 = vpop.f32.mrf.mxu0
  %v1826 = vadd.f32 0.0, %v1825
  %1827 = vmatmul.bf16.gmra.mxu0 %v1212
  %v1828 = vpop.f32.mrf.mxu0
  %v1829 = vadd.f32 0.0, %v1828
  %v1830 = vpop.f32.mrf.mxu0
  %v1831 = vadd.f32 0.0, %v1830
  %1832 = vmatmul.bf16.gmra.mxu0 %v1215
  %v1833 = vpop.f32.mrf.mxu0
  %v1834 = vadd.f32 0.0, %v1833
  %v1835 = vpop.f32.mrf.mxu0
  %v1836 = vadd.f32 0.0, %v1835
  %1837 = vdwg.mxu0
  %1838 = vmatpush.bf16.msra.mxu0 0
  %1839 = vmatpush.bf16.msra.mxu0 %v1252
  %1840 = vmatpush.bf16.msra.mxu0 %v987
  %1841 = vmatpush.bf16.msra.mxu0 %v960
  %1842 = vmatpush.bf16.msra.mxu0 %v933
  %1843 = vmatpush.bf16.msra.mxu0 %v906
  %1844 = vmatpush.bf16.msra.mxu0 %v879
  %1845 = vmatpush.bf16.msra.mxu0 %v852
  %1846 = vmatmul.bf16.gmra.mxu0 %v1194
  %v1847 = vpop.f32.mrf.mxu0
  %v1848 = vadd.f32 0.0, %v1847
  %v1849 = vpop.f32.mrf.mxu0
  %v1850 = vadd.f32 0.0, %v1849
  %1851 = vmatmul.bf16.gmra.mxu0 %v1197
  %v1852 = vpop.f32.mrf.mxu0
  %v1853 = vadd.f32 0.0, %v1852
  %v1854 = vpop.f32.mrf.mxu0
  %v1855 = vadd.f32 0.0, %v1854
  %1856 = vmatmul.bf16.gmra.mxu0 %v1200
  %v1857 = vpop.f32.mrf.mxu0
  %v1858 = vadd.f32 0.0, %v1857
  %v1859 = vpop.f32.mrf.mxu0
  %v1860 = vadd.f32 0.0, %v1859
  %1861 = vmatmul.bf16.gmra.mxu0 %v1203
  %v1862 = vpop.f32.mrf.mxu0
  %v1863 = vadd.f32 0.0, %v1862
  %v1864 = vpop.f32.mrf.mxu0
  %v1865 = vadd.f32 0.0, %v1864
  %1866 = vmatmul.bf16.gmra.mxu0 %v1206
  %v1867 = vpop.f32.mrf.mxu0
  %v1868 = vadd.f32 0.0, %v1867
  %v1869 = vpop.f32.mrf.mxu0
  %v1870 = vadd.f32 0.0, %v1869
  %1871 = vmatmul.bf16.gmra.mxu0 %v1209
  %v1872 = vpop.f32.mrf.mxu0
  %v1873 = vadd.f32 0.0, %v1872
  %v1874 = vpop.f32.mrf.mxu0
  %v1875 = vadd.f32 0.0, %v1874
  %1876 = vmatmul.bf16.gmra.mxu0 %v1212
  %v1877 = vpop.f32.mrf.mxu0
  %v1878 = vadd.f32 0.0, %v1877
  %v1879 = vpop.f32.mrf.mxu0
  %v1880 = vadd.f32 0.0, %v1879
  %1881 = vmatmul.bf16.gmra.mxu0 %v1215
  %v1882 = vpop.f32.mrf.mxu0
  %v1883 = vadd.f32 0.0, %v1882
  %v1884 = vpop.f32.mrf.mxu0
  %v1885 = vadd.f32 0.0, %v1884
  %1886 = vdwg.mxu0
  %1887 = vmatpush.bf16.msra.mxu0 0
  %1888 = vmatpush.bf16.msra.mxu0 %v1255
  %1889 = vmatpush.bf16.msra.mxu0 %v988
  %1890 = vmatpush.bf16.msra.mxu0 %v961
  %1891 = vmatpush.bf16.msra.mxu0 %v934
  %1892 = vmatpush.bf16.msra.mxu0 %v907
  %1893 = vmatpush.bf16.msra.mxu0 %v880
  %1894 = vmatpush.bf16.msra.mxu0 %v853
  %1895 = vmatmul.bf16.gmra.mxu0 %v1194
  %v1896 = vpop.f32.mrf.mxu0
  %v1897 = vadd.f32 0.0, %v1896
  %v1898 = vpop.f32.mrf.mxu0
  %v1899 = vadd.f32 0.0, %v1898
  %1900 = vmatmul.bf16.gmra.mxu0 %v1197
  %v1901 = vpop.f32.mrf.mxu0
  %v1902 = vadd.f32 0.0, %v1901
  %v1903 = vpop.f32.mrf.mxu0
  %v1904 = vadd.f32 0.0, %v1903
  %1905 = vmatmul.bf16.gmra.mxu0 %v1200
  %v1906 = vpop.f32.mrf.mxu0
  %v1907 = vadd.f32 0.0, %v1906
  %v1908 = vpop.f32.mrf.mxu0
  %v1909 = vadd.f32 0.0, %v1908
  %1910 = vmatmul.bf16.gmra.mxu0 %v1203
  %v1911 = vpop.f32.mrf.mxu0
  %v1912 = vadd.f32 0.0, %v1911
  %v1913 = vpop.f32.mrf.mxu0
  %v1914 = vadd.f32 0.0, %v1913
  %1915 = vmatmul.bf16.gmra.mxu0 %v1206
  %v1916 = vpop.f32.mrf.mxu0
  %v1917 = vadd.f32 0.0, %v1916
  %v1918 = vpop.f32.mrf.mxu0
  %v1919 = vadd.f32 0.0, %v1918
  %1920 = vmatmul.bf16.gmra.mxu0 %v1209
  %v1921 = vpop.f32.mrf.mxu0
  %v1922 = vadd.f32 0.0, %v1921
  %v1923 = vpop.f32.mrf.mxu0
  %v1924 = vadd.f32 0.0, %v1923
  %1925 = vmatmul.bf16.gmra.mxu0 %v1212
  %v1926 = vpop.f32.mrf.mxu0
  %v1927 = vadd.f32 0.0, %v1926
  %v1928 = vpop.f32.mrf.mxu0
  %v1929 = vadd.f32 0.0, %v1928
  %1930 = vmatmul.bf16.gmra.mxu0 %v1215
  %v1931 = vpop.f32.mrf.mxu0
  %v1932 = vadd.f32 0.0, %v1931
  %v1933 = vpop.f32.mrf.mxu0
  %v1934 = vadd.f32 0.0, %v1933
  %1935 = vdwg.mxu0
  %1936 = vmatpush.bf16.msra.mxu0 0
  %1937 = vmatpush.bf16.msra.mxu0 %v1258
  %1938 = vmatpush.bf16.msra.mxu0 %v989
  %1939 = vmatpush.bf16.msra.mxu0 %v962
  %1940 = vmatpush.bf16.msra.mxu0 %v935
  %1941 = vmatpush.bf16.msra.mxu0 %v908
  %1942 = vmatpush.bf16.msra.mxu0 %v881
  %1943 = vmatpush.bf16.msra.mxu0 %v854
  %1944 = vmatmul.bf16.gmra.mxu0 %v1194
  %v1945 = vpop.f32.mrf.mxu0
  %v1946 = vadd.f32 0.0, %v1945
  %v1947 = vpop.f32.mrf.mxu0
  %v1948 = vadd.f32 0.0, %v1947
  %1949 = vmatmul.bf16.gmra.mxu0 %v1197
  %v1950 = vpop.f32.mrf.mxu0
  %v1951 = vadd.f32 0.0, %v1950
  %v1952 = vpop.f32.mrf.mxu0
  %v1953 = vadd.f32 0.0, %v1952
  %1954 = vmatmul.bf16.gmra.mxu0 %v1200
  %v1955 = vpop.f32.mrf.mxu0
  %v1956 = vadd.f32 0.0, %v1955
  %v1957 = vpop.f32.mrf.mxu0
  %v1958 = vadd.f32 0.0, %v1957
  %1959 = vmatmul.bf16.gmra.mxu0 %v1203
  %v1960 = vpop.f32.mrf.mxu0
  %v1961 = vadd.f32 0.0, %v1960
  %v1962 = vpop.f32.mrf.mxu0
  %v1963 = vadd.f32 0.0, %v1962
  %1964 = vmatmul.bf16.gmra.mxu0 %v1206
  %v1965 = vpop.f32.mrf.mxu0
  %v1966 = vadd.f32 0.0, %v1965
  %v1967 = vpop.f32.mrf.mxu0
  %v1968 = vadd.f32 0.0, %v1967
  %1969 = vmatmul.bf16.gmra.mxu0 %v1209
  %v1970 = vpop.f32.mrf.mxu0
  %v1971 = vadd.f32 0.0, %v1970
  %v1972 = vpop.f32.mrf.mxu0
  %v1973 = vadd.f32 0.0, %v1972
  %1974 = vmatmul.bf16.gmra.mxu0 %v1212
  %v1975 = vpop.f32.mrf.mxu0
  %v1976 = vadd.f32 0.0, %v1975
  %v1977 = vpop.f32.mrf.mxu0
  %v1978 = vadd.f32 0.0, %v1977
  %1979 = vmatmul.bf16.gmra.mxu0 %v1215
  %v1980 = vpop.f32.mrf.mxu0
  %v1981 = vadd.f32 0.0, %v1980
  %v1982 = vpop.f32.mrf.mxu0
  %v1983 = vadd.f32 0.0, %v1982
  %1984 = vdwg.mxu0
  %1985 = vmatpush.bf16.msra.mxu0 0
  %1986 = vmatpush.bf16.msra.mxu0 %v1261
  %1987 = vmatpush.bf16.msra.mxu0 %v990
  %1988 = vmatpush.bf16.msra.mxu0 %v963
  %1989 = vmatpush.bf16.msra.mxu0 %v936
  %1990 = vmatpush.bf16.msra.mxu0 %v909
  %1991 = vmatpush.bf16.msra.mxu0 %v882
  %1992 = vmatpush.bf16.msra.mxu0 %v855
  %1993 = vmatmul.bf16.gmra.mxu0 %v1194
  %v1994 = vpop.f32.mrf.mxu0
  %v1995 = vadd.f32 0.0, %v1994
  %v1996 = vpop.f32.mrf.mxu0
  %v1997 = vadd.f32 0.0, %v1996
  %1998 = vmatmul.bf16.gmra.mxu0 %v1197
  %v1999 = vpop.f32.mrf.mxu0
  %v2000 = vadd.f32 0.0, %v1999
  %v2001 = vpop.f32.mrf.mxu0
  %v2002 = vadd.f32 0.0, %v2001
  %2003 = vmatmul.bf16.gmra.mxu0 %v1200
  %v2004 = vpop.f32.mrf.mxu0
  %v2005 = vadd.f32 0.0, %v2004
  %v2006 = vpop.f32.mrf.mxu0
  %v2007 = vadd.f32 0.0, %v2006
  %2008 = vmatmul.bf16.gmra.mxu0 %v1203
  %v2009 = vpop.f32.mrf.mxu0
  %v2010 = vadd.f32 0.0, %v2009
  %v2011 = vpop.f32.mrf.mxu0
  %v2012 = vadd.f32 0.0, %v2011
  %2013 = vmatmul.bf16.gmra.mxu0 %v1206
  %v2014 = vpop.f32.mrf.mxu0
  %v2015 = vadd.f32 0.0, %v2014
  %v2016 = vpop.f32.mrf.mxu0
  %v2017 = vadd.f32 0.0, %v2016
  %2018 = vmatmul.bf16.gmra.mxu0 %v1209
  %v2019 = vpop.f32.mrf.mxu0
  %v2020 = vadd.f32 0.0, %v2019
  %v2021 = vpop.f32.mrf.mxu0
  %v2022 = vadd.f32 0.0, %v2021
  %2023 = vmatmul.bf16.gmra.mxu0 %v1212
  %v2024 = vpop.f32.mrf.mxu0
  %v2025 = vadd.f32 0.0, %v2024
  %v2026 = vpop.f32.mrf.mxu0
  %v2027 = vadd.f32 0.0, %v2026
  %2028 = vmatmul.bf16.gmra.mxu0 %v1215
  %v2029 = vpop.f32.mrf.mxu0
  %v2030 = vadd.f32 0.0, %v2029
  %v2031 = vpop.f32.mrf.mxu0
  %v2032 = vadd.f32 0.0, %v2031
  %2033 = vdwg.mxu0
  %2034 = vmatpush.bf16.msra.mxu0 0
  %2035 = vmatpush.bf16.msra.mxu0 %v1264
  %2036 = vmatpush.bf16.msra.mxu0 %v991
  %2037 = vmatpush.bf16.msra.mxu0 %v964
  %2038 = vmatpush.bf16.msra.mxu0 %v937
  %2039 = vmatpush.bf16.msra.mxu0 %v910
  %2040 = vmatpush.bf16.msra.mxu0 %v883
  %2041 = vmatpush.bf16.msra.mxu0 %v856
  %2042 = vmatmul.bf16.gmra.mxu0 %v1194
  %v2043 = vpop.f32.mrf.mxu0
  %v2044 = vadd.f32 0.0, %v2043
  %v2045 = vpop.f32.mrf.mxu0
  %v2046 = vadd.f32 0.0, %v2045
  %2047 = vmatmul.bf16.gmra.mxu0 %v1197
  %v2048 = vpop.f32.mrf.mxu0
  %v2049 = vadd.f32 0.0, %v2048
  %v2050 = vpop.f32.mrf.mxu0
  %v2051 = vadd.f32 0.0, %v2050
  %2052 = vmatmul.bf16.gmra.mxu0 %v1200
  %v2053 = vpop.f32.mrf.mxu0
  %v2054 = vadd.f32 0.0, %v2053
  %v2055 = vpop.f32.mrf.mxu0
  %v2056 = vadd.f32 0.0, %v2055
  %2057 = vmatmul.bf16.gmra.mxu0 %v1203
  %v2058 = vpop.f32.mrf.mxu0
  %v2059 = vadd.f32 0.0, %v2058
  %v2060 = vpop.f32.mrf.mxu0
  %v2061 = vadd.f32 0.0, %v2060
  %2062 = vmatmul.bf16.gmra.mxu0 %v1206
  %v2063 = vpop.f32.mrf.mxu0
  %v2064 = vadd.f32 0.0, %v2063
  %v2065 = vpop.f32.mrf.mxu0
  %v2066 = vadd.f32 0.0, %v2065
  %2067 = vmatmul.bf16.gmra.mxu0 %v1209
  %v2068 = vpop.f32.mrf.mxu0
  %v2069 = vadd.f32 0.0, %v2068
  %v2070 = vpop.f32.mrf.mxu0
  %v2071 = vadd.f32 0.0, %v2070
  %2072 = vmatmul.bf16.gmra.mxu0 %v1212
  %v2073 = vpop.f32.mrf.mxu0
  %v2074 = vadd.f32 0.0, %v2073
  %v2075 = vpop.f32.mrf.mxu0
  %v2076 = vadd.f32 0.0, %v2075
  %2077 = vmatmul.bf16.gmra.mxu0 %v1215
  %v2078 = vpop.f32.mrf.mxu0
  %v2079 = vadd.f32 0.0, %v2078
  %v2080 = vpop.f32.mrf.mxu0
  %v2081 = vadd.f32 0.0, %v2080
  %2082 = vdwg.mxu0
  %2083 = vmatpush.bf16.msra.mxu0 0
  %2084 = vmatpush.bf16.msra.mxu0 %v1267
  %2085 = vmatpush.bf16.msra.mxu0 %v992
  %2086 = vmatpush.bf16.msra.mxu0 %v965
  %2087 = vmatpush.bf16.msra.mxu0 %v938
  %2088 = vmatpush.bf16.msra.mxu0 %v911
  %2089 = vmatpush.bf16.msra.mxu0 %v884
  %2090 = vmatpush.bf16.msra.mxu0 %v857
  %2091 = vmatmul.bf16.gmra.mxu0 %v1194
  %v2092 = vpop.f32.mrf.mxu0
  %v2093 = vadd.f32 0.0, %v2092
  %v2094 = vpop.f32.mrf.mxu0
  %v2095 = vadd.f32 0.0, %v2094
  %2096 = vmatmul.bf16.gmra.mxu0 %v1197
  %v2097 = vpop.f32.mrf.mxu0
  %v2098 = vadd.f32 0.0, %v2097
  %v2099 = vpop.f32.mrf.mxu0
  %v2100 = vadd.f32 0.0, %v2099
  %2101 = vmatmul.bf16.gmra.mxu0 %v1200
  %v2102 = vpop.f32.mrf.mxu0
  %v2103 = vadd.f32 0.0, %v2102
  %v2104 = vpop.f32.mrf.mxu0
  %v2105 = vadd.f32 0.0, %v2104
  %2106 = vmatmul.bf16.gmra.mxu0 %v1203
  %v2107 = vpop.f32.mrf.mxu0
  %v2108 = vadd.f32 0.0, %v2107
  %v2109 = vpop.f32.mrf.mxu0
  %v2110 = vadd.f32 0.0, %v2109
  %2111 = vmatmul.bf16.gmra.mxu0 %v1206
  %v2112 = vpop.f32.mrf.mxu0
  %v2113 = vadd.f32 0.0, %v2112
  %v2114 = vpop.f32.mrf.mxu0
  %v2115 = vadd.f32 0.0, %v2114
  %2116 = vmatmul.bf16.gmra.mxu0 %v1209
  %v2117 = vpop.f32.mrf.mxu0
  %v2118 = vadd.f32 0.0, %v2117
  %v2119 = vpop.f32.mrf.mxu0
  %v2120 = vadd.f32 0.0, %v2119
  %2121 = vmatmul.bf16.gmra.mxu0 %v1212
  %v2122 = vpop.f32.mrf.mxu0
  %v2123 = vadd.f32 0.0, %v2122
  %v2124 = vpop.f32.mrf.mxu0
  %v2125 = vadd.f32 0.0, %v2124
  %2126 = vmatmul.bf16.gmra.mxu0 %v1215
  %v2127 = vpop.f32.mrf.mxu0
  %v2128 = vadd.f32 0.0, %v2127
  %v2129 = vpop.f32.mrf.mxu0
  %v2130 = vadd.f32 0.0, %v2129
  %2131 = vdwg.mxu0
  %2132 = vmatpush.bf16.msra.mxu0 0
  %2133 = vmatpush.bf16.msra.mxu0 %v1270
  %2134 = vmatpush.bf16.msra.mxu0 %v993
  %2135 = vmatpush.bf16.msra.mxu0 %v966
  %2136 = vmatpush.bf16.msra.mxu0 %v939
  %2137 = vmatpush.bf16.msra.mxu0 %v912
  %2138 = vmatpush.bf16.msra.mxu0 %v885
  %2139 = vmatpush.bf16.msra.mxu0 %v858
  %2140 = vmatmul.bf16.gmra.mxu0 %v1194
  %v2141 = vpop.f32.mrf.mxu0
  %v2142 = vadd.f32 0.0, %v2141
  %v2143 = vpop.f32.mrf.mxu0
  %v2144 = vadd.f32 0.0, %v2143
  %2145 = vmatmul.bf16.gmra.mxu0 %v1197
  %v2146 = vpop.f32.mrf.mxu0
  %v2147 = vadd.f32 0.0, %v2146
  %v2148 = vpop.f32.mrf.mxu0
  %v2149 = vadd.f32 0.0, %v2148
  %2150 = vmatmul.bf16.gmra.mxu0 %v1200
  %v2151 = vpop.f32.mrf.mxu0
  %v2152 = vadd.f32 0.0, %v2151
  %v2153 = vpop.f32.mrf.mxu0
  %v2154 = vadd.f32 0.0, %v2153
  %2155 = vmatmul.bf16.gmra.mxu0 %v1203
  %v2156 = vpop.f32.mrf.mxu0
  %v2157 = vadd.f32 0.0, %v2156
  %v2158 = vpop.f32.mrf.mxu0
  %v2159 = vadd.f32 0.0, %v2158
  %2160 = vmatmul.bf16.gmra.mxu0 %v1206
  %v2161 = vpop.f32.mrf.mxu0
  %v2162 = vadd.f32 0.0, %v2161
  %v2163 = vpop.f32.mrf.mxu0
  %v2164 = vadd.f32 0.0, %v2163
  %2165 = vmatmul.bf16.gmra.mxu0 %v1209
  %v2166 = vpop.f32.mrf.mxu0
  %v2167 = vadd.f32 0.0, %v2166
  %v2168 = vpop.f32.mrf.mxu0
  %v2169 = vadd.f32 0.0, %v2168
  %2170 = vmatmul.bf16.gmra.mxu0 %v1212
  %v2171 = vpop.f32.mrf.mxu0
  %v2172 = vadd.f32 0.0, %v2171
  %v2173 = vpop.f32.mrf.mxu0
  %v2174 = vadd.f32 0.0, %v2173
  %2175 = vmatmul.bf16.gmra.mxu0 %v1215
  %v2176 = vpop.f32.mrf.mxu0
  %v2177 = vadd.f32 0.0, %v2176
  %v2178 = vpop.f32.mrf.mxu0
  %v2179 = vadd.f32 0.0, %v2178
  %2180 = vdwg.mxu0
  %2181 = vmatpush.bf16.msra.mxu0 0
  %2182 = vmatpush.bf16.msra.mxu0 %v1273
  %2183 = vmatpush.bf16.msra.mxu0 %v994
  %2184 = vmatpush.bf16.msra.mxu0 %v967
  %2185 = vmatpush.bf16.msra.mxu0 %v940
  %2186 = vmatpush.bf16.msra.mxu0 %v913
  %2187 = vmatpush.bf16.msra.mxu0 %v886
  %2188 = vmatpush.bf16.msra.mxu0 %v859
  %2189 = vmatmul.bf16.gmra.mxu0 %v1194
  %v2190 = vpop.f32.mrf.mxu0
  %v2191 = vadd.f32 0.0, %v2190
  %v2192 = vpop.f32.mrf.mxu0
  %v2193 = vadd.f32 0.0, %v2192
  %2194 = vmatmul.bf16.gmra.mxu0 %v1197
  %v2195 = vpop.f32.mrf.mxu0
  %v2196 = vadd.f32 0.0, %v2195
  %v2197 = vpop.f32.mrf.mxu0
  %v2198 = vadd.f32 0.0, %v2197
  %2199 = vmatmul.bf16.gmra.mxu0 %v1200
  %v2200 = vpop.f32.mrf.mxu0
  %v2201 = vadd.f32 0.0, %v2200
  %v2202 = vpop.f32.mrf.mxu0
  %v2203 = vadd.f32 0.0, %v2202
  %2204 = vmatmul.bf16.gmra.mxu0 %v1203
  %v2205 = vpop.f32.mrf.mxu0
  %v2206 = vadd.f32 0.0, %v2205
  %v2207 = vpop.f32.mrf.mxu0
  %v2208 = vadd.f32 0.0, %v2207
  %2209 = vmatmul.bf16.gmra.mxu0 %v1206
  %v2210 = vpop.f32.mrf.mxu0
  %v2211 = vadd.f32 0.0, %v2210
  %v2212 = vpop.f32.mrf.mxu0
  %v2213 = vadd.f32 0.0, %v2212
  %2214 = vmatmul.bf16.gmra.mxu0 %v1209
  %v2215 = vpop.f32.mrf.mxu0
  %v2216 = vadd.f32 0.0, %v2215
  %v2217 = vpop.f32.mrf.mxu0
  %v2218 = vadd.f32 0.0, %v2217
  %2219 = vmatmul.bf16.gmra.mxu0 %v1212
  %v2220 = vpop.f32.mrf.mxu0
  %v2221 = vadd.f32 0.0, %v2220
  %v2222 = vpop.f32.mrf.mxu0
  %v2223 = vadd.f32 0.0, %v2222
  %2224 = vmatmul.bf16.gmra.mxu0 %v1215
  %v2225 = vpop.f32.mrf.mxu0
  %v2226 = vadd.f32 0.0, %v2225
  %v2227 = vpop.f32.mrf.mxu0
  %v2228 = vadd.f32 0.0, %v2227
  %2229 = vdwg.mxu0
  %2230 = vmatpush.bf16.msra.mxu0 0
  %2231 = vmatpush.bf16.msra.mxu0 %v1276
  %2232 = vmatpush.bf16.msra.mxu0 %v995
  %2233 = vmatpush.bf16.msra.mxu0 %v968
  %2234 = vmatpush.bf16.msra.mxu0 %v941
  %2235 = vmatpush.bf16.msra.mxu0 %v914
  %2236 = vmatpush.bf16.msra.mxu0 %v887
  %2237 = vmatpush.bf16.msra.mxu0 %v860
  %2238 = vmatmul.bf16.gmra.mxu0 %v1194
  %v2239 = vpop.f32.mrf.mxu0
  %v2240 = vadd.f32 0.0, %v2239
  %v2241 = vpop.f32.mrf.mxu0
  %v2242 = vadd.f32 0.0, %v2241
  %2243 = vmatmul.bf16.gmra.mxu0 %v1197
  %v2244 = vpop.f32.mrf.mxu0
  %v2245 = vadd.f32 0.0, %v2244
  %v2246 = vpop.f32.mrf.mxu0
  %v2247 = vadd.f32 0.0, %v2246
  %2248 = vmatmul.bf16.gmra.mxu0 %v1200
  %v2249 = vpop.f32.mrf.mxu0
  %v2250 = vadd.f32 0.0, %v2249
  %v2251 = vpop.f32.mrf.mxu0
  %v2252 = vadd.f32 0.0, %v2251
  %2253 = vmatmul.bf16.gmra.mxu0 %v1203
  %v2254 = vpop.f32.mrf.mxu0
  %v2255 = vadd.f32 0.0, %v2254
  %v2256 = vpop.f32.mrf.mxu0
  %v2257 = vadd.f32 0.0, %v2256
  %2258 = vmatmul.bf16.gmra.mxu0 %v1206
  %v2259 = vpop.f32.mrf.mxu0
  %v2260 = vadd.f32 0.0, %v2259
  %v2261 = vpop.f32.mrf.mxu0
  %v2262 = vadd.f32 0.0, %v2261
  %2263 = vmatmul.bf16.gmra.mxu0 %v1209
  %v2264 = vpop.f32.mrf.mxu0
  %v2265 = vadd.f32 0.0, %v2264
  %v2266 = vpop.f32.mrf.mxu0
  %v2267 = vadd.f32 0.0, %v2266
  %2268 = vmatmul.bf16.gmra.mxu0 %v1212
  %v2269 = vpop.f32.mrf.mxu0
  %v2270 = vadd.f32 0.0, %v2269
  %v2271 = vpop.f32.mrf.mxu0
  %v2272 = vadd.f32 0.0, %v2271
  %2273 = vmatmul.bf16.gmra.mxu0 %v1215
  %v2274 = vpop.f32.mrf.mxu0
  %v2275 = vadd.f32 0.0, %v2274
  %v2276 = vpop.f32.mrf.mxu0
  %v2277 = vadd.f32 0.0, %v2276
  %2278 = vdwg.mxu0
  %2279 = vmatpush.bf16.msra.mxu0 0
  %2280 = vmatpush.bf16.msra.mxu0 %v1279
  %2281 = vmatpush.bf16.msra.mxu0 %v996
  %2282 = vmatpush.bf16.msra.mxu0 %v969
  %2283 = vmatpush.bf16.msra.mxu0 %v942
  %2284 = vmatpush.bf16.msra.mxu0 %v915
  %2285 = vmatpush.bf16.msra.mxu0 %v888
  %2286 = vmatpush.bf16.msra.mxu0 %v861
  %2287 = vmatmul.bf16.gmra.mxu0 %v1194
  %v2288 = vpop.f32.mrf.mxu0
  %v2289 = vadd.f32 0.0, %v2288
  %v2290 = vpop.f32.mrf.mxu0
  %v2291 = vadd.f32 0.0, %v2290
  %2292 = vmatmul.bf16.gmra.mxu0 %v1197
  %v2293 = vpop.f32.mrf.mxu0
  %v2294 = vadd.f32 0.0, %v2293
  %v2295 = vpop.f32.mrf.mxu0
  %v2296 = vadd.f32 0.0, %v2295
  %2297 = vmatmul.bf16.gmra.mxu0 %v1200
  %v2298 = vpop.f32.mrf.mxu0
  %v2299 = vadd.f32 0.0, %v2298
  %v2300 = vpop.f32.mrf.mxu0
  %v2301 = vadd.f32 0.0, %v2300
  %2302 = vmatmul.bf16.gmra.mxu0 %v1203
  %v2303 = vpop.f32.mrf.mxu0
  %v2304 = vadd.f32 0.0, %v2303
  %v2305 = vpop.f32.mrf.mxu0
  %v2306 = vadd.f32 0.0, %v2305
  %2307 = vmatmul.bf16.gmra.mxu0 %v1206
  %v2308 = vpop.f32.mrf.mxu0
  %v2309 = vadd.f32 0.0, %v2308
  %v2310 = vpop.f32.mrf.mxu0
  %v2311 = vadd.f32 0.0, %v2310
  %2312 = vmatmul.bf16.gmra.mxu0 %v1209
  %v2313 = vpop.f32.mrf.mxu0
  %v2314 = vadd.f32 0.0, %v2313
  %v2315 = vpop.f32.mrf.mxu0
  %v2316 = vadd.f32 0.0, %v2315
  %2317 = vmatmul.bf16.gmra.mxu0 %v1212
  %v2318 = vpop.f32.mrf.mxu0
  %v2319 = vadd.f32 0.0, %v2318
  %v2320 = vpop.f32.mrf.mxu0
  %v2321 = vadd.f32 0.0, %v2320
  %2322 = vmatmul.bf16.gmra.mxu0 %v1215
  %v2323 = vpop.f32.mrf.mxu0
  %v2324 = vadd.f32 0.0, %v2323
  %v2325 = vpop.f32.mrf.mxu0
  %v2326 = vadd.f32 0.0, %v2325
  %2327 = vdwg.mxu0
  %2328 = vmatpush.bf16.msra.mxu0 0
  %2329 = vmatpush.bf16.msra.mxu0 %v1282
  %2330 = vmatpush.bf16.msra.mxu0 %v997
  %2331 = vmatpush.bf16.msra.mxu0 %v970
  %2332 = vmatpush.bf16.msra.mxu0 %v943
  %2333 = vmatpush.bf16.msra.mxu0 %v916
  %2334 = vmatpush.bf16.msra.mxu0 %v889
  %2335 = vmatpush.bf16.msra.mxu0 %v862
  %2336 = vmatmul.bf16.gmra.mxu0 %v1194
  %v2337 = vpop.f32.mrf.mxu0
  %v2338 = vadd.f32 0.0, %v2337
  %v2339 = vpop.f32.mrf.mxu0
  %v2340 = vadd.f32 0.0, %v2339
  %2341 = vmatmul.bf16.gmra.mxu0 %v1197
  %v2342 = vpop.f32.mrf.mxu0
  %v2343 = vadd.f32 0.0, %v2342
  %v2344 = vpop.f32.mrf.mxu0
  %v2345 = vadd.f32 0.0, %v2344
  %2346 = vmatmul.bf16.gmra.mxu0 %v1200
  %v2347 = vpop.f32.mrf.mxu0
  %v2348 = vadd.f32 0.0, %v2347
  %v2349 = vpop.f32.mrf.mxu0
  %v2350 = vadd.f32 0.0, %v2349
  %2351 = vmatmul.bf16.gmra.mxu0 %v1203
  %v2352 = vpop.f32.mrf.mxu0
  %v2353 = vadd.f32 0.0, %v2352
  %v2354 = vpop.f32.mrf.mxu0
  %v2355 = vadd.f32 0.0, %v2354
  %2356 = vmatmul.bf16.gmra.mxu0 %v1206
  %v2357 = vpop.f32.mrf.mxu0
  %v2358 = vadd.f32 0.0, %v2357
  %v2359 = vpop.f32.mrf.mxu0
  %v2360 = vadd.f32 0.0, %v2359
  %2361 = vmatmul.bf16.gmra.mxu0 %v1209
  %v2362 = vpop.f32.mrf.mxu0
  %v2363 = vadd.f32 0.0, %v2362
  %v2364 = vpop.f32.mrf.mxu0
  %v2365 = vadd.f32 0.0, %v2364
  %2366 = vmatmul.bf16.gmra.mxu0 %v1212
  %v2367 = vpop.f32.mrf.mxu0
  %v2368 = vadd.f32 0.0, %v2367
  %v2369 = vpop.f32.mrf.mxu0
  %v2370 = vadd.f32 0.0, %v2369
  %2371 = vmatmul.bf16.gmra.mxu0 %v1215
  %v2372 = vpop.f32.mrf.mxu0
  %v2373 = vadd.f32 0.0, %v2372
  %v2374 = vpop.f32.mrf.mxu0
  %v2375 = vadd.f32 0.0, %v2374
  %2376 = vdwg.mxu0
  %2377 = vmatpush.bf16.msra.mxu0 0
  %2378 = vmatpush.bf16.msra.mxu0 %v1285
  %2379 = vmatpush.bf16.msra.mxu0 %v998
  %2380 = vmatpush.bf16.msra.mxu0 %v971
  %2381 = vmatpush.bf16.msra.mxu0 %v944
  %2382 = vmatpush.bf16.msra.mxu0 %v917
  %2383 = vmatpush.bf16.msra.mxu0 %v890
  %2384 = vmatpush.bf16.msra.mxu0 %v863
  %2385 = vmatmul.bf16.gmra.mxu0 %v1194
  %v2386 = vpop.f32.mrf.mxu0
  %v2387 = vadd.f32 0.0, %v2386
  %v2388 = vpop.f32.mrf.mxu0
  %v2389 = vadd.f32 0.0, %v2388
  %2390 = vmatmul.bf16.gmra.mxu0 %v1197
  %v2391 = vpop.f32.mrf.mxu0
  %v2392 = vadd.f32 0.0, %v2391
  %v2393 = vpop.f32.mrf.mxu0
  %v2394 = vadd.f32 0.0, %v2393
  %2395 = vmatmul.bf16.gmra.mxu0 %v1200
  %v2396 = vpop.f32.mrf.mxu0
  %v2397 = vadd.f32 0.0, %v2396
  %v2398 = vpop.f32.mrf.mxu0
  %v2399 = vadd.f32 0.0, %v2398
  %2400 = vmatmul.bf16.gmra.mxu0 %v1203
  %v2401 = vpop.f32.mrf.mxu0
  %v2402 = vadd.f32 0.0, %v2401
  %v2403 = vpop.f32.mrf.mxu0
  %v2404 = vadd.f32 0.0, %v2403
  %2405 = vmatmul.bf16.gmra.mxu0 %v1206
  %v2406 = vpop.f32.mrf.mxu0
  %v2407 = vadd.f32 0.0, %v2406
  %v2408 = vpop.f32.mrf.mxu0
  %v2409 = vadd.f32 0.0, %v2408
  %2410 = vmatmul.bf16.gmra.mxu0 %v1209
  %v2411 = vpop.f32.mrf.mxu0
  %v2412 = vadd.f32 0.0, %v2411
  %v2413 = vpop.f32.mrf.mxu0
  %v2414 = vadd.f32 0.0, %v2413
  %2415 = vmatmul.bf16.gmra.mxu0 %v1212
  %v2416 = vpop.f32.mrf.mxu0
  %v2417 = vadd.f32 0.0, %v2416
  %v2418 = vpop.f32.mrf.mxu0
  %v2419 = vadd.f32 0.0, %v2418
  %2420 = vmatmul.bf16.gmra.mxu0 %v1215
  %v2421 = vpop.f32.mrf.mxu0
  %v2422 = vadd.f32 0.0, %v2421
  %v2423 = vpop.f32.mrf.mxu0
  %v2424 = vadd.f32 0.0, %v2423
  %2425 = vdwg.mxu0
  %2426 = vmatpush.bf16.msra.mxu0 0
  %2427 = vmatpush.bf16.msra.mxu0 %v1288
  %2428 = vmatpush.bf16.msra.mxu0 %v999
  %2429 = vmatpush.bf16.msra.mxu0 %v972
  %2430 = vmatpush.bf16.msra.mxu0 %v945
  %2431 = vmatpush.bf16.msra.mxu0 %v918
  %2432 = vmatpush.bf16.msra.mxu0 %v891
  %2433 = vmatpush.bf16.msra.mxu0 %v864
  %2434 = vmatmul.bf16.gmra.mxu0 %v1194
  %v2435 = vpop.f32.mrf.mxu0
  %v2436 = vadd.f32 0.0, %v2435
  %v2437 = vpop.f32.mrf.mxu0
  %v2438 = vadd.f32 0.0, %v2437
  %2439 = vmatmul.bf16.gmra.mxu0 %v1197
  %v2440 = vpop.f32.mrf.mxu0
  %v2441 = vadd.f32 0.0, %v2440
  %v2442 = vpop.f32.mrf.mxu0
  %v2443 = vadd.f32 0.0, %v2442
  %2444 = vmatmul.bf16.gmra.mxu0 %v1200
  %v2445 = vpop.f32.mrf.mxu0
  %v2446 = vadd.f32 0.0, %v2445
  %v2447 = vpop.f32.mrf.mxu0
  %v2448 = vadd.f32 0.0, %v2447
  %2449 = vmatmul.bf16.gmra.mxu0 %v1203
  %v2450 = vpop.f32.mrf.mxu0
  %v2451 = vadd.f32 0.0, %v2450
  %v2452 = vpop.f32.mrf.mxu0
  %v2453 = vadd.f32 0.0, %v2452
  %2454 = vmatmul.bf16.gmra.mxu0 %v1206
  %v2455 = vpop.f32.mrf.mxu0
  %v2456 = vadd.f32 0.0, %v2455
  %v2457 = vpop.f32.mrf.mxu0
  %v2458 = vadd.f32 0.0, %v2457
  %2459 = vmatmul.bf16.gmra.mxu0 %v1209
  %v2460 = vpop.f32.mrf.mxu0
  %v2461 = vadd.f32 0.0, %v2460
  %v2462 = vpop.f32.mrf.mxu0
  %v2463 = vadd.f32 0.0, %v2462
  %2464 = vmatmul.bf16.gmra.mxu0 %v1212
  %v2465 = vpop.f32.mrf.mxu0
  %v2466 = vadd.f32 0.0, %v2465
  %v2467 = vpop.f32.mrf.mxu0
  %v2468 = vadd.f32 0.0, %v2467
  %2469 = vmatmul.bf16.gmra.mxu0 %v1215
  %v2470 = vpop.f32.mrf.mxu0
  %v2471 = vadd.f32 0.0, %v2470
  %v2472 = vpop.f32.mrf.mxu0
  %v2473 = vadd.f32 0.0, %v2472
  %2474 = vdwg.mxu0
  %2475 = vmatpush.bf16.msra.mxu0 0
  %2476 = vmatpush.bf16.msra.mxu0 %v1291
  %2477 = vmatpush.bf16.msra.mxu0 %v1000
  %2478 = vmatpush.bf16.msra.mxu0 %v973
  %2479 = vmatpush.bf16.msra.mxu0 %v946
  %2480 = vmatpush.bf16.msra.mxu0 %v919
  %2481 = vmatpush.bf16.msra.mxu0 %v892
  %2482 = vmatpush.bf16.msra.mxu0 %v865
  %2483 = vmatmul.bf16.gmra.mxu0 %v1194
  %v2484 = vpop.f32.mrf.mxu0
  %v2485 = vadd.f32 0.0, %v2484
  %v2486 = vpop.f32.mrf.mxu0
  %v2487 = vadd.f32 0.0, %v2486
  %2488 = vmatmul.bf16.gmra.mxu0 %v1197
  %v2489 = vpop.f32.mrf.mxu0
  %v2490 = vadd.f32 0.0, %v2489
  %v2491 = vpop.f32.mrf.mxu0
  %v2492 = vadd.f32 0.0, %v2491
  %2493 = vmatmul.bf16.gmra.mxu0 %v1200
  %v2494 = vpop.f32.mrf.mxu0
  %v2495 = vadd.f32 0.0, %v2494
  %v2496 = vpop.f32.mrf.mxu0
  %v2497 = vadd.f32 0.0, %v2496
  %2498 = vmatmul.bf16.gmra.mxu0 %v1203
  %v2499 = vpop.f32.mrf.mxu0
  %v2500 = vadd.f32 0.0, %v2499
  %v2501 = vpop.f32.mrf.mxu0
  %v2502 = vadd.f32 0.0, %v2501
  %2503 = vmatmul.bf16.gmra.mxu0 %v1206
  %v2504 = vpop.f32.mrf.mxu0
  %v2505 = vadd.f32 0.0, %v2504
  %v2506 = vpop.f32.mrf.mxu0
  %v2507 = vadd.f32 0.0, %v2506
  %2508 = vmatmul.bf16.gmra.mxu0 %v1209
  %v2509 = vpop.f32.mrf.mxu0
  %v2510 = vadd.f32 0.0, %v2509
  %v2511 = vpop.f32.mrf.mxu0
  %v2512 = vadd.f32 0.0, %v2511
  %2513 = vmatmul.bf16.gmra.mxu0 %v1212
  %v2514 = vpop.f32.mrf.mxu0
  %v2515 = vadd.f32 0.0, %v2514
  %v2516 = vpop.f32.mrf.mxu0
  %v2517 = vadd.f32 0.0, %v2516
  %2518 = vmatmul.bf16.gmra.mxu0 %v1215
  %v2519 = vpop.f32.mrf.mxu0
  %v2520 = vadd.f32 0.0, %v2519
  %v2521 = vpop.f32.mrf.mxu0
  %v2522 = vadd.f32 0.0, %v2521
  %2523 = vdwg.mxu0
  %2524 = vmatpush.bf16.msra.mxu0 0
  %2525 = vmatpush.bf16.msra.mxu0 %v1294
  %2526 = vmatpush.bf16.msra.mxu0 %v1001
  %2527 = vmatpush.bf16.msra.mxu0 %v974
  %2528 = vmatpush.bf16.msra.mxu0 %v947
  %2529 = vmatpush.bf16.msra.mxu0 %v920
  %2530 = vmatpush.bf16.msra.mxu0 %v893
  %2531 = vmatpush.bf16.msra.mxu0 %v866
  %2532 = vmatmul.bf16.gmra.mxu0 %v1194
  %v2533 = vpop.f32.mrf.mxu0
  %v2534 = vadd.f32 0.0, %v2533
  %v2535 = vpop.f32.mrf.mxu0
  %v2536 = vadd.f32 0.0, %v2535
  %2537 = vmatmul.bf16.gmra.mxu0 %v1197
  %v2538 = vpop.f32.mrf.mxu0
  %v2539 = vadd.f32 0.0, %v2538
  %v2540 = vpop.f32.mrf.mxu0
  %v2541 = vadd.f32 0.0, %v2540
  %2542 = vmatmul.bf16.gmra.mxu0 %v1200
  %v2543 = vpop.f32.mrf.mxu0
  %v2544 = vadd.f32 0.0, %v2543
  %v2545 = vpop.f32.mrf.mxu0
  %v2546 = vadd.f32 0.0, %v2545
  %2547 = vmatmul.bf16.gmra.mxu0 %v1203
  %v2548 = vpop.f32.mrf.mxu0
  %v2549 = vadd.f32 0.0, %v2548
  %v2550 = vpop.f32.mrf.mxu0
  %v2551 = vadd.f32 0.0, %v2550
  %2552 = vmatmul.bf16.gmra.mxu0 %v1206
  %v2553 = vpop.f32.mrf.mxu0
  %v2554 = vadd.f32 0.0, %v2553
  %v2555 = vpop.f32.mrf.mxu0
  %v2556 = vadd.f32 0.0, %v2555
  %2557 = vmatmul.bf16.gmra.mxu0 %v1209
  %v2558 = vpop.f32.mrf.mxu0
  %v2559 = vadd.f32 0.0, %v2558
  %v2560 = vpop.f32.mrf.mxu0
  %v2561 = vadd.f32 0.0, %v2560
  %2562 = vmatmul.bf16.gmra.mxu0 %v1212
  %v2563 = vpop.f32.mrf.mxu0
  %v2564 = vadd.f32 0.0, %v2563
  %v2565 = vpop.f32.mrf.mxu0
  %v2566 = vadd.f32 0.0, %v2565
  %2567 = vmatmul.bf16.gmra.mxu0 %v1215
  %v2568 = vpop.f32.mrf.mxu0
  %v2569 = vadd.f32 0.0, %v2568
  %v2570 = vpop.f32.mrf.mxu0
  %v2571 = vadd.f32 0.0, %v2570
  %2572 = vdwg.mxu0
  %2573 = vmatpush.bf16.msra.mxu0 0
  %2574 = vmatpush.bf16.msra.mxu0 %v1297
  %2575 = vmatpush.bf16.msra.mxu0 %v1002
  %2576 = vmatpush.bf16.msra.mxu0 %v975
  %2577 = vmatpush.bf16.msra.mxu0 %v948
  %2578 = vmatpush.bf16.msra.mxu0 %v921
  %2579 = vmatpush.bf16.msra.mxu0 %v894
  %2580 = vmatpush.bf16.msra.mxu0 %v867
  %2581 = vmatmul.bf16.gmra.mxu0 %v1194
  %v2582 = vpop.f32.mrf.mxu0
  %v2583 = vadd.f32 0.0, %v2582
  %v2584 = vpop.f32.mrf.mxu0
  %v2585 = vadd.f32 0.0, %v2584
  %2586 = vmatmul.bf16.gmra.mxu0 %v1197
  %v2587 = vpop.f32.mrf.mxu0
  %v2588 = vadd.f32 0.0, %v2587
  %v2589 = vpop.f32.mrf.mxu0
  %v2590 = vadd.f32 0.0, %v2589
  %2591 = vmatmul.bf16.gmra.mxu0 %v1200
  %v2592 = vpop.f32.mrf.mxu0
  %v2593 = vadd.f32 0.0, %v2592
  %v2594 = vpop.f32.mrf.mxu0
  %v2595 = vadd.f32 0.0, %v2594
  %2596 = vmatmul.bf16.gmra.mxu0 %v1203
  %v2597 = vpop.f32.mrf.mxu0
  %v2598 = vadd.f32 0.0, %v2597
  %v2599 = vpop.f32.mrf.mxu0
  %v2600 = vadd.f32 0.0, %v2599
  %2601 = vmatmul.bf16.gmra.mxu0 %v1206
  %v2602 = vpop.f32.mrf.mxu0
  %v2603 = vadd.f32 0.0, %v2602
  %v2604 = vpop.f32.mrf.mxu0
  %v2605 = vadd.f32 0.0, %v2604
  %2606 = vmatmul.bf16.gmra.mxu0 %v1209
  %v2607 = vpop.f32.mrf.mxu0
  %v2608 = vadd.f32 0.0, %v2607
  %v2609 = vpop.f32.mrf.mxu0
  %v2610 = vadd.f32 0.0, %v2609
  %2611 = vmatmul.bf16.gmra.mxu0 %v1212
  %v2612 = vpop.f32.mrf.mxu0
  %v2613 = vadd.f32 0.0, %v2612
  %v2614 = vpop.f32.mrf.mxu0
  %v2615 = vadd.f32 0.0, %v2614
  %2616 = vmatmul.bf16.gmra.mxu0 %v1215
  %v2617 = vpop.f32.mrf.mxu0
  %v2618 = vadd.f32 0.0, %v2617
  %v2619 = vpop.f32.mrf.mxu0
  %v2620 = vadd.f32 0.0, %v2619
  %2621 = vdwg.mxu0
  %v2622 = vmax.f32 %v1309, %v1319
  %v2623 = vmax.f32 %v1358, %v1368
  %v2624 = vmax.f32 %v1407, %v1417
  %v2625 = vmax.f32 %v1456, %v1466
  %v2626 = vmax.f32 %v1505, %v1515
  %v2627 = vmax.f32 %v1554, %v1564
  %v2628 = vmax.f32 %v1603, %v1613
  %v2629 = vmax.f32 %v1652, %v1662
  %v2630 = vmax.f32 %v1701, %v1711
  %v2631 = vmax.f32 %v1750, %v1760
  %v2632 = vmax.f32 %v1799, %v1809
  %v2633 = vmax.f32 %v1848, %v1858
  %v2634 = vmax.f32 %v1897, %v1907
  %v2635 = vmax.f32 %v1946, %v1956
  %v2636 = vmax.f32 %v1995, %v2005
  %v2637 = vmax.f32 %v2044, %v2054
  %v2638 = vmax.f32 %v2093, %v2103
  %v2639 = vmax.f32 %v2142, %v2152
  %v2640 = vmax.f32 %v2191, %v2201
  %v2641 = vmax.f32 %v2240, %v2250
  %v2642 = vmax.f32 %v2289, %v2299
  %v2643 = vmax.f32 %v2338, %v2348
  %v2644 = vmax.f32 %v2387, %v2397
  %v2645 = vmax.f32 %v2436, %v2446
  %v2646 = vmax.f32 %v2485, %v2495
  %v2647 = vmax.f32 %v2534, %v2544
  %v2648 = vmax.f32 %v2583, %v2593
  %v2649 = vmax.f32 %v1311, %v1321
  %v2650 = vmax.f32 %v1360, %v1370
  %v2651 = vmax.f32 %v1409, %v1419
  %v2652 = vmax.f32 %v1458, %v1468
  %v2653 = vmax.f32 %v1507, %v1517
  %v2654 = vmax.f32 %v1556, %v1566
  %v2655 = vmax.f32 %v1605, %v1615
  %v2656 = vmax.f32 %v1654, %v1664
  %v2657 = vmax.f32 %v1703, %v1713
  %v2658 = vmax.f32 %v1752, %v1762
  %v2659 = vmax.f32 %v1801, %v1811
  %v2660 = vmax.f32 %v1850, %v1860
  %v2661 = vmax.f32 %v1899, %v1909
  %v2662 = vmax.f32 %v1948, %v1958
  %v2663 = vmax.f32 %v1997, %v2007
  %v2664 = vmax.f32 %v2046, %v2056
  %v2665 = vmax.f32 %v2095, %v2105
  %v2666 = vmax.f32 %v2144, %v2154
  %v2667 = vmax.f32 %v2193, %v2203
  %v2668 = vmax.f32 %v2242, %v2252
  %v2669 = vmax.f32 %v2291, %v2301
  %v2670 = vmax.f32 %v2340, %v2350
  %v2671 = vmax.f32 %v2389, %v2399
  %v2672 = vmax.f32 %v2438, %v2448
  %v2673 = vmax.f32 %v2487, %v2497
  %v2674 = vmax.f32 %v2536, %v2546
  %v2675 = vmax.f32 %v2585, %v2595
  %v2676 = vmax.f32 %v1314, %v1324
  %v2677 = vmax.f32 %v1363, %v1373
  %v2678 = vmax.f32 %v1412, %v1422
  %v2679 = vmax.f32 %v1461, %v1471
  %v2680 = vmax.f32 %v1510, %v1520
  %v2681 = vmax.f32 %v1559, %v1569
  %v2682 = vmax.f32 %v1608, %v1618
  %v2683 = vmax.f32 %v1657, %v1667
  %v2684 = vmax.f32 %v1706, %v1716
  %v2685 = vmax.f32 %v1755, %v1765
  %v2686 = vmax.f32 %v1804, %v1814
  %v2687 = vmax.f32 %v1853, %v1863
  %v2688 = vmax.f32 %v1902, %v1912
  %v2689 = vmax.f32 %v1951, %v1961
  %v2690 = vmax.f32 %v2000, %v2010
  %v2691 = vmax.f32 %v2049, %v2059
  %v2692 = vmax.f32 %v2098, %v2108
  %v2693 = vmax.f32 %v2147, %v2157
  %v2694 = vmax.f32 %v2196, %v2206
  %v2695 = vmax.f32 %v2245, %v2255
  %v2696 = vmax.f32 %v2294, %v2304
  %v2697 = vmax.f32 %v2343, %v2353
  %v2698 = vmax.f32 %v2392, %v2402
  %v2699 = vmax.f32 %v2441, %v2451
  %v2700 = vmax.f32 %v2490, %v2500
  %v2701 = vmax.f32 %v2539, %v2549
  %v2702 = vmax.f32 %v2588, %v2598
  %v2703 = vmax.f32 %v1316, %v1326
  %v2704 = vmax.f32 %v1365, %v1375
  %v2705 = vmax.f32 %v1414, %v1424
  %v2706 = vmax.f32 %v1463, %v1473
  %v2707 = vmax.f32 %v1512, %v1522
  %v2708 = vmax.f32 %v1561, %v1571
  %v2709 = vmax.f32 %v1610, %v1620
  %v2710 = vmax.f32 %v1659, %v1669
  %v2711 = vmax.f32 %v1708, %v1718
  %v2712 = vmax.f32 %v1757, %v1767
  %v2713 = vmax.f32 %v1806, %v1816
  %v2714 = vmax.f32 %v1855, %v1865
  %v2715 = vmax.f32 %v1904, %v1914
  %v2716 = vmax.f32 %v1953, %v1963
  %v2717 = vmax.f32 %v2002, %v2012
  %v2718 = vmax.f32 %v2051, %v2061
  %v2719 = vmax.f32 %v2100, %v2110
  %v2720 = vmax.f32 %v2149, %v2159
  %v2721 = vmax.f32 %v2198, %v2208
  %v2722 = vmax.f32 %v2247, %v2257
  %v2723 = vmax.f32 %v2296, %v2306
  %v2724 = vmax.f32 %v2345, %v2355
  %v2725 = vmax.f32 %v2394, %v2404
  %v2726 = vmax.f32 %v2443, %v2453
  %v2727 = vmax.f32 %v2492, %v2502
  %v2728 = vmax.f32 %v2541, %v2551
  %v2729 = vmax.f32 %v2590, %v2600
  %v2730 = vmax.f32 %v1329, %v1339
  %v2731 = vmax.f32 %v1378, %v1388
  %v2732 = vmax.f32 %v1427, %v1437
  %v2733 = vmax.f32 %v1476, %v1486
  %v2734 = vmax.f32 %v1525, %v1535
  %v2735 = vmax.f32 %v1574, %v1584
  %v2736 = vmax.f32 %v1623, %v1633
  %v2737 = vmax.f32 %v1672, %v1682
  %v2738 = vmax.f32 %v1721, %v1731
  %v2739 = vmax.f32 %v1770, %v1780
  %v2740 = vmax.f32 %v1819, %v1829
  %v2741 = vmax.f32 %v1868, %v1878
  %v2742 = vmax.f32 %v1917, %v1927
  %v2743 = vmax.f32 %v1966, %v1976
  %v2744 = vmax.f32 %v2015, %v2025
  %v2745 = vmax.f32 %v2064, %v2074
  %v2746 = vmax.f32 %v2113, %v2123
  %v2747 = vmax.f32 %v2162, %v2172
  %v2748 = vmax.f32 %v2211, %v2221
  %v2749 = vmax.f32 %v2260, %v2270
  %v2750 = vmax.f32 %v2309, %v2319
  %v2751 = vmax.f32 %v2358, %v2368
  %v2752 = vmax.f32 %v2407, %v2417
  %v2753 = vmax.f32 %v2456, %v2466
  %v2754 = vmax.f32 %v2505, %v2515
  %v2755 = vmax.f32 %v2554, %v2564
  %v2756 = vmax.f32 %v2603, %v2613
  %v2757 = vmax.f32 %v1331, %v1341
  %v2758 = vmax.f32 %v1380, %v1390
  %v2759 = vmax.f32 %v1429, %v1439
  %v2760 = vmax.f32 %v1478, %v1488
  %v2761 = vmax.f32 %v1527, %v1537
  %v2762 = vmax.f32 %v1576, %v1586
  %v2763 = vmax.f32 %v1625, %v1635
  %v2764 = vmax.f32 %v1674, %v1684
  %v2765 = vmax.f32 %v1723, %v1733
  %v2766 = vmax.f32 %v1772, %v1782
  %v2767 = vmax.f32 %v1821, %v1831
  %v2768 = vmax.f32 %v1870, %v1880
  %v2769 = vmax.f32 %v1919, %v1929
  %v2770 = vmax.f32 %v1968, %v1978
  %v2771 = vmax.f32 %v2017, %v2027
  %v2772 = vmax.f32 %v2066, %v2076
  %v2773 = vmax.f32 %v2115, %v2125
  %v2774 = vmax.f32 %v2164, %v2174
  %v2775 = vmax.f32 %v2213, %v2223
  %v2776 = vmax.f32 %v2262, %v2272
  %v2777 = vmax.f32 %v2311, %v2321
  %v2778 = vmax.f32 %v2360, %v2370
  %v2779 = vmax.f32 %v2409, %v2419
  %v2780 = vmax.f32 %v2458, %v2468
  %v2781 = vmax.f32 %v2507, %v2517
  %v2782 = vmax.f32 %v2556, %v2566
  %v2783 = vmax.f32 %v2605, %v2615
  %v2784 = vmax.f32 %v1334, %v1344
  %v2785 = vmax.f32 %v1383, %v1393
  %v2786 = vmax.f32 %v1432, %v1442
  %v2787 = vmax.f32 %v1481, %v1491
  %v2788 = vmax.f32 %v1530, %v1540
  %v2789 = vmax.f32 %v1579, %v1589
  %v2790 = vmax.f32 %v1628, %v1638
  %v2791 = vmax.f32 %v1677, %v1687
  %v2792 = vmax.f32 %v1726, %v1736
  %v2793 = vmax.f32 %v1775, %v1785
  %v2794 = vmax.f32 %v1824, %v1834
  %v2795 = vmax.f32 %v1873, %v1883
  %v2796 = vmax.f32 %v1922, %v1932
  %v2797 = vmax.f32 %v1971, %v1981
  %v2798 = vmax.f32 %v2020, %v2030
  %v2799 = vmax.f32 %v2069, %v2079
  %v2800 = vmax.f32 %v2118, %v2128
  %v2801 = vmax.f32 %v2167, %v2177
  %v2802 = vmax.f32 %v2216, %v2226
  %v2803 = vmax.f32 %v2265, %v2275
  %v2804 = vmax.f32 %v2314, %v2324
  %v2805 = vmax.f32 %v2363, %v2373
  %v2806 = vmax.f32 %v2412, %v2422
  %v2807 = vmax.f32 %v2461, %v2471
  %v2808 = vmax.f32 %v2510, %v2520
  %v2809 = vmax.f32 %v2559, %v2569
  %v2810 = vmax.f32 %v2608, %v2618
  %v2811 = vmax.f32 %v1336, %v1346
  %v2812 = vmax.f32 %v1385, %v1395
  %v2813 = vmax.f32 %v1434, %v1444
  %v2814 = vmax.f32 %v1483, %v1493
  %v2815 = vmax.f32 %v1532, %v1542
  %v2816 = vmax.f32 %v1581, %v1591
  %v2817 = vmax.f32 %v1630, %v1640
  %v2818 = vmax.f32 %v1679, %v1689
  %v2819 = vmax.f32 %v1728, %v1738
  %v2820 = vmax.f32 %v1777, %v1787
  %v2821 = vmax.f32 %v1826, %v1836
  %v2822 = vmax.f32 %v1875, %v1885
  %v2823 = vmax.f32 %v1924, %v1934
  %v2824 = vmax.f32 %v1973, %v1983
  %v2825 = vmax.f32 %v2022, %v2032
  %v2826 = vmax.f32 %v2071, %v2081
  %v2827 = vmax.f32 %v2120, %v2130
  %v2828 = vmax.f32 %v2169, %v2179
  %v2829 = vmax.f32 %v2218, %v2228
  %v2830 = vmax.f32 %v2267, %v2277
  %v2831 = vmax.f32 %v2316, %v2326
  %v2832 = vmax.f32 %v2365, %v2375
  %v2833 = vmax.f32 %v2414, %v2424
  %v2834 = vmax.f32 %v2463, %v2473
  %v2835 = vmax.f32 %v2512, %v2522
  %v2836 = vmax.f32 %v2561, %v2571
  %v2837 = vmax.f32 %v2610, %v2620
  %v2838 = vmax.f32 %v2622, %v2730
  %v2839 = vmax.f32 %v2623, %v2731
  %v2840 = vmax.f32 %v2624, %v2732
  %v2841 = vmax.f32 %v2625, %v2733
  %v2842 = vmax.f32 %v2626, %v2734
  %v2843 = vmax.f32 %v2627, %v2735
  %v2844 = vmax.f32 %v2628, %v2736
  %v2845 = vmax.f32 %v2629, %v2737
  %v2846 = vmax.f32 %v2630, %v2738
  %v2847 = vmax.f32 %v2631, %v2739
  %v2848 = vmax.f32 %v2632, %v2740
  %v2849 = vmax.f32 %v2633, %v2741
  %v2850 = vmax.f32 %v2634, %v2742
  %v2851 = vmax.f32 %v2635, %v2743
  %v2852 = vmax.f32 %v2636, %v2744
  %v2853 = vmax.f32 %v2637, %v2745
  %v2854 = vmax.f32 %v2638, %v2746
  %v2855 = vmax.f32 %v2639, %v2747
  %v2856 = vmax.f32 %v2640, %v2748
  %v2857 = vmax.f32 %v2641, %v2749
  %v2858 = vmax.f32 %v2642, %v2750
  %v2859 = vmax.f32 %v2643, %v2751
  %v2860 = vmax.f32 %v2644, %v2752
  %v2861 = vmax.f32 %v2645, %v2753
  %v2862 = vmax.f32 %v2646, %v2754
  %v2863 = vmax.f32 %v2647, %v2755
  %v2864 = vmax.f32 %v2648, %v2756
  %v2865 = vmax.f32 %v2649, %v2757
  %v2866 = vmax.f32 %v2650, %v2758
  %v2867 = vmax.f32 %v2651, %v2759
  %v2868 = vmax.f32 %v2652, %v2760
  %v2869 = vmax.f32 %v2653, %v2761
  %v2870 = vmax.f32 %v2654, %v2762
  %v2871 = vmax.f32 %v2655, %v2763
  %v2872 = vmax.f32 %v2656, %v2764
  %v2873 = vmax.f32 %v2657, %v2765
  %v2874 = vmax.f32 %v2658, %v2766
  %v2875 = vmax.f32 %v2659, %v2767
  %v2876 = vmax.f32 %v2660, %v2768
  %v2877 = vmax.f32 %v2661, %v2769
  %v2878 = vmax.f32 %v2662, %v2770
  %v2879 = vmax.f32 %v2663, %v2771
  %v2880 = vmax.f32 %v2664, %v2772
  %v2881 = vmax.f32 %v2665, %v2773
  %v2882 = vmax.f32 %v2666, %v2774
  %v2883 = vmax.f32 %v2667, %v2775
  %v2884 = vmax.f32 %v2668, %v2776
  %v2885 = vmax.f32 %v2669, %v2777
  %v2886 = vmax.f32 %v2670, %v2778
  %v2887 = vmax.f32 %v2671, %v2779
  %v2888 = vmax.f32 %v2672, %v2780
  %v2889 = vmax.f32 %v2673, %v2781
  %v2890 = vmax.f32 %v2674, %v2782
  %v2891 = vmax.f32 %v2675, %v2783
  %v2892 = vmax.f32 %v2676, %v2784
  %v2893 = vmax.f32 %v2677, %v2785
  %v2894 = vmax.f32 %v2678, %v2786
  %v2895 = vmax.f32 %v2679, %v2787
  %v2896 = vmax.f32 %v2680, %v2788
  %v2897 = vmax.f32 %v2681, %v2789
  %v2898 = vmax.f32 %v2682, %v2790
  %v2899 = vmax.f32 %v2683, %v2791
  %v2900 = vmax.f32 %v2684, %v2792
  %v2901 = vmax.f32 %v2685, %v2793
  %v2902 = vmax.f32 %v2686, %v2794
  %v2903 = vmax.f32 %v2687, %v2795
  %v2904 = vmax.f32 %v2688, %v2796
  %v2905 = vmax.f32 %v2689, %v2797
  %v2906 = vmax.f32 %v2690, %v2798
  %v2907 = vmax.f32 %v2691, %v2799
  %v2908 = vmax.f32 %v2692, %v2800
  %v2909 = vmax.f32 %v2693, %v2801
  %v2910 = vmax.f32 %v2694, %v2802
  %v2911 = vmax.f32 %v2695, %v2803
  %v2912 = vmax.f32 %v2696, %v2804
  %v2913 = vmax.f32 %v2697, %v2805
  %v2914 = vmax.f32 %v2698, %v2806
  %v2915 = vmax.f32 %v2699, %v2807
  %v2916 = vmax.f32 %v2700, %v2808
  %v2917 = vmax.f32 %v2701, %v2809
  %v2918 = vmax.f32 %v2702, %v2810
  %v2919 = vmax.f32 %v2703, %v2811
  %v2920 = vmax.f32 %v2704, %v2812
  %v2921 = vmax.f32 %v2705, %v2813
  %v2922 = vmax.f32 %v2706, %v2814
  %v2923 = vmax.f32 %v2707, %v2815
  %v2924 = vmax.f32 %v2708, %v2816
  %v2925 = vmax.f32 %v2709, %v2817
  %v2926 = vmax.f32 %v2710, %v2818
  %v2927 = vmax.f32 %v2711, %v2819
  %v2928 = vmax.f32 %v2712, %v2820
  %v2929 = vmax.f32 %v2713, %v2821
  %v2930 = vmax.f32 %v2714, %v2822
  %v2931 = vmax.f32 %v2715, %v2823
  %v2932 = vmax.f32 %v2716, %v2824
  %v2933 = vmax.f32 %v2717, %v2825
  %v2934 = vmax.f32 %v2718, %v2826
  %v2935 = vmax.f32 %v2719, %v2827
  %v2936 = vmax.f32 %v2720, %v2828
  %v2937 = vmax.f32 %v2721, %v2829
  %v2938 = vmax.f32 %v2722, %v2830
  %v2939 = vmax.f32 %v2723, %v2831
  %v2940 = vmax.f32 %v2724, %v2832
  %v2941 = vmax.f32 %v2725, %v2833
  %v2942 = vmax.f32 %v2726, %v2834
  %v2943 = vmax.f32 %v2727, %v2835
  %v2944 = vmax.f32 %v2728, %v2836
  %v2945 = vmax.f32 %v2729, %v2837
  %v2946 = vld [vmem:[%s2] sm:$0xff]
  %v2947 = vld [vmem:[%s2 + $0x8] sm:$0xff]
  %v2948 = vld [vmem:[%s2 + $0x10] sm:$0xff]
  %v2949 = vld [vmem:[%s2 + $0x18] sm:$0xff]
  %2951 = vset.pattern.permute.xlu0 0
  %2952 = vperm.xlu0 %2951, %v2946
  %v2953 = vpop.permute.xlu0 %2952
  %2956 = vset.pattern.permute.xlu0 0
  %2957 = vperm.xlu0 %2956, %v2947
  %v2958 = vpop.permute.xlu0 %2957
  %2961 = vset.pattern.permute.xlu0 0
  %2962 = vperm.xlu0 %2961, %v2948
  %v2963 = vpop.permute.xlu0 %2962
  %2966 = vset.pattern.permute.xlu0 0
  %2967 = vperm.xlu0 %2966, %v2949
  %v2968 = vpop.permute.xlu0 %2967
  %v2970 = vadd.f32 %v2838, %v2953
  %v2971 = vadd.f32 %v2839, %v2953
  %v2972 = vadd.f32 %v2840, %v2953
  %v2973 = vadd.f32 %v2841, %v2953
  %v2974 = vadd.f32 %v2842, %v2953
  %v2975 = vadd.f32 %v2843, %v2953
  %v2976 = vadd.f32 %v2844, %v2953
  %v2977 = vadd.f32 %v2845, %v2953
  %v2978 = vadd.f32 %v2846, %v2953
  %v2979 = vadd.f32 %v2847, %v2953
  %v2980 = vadd.f32 %v2848, %v2953
  %v2981 = vadd.f32 %v2849, %v2953
  %v2982 = vadd.f32 %v2850, %v2953
  %v2983 = vadd.f32 %v2851, %v2953
  %v2984 = vadd.f32 %v2852, %v2953
  %v2985 = vadd.f32 %v2853, %v2953
  %v2986 = vadd.f32 %v2854, %v2953
  %v2987 = vadd.f32 %v2855, %v2953
  %v2988 = vadd.f32 %v2856, %v2953
  %v2989 = vadd.f32 %v2857, %v2953
  %v2990 = vadd.f32 %v2858, %v2953
  %v2991 = vadd.f32 %v2859, %v2953
  %v2992 = vadd.f32 %v2860, %v2953
  %v2993 = vadd.f32 %v2861, %v2953
  %v2994 = vadd.f32 %v2862, %v2953
  %v2995 = vadd.f32 %v2863, %v2953
  %v2996 = vadd.f32 %v2864, %v2953
  %v2997 = vadd.f32 %v2865, %v2958
  %v2998 = vadd.f32 %v2866, %v2958
  %v2999 = vadd.f32 %v2867, %v2958
  %v3000 = vadd.f32 %v2868, %v2958
  %v3001 = vadd.f32 %v2869, %v2958
  %v3002 = vadd.f32 %v2870, %v2958
  %v3003 = vadd.f32 %v2871, %v2958
  %v3004 = vadd.f32 %v2872, %v2958
  %v3005 = vadd.f32 %v2873, %v2958
  %v3006 = vadd.f32 %v2874, %v2958
  %v3007 = vadd.f32 %v2875, %v2958
  %v3008 = vadd.f32 %v2876, %v2958
  %v3009 = vadd.f32 %v2877, %v2958
  %v3010 = vadd.f32 %v2878, %v2958
  %v3011 = vadd.f32 %v2879, %v2958
  %v3012 = vadd.f32 %v2880, %v2958
  %v3013 = vadd.f32 %v2881, %v2958
  %v3014 = vadd.f32 %v2882, %v2958
  %v3015 = vadd.f32 %v2883, %v2958
  %v3016 = vadd.f32 %v2884, %v2958
  %v3017 = vadd.f32 %v2885, %v2958
  %v3018 = vadd.f32 %v2886, %v2958
  %v3019 = vadd.f32 %v2887, %v2958
  %v3020 = vadd.f32 %v2888, %v2958
  %v3021 = vadd.f32 %v2889, %v2958
  %v3022 = vadd.f32 %v2890, %v2958
  %v3023 = vadd.f32 %v2891, %v2958
  %v3024 = vadd.f32 %v2892, %v2963
  %v3025 = vadd.f32 %v2893, %v2963
  %v3026 = vadd.f32 %v2894, %v2963
  %v3027 = vadd.f32 %v2895, %v2963
  %v3028 = vadd.f32 %v2896, %v2963
  %v3029 = vadd.f32 %v2897, %v2963
  %v3030 = vadd.f32 %v2898, %v2963
  %v3031 = vadd.f32 %v2899, %v2963
  %v3032 = vadd.f32 %v2900, %v2963
  %v3033 = vadd.f32 %v2901, %v2963
  %v3034 = vadd.f32 %v2902, %v2963
  %v3035 = vadd.f32 %v2903, %v2963
  %v3036 = vadd.f32 %v2904, %v2963
  %v3037 = vadd.f32 %v2905, %v2963
  %v3038 = vadd.f32 %v2906, %v2963
  %v3039 = vadd.f32 %v2907, %v2963
  %v3040 = vadd.f32 %v2908, %v2963
  %v3041 = vadd.f32 %v2909, %v2963
  %v3042 = vadd.f32 %v2910, %v2963
  %v3043 = vadd.f32 %v2911, %v2963
  %v3044 = vadd.f32 %v2912, %v2963
  %v3045 = vadd.f32 %v2913, %v2963
  %v3046 = vadd.f32 %v2914, %v2963
  %v3047 = vadd.f32 %v2915, %v2963
  %v3048 = vadd.f32 %v2916, %v2963
  %v3049 = vadd.f32 %v2917, %v2963
  %v3050 = vadd.f32 %v2918, %v2963
  %v3051 = vadd.f32 %v2919, %v2968
  %v3052 = vadd.f32 %v2920, %v2968
  %v3053 = vadd.f32 %v2921, %v2968
  %v3054 = vadd.f32 %v2922, %v2968
  %v3055 = vadd.f32 %v2923, %v2968
  %v3056 = vadd.f32 %v2924, %v2968
  %v3057 = vadd.f32 %v2925, %v2968
  %v3058 = vadd.f32 %v2926, %v2968
  %v3059 = vadd.f32 %v2927, %v2968
  %v3060 = vadd.f32 %v2928, %v2968
  %v3061 = vadd.f32 %v2929, %v2968
  %v3062 = vadd.f32 %v2930, %v2968
  %v3063 = vadd.f32 %v2931, %v2968
  %v3064 = vadd.f32 %v2932, %v2968
  %v3065 = vadd.f32 %v2933, %v2968
  %v3066 = vadd.f32 %v2934, %v2968
  %v3067 = vadd.f32 %v2935, %v2968
  %v3068 = vadd.f32 %v2936, %v2968
  %v3069 = vadd.f32 %v2937, %v2968
  %v3070 = vadd.f32 %v2938, %v2968
  %v3071 = vadd.f32 %v2939, %v2968
  %v3072 = vadd.f32 %v2940, %v2968
  %v3073 = vadd.f32 %v2941, %v2968
  %v3074 = vadd.f32 %v2942, %v2968
  %v3075 = vadd.f32 %v2943, %v2968
  %v3076 = vadd.f32 %v2944, %v2968
  %v3077 = vadd.f32 %v2945, %v2968
  %v3078 = vmax.f32 %v2970, 0.0
  %v3079 = vmax.f32 %v2971, 0.0
  %v3080 = vmax.f32 %v2972, 0.0
  %v3081 = vmax.f32 %v2973, 0.0
  %v3082 = vmax.f32 %v2974, 0.0
  %v3083 = vmax.f32 %v2975, 0.0
  %v3084 = vmax.f32 %v2976, 0.0
  %v3085 = vmax.f32 %v2977, 0.0
  %v3086 = vmax.f32 %v2978, 0.0
  %v3087 = vmax.f32 %v2979, 0.0
  %v3088 = vmax.f32 %v2980, 0.0
  %v3089 = vmax.f32 %v2981, 0.0
  %v3090 = vmax.f32 %v2982, 0.0
  %v3091 = vmax.f32 %v2983, 0.0
  %v3092 = vmax.f32 %v2984, 0.0
  %v3093 = vmax.f32 %v2985, 0.0
  %v3094 = vmax.f32 %v2986, 0.0
  %v3095 = vmax.f32 %v2987, 0.0
  %v3096 = vmax.f32 %v2988, 0.0
  %v3097 = vmax.f32 %v2989, 0.0
  %v3098 = vmax.f32 %v2990, 0.0
  %v3099 = vmax.f32 %v2991, 0.0
  %v3100 = vmax.f32 %v2992, 0.0
  %v3101 = vmax.f32 %v2993, 0.0
  %v3102 = vmax.f32 %v2994, 0.0
  %v3103 = vmax.f32 %v2995, 0.0
  %v3104 = vmax.f32 %v2996, 0.0
  %v3105 = vmax.f32 %v2997, 0.0
  %v3106 = vmax.f32 %v2998, 0.0
  %v3107 = vmax.f32 %v2999, 0.0
  %v3108 = vmax.f32 %v3000, 0.0
  %v3109 = vmax.f32 %v3001, 0.0
  %v3110 = vmax.f32 %v3002, 0.0
  %v3111 = vmax.f32 %v3003, 0.0
  %v3112 = vmax.f32 %v3004, 0.0
  %v3113 = vmax.f32 %v3005, 0.0
  %v3114 = vmax.f32 %v3006, 0.0
  %v3115 = vmax.f32 %v3007, 0.0
  %v3116 = vmax.f32 %v3008, 0.0
  %v3117 = vmax.f32 %v3009, 0.0
  %v3118 = vmax.f32 %v3010, 0.0
  %v3119 = vmax.f32 %v3011, 0.0
  %v3120 = vmax.f32 %v3012, 0.0
  %v3121 = vmax.f32 %v3013, 0.0
  %v3122 = vmax.f32 %v3014, 0.0
  %v3123 = vmax.f32 %v3015, 0.0
  %v3124 = vmax.f32 %v3016, 0.0
  %v3125 = vmax.f32 %v3017, 0.0
  %v3126 = vmax.f32 %v3018, 0.0
  %v3127 = vmax.f32 %v3019, 0.0
  %v3128 = vmax.f32 %v3020, 0.0
  %v3129 = vmax.f32 %v3021, 0.0
  %v3130 = vmax.f32 %v3022, 0.0
  %v3131 = vmax.f32 %v3023, 0.0
  %v3132 = vmax.f32 %v3024, 0.0
  %v3133 = vmax.f32 %v3025, 0.0
  %v3134 = vmax.f32 %v3026, 0.0
  %v3135 = vmax.f32 %v3027, 0.0
  %v3136 = vmax.f32 %v3028, 0.0
  %v3137 = vmax.f32 %v3029, 0.0
  %v3138 = vmax.f32 %v3030, 0.0
  %v3139 = vmax.f32 %v3031, 0.0
  %v3140 = vmax.f32 %v3032, 0.0
  %v3141 = vmax.f32 %v3033, 0.0
  %v3142 = vmax.f32 %v3034, 0.0
  %v3143 = vmax.f32 %v3035, 0.0
  %v3144 = vmax.f32 %v3036, 0.0
  %v3145 = vmax.f32 %v3037, 0.0
  %v3146 = vmax.f32 %v3038, 0.0
  %v3147 = vmax.f32 %v3039, 0.0
  %v3148 = vmax.f32 %v3040, 0.0
  %v3149 = vmax.f32 %v3041, 0.0
  %v3150 = vmax.f32 %v3042, 0.0
  %v3151 = vmax.f32 %v3043, 0.0
  %v3152 = vmax.f32 %v3044, 0.0
  %v3153 = vmax.f32 %v3045, 0.0
  %v3154 = vmax.f32 %v3046, 0.0
  %v3155 = vmax.f32 %v3047, 0.0
  %v3156 = vmax.f32 %v3048, 0.0
  %v3157 = vmax.f32 %v3049, 0.0
  %v3158 = vmax.f32 %v3050, 0.0
  %v3159 = vmax.f32 %v3051, 0.0
  %v3160 = vmax.f32 %v3052, 0.0
  %v3161 = vmax.f32 %v3053, 0.0
  %v3162 = vmax.f32 %v3054, 0.0
  %v3163 = vmax.f32 %v3055, 0.0
  %v3164 = vmax.f32 %v3056, 0.0
  %v3165 = vmax.f32 %v3057, 0.0
  %v3166 = vmax.f32 %v3058, 0.0
  %v3167 = vmax.f32 %v3059, 0.0
  %v3168 = vmax.f32 %v3060, 0.0
  %v3169 = vmax.f32 %v3061, 0.0
  %v3170 = vmax.f32 %v3062, 0.0
  %v3171 = vmax.f32 %v3063, 0.0
  %v3172 = vmax.f32 %v3064, 0.0
  %v3173 = vmax.f32 %v3065, 0.0
  %v3174 = vmax.f32 %v3066, 0.0
  %v3175 = vmax.f32 %v3067, 0.0
  %v3176 = vmax.f32 %v3068, 0.0
  %v3177 = vmax.f32 %v3069, 0.0
  %v3178 = vmax.f32 %v3070, 0.0
  %v3179 = vmax.f32 %v3071, 0.0
  %v3180 = vmax.f32 %v3072, 0.0
  %v3181 = vmax.f32 %v3073, 0.0
  %v3182 = vmax.f32 %v3074, 0.0
  %v3183 = vmax.f32 %v3075, 0.0
  %v3184 = vmax.f32 %v3076, 0.0
  %v3185 = vmax.f32 %v3077, 0.0
  %v3186 = vpack.c.bf16 %v3079, %v3078
  %v3187 = vpack.c.bf16 %v3081, %v3080
  %v3188 = vpack.c.bf16 %v3083, %v3082
  %v3189 = vpack.c.bf16 %v3085, %v3084
  %v3190 = vpack.c.bf16 %v3087, %v3086
  %v3191 = vpack.c.bf16 %v3089, %v3088
  %v3192 = vpack.c.bf16 %v3091, %v3090
  %v3193 = vpack.c.bf16 %v3093, %v3092
  %v3194 = vpack.c.bf16 %v3095, %v3094
  %v3195 = vpack.c.bf16 %v3097, %v3096
  %v3196 = vpack.c.bf16 %v3099, %v3098
  %v3197 = vpack.c.bf16 %v3101, %v3100
  %v3198 = vpack.c.bf16 %v3103, %v3102
  %v3199 = vpack.c.bf16 %v3104, %v3104
  %v3200 = vpack.c.bf16 %v3106, %v3105
  %v3201 = vpack.c.bf16 %v3108, %v3107
  %v3202 = vpack.c.bf16 %v3110, %v3109
  %v3203 = vpack.c.bf16 %v3112, %v3111
  %v3204 = vpack.c.bf16 %v3114, %v3113
  %v3205 = vpack.c.bf16 %v3116, %v3115
  %v3206 = vpack.c.bf16 %v3118, %v3117
  %v3207 = vpack.c.bf16 %v3120, %v3119
  %v3208 = vpack.c.bf16 %v3122, %v3121
  %v3209 = vpack.c.bf16 %v3124, %v3123
  %v3210 = vpack.c.bf16 %v3126, %v3125
  %v3211 = vpack.c.bf16 %v3128, %v3127
  %v3212 = vpack.c.bf16 %v3130, %v3129
  %v3213 = vpack.c.bf16 %v3131, %v3131
  %v3214 = vpack.c.bf16 %v3133, %v3132
  %v3215 = vpack.c.bf16 %v3135, %v3134
  %v3216 = vpack.c.bf16 %v3137, %v3136
  %v3217 = vpack.c.bf16 %v3139, %v3138
  %v3218 = vpack.c.bf16 %v3141, %v3140
  %v3219 = vpack.c.bf16 %v3143, %v3142
  %v3220 = vpack.c.bf16 %v3145, %v3144
  %v3221 = vpack.c.bf16 %v3147, %v3146
  %v3222 = vpack.c.bf16 %v3149, %v3148
  %v3223 = vpack.c.bf16 %v3151, %v3150
  %v3224 = vpack.c.bf16 %v3153, %v3152
  %v3225 = vpack.c.bf16 %v3155, %v3154
  %v3226 = vpack.c.bf16 %v3157, %v3156
  %v3227 = vpack.c.bf16 %v3158, %v3158
  %v3228 = vpack.c.bf16 %v3160, %v3159
  %v3229 = vpack.c.bf16 %v3162, %v3161
  %v3230 = vpack.c.bf16 %v3164, %v3163
  %v3231 = vpack.c.bf16 %v3166, %v3165
  %v3232 = vpack.c.bf16 %v3168, %v3167
  %v3233 = vpack.c.bf16 %v3170, %v3169
  %v3234 = vpack.c.bf16 %v3172, %v3171
  %v3235 = vpack.c.bf16 %v3174, %v3173
  %v3236 = vpack.c.bf16 %v3176, %v3175
  %v3237 = vpack.c.bf16 %v3178, %v3177
  %v3238 = vpack.c.bf16 %v3180, %v3179
  %v3239 = vpack.c.bf16 %v3182, %v3181
  %v3240 = vpack.c.bf16 %v3184, %v3183
  %v3241 = vpack.c.bf16 %v3185, %v3185
  %3242 = vst [vmem:[%s3] sm:$0xff] %v3186
  %3243 = vst [vmem:[%s3 + $0x8] sm:$0xff] %v3187
  %3244 = vst [vmem:[%s3 + $0x10] sm:$0xff] %v3188
  %3245 = vst [vmem:[%s3 + $0x18] sm:$0xff] %v3189
  %3246 = vst [vmem:[%s3 + $0x20] sm:$0xff] %v3190
  %3247 = vst [vmem:[%s3 + $0x28] sm:$0xff] %v3191
  %3248 = vst [vmem:[%s3 + $0x30] sm:$0xff] %v3192
  %3249 = vst [vmem:[%s3 + $0x38] sm:$0xff] %v3193
  %3250 = vst [vmem:[%s3 + $0x40] sm:$0xff] %v3194
  %3251 = vst [vmem:[%s3 + $0x48] sm:$0xff] %v3195
  %3252 = vst [vmem:[%s3 + $0x50] sm:$0xff] %v3196
  %3253 = vst [vmem:[%s3 + $0x58] sm:$0xff] %v3197
  %3254 = vst [vmem:[%s3 + $0x60] sm:$0xff] %v3198
  %3255 = vst [vmem:[%s3 + $0x68] sm:$0xf] %v3199
  %3256 = vst [vmem:[%s3 + $0x6c] sm:$0xff] %v3200
  %3257 = vst [vmem:[%s3 + $0x74] sm:$0xff] %v3201
  %3258 = vst [vmem:[%s3 + $0x7c] sm:$0xff] %v3202
  %3259 = vst [vmem:[%s3 + $0x84] sm:$0xff] %v3203
  %3260 = vst [vmem:[%s3 + $0x8c] sm:$0xff] %v3204
  %3261 = vst [vmem:[%s3 + $0x94] sm:$0xff] %v3205
  %3262 = vst [vmem:[%s3 + $0x9c] sm:$0xff] %v3206
  %3263 = vst [vmem:[%s3 + $0xa4] sm:$0xff] %v3207
  %3264 = vst [vmem:[%s3 + $0xac] sm:$0xff] %v3208
  %3265 = vst [vmem:[%s3 + $0xb4] sm:$0xff] %v3209
  %3266 = vst [vmem:[%s3 + $0xbc] sm:$0xff] %v3210
  %3267 = vst [vmem:[%s3 + $0xc4] sm:$0xff] %v3211
  %3268 = vst [vmem:[%s3 + $0xcc] sm:$0xff] %v3212
  %3269 = vst [vmem:[%s3 + $0xd4] sm:$0xf] %v3213
  %3270 = vst [vmem:[%s3 + $0xd8] sm:$0xff] %v3214
  %3271 = vst [vmem:[%s3 + $0xe0] sm:$0xff] %v3215
  %3272 = vst [vmem:[%s3 + $0xe8] sm:$0xff] %v3216
  %3273 = vst [vmem:[%s3 + $0xf0] sm:$0xff] %v3217
  %3274 = vst [vmem:[%s3 + $0xf8] sm:$0xff] %v3218
  %3275 = vst [vmem:[%s3 + $0x100] sm:$0xff] %v3219
  %3276 = vst [vmem:[%s3 + $0x108] sm:$0xff] %v3220
  %3277 = vst [vmem:[%s3 + $0x110] sm:$0xff] %v3221
  %3278 = vst [vmem:[%s3 + $0x118] sm:$0xff] %v3222
  %3279 = vst [vmem:[%s3 + $0x120] sm:$0xff] %v3223
  %3280 = vst [vmem:[%s3 + $0x128] sm:$0xff] %v3224
  %3281 = vst [vmem:[%s3 + $0x130] sm:$0xff] %v3225
  %3282 = vst [vmem:[%s3 + $0x138] sm:$0xff] %v3226
  %3283 = vst [vmem:[%s3 + $0x140] sm:$0xf] %v3227
  %3284 = vst [vmem:[%s3 + $0x144] sm:$0xff] %v3228
  %3285 = vst [vmem:[%s3 + $0x14c] sm:$0xff] %v3229
  %3286 = vst [vmem:[%s3 + $0x154] sm:$0xff] %v3230
  %3287 = vst [vmem:[%s3 + $0x15c] sm:$0xff] %v3231
  %3288 = vst [vmem:[%s3 + $0x164] sm:$0xff] %v3232
  %3289 = vst [vmem:[%s3 + $0x16c] sm:$0xff] %v3233
  %3290 = vst [vmem:[%s3 + $0x174] sm:$0xff] %v3234
  %3291 = vst [vmem:[%s3 + $0x17c] sm:$0xff] %v3235
  %3292 = vst [vmem:[%s3 + $0x184] sm:$0xff] %v3236
  %3293 = vst [vmem:[%s3 + $0x18c] sm:$0xff] %v3237
  %3294 = vst [vmem:[%s3 + $0x194] sm:$0xff] %v3238
  %3295 = vst [vmem:[%s3 + $0x19c] sm:$0xff] %v3239
  %3296 = vst [vmem:[%s3 + $0x1a4] sm:$0xff] %v3240
  %3297 = vst [vmem:[%s3 + $0x1ac] sm:$0xf] %v3241
  // Predicated region
  $region14: #{client_model_forward.4} parent=0 // pred_check
    _
  $region15: #{client_model_forward.4} parent=0 // pred_check_branch
    %3299 = sbr.rel (0) target = $region17
  $region16: #{client_model_forward.4} parent=0 // pred_region
    _
  $region17: #{client_model_forward.4} parent=0 // pred_fallthru
    _
  // Predicated region
  $region18: #{client_model_forward.4} parent=0 // pred_check
    _
  $region19: #{client_model_forward.4} parent=0 // pred_check_branch
    %3301 = sbr.rel (0) target = $region21
  $region20: #{client_model_forward.4} parent=0 // pred_region
    _
  $region21: #{client_model_forward.4} parent=0 // pred_fallthru
    _

// kernel: client_model_forward.5
$region0: #{client_model_forward.5}
  #allocation0 [shape = 'u32[]', space=smem, size = 0x4, offset = 0x4, fixed_abs, tag = 'smem constant byte address 0x4 - core index']
  #allocation1 [shape = 'u32[72,128]{1,0:T(1,128)}', space=vmem, size = 0x9000, scoped, tag = 'internal scratch']
  %s0 = inlined_call_operand.vmem [shape: bf16[1152,768], index: 0, kind: input, shape index: {}]
  %s1 = inlined_call_operand.vmem [shape: bf16[128,1152], index: 1, kind: input, shape index: {}]
  %s2 = inlined_call_operand.vmem [shape: f32[32,1], index: 2, kind: input, shape index: {}]
  %s3 = inlined_call_operand.vmem [shape: bf16[32,768], index: 3, kind: output, shape index: {}]
  %s4 = sld [smem:[#allocation0]]
  $region22: #{client_model_forward.5} parent=0
    _
  %s6 = ssub.s32 1, %s4
  %s7 = scalar_select 0, %s6, %s4
  // Predicated region
  $region2: #{client_model_forward.5} parent=0 // pred_check
    _
  $region3: #{client_model_forward.5} parent=0 // pred_check_branch
    %9 = sbr.rel (0) target = $region5
  $region4: #{client_model_forward.5} parent=0 // pred_region
    _
  $region5: #{client_model_forward.5} parent=0 // pred_fallthru
    _
  // Predicated region
  $region6: #{client_model_forward.5} parent=0 // pred_check
    _
  $region7: #{client_model_forward.5} parent=0 // pred_check_branch
    %11 = sbr.rel (0) target = $region9
  $region8: #{client_model_forward.5} parent=0 // pred_region
    _
  $region9: #{client_model_forward.5} parent=0 // pred_fallthru
    _
  // Predicated region
  $region10: #{client_model_forward.5} parent=0 // pred_check
    _
  $region11: #{client_model_forward.5} parent=0 // pred_check_branch
    %13 = sbr.rel (0) target = $region13
  $region12: #{client_model_forward.5} parent=0 // pred_region
    _
  $region13: #{client_model_forward.5} parent=0 // pred_fallthru
    _
  %v14 = vld [vmem:[%s1] sm:$0xff]
  %v15 = vld [vmem:[%s1 + $0x8] sm:$0xff]
  %v16 = vld [vmem:[%s1 + $0x10] sm:$0xff]
  %v17 = vld [vmem:[%s1 + $0x18] sm:$0xff]
  %v18 = vld [vmem:[%s1 + $0x20] sm:$0xf]
  %v19 = vld [vmem:[%s1 + $0x24] sm:$0xff]
  %v20 = vld [vmem:[%s1 + $0x2c] sm:$0xff]
  %v21 = vld [vmem:[%s1 + $0x34] sm:$0xff]
  %v22 = vld [vmem:[%s1 + $0x3c] sm:$0xff]
  %v23 = vld [vmem:[%s1 + $0x44] sm:$0xf]
  %v24 = vld [vmem:[%s1 + $0x48] sm:$0xff]
  %v25 = vld [vmem:[%s1 + $0x50] sm:$0xff]
  %v26 = vld [vmem:[%s1 + $0x58] sm:$0xff]
  %v27 = vld [vmem:[%s1 + $0x60] sm:$0xff]
  %v28 = vld [vmem:[%s1 + $0x68] sm:$0xf]
  %v29 = vld [vmem:[%s1 + $0x6c] sm:$0xff]
  %v30 = vld [vmem:[%s1 + $0x74] sm:$0xff]
  %v31 = vld [vmem:[%s1 + $0x7c] sm:$0xff]
  %v32 = vld [vmem:[%s1 + $0x84] sm:$0xff]
  %v33 = vld [vmem:[%s1 + $0x8c] sm:$0xf]
  %v34 = vld [vmem:[%s1 + $0x90] sm:$0xff]
  %v35 = vld [vmem:[%s1 + $0x98] sm:$0xff]
  %v36 = vld [vmem:[%s1 + $0xa0] sm:$0xff]
  %v37 = vld [vmem:[%s1 + $0xa8] sm:$0xff]
  %v38 = vld [vmem:[%s1 + $0xb0] sm:$0xf]
  %v39 = vld [vmem:[%s1 + $0xb4] sm:$0xff]
  %v40 = vld [vmem:[%s1 + $0xbc] sm:$0xff]
  %v41 = vld [vmem:[%s1 + $0xc4] sm:$0xff]
  %v42 = vld [vmem:[%s1 + $0xcc] sm:$0xff]
  %v43 = vld [vmem:[%s1 + $0xd4] sm:$0xf]
  %v44 = vld [vmem:[%s1 + $0xd8] sm:$0xff]
  %v45 = vld [vmem:[%s1 + $0xe0] sm:$0xff]
  %v46 = vld [vmem:[%s1 + $0xe8] sm:$0xff]
  %v47 = vld [vmem:[%s1 + $0xf0] sm:$0xff]
  %v48 = vld [vmem:[%s1 + $0xf8] sm:$0xf]
  %v49 = vld [vmem:[%s1 + $0xfc] sm:$0xff]
  %v50 = vld [vmem:[%s1 + $0x104] sm:$0xff]
  %v51 = vld [vmem:[%s1 + $0x10c] sm:$0xff]
  %v52 = vld [vmem:[%s1 + $0x114] sm:$0xff]
  %v53 = vld [vmem:[%s1 + $0x11c] sm:$0xf]
  %v54 = vld [vmem:[%s1 + $0x120] sm:$0xff]
  %v55 = vld [vmem:[%s1 + $0x128] sm:$0xff]
  %v56 = vld [vmem:[%s1 + $0x130] sm:$0xff]
  %v57 = vld [vmem:[%s1 + $0x138] sm:$0xff]
  %v58 = vld [vmem:[%s1 + $0x140] sm:$0xf]
  %v59 = vld [vmem:[%s1 + $0x144] sm:$0xff]
  %v60 = vld [vmem:[%s1 + $0x14c] sm:$0xff]
  %v61 = vld [vmem:[%s1 + $0x154] sm:$0xff]
  %v62 = vld [vmem:[%s1 + $0x15c] sm:$0xff]
  %v63 = vld [vmem:[%s1 + $0x164] sm:$0xf]
  %v64 = vld [vmem:[%s1 + $0x168] sm:$0xff]
  %v65 = vld [vmem:[%s1 + $0x170] sm:$0xff]
  %v66 = vld [vmem:[%s1 + $0x178] sm:$0xff]
  %v67 = vld [vmem:[%s1 + $0x180] sm:$0xff]
  %v68 = vld [vmem:[%s1 + $0x188] sm:$0xf]
  %v69 = vld [vmem:[%s1 + $0x18c] sm:$0xff]
  %v70 = vld [vmem:[%s1 + $0x194] sm:$0xff]
  %v71 = vld [vmem:[%s1 + $0x19c] sm:$0xff]
  %v72 = vld [vmem:[%s1 + $0x1a4] sm:$0xff]
  %v73 = vld [vmem:[%s1 + $0x1ac] sm:$0xf]
  %v74 = vld [vmem:[%s1 + $0x1b0] sm:$0xff]
  %v75 = vld [vmem:[%s1 + $0x1b8] sm:$0xff]
  %v76 = vld [vmem:[%s1 + $0x1c0] sm:$0xff]
  %v77 = vld [vmem:[%s1 + $0x1c8] sm:$0xff]
  %v78 = vld [vmem:[%s1 + $0x1d0] sm:$0xf]
  %v79 = vld [vmem:[%s1 + $0x1d4] sm:$0xff]
  %v80 = vld [vmem:[%s1 + $0x1dc] sm:$0xff]
  %v81 = vld [vmem:[%s1 + $0x1e4] sm:$0xff]
  %v82 = vld [vmem:[%s1 + $0x1ec] sm:$0xff]
  %v83 = vld [vmem:[%s1 + $0x1f4] sm:$0xf]
  %v84 = vld [vmem:[%s1 + $0x1f8] sm:$0xff]
  %v85 = vld [vmem:[%s1 + $0x200] sm:$0xff]
  %v86 = vld [vmem:[%s1 + $0x208] sm:$0xff]
  %v87 = vld [vmem:[%s1 + $0x210] sm:$0xff]
  %v88 = vld [vmem:[%s1 + $0x218] sm:$0xf]
  %v89 = vld [vmem:[%s1 + $0x21c] sm:$0xff]
  %v90 = vld [vmem:[%s1 + $0x224] sm:$0xff]
  %v91 = vld [vmem:[%s1 + $0x22c] sm:$0xff]
  %v92 = vld [vmem:[%s1 + $0x234] sm:$0xff]
  %v93 = vld [vmem:[%s1 + $0x23c] sm:$0xf]
  %v94 = vld [vmem:[%s0] sm:$0xff]
  %v95 = vld [vmem:[%s0 + $0x8] sm:$0xff]
  %v96 = vld [vmem:[%s0 + $0x10] sm:$0xff]
  %v97 = vld [vmem:[%s0 + $0x18] sm:$0xff]
  %v98 = vld [vmem:[%s0 + $0x20] sm:$0xff]
  %v99 = vld [vmem:[%s0 + $0x28] sm:$0xff]
  %v100 = vld [vmem:[%s0 + $0x30] sm:$0xff]
  %v101 = vld [vmem:[%s0 + $0x38] sm:$0xff]
  %v102 = vld [vmem:[%s0 + $0x40] sm:$0xff]
  %v103 = vld [vmem:[%s0 + $0x48] sm:$0xff]
  %v104 = vld [vmem:[%s0 + $0x50] sm:$0xff]
  %v105 = vld [vmem:[%s0 + $0x58] sm:$0xff]
  %v106 = vld [vmem:[%s0 + $0x60] sm:$0xff]
  %v107 = vld [vmem:[%s0 + $0x68] sm:$0xff]
  %v108 = vld [vmem:[%s0 + $0x70] sm:$0xff]
  %v109 = vld [vmem:[%s0 + $0x78] sm:$0xff]
  %v110 = vld [vmem:[%s0 + $0x80] sm:$0xff]
  %v111 = vld [vmem:[%s0 + $0x88] sm:$0xff]
  %v112 = vld [vmem:[%s0 + $0x90] sm:$0xff]
  %v113 = vld [vmem:[%s0 + $0x98] sm:$0xff]
  %v114 = vld [vmem:[%s0 + $0xa0] sm:$0xff]
  %v115 = vld [vmem:[%s0 + $0xa8] sm:$0xff]
  %v116 = vld [vmem:[%s0 + $0xb0] sm:$0xff]
  %v117 = vld [vmem:[%s0 + $0xb8] sm:$0xff]
  %v118 = vld [vmem:[%s0 + $0xc0] sm:$0xff]
  %v119 = vld [vmem:[%s0 + $0xc8] sm:$0xff]
  %v120 = vld [vmem:[%s0 + $0xd0] sm:$0xff]
  %v121 = vld [vmem:[%s0 + $0xd8] sm:$0xff]
  %v122 = vld [vmem:[%s0 + $0xe0] sm:$0xff]
  %v123 = vld [vmem:[%s0 + $0xe8] sm:$0xff]
  %v124 = vld [vmem:[%s0 + $0xf0] sm:$0xff]
  %v125 = vld [vmem:[%s0 + $0xf8] sm:$0xff]
  %v126 = vld [vmem:[%s0 + $0x100] sm:$0xff]
  %v127 = vld [vmem:[%s0 + $0x108] sm:$0xff]
  %v128 = vld [vmem:[%s0 + $0x110] sm:$0xff]
  %v129 = vld [vmem:[%s0 + $0x118] sm:$0xff]
  %v130 = vld [vmem:[%s0 + $0x120] sm:$0xff]
  %v131 = vld [vmem:[%s0 + $0x128] sm:$0xff]
  %v132 = vld [vmem:[%s0 + $0x130] sm:$0xff]
  %v133 = vld [vmem:[%s0 + $0x138] sm:$0xff]
  %v134 = vld [vmem:[%s0 + $0x140] sm:$0xff]
  %v135 = vld [vmem:[%s0 + $0x148] sm:$0xff]
  %v136 = vld [vmem:[%s0 + $0x150] sm:$0xff]
  %v137 = vld [vmem:[%s0 + $0x158] sm:$0xff]
  %v138 = vld [vmem:[%s0 + $0x160] sm:$0xff]
  %v139 = vld [vmem:[%s0 + $0x168] sm:$0xff]
  %v140 = vld [vmem:[%s0 + $0x170] sm:$0xff]
  %v141 = vld [vmem:[%s0 + $0x178] sm:$0xff]
  %v142 = vld [vmem:[%s0 + $0x180] sm:$0xff]
  %v143 = vld [vmem:[%s0 + $0x188] sm:$0xff]
  %v144 = vld [vmem:[%s0 + $0x190] sm:$0xff]
  %v145 = vld [vmem:[%s0 + $0x198] sm:$0xff]
  %v146 = vld [vmem:[%s0 + $0x1a0] sm:$0xff]
  %v147 = vld [vmem:[%s0 + $0x1a8] sm:$0xff]
  %v148 = vld [vmem:[%s0 + $0x1b0] sm:$0xff]
  %v149 = vld [vmem:[%s0 + $0x1b8] sm:$0xff]
  %v150 = vld [vmem:[%s0 + $0x1c0] sm:$0xff]
  %v151 = vld [vmem:[%s0 + $0x1c8] sm:$0xff]
  %v152 = vld [vmem:[%s0 + $0x1d0] sm:$0xff]
  %v153 = vld [vmem:[%s0 + $0x1d8] sm:$0xff]
  %v154 = vld [vmem:[%s0 + $0x1e0] sm:$0xff]
  %v155 = vld [vmem:[%s0 + $0x1e8] sm:$0xff]
  %v156 = vld [vmem:[%s0 + $0x1f0] sm:$0xff]
  %v157 = vld [vmem:[%s0 + $0x1f8] sm:$0xff]
  %v158 = vld [vmem:[%s0 + $0x200] sm:$0xff]
  %v159 = vld [vmem:[%s0 + $0x208] sm:$0xff]
  %v160 = vld [vmem:[%s0 + $0x210] sm:$0xff]
  %v161 = vld [vmem:[%s0 + $0x218] sm:$0xff]
  %v162 = vld [vmem:[%s0 + $0x220] sm:$0xff]
  %v163 = vld [vmem:[%s0 + $0x228] sm:$0xff]
  %v164 = vld [vmem:[%s0 + $0x230] sm:$0xff]
  %v165 = vld [vmem:[%s0 + $0x238] sm:$0xff]
  %v166 = vld [vmem:[%s0 + $0x240] sm:$0xff]
  %v167 = vld [vmem:[%s0 + $0x248] sm:$0xff]
  %v168 = vld [vmem:[%s0 + $0x250] sm:$0xff]
  %v169 = vld [vmem:[%s0 + $0x258] sm:$0xff]
  %v170 = vld [vmem:[%s0 + $0x260] sm:$0xff]
  %v171 = vld [vmem:[%s0 + $0x268] sm:$0xff]
  %v172 = vld [vmem:[%s0 + $0x270] sm:$0xff]
  %v173 = vld [vmem:[%s0 + $0x278] sm:$0xff]
  %v174 = vld [vmem:[%s0 + $0x280] sm:$0xff]
  %v175 = vld [vmem:[%s0 + $0x288] sm:$0xff]
  %v176 = vld [vmem:[%s0 + $0x290] sm:$0xff]
  %v177 = vld [vmem:[%s0 + $0x298] sm:$0xff]
  %v178 = vld [vmem:[%s0 + $0x2a0] sm:$0xff]
  %v179 = vld [vmem:[%s0 + $0x2a8] sm:$0xff]
  %v180 = vld [vmem:[%s0 + $0x2b0] sm:$0xff]
  %v181 = vld [vmem:[%s0 + $0x2b8] sm:$0xff]
  %v182 = vld [vmem:[%s0 + $0x2c0] sm:$0xff]
  %v183 = vld [vmem:[%s0 + $0x2c8] sm:$0xff]
  %v184 = vld [vmem:[%s0 + $0x2d0] sm:$0xff]
  %v185 = vld [vmem:[%s0 + $0x2d8] sm:$0xff]
  %v186 = vld [vmem:[%s0 + $0x2e0] sm:$0xff]
  %v187 = vld [vmem:[%s0 + $0x2e8] sm:$0xff]
  %v188 = vld [vmem:[%s0 + $0x2f0] sm:$0xff]
  %v189 = vld [vmem:[%s0 + $0x2f8] sm:$0xff]
  %v190 = vld [vmem:[%s0 + $0x300] sm:$0xff]
  %v191 = vld [vmem:[%s0 + $0x308] sm:$0xff]
  %v192 = vld [vmem:[%s0 + $0x310] sm:$0xff]
  %v193 = vld [vmem:[%s0 + $0x318] sm:$0xff]
  %v194 = vld [vmem:[%s0 + $0x320] sm:$0xff]
  %v195 = vld [vmem:[%s0 + $0x328] sm:$0xff]
  %v196 = vld [vmem:[%s0 + $0x330] sm:$0xff]
  %v197 = vld [vmem:[%s0 + $0x338] sm:$0xff]
  %v198 = vld [vmem:[%s0 + $0x340] sm:$0xff]
  %v199 = vld [vmem:[%s0 + $0x348] sm:$0xff]
  %v200 = vld [vmem:[%s0 + $0x350] sm:$0xff]
  %v201 = vld [vmem:[%s0 + $0x358] sm:$0xff]
  %v202 = vld [vmem:[%s0 + $0x360] sm:$0xff]
  %v203 = vld [vmem:[%s0 + $0x368] sm:$0xff]
  %v204 = vld [vmem:[%s0 + $0x370] sm:$0xff]
  %v205 = vld [vmem:[%s0 + $0x378] sm:$0xff]
  %v206 = vld [vmem:[%s0 + $0x380] sm:$0xff]
  %v207 = vld [vmem:[%s0 + $0x388] sm:$0xff]
  %v208 = vld [vmem:[%s0 + $0x390] sm:$0xff]
  %v209 = vld [vmem:[%s0 + $0x398] sm:$0xff]
  %v210 = vld [vmem:[%s0 + $0x3a0] sm:$0xff]
  %v211 = vld [vmem:[%s0 + $0x3a8] sm:$0xff]
  %v212 = vld [vmem:[%s0 + $0x3b0] sm:$0xff]
  %v213 = vld [vmem:[%s0 + $0x3b8] sm:$0xff]
  %v214 = vld [vmem:[%s0 + $0x3c0] sm:$0xff]
  %v215 = vld [vmem:[%s0 + $0x3c8] sm:$0xff]
  %v216 = vld [vmem:[%s0 + $0x3d0] sm:$0xff]
  %v217 = vld [vmem:[%s0 + $0x3d8] sm:$0xff]
  %v218 = vld [vmem:[%s0 + $0x3e0] sm:$0xff]
  %v219 = vld [vmem:[%s0 + $0x3e8] sm:$0xff]
  %v220 = vld [vmem:[%s0 + $0x3f0] sm:$0xff]
  %v221 = vld [vmem:[%s0 + $0x3f8] sm:$0xff]
  %v222 = vld [vmem:[%s0 + $0x400] sm:$0xff]
  %v223 = vld [vmem:[%s0 + $0x408] sm:$0xff]
  %v224 = vld [vmem:[%s0 + $0x410] sm:$0xff]
  %v225 = vld [vmem:[%s0 + $0x418] sm:$0xff]
  %v226 = vld [vmem:[%s0 + $0x420] sm:$0xff]
  %v227 = vld [vmem:[%s0 + $0x428] sm:$0xff]
  %v228 = vld [vmem:[%s0 + $0x430] sm:$0xff]
  %v229 = vld [vmem:[%s0 + $0x438] sm:$0xff]
  %v230 = vld [vmem:[%s0 + $0x440] sm:$0xff]
  %v231 = vld [vmem:[%s0 + $0x448] sm:$0xff]
  %v232 = vld [vmem:[%s0 + $0x450] sm:$0xff]
  %v233 = vld [vmem:[%s0 + $0x458] sm:$0xff]
  %v234 = vld [vmem:[%s0 + $0x460] sm:$0xff]
  %v235 = vld [vmem:[%s0 + $0x468] sm:$0xff]
  %v236 = vld [vmem:[%s0 + $0x470] sm:$0xff]
  %v237 = vld [vmem:[%s0 + $0x478] sm:$0xff]
  %v238 = vld [vmem:[%s0 + $0x480] sm:$0xff]
  %v239 = vld [vmem:[%s0 + $0x488] sm:$0xff]
  %v240 = vld [vmem:[%s0 + $0x490] sm:$0xff]
  %v241 = vld [vmem:[%s0 + $0x498] sm:$0xff]
  %v242 = vld [vmem:[%s0 + $0x4a0] sm:$0xff]
  %v243 = vld [vmem:[%s0 + $0x4a8] sm:$0xff]
  %v244 = vld [vmem:[%s0 + $0x4b0] sm:$0xff]
  %v245 = vld [vmem:[%s0 + $0x4b8] sm:$0xff]
  %v246 = vld [vmem:[%s0 + $0x4c0] sm:$0xff]
  %v247 = vld [vmem:[%s0 + $0x4c8] sm:$0xff]
  %v248 = vld [vmem:[%s0 + $0x4d0] sm:$0xff]
  %v249 = vld [vmem:[%s0 + $0x4d8] sm:$0xff]
  %v250 = vld [vmem:[%s0 + $0x4e0] sm:$0xff]
  %v251 = vld [vmem:[%s0 + $0x4e8] sm:$0xff]
  %v252 = vld [vmem:[%s0 + $0x4f0] sm:$0xff]
  %v253 = vld [vmem:[%s0 + $0x4f8] sm:$0xff]
  %v254 = vld [vmem:[%s0 + $0x500] sm:$0xff]
  %v255 = vld [vmem:[%s0 + $0x508] sm:$0xff]
  %v256 = vld [vmem:[%s0 + $0x510] sm:$0xff]
  %v257 = vld [vmem:[%s0 + $0x518] sm:$0xff]
  %v258 = vld [vmem:[%s0 + $0x520] sm:$0xff]
  %v259 = vld [vmem:[%s0 + $0x528] sm:$0xff]
  %v260 = vld [vmem:[%s0 + $0x530] sm:$0xff]
  %v261 = vld [vmem:[%s0 + $0x538] sm:$0xff]
  %v262 = vld [vmem:[%s0 + $0x540] sm:$0xff]
  %v263 = vld [vmem:[%s0 + $0x548] sm:$0xff]
  %v264 = vld [vmem:[%s0 + $0x550] sm:$0xff]
  %v265 = vld [vmem:[%s0 + $0x558] sm:$0xff]
  %v266 = vld [vmem:[%s0 + $0x560] sm:$0xff]
  %v267 = vld [vmem:[%s0 + $0x568] sm:$0xff]
  %v268 = vld [vmem:[%s0 + $0x570] sm:$0xff]
  %v269 = vld [vmem:[%s0 + $0x578] sm:$0xff]
  %v270 = vld [vmem:[%s0 + $0x580] sm:$0xff]
  %v271 = vld [vmem:[%s0 + $0x588] sm:$0xff]
  %v272 = vld [vmem:[%s0 + $0x590] sm:$0xff]
  %v273 = vld [vmem:[%s0 + $0x598] sm:$0xff]
  %v274 = vld [vmem:[%s0 + $0x5a0] sm:$0xff]
  %v275 = vld [vmem:[%s0 + $0x5a8] sm:$0xff]
  %v276 = vld [vmem:[%s0 + $0x5b0] sm:$0xff]
  %v277 = vld [vmem:[%s0 + $0x5b8] sm:$0xff]
  %v278 = vld [vmem:[%s0 + $0x5c0] sm:$0xff]
  %v279 = vld [vmem:[%s0 + $0x5c8] sm:$0xff]
  %v280 = vld [vmem:[%s0 + $0x5d0] sm:$0xff]
  %v281 = vld [vmem:[%s0 + $0x5d8] sm:$0xff]
  %v282 = vld [vmem:[%s0 + $0x5e0] sm:$0xff]
  %v283 = vld [vmem:[%s0 + $0x5e8] sm:$0xff]
  %v284 = vld [vmem:[%s0 + $0x5f0] sm:$0xff]
  %v285 = vld [vmem:[%s0 + $0x5f8] sm:$0xff]
  %v286 = vld [vmem:[%s0 + $0x600] sm:$0xff]
  %v287 = vld [vmem:[%s0 + $0x608] sm:$0xff]
  %v288 = vld [vmem:[%s0 + $0x610] sm:$0xff]
  %v289 = vld [vmem:[%s0 + $0x618] sm:$0xff]
  %v290 = vld [vmem:[%s0 + $0x620] sm:$0xff]
  %v291 = vld [vmem:[%s0 + $0x628] sm:$0xff]
  %v292 = vld [vmem:[%s0 + $0x630] sm:$0xff]
  %v293 = vld [vmem:[%s0 + $0x638] sm:$0xff]
  %v294 = vld [vmem:[%s0 + $0x640] sm:$0xff]
  %v295 = vld [vmem:[%s0 + $0x648] sm:$0xff]
  %v296 = vld [vmem:[%s0 + $0x650] sm:$0xff]
  %v297 = vld [vmem:[%s0 + $0x658] sm:$0xff]
  %v298 = vld [vmem:[%s0 + $0x660] sm:$0xff]
  %v299 = vld [vmem:[%s0 + $0x668] sm:$0xff]
  %v300 = vld [vmem:[%s0 + $0x670] sm:$0xff]
  %v301 = vld [vmem:[%s0 + $0x678] sm:$0xff]
  %v302 = vld [vmem:[%s0 + $0x680] sm:$0xff]
  %v303 = vld [vmem:[%s0 + $0x688] sm:$0xff]
  %v304 = vld [vmem:[%s0 + $0x690] sm:$0xff]
  %v305 = vld [vmem:[%s0 + $0x698] sm:$0xff]
  %v306 = vld [vmem:[%s0 + $0x6a0] sm:$0xff]
  %v307 = vld [vmem:[%s0 + $0x6a8] sm:$0xff]
  %v308 = vld [vmem:[%s0 + $0x6b0] sm:$0xff]
  %v309 = vld [vmem:[%s0 + $0x6b8] sm:$0xff]
  %v310 = vld [vmem:[%s0 + $0x6c0] sm:$0xff]
  %v311 = vld [vmem:[%s0 + $0x6c8] sm:$0xff]
  %v312 = vld [vmem:[%s0 + $0x6d0] sm:$0xff]
  %v313 = vld [vmem:[%s0 + $0x6d8] sm:$0xff]
  %v314 = vld [vmem:[%s0 + $0x6e0] sm:$0xff]
  %v315 = vld [vmem:[%s0 + $0x6e8] sm:$0xff]
  %v316 = vld [vmem:[%s0 + $0x6f0] sm:$0xff]
  %v317 = vld [vmem:[%s0 + $0x6f8] sm:$0xff]
  %v318 = vld [vmem:[%s0 + $0x700] sm:$0xff]
  %v319 = vld [vmem:[%s0 + $0x708] sm:$0xff]
  %v320 = vld [vmem:[%s0 + $0x710] sm:$0xff]
  %v321 = vld [vmem:[%s0 + $0x718] sm:$0xff]
  %v322 = vld [vmem:[%s0 + $0x720] sm:$0xff]
  %v323 = vld [vmem:[%s0 + $0x728] sm:$0xff]
  %v324 = vld [vmem:[%s0 + $0x730] sm:$0xff]
  %v325 = vld [vmem:[%s0 + $0x738] sm:$0xff]
  %v326 = vld [vmem:[%s0 + $0x740] sm:$0xff]
  %v327 = vld [vmem:[%s0 + $0x748] sm:$0xff]
  %v328 = vld [vmem:[%s0 + $0x750] sm:$0xff]
  %v329 = vld [vmem:[%s0 + $0x758] sm:$0xff]
  %v330 = vld [vmem:[%s0 + $0x760] sm:$0xff]
  %v331 = vld [vmem:[%s0 + $0x768] sm:$0xff]
  %v332 = vld [vmem:[%s0 + $0x770] sm:$0xff]
  %v333 = vld [vmem:[%s0 + $0x778] sm:$0xff]
  %v334 = vld [vmem:[%s0 + $0x780] sm:$0xff]
  %v335 = vld [vmem:[%s0 + $0x788] sm:$0xff]
  %v336 = vld [vmem:[%s0 + $0x790] sm:$0xff]
  %v337 = vld [vmem:[%s0 + $0x798] sm:$0xff]
  %v338 = vld [vmem:[%s0 + $0x7a0] sm:$0xff]
  %v339 = vld [vmem:[%s0 + $0x7a8] sm:$0xff]
  %v340 = vld [vmem:[%s0 + $0x7b0] sm:$0xff]
  %v341 = vld [vmem:[%s0 + $0x7b8] sm:$0xff]
  %v342 = vld [vmem:[%s0 + $0x7c0] sm:$0xff]
  %v343 = vld [vmem:[%s0 + $0x7c8] sm:$0xff]
  %v344 = vld [vmem:[%s0 + $0x7d0] sm:$0xff]
  %v345 = vld [vmem:[%s0 + $0x7d8] sm:$0xff]
  %v346 = vld [vmem:[%s0 + $0x7e0] sm:$0xff]
  %v347 = vld [vmem:[%s0 + $0x7e8] sm:$0xff]
  %v348 = vld [vmem:[%s0 + $0x7f0] sm:$0xff]
  %v349 = vld [vmem:[%s0 + $0x7f8] sm:$0xff]
  %v350 = vld [vmem:[%s0 + $0x800] sm:$0xff]
  %v351 = vld [vmem:[%s0 + $0x808] sm:$0xff]
  %v352 = vld [vmem:[%s0 + $0x810] sm:$0xff]
  %v353 = vld [vmem:[%s0 + $0x818] sm:$0xff]
  %v354 = vld [vmem:[%s0 + $0x820] sm:$0xff]
  %v355 = vld [vmem:[%s0 + $0x828] sm:$0xff]
  %v356 = vld [vmem:[%s0 + $0x830] sm:$0xff]
  %v357 = vld [vmem:[%s0 + $0x838] sm:$0xff]
  %v358 = vld [vmem:[%s0 + $0x840] sm:$0xff]
  %v359 = vld [vmem:[%s0 + $0x848] sm:$0xff]
  %v360 = vld [vmem:[%s0 + $0x850] sm:$0xff]
  %v361 = vld [vmem:[%s0 + $0x858] sm:$0xff]
  %v362 = vld [vmem:[%s0 + $0x860] sm:$0xff]
  %v363 = vld [vmem:[%s0 + $0x868] sm:$0xff]
  %v364 = vld [vmem:[%s0 + $0x870] sm:$0xff]
  %v365 = vld [vmem:[%s0 + $0x878] sm:$0xff]
  %v366 = vld [vmem:[%s0 + $0x880] sm:$0xff]
  %v367 = vld [vmem:[%s0 + $0x888] sm:$0xff]
  %v368 = vld [vmem:[%s0 + $0x890] sm:$0xff]
  %v369 = vld [vmem:[%s0 + $0x898] sm:$0xff]
  %v370 = vld [vmem:[%s0 + $0x8a0] sm:$0xff]
  %v371 = vld [vmem:[%s0 + $0x8a8] sm:$0xff]
  %v372 = vld [vmem:[%s0 + $0x8b0] sm:$0xff]
  %v373 = vld [vmem:[%s0 + $0x8b8] sm:$0xff]
  %v374 = vld [vmem:[%s0 + $0x8c0] sm:$0xff]
  %v375 = vld [vmem:[%s0 + $0x8c8] sm:$0xff]
  %v376 = vld [vmem:[%s0 + $0x8d0] sm:$0xff]
  %v377 = vld [vmem:[%s0 + $0x8d8] sm:$0xff]
  %v378 = vld [vmem:[%s0 + $0x8e0] sm:$0xff]
  %v379 = vld [vmem:[%s0 + $0x8e8] sm:$0xff]
  %v380 = vld [vmem:[%s0 + $0x8f0] sm:$0xff]
  %v381 = vld [vmem:[%s0 + $0x8f8] sm:$0xff]
  %v382 = vld [vmem:[%s0 + $0x900] sm:$0xff]
  %v383 = vld [vmem:[%s0 + $0x908] sm:$0xff]
  %v384 = vld [vmem:[%s0 + $0x910] sm:$0xff]
  %v385 = vld [vmem:[%s0 + $0x918] sm:$0xff]
  %v386 = vld [vmem:[%s0 + $0x920] sm:$0xff]
  %v387 = vld [vmem:[%s0 + $0x928] sm:$0xff]
  %v388 = vld [vmem:[%s0 + $0x930] sm:$0xff]
  %v389 = vld [vmem:[%s0 + $0x938] sm:$0xff]
  %v390 = vld [vmem:[%s0 + $0x940] sm:$0xff]
  %v391 = vld [vmem:[%s0 + $0x948] sm:$0xff]
  %v392 = vld [vmem:[%s0 + $0x950] sm:$0xff]
  %v393 = vld [vmem:[%s0 + $0x958] sm:$0xff]
  %v394 = vld [vmem:[%s0 + $0x960] sm:$0xff]
  %v395 = vld [vmem:[%s0 + $0x968] sm:$0xff]
  %v396 = vld [vmem:[%s0 + $0x970] sm:$0xff]
  %v397 = vld [vmem:[%s0 + $0x978] sm:$0xff]
  %v398 = vld [vmem:[%s0 + $0x980] sm:$0xff]
  %v399 = vld [vmem:[%s0 + $0x988] sm:$0xff]
  %v400 = vld [vmem:[%s0 + $0x990] sm:$0xff]
  %v401 = vld [vmem:[%s0 + $0x998] sm:$0xff]
  %v402 = vld [vmem:[%s0 + $0x9a0] sm:$0xff]
  %v403 = vld [vmem:[%s0 + $0x9a8] sm:$0xff]
  %v404 = vld [vmem:[%s0 + $0x9b0] sm:$0xff]
  %v405 = vld [vmem:[%s0 + $0x9b8] sm:$0xff]
  %v406 = vld [vmem:[%s0 + $0x9c0] sm:$0xff]
  %v407 = vld [vmem:[%s0 + $0x9c8] sm:$0xff]
  %v408 = vld [vmem:[%s0 + $0x9d0] sm:$0xff]
  %v409 = vld [vmem:[%s0 + $0x9d8] sm:$0xff]
  %v410 = vld [vmem:[%s0 + $0x9e0] sm:$0xff]
  %v411 = vld [vmem:[%s0 + $0x9e8] sm:$0xff]
  %v412 = vld [vmem:[%s0 + $0x9f0] sm:$0xff]
  %v413 = vld [vmem:[%s0 + $0x9f8] sm:$0xff]
  %v414 = vld [vmem:[%s0 + $0xa00] sm:$0xff]
  %v415 = vld [vmem:[%s0 + $0xa08] sm:$0xff]
  %v416 = vld [vmem:[%s0 + $0xa10] sm:$0xff]
  %v417 = vld [vmem:[%s0 + $0xa18] sm:$0xff]
  %v418 = vld [vmem:[%s0 + $0xa20] sm:$0xff]
  %v419 = vld [vmem:[%s0 + $0xa28] sm:$0xff]
  %v420 = vld [vmem:[%s0 + $0xa30] sm:$0xff]
  %v421 = vld [vmem:[%s0 + $0xa38] sm:$0xff]
  %v422 = vld [vmem:[%s0 + $0xa40] sm:$0xff]
  %v423 = vld [vmem:[%s0 + $0xa48] sm:$0xff]
  %v424 = vld [vmem:[%s0 + $0xa50] sm:$0xff]
  %v425 = vld [vmem:[%s0 + $0xa58] sm:$0xff]
  %v426 = vld [vmem:[%s0 + $0xa60] sm:$0xff]
  %v427 = vld [vmem:[%s0 + $0xa68] sm:$0xff]
  %v428 = vld [vmem:[%s0 + $0xa70] sm:$0xff]
  %v429 = vld [vmem:[%s0 + $0xa78] sm:$0xff]
  %v430 = vld [vmem:[%s0 + $0xa80] sm:$0xff]
  %v431 = vld [vmem:[%s0 + $0xa88] sm:$0xff]
  %v432 = vld [vmem:[%s0 + $0xa90] sm:$0xff]
  %v433 = vld [vmem:[%s0 + $0xa98] sm:$0xff]
  %v434 = vld [vmem:[%s0 + $0xaa0] sm:$0xff]
  %v435 = vld [vmem:[%s0 + $0xaa8] sm:$0xff]
  %v436 = vld [vmem:[%s0 + $0xab0] sm:$0xff]
  %v437 = vld [vmem:[%s0 + $0xab8] sm:$0xff]
  %v438 = vld [vmem:[%s0 + $0xac0] sm:$0xff]
  %v439 = vld [vmem:[%s0 + $0xac8] sm:$0xff]
  %v440 = vld [vmem:[%s0 + $0xad0] sm:$0xff]
  %v441 = vld [vmem:[%s0 + $0xad8] sm:$0xff]
  %v442 = vld [vmem:[%s0 + $0xae0] sm:$0xff]
  %v443 = vld [vmem:[%s0 + $0xae8] sm:$0xff]
  %v444 = vld [vmem:[%s0 + $0xaf0] sm:$0xff]
  %v445 = vld [vmem:[%s0 + $0xaf8] sm:$0xff]
  %v446 = vld [vmem:[%s0 + $0xb00] sm:$0xff]
  %v447 = vld [vmem:[%s0 + $0xb08] sm:$0xff]
  %v448 = vld [vmem:[%s0 + $0xb10] sm:$0xff]
  %v449 = vld [vmem:[%s0 + $0xb18] sm:$0xff]
  %v450 = vld [vmem:[%s0 + $0xb20] sm:$0xff]
  %v451 = vld [vmem:[%s0 + $0xb28] sm:$0xff]
  %v452 = vld [vmem:[%s0 + $0xb30] sm:$0xff]
  %v453 = vld [vmem:[%s0 + $0xb38] sm:$0xff]
  %v454 = vld [vmem:[%s0 + $0xb40] sm:$0xff]
  %v455 = vld [vmem:[%s0 + $0xb48] sm:$0xff]
  %v456 = vld [vmem:[%s0 + $0xb50] sm:$0xff]
  %v457 = vld [vmem:[%s0 + $0xb58] sm:$0xff]
  %v458 = vld [vmem:[%s0 + $0xb60] sm:$0xff]
  %v459 = vld [vmem:[%s0 + $0xb68] sm:$0xff]
  %v460 = vld [vmem:[%s0 + $0xb70] sm:$0xff]
  %v461 = vld [vmem:[%s0 + $0xb78] sm:$0xff]
  %v462 = vld [vmem:[%s0 + $0xb80] sm:$0xff]
  %v463 = vld [vmem:[%s0 + $0xb88] sm:$0xff]
  %v464 = vld [vmem:[%s0 + $0xb90] sm:$0xff]
  %v465 = vld [vmem:[%s0 + $0xb98] sm:$0xff]
  %v466 = vld [vmem:[%s0 + $0xba0] sm:$0xff]
  %v467 = vld [vmem:[%s0 + $0xba8] sm:$0xff]
  %v468 = vld [vmem:[%s0 + $0xbb0] sm:$0xff]
  %v469 = vld [vmem:[%s0 + $0xbb8] sm:$0xff]
  %v470 = vld [vmem:[%s0 + $0xbc0] sm:$0xff]
  %v471 = vld [vmem:[%s0 + $0xbc8] sm:$0xff]
  %v472 = vld [vmem:[%s0 + $0xbd0] sm:$0xff]
  %v473 = vld [vmem:[%s0 + $0xbd8] sm:$0xff]
  %v474 = vld [vmem:[%s0 + $0xbe0] sm:$0xff]
  %v475 = vld [vmem:[%s0 + $0xbe8] sm:$0xff]
  %v476 = vld [vmem:[%s0 + $0xbf0] sm:$0xff]
  %v477 = vld [vmem:[%s0 + $0xbf8] sm:$0xff]
  %v478 = vld [vmem:[%s0 + $0xc00] sm:$0xff]
  %v479 = vld [vmem:[%s0 + $0xc08] sm:$0xff]
  %v480 = vld [vmem:[%s0 + $0xc10] sm:$0xff]
  %v481 = vld [vmem:[%s0 + $0xc18] sm:$0xff]
  %v482 = vld [vmem:[%s0 + $0xc20] sm:$0xff]
  %v483 = vld [vmem:[%s0 + $0xc28] sm:$0xff]
  %v484 = vld [vmem:[%s0 + $0xc30] sm:$0xff]
  %v485 = vld [vmem:[%s0 + $0xc38] sm:$0xff]
  %v486 = vld [vmem:[%s0 + $0xc40] sm:$0xff]
  %v487 = vld [vmem:[%s0 + $0xc48] sm:$0xff]
  %v488 = vld [vmem:[%s0 + $0xc50] sm:$0xff]
  %v489 = vld [vmem:[%s0 + $0xc58] sm:$0xff]
  %v490 = vld [vmem:[%s0 + $0xc60] sm:$0xff]
  %v491 = vld [vmem:[%s0 + $0xc68] sm:$0xff]
  %v492 = vld [vmem:[%s0 + $0xc70] sm:$0xff]
  %v493 = vld [vmem:[%s0 + $0xc78] sm:$0xff]
  %v494 = vld [vmem:[%s0 + $0xc80] sm:$0xff]
  %v495 = vld [vmem:[%s0 + $0xc88] sm:$0xff]
  %v496 = vld [vmem:[%s0 + $0xc90] sm:$0xff]
  %v497 = vld [vmem:[%s0 + $0xc98] sm:$0xff]
  %v498 = vld [vmem:[%s0 + $0xca0] sm:$0xff]
  %v499 = vld [vmem:[%s0 + $0xca8] sm:$0xff]
  %v500 = vld [vmem:[%s0 + $0xcb0] sm:$0xff]
  %v501 = vld [vmem:[%s0 + $0xcb8] sm:$0xff]
  %v502 = vld [vmem:[%s0 + $0xcc0] sm:$0xff]
  %v503 = vld [vmem:[%s0 + $0xcc8] sm:$0xff]
  %v504 = vld [vmem:[%s0 + $0xcd0] sm:$0xff]
  %v505 = vld [vmem:[%s0 + $0xcd8] sm:$0xff]
  %v506 = vld [vmem:[%s0 + $0xce0] sm:$0xff]
  %v507 = vld [vmem:[%s0 + $0xce8] sm:$0xff]
  %v508 = vld [vmem:[%s0 + $0xcf0] sm:$0xff]
  %v509 = vld [vmem:[%s0 + $0xcf8] sm:$0xff]
  %v510 = vld [vmem:[%s0 + $0xd00] sm:$0xff]
  %v511 = vld [vmem:[%s0 + $0xd08] sm:$0xff]
  %v512 = vld [vmem:[%s0 + $0xd10] sm:$0xff]
  %v513 = vld [vmem:[%s0 + $0xd18] sm:$0xff]
  %v514 = vld [vmem:[%s0 + $0xd20] sm:$0xff]
  %v515 = vld [vmem:[%s0 + $0xd28] sm:$0xff]
  %v516 = vld [vmem:[%s0 + $0xd30] sm:$0xff]
  %v517 = vld [vmem:[%s0 + $0xd38] sm:$0xff]
  %v518 = vld [vmem:[%s0 + $0xd40] sm:$0xff]
  %v519 = vld [vmem:[%s0 + $0xd48] sm:$0xff]
  %v520 = vld [vmem:[%s0 + $0xd50] sm:$0xff]
  %v521 = vld [vmem:[%s0 + $0xd58] sm:$0xff]
  %v522 = vld [vmem:[%s0 + $0xd60] sm:$0xff]
  %v523 = vld [vmem:[%s0 + $0xd68] sm:$0xff]
  %v524 = vld [vmem:[%s0 + $0xd70] sm:$0xff]
  %v525 = vld [vmem:[%s0 + $0xd78] sm:$0xff]
  %v606 = vunpack.c.l.b16 %v14
  %v607 = vunpack.c.h.b16 %v14
  %v608 = vunpack.c.l.b16 %v15
  %v609 = vunpack.c.h.b16 %v15
  %v610 = vunpack.c.l.b16 %v16
  %v611 = vunpack.c.h.b16 %v16
  %v612 = vunpack.c.l.b16 %v17
  %v613 = vunpack.c.h.b16 %v17
  %v614 = vunpack.c.l.b16 %v18
  %v615 = vunpack.c.l.b16 %v19
  %v616 = vunpack.c.h.b16 %v19
  %v617 = vunpack.c.l.b16 %v20
  %v618 = vunpack.c.h.b16 %v20
  %v619 = vunpack.c.l.b16 %v21
  %v620 = vunpack.c.h.b16 %v21
  %v621 = vunpack.c.l.b16 %v22
  %v622 = vunpack.c.h.b16 %v22
  %v623 = vunpack.c.l.b16 %v23
  %v624 = vunpack.c.l.b16 %v24
  %v625 = vunpack.c.h.b16 %v24
  %v626 = vunpack.c.l.b16 %v25
  %v627 = vunpack.c.h.b16 %v25
  %v628 = vunpack.c.l.b16 %v26
  %v629 = vunpack.c.h.b16 %v26
  %v630 = vunpack.c.l.b16 %v27
  %v631 = vunpack.c.h.b16 %v27
  %v632 = vunpack.c.l.b16 %v28
  %v633 = vunpack.c.l.b16 %v29
  %v634 = vunpack.c.h.b16 %v29
  %v635 = vunpack.c.l.b16 %v30
  %v636 = vunpack.c.h.b16 %v30
  %v637 = vunpack.c.l.b16 %v31
  %v638 = vunpack.c.h.b16 %v31
  %v639 = vunpack.c.l.b16 %v32
  %v640 = vunpack.c.h.b16 %v32
  %v641 = vunpack.c.l.b16 %v33
  %v642 = vunpack.c.l.b16 %v34
  %v643 = vunpack.c.h.b16 %v34
  %v644 = vunpack.c.l.b16 %v35
  %v645 = vunpack.c.h.b16 %v35
  %v646 = vunpack.c.l.b16 %v36
  %v647 = vunpack.c.h.b16 %v36
  %v648 = vunpack.c.l.b16 %v37
  %v649 = vunpack.c.h.b16 %v37
  %v650 = vunpack.c.l.b16 %v38
  %v651 = vunpack.c.l.b16 %v39
  %v652 = vunpack.c.h.b16 %v39
  %v653 = vunpack.c.l.b16 %v40
  %v654 = vunpack.c.h.b16 %v40
  %v655 = vunpack.c.l.b16 %v41
  %v656 = vunpack.c.h.b16 %v41
  %v657 = vunpack.c.l.b16 %v42
  %v658 = vunpack.c.h.b16 %v42
  %v659 = vunpack.c.l.b16 %v43
  %v660 = vunpack.c.l.b16 %v44
  %v661 = vunpack.c.h.b16 %v44
  %v662 = vunpack.c.l.b16 %v45
  %v663 = vunpack.c.h.b16 %v45
  %v664 = vunpack.c.l.b16 %v46
  %v665 = vunpack.c.h.b16 %v46
  %v666 = vunpack.c.l.b16 %v47
  %v667 = vunpack.c.h.b16 %v47
  %v668 = vunpack.c.l.b16 %v48
  %v669 = vunpack.c.l.b16 %v49
  %v670 = vunpack.c.h.b16 %v49
  %v671 = vunpack.c.l.b16 %v50
  %v672 = vunpack.c.h.b16 %v50
  %v673 = vunpack.c.l.b16 %v51
  %v674 = vunpack.c.h.b16 %v51
  %v675 = vunpack.c.l.b16 %v52
  %v676 = vunpack.c.h.b16 %v52
  %v677 = vunpack.c.l.b16 %v53
  %v678 = vunpack.c.l.b16 %v54
  %v679 = vunpack.c.h.b16 %v54
  %v680 = vunpack.c.l.b16 %v55
  %v681 = vunpack.c.h.b16 %v55
  %v682 = vunpack.c.l.b16 %v56
  %v683 = vunpack.c.h.b16 %v56
  %v684 = vunpack.c.l.b16 %v57
  %v685 = vunpack.c.h.b16 %v57
  %v686 = vunpack.c.l.b16 %v58
  %v687 = vunpack.c.l.b16 %v59
  %v688 = vunpack.c.h.b16 %v59
  %v689 = vunpack.c.l.b16 %v60
  %v690 = vunpack.c.h.b16 %v60
  %v691 = vunpack.c.l.b16 %v61
  %v692 = vunpack.c.h.b16 %v61
  %v693 = vunpack.c.l.b16 %v62
  %v694 = vunpack.c.h.b16 %v62
  %v695 = vunpack.c.l.b16 %v63
  %v696 = vunpack.c.l.b16 %v64
  %v697 = vunpack.c.h.b16 %v64
  %v698 = vunpack.c.l.b16 %v65
  %v699 = vunpack.c.h.b16 %v65
  %v700 = vunpack.c.l.b16 %v66
  %v701 = vunpack.c.h.b16 %v66
  %v702 = vunpack.c.l.b16 %v67
  %v703 = vunpack.c.h.b16 %v67
  %v704 = vunpack.c.l.b16 %v68
  %v705 = vunpack.c.l.b16 %v69
  %v706 = vunpack.c.h.b16 %v69
  %v707 = vunpack.c.l.b16 %v70
  %v708 = vunpack.c.h.b16 %v70
  %v709 = vunpack.c.l.b16 %v71
  %v710 = vunpack.c.h.b16 %v71
  %v711 = vunpack.c.l.b16 %v72
  %v712 = vunpack.c.h.b16 %v72
  %v713 = vunpack.c.l.b16 %v73
  %v714 = vunpack.c.l.b16 %v74
  %v715 = vunpack.c.h.b16 %v74
  %v716 = vunpack.c.l.b16 %v75
  %v717 = vunpack.c.h.b16 %v75
  %v718 = vunpack.c.l.b16 %v76
  %v719 = vunpack.c.h.b16 %v76
  %v720 = vunpack.c.l.b16 %v77
  %v721 = vunpack.c.h.b16 %v77
  %v722 = vunpack.c.l.b16 %v78
  %v723 = vunpack.c.l.b16 %v79
  %v724 = vunpack.c.h.b16 %v79
  %v725 = vunpack.c.l.b16 %v80
  %v726 = vunpack.c.h.b16 %v80
  %v727 = vunpack.c.l.b16 %v81
  %v728 = vunpack.c.h.b16 %v81
  %v729 = vunpack.c.l.b16 %v82
  %v730 = vunpack.c.h.b16 %v82
  %v731 = vunpack.c.l.b16 %v83
  %v732 = vunpack.c.l.b16 %v84
  %v733 = vunpack.c.h.b16 %v84
  %v734 = vunpack.c.l.b16 %v85
  %v735 = vunpack.c.h.b16 %v85
  %v736 = vunpack.c.l.b16 %v86
  %v737 = vunpack.c.h.b16 %v86
  %v738 = vunpack.c.l.b16 %v87
  %v739 = vunpack.c.h.b16 %v87
  %v740 = vunpack.c.l.b16 %v88
  %v741 = vunpack.c.l.b16 %v89
  %v742 = vunpack.c.h.b16 %v89
  %v743 = vunpack.c.l.b16 %v90
  %v744 = vunpack.c.h.b16 %v90
  %v745 = vunpack.c.l.b16 %v91
  %v746 = vunpack.c.h.b16 %v91
  %v747 = vunpack.c.l.b16 %v92
  %v748 = vunpack.c.h.b16 %v92
  %v749 = vunpack.c.l.b16 %v93
  %v750 = vpack.c.b16 %v615, %v606
  %v751 = vpack.c.b16 %v616, %v607
  %v752 = vpack.c.b16 %v617, %v608
  %v753 = vpack.c.b16 %v618, %v609
  %v754 = vpack.c.b16 %v619, %v610
  %v755 = vpack.c.b16 %v620, %v611
  %v756 = vpack.c.b16 %v621, %v612
  %v757 = vpack.c.b16 %v622, %v613
  %v758 = vpack.c.b16 %v623, %v614
  %v759 = vpack.c.b16 %v633, %v624
  %v760 = vpack.c.b16 %v634, %v625
  %v761 = vpack.c.b16 %v635, %v626
  %v762 = vpack.c.b16 %v636, %v627
  %v763 = vpack.c.b16 %v637, %v628
  %v764 = vpack.c.b16 %v638, %v629
  %v765 = vpack.c.b16 %v639, %v630
  %v766 = vpack.c.b16 %v640, %v631
  %v767 = vpack.c.b16 %v641, %v632
  %v768 = vpack.c.b16 %v651, %v642
  %v769 = vpack.c.b16 %v652, %v643
  %v770 = vpack.c.b16 %v653, %v644
  %v771 = vpack.c.b16 %v654, %v645
  %v772 = vpack.c.b16 %v655, %v646
  %v773 = vpack.c.b16 %v656, %v647
  %v774 = vpack.c.b16 %v657, %v648
  %v775 = vpack.c.b16 %v658, %v649
  %v776 = vpack.c.b16 %v659, %v650
  %v777 = vpack.c.b16 %v669, %v660
  %v778 = vpack.c.b16 %v670, %v661
  %v779 = vpack.c.b16 %v671, %v662
  %v780 = vpack.c.b16 %v672, %v663
  %v781 = vpack.c.b16 %v673, %v664
  %v782 = vpack.c.b16 %v674, %v665
  %v783 = vpack.c.b16 %v675, %v666
  %v784 = vpack.c.b16 %v676, %v667
  %v785 = vpack.c.b16 %v677, %v668
  %v786 = vpack.c.b16 %v687, %v678
  %v787 = vpack.c.b16 %v688, %v679
  %v788 = vpack.c.b16 %v689, %v680
  %v789 = vpack.c.b16 %v690, %v681
  %v790 = vpack.c.b16 %v691, %v682
  %v791 = vpack.c.b16 %v692, %v683
  %v792 = vpack.c.b16 %v693, %v684
  %v793 = vpack.c.b16 %v694, %v685
  %v794 = vpack.c.b16 %v695, %v686
  %v795 = vpack.c.b16 %v705, %v696
  %v796 = vpack.c.b16 %v706, %v697
  %v797 = vpack.c.b16 %v707, %v698
  %v798 = vpack.c.b16 %v708, %v699
  %v799 = vpack.c.b16 %v709, %v700
  %v800 = vpack.c.b16 %v710, %v701
  %v801 = vpack.c.b16 %v711, %v702
  %v802 = vpack.c.b16 %v712, %v703
  %v803 = vpack.c.b16 %v713, %v704
  %v804 = vpack.c.b16 %v723, %v714
  %v805 = vpack.c.b16 %v724, %v715
  %v806 = vpack.c.b16 %v725, %v716
  %v807 = vpack.c.b16 %v726, %v717
  %v808 = vpack.c.b16 %v727, %v718
  %v809 = vpack.c.b16 %v728, %v719
  %v810 = vpack.c.b16 %v729, %v720
  %v811 = vpack.c.b16 %v730, %v721
  %v812 = vpack.c.b16 %v731, %v722
  %v813 = vpack.c.b16 %v741, %v732
  %v814 = vpack.c.b16 %v742, %v733
  %v815 = vpack.c.b16 %v743, %v734
  %v816 = vpack.c.b16 %v744, %v735
  %v817 = vpack.c.b16 %v745, %v736
  %v818 = vpack.c.b16 %v746, %v737
  %v819 = vpack.c.b16 %v747, %v738
  %v820 = vpack.c.b16 %v748, %v739
  %v821 = vpack.c.b16 %v749, %v740
  %v1326 = vunpack.c.l.b16 %v94
  %v1327 = vunpack.c.h.b16 %v94
  %v1328 = vunpack.c.l.b16 %v95
  %v1329 = vunpack.c.h.b16 %v95
  %v1330 = vunpack.c.l.b16 %v96
  %v1331 = vunpack.c.h.b16 %v96
  %v1332 = vunpack.c.l.b16 %v97
  %v1333 = vunpack.c.h.b16 %v97
  %v1334 = vunpack.c.l.b16 %v98
  %v1335 = vunpack.c.h.b16 %v98
  %v1336 = vunpack.c.l.b16 %v99
  %v1337 = vunpack.c.h.b16 %v99
  %v1338 = vunpack.c.l.b16 %v100
  %v1339 = vunpack.c.h.b16 %v100
  %v1340 = vunpack.c.l.b16 %v101
  %v1341 = vunpack.c.h.b16 %v101
  %v1342 = vunpack.c.l.b16 %v102
  %v1343 = vunpack.c.h.b16 %v102
  %v1344 = vunpack.c.l.b16 %v103
  %v1345 = vunpack.c.h.b16 %v103
  %v1346 = vunpack.c.l.b16 %v104
  %v1347 = vunpack.c.h.b16 %v104
  %v1348 = vunpack.c.l.b16 %v105
  %v1349 = vunpack.c.h.b16 %v105
  %v1350 = vunpack.c.l.b16 %v106
  %v1351 = vunpack.c.h.b16 %v106
  %v1352 = vunpack.c.l.b16 %v107
  %v1353 = vunpack.c.h.b16 %v107
  %v1354 = vunpack.c.l.b16 %v108
  %v1355 = vunpack.c.h.b16 %v108
  %v1356 = vunpack.c.l.b16 %v109
  %v1357 = vunpack.c.h.b16 %v109
  %v1358 = vunpack.c.l.b16 %v110
  %v1359 = vunpack.c.h.b16 %v110
  %v1360 = vunpack.c.l.b16 %v111
  %v1361 = vunpack.c.h.b16 %v111
  %v1362 = vunpack.c.l.b16 %v112
  %v1363 = vunpack.c.h.b16 %v112
  %v1364 = vunpack.c.l.b16 %v113
  %v1365 = vunpack.c.h.b16 %v113
  %v1366 = vunpack.c.l.b16 %v114
  %v1367 = vunpack.c.h.b16 %v114
  %v1368 = vunpack.c.l.b16 %v115
  %v1369 = vunpack.c.h.b16 %v115
  %v1370 = vunpack.c.l.b16 %v116
  %v1371 = vunpack.c.h.b16 %v116
  %v1372 = vunpack.c.l.b16 %v117
  %v1373 = vunpack.c.h.b16 %v117
  %v1374 = vunpack.c.l.b16 %v118
  %v1375 = vunpack.c.h.b16 %v118
  %v1376 = vunpack.c.l.b16 %v119
  %v1377 = vunpack.c.h.b16 %v119
  %v1378 = vunpack.c.l.b16 %v120
  %v1379 = vunpack.c.h.b16 %v120
  %v1380 = vunpack.c.l.b16 %v121
  %v1381 = vunpack.c.h.b16 %v121
  %v1382 = vunpack.c.l.b16 %v122
  %v1383 = vunpack.c.h.b16 %v122
  %v1384 = vunpack.c.l.b16 %v123
  %v1385 = vunpack.c.h.b16 %v123
  %v1386 = vunpack.c.l.b16 %v124
  %v1387 = vunpack.c.h.b16 %v124
  %v1388 = vunpack.c.l.b16 %v125
  %v1389 = vunpack.c.h.b16 %v125
  %v1390 = vunpack.c.l.b16 %v126
  %v1391 = vunpack.c.h.b16 %v126
  %v1392 = vunpack.c.l.b16 %v127
  %v1393 = vunpack.c.h.b16 %v127
  %v1394 = vunpack.c.l.b16 %v128
  %v1395 = vunpack.c.h.b16 %v128
  %v1396 = vunpack.c.l.b16 %v129
  %v1397 = vunpack.c.h.b16 %v129
  %v1398 = vunpack.c.l.b16 %v130
  %v1399 = vunpack.c.h.b16 %v130
  %v1400 = vunpack.c.l.b16 %v131
  %v1401 = vunpack.c.h.b16 %v131
  %v1402 = vunpack.c.l.b16 %v132
  %v1403 = vunpack.c.h.b16 %v132
  %v1404 = vunpack.c.l.b16 %v133
  %v1405 = vunpack.c.h.b16 %v133
  %v1406 = vunpack.c.l.b16 %v134
  %v1407 = vunpack.c.h.b16 %v134
  %v1408 = vunpack.c.l.b16 %v135
  %v1409 = vunpack.c.h.b16 %v135
  %v1410 = vunpack.c.l.b16 %v136
  %v1411 = vunpack.c.h.b16 %v136
  %v1412 = vunpack.c.l.b16 %v137
  %v1413 = vunpack.c.h.b16 %v137
  %v1414 = vunpack.c.l.b16 %v138
  %v1415 = vunpack.c.h.b16 %v138
  %v1416 = vunpack.c.l.b16 %v139
  %v1417 = vunpack.c.h.b16 %v139
  %v1418 = vunpack.c.l.b16 %v140
  %v1419 = vunpack.c.h.b16 %v140
  %v1420 = vunpack.c.l.b16 %v141
  %v1421 = vunpack.c.h.b16 %v141
  %v1422 = vunpack.c.l.b16 %v142
  %v1423 = vunpack.c.h.b16 %v142
  %v1424 = vunpack.c.l.b16 %v143
  %v1425 = vunpack.c.h.b16 %v143
  %v1426 = vunpack.c.l.b16 %v144
  %v1427 = vunpack.c.h.b16 %v144
  %v1428 = vunpack.c.l.b16 %v145
  %v1429 = vunpack.c.h.b16 %v145
  %v1430 = vunpack.c.l.b16 %v146
  %v1431 = vunpack.c.h.b16 %v146
  %v1432 = vunpack.c.l.b16 %v147
  %v1433 = vunpack.c.h.b16 %v147
  %v1434 = vunpack.c.l.b16 %v148
  %v1435 = vunpack.c.h.b16 %v148
  %v1436 = vunpack.c.l.b16 %v149
  %v1437 = vunpack.c.h.b16 %v149
  %v1438 = vunpack.c.l.b16 %v150
  %v1439 = vunpack.c.h.b16 %v150
  %v1440 = vunpack.c.l.b16 %v151
  %v1441 = vunpack.c.h.b16 %v151
  %v1442 = vunpack.c.l.b16 %v152
  %v1443 = vunpack.c.h.b16 %v152
  %v1444 = vunpack.c.l.b16 %v153
  %v1445 = vunpack.c.h.b16 %v153
  %v1446 = vunpack.c.l.b16 %v154
  %v1447 = vunpack.c.h.b16 %v154
  %v1448 = vunpack.c.l.b16 %v155
  %v1449 = vunpack.c.h.b16 %v155
  %v1450 = vunpack.c.l.b16 %v156
  %v1451 = vunpack.c.h.b16 %v156
  %v1452 = vunpack.c.l.b16 %v157
  %v1453 = vunpack.c.h.b16 %v157
  %v1454 = vunpack.c.l.b16 %v158
  %v1455 = vunpack.c.h.b16 %v158
  %v1456 = vunpack.c.l.b16 %v159
  %v1457 = vunpack.c.h.b16 %v159
  %v1458 = vunpack.c.l.b16 %v160
  %v1459 = vunpack.c.h.b16 %v160
  %v1460 = vunpack.c.l.b16 %v161
  %v1461 = vunpack.c.h.b16 %v161
  %v1462 = vunpack.c.l.b16 %v162
  %v1463 = vunpack.c.h.b16 %v162
  %v1464 = vunpack.c.l.b16 %v163
  %v1465 = vunpack.c.h.b16 %v163
  %v1466 = vunpack.c.l.b16 %v164
  %v1467 = vunpack.c.h.b16 %v164
  %v1468 = vunpack.c.l.b16 %v165
  %v1469 = vunpack.c.h.b16 %v165
  %v1470 = vunpack.c.l.b16 %v166
  %v1471 = vunpack.c.h.b16 %v166
  %v1472 = vunpack.c.l.b16 %v167
  %v1473 = vunpack.c.h.b16 %v167
  %v1474 = vunpack.c.l.b16 %v168
  %v1475 = vunpack.c.h.b16 %v168
  %v1476 = vunpack.c.l.b16 %v169
  %v1477 = vunpack.c.h.b16 %v169
  %v1478 = vunpack.c.l.b16 %v170
  %v1479 = vunpack.c.h.b16 %v170
  %v1480 = vunpack.c.l.b16 %v171
  %v1481 = vunpack.c.h.b16 %v171
  %v1482 = vunpack.c.l.b16 %v172
  %v1483 = vunpack.c.h.b16 %v172
  %v1484 = vunpack.c.l.b16 %v173
  %v1485 = vunpack.c.h.b16 %v173
  %v1486 = vunpack.c.l.b16 %v174
  %v1487 = vunpack.c.h.b16 %v174
  %v1488 = vunpack.c.l.b16 %v175
  %v1489 = vunpack.c.h.b16 %v175
  %v1490 = vunpack.c.l.b16 %v176
  %v1491 = vunpack.c.h.b16 %v176
  %v1492 = vunpack.c.l.b16 %v177
  %v1493 = vunpack.c.h.b16 %v177
  %v1494 = vunpack.c.l.b16 %v178
  %v1495 = vunpack.c.h.b16 %v178
  %v1496 = vunpack.c.l.b16 %v179
  %v1497 = vunpack.c.h.b16 %v179
  %v1498 = vunpack.c.l.b16 %v180
  %v1499 = vunpack.c.h.b16 %v180
  %v1500 = vunpack.c.l.b16 %v181
  %v1501 = vunpack.c.h.b16 %v181
  %v1502 = vunpack.c.l.b16 %v182
  %v1503 = vunpack.c.h.b16 %v182
  %v1504 = vunpack.c.l.b16 %v183
  %v1505 = vunpack.c.h.b16 %v183
  %v1506 = vunpack.c.l.b16 %v184
  %v1507 = vunpack.c.h.b16 %v184
  %v1508 = vunpack.c.l.b16 %v185
  %v1509 = vunpack.c.h.b16 %v185
  %v1510 = vunpack.c.l.b16 %v186
  %v1511 = vunpack.c.h.b16 %v186
  %v1512 = vunpack.c.l.b16 %v187
  %v1513 = vunpack.c.h.b16 %v187
  %v1514 = vunpack.c.l.b16 %v188
  %v1515 = vunpack.c.h.b16 %v188
  %v1516 = vunpack.c.l.b16 %v189
  %v1517 = vunpack.c.h.b16 %v189
  %v1518 = vunpack.c.l.b16 %v190
  %v1519 = vunpack.c.h.b16 %v190
  %v1520 = vunpack.c.l.b16 %v191
  %v1521 = vunpack.c.h.b16 %v191
  %v1522 = vunpack.c.l.b16 %v192
  %v1523 = vunpack.c.h.b16 %v192
  %v1524 = vunpack.c.l.b16 %v193
  %v1525 = vunpack.c.h.b16 %v193
  %v1526 = vunpack.c.l.b16 %v194
  %v1527 = vunpack.c.h.b16 %v194
  %v1528 = vunpack.c.l.b16 %v195
  %v1529 = vunpack.c.h.b16 %v195
  %v1530 = vunpack.c.l.b16 %v196
  %v1531 = vunpack.c.h.b16 %v196
  %v1532 = vunpack.c.l.b16 %v197
  %v1533 = vunpack.c.h.b16 %v197
  %v1534 = vunpack.c.l.b16 %v198
  %v1535 = vunpack.c.h.b16 %v198
  %v1536 = vunpack.c.l.b16 %v199
  %v1537 = vunpack.c.h.b16 %v199
  %v1538 = vunpack.c.l.b16 %v200
  %v1539 = vunpack.c.h.b16 %v200
  %v1540 = vunpack.c.l.b16 %v201
  %v1541 = vunpack.c.h.b16 %v201
  %v1542 = vunpack.c.l.b16 %v202
  %v1543 = vunpack.c.h.b16 %v202
  %v1544 = vunpack.c.l.b16 %v203
  %v1545 = vunpack.c.h.b16 %v203
  %v1546 = vunpack.c.l.b16 %v204
  %v1547 = vunpack.c.h.b16 %v204
  %v1548 = vunpack.c.l.b16 %v205
  %v1549 = vunpack.c.h.b16 %v205
  %v1550 = vunpack.c.l.b16 %v206
  %v1551 = vunpack.c.h.b16 %v206
  %v1552 = vunpack.c.l.b16 %v207
  %v1553 = vunpack.c.h.b16 %v207
  %v1554 = vunpack.c.l.b16 %v208
  %v1555 = vunpack.c.h.b16 %v208
  %v1556 = vunpack.c.l.b16 %v209
  %v1557 = vunpack.c.h.b16 %v209
  %v1558 = vunpack.c.l.b16 %v210
  %v1559 = vunpack.c.h.b16 %v210
  %v1560 = vunpack.c.l.b16 %v211
  %v1561 = vunpack.c.h.b16 %v211
  %v1562 = vunpack.c.l.b16 %v212
  %v1563 = vunpack.c.h.b16 %v212
  %v1564 = vunpack.c.l.b16 %v213
  %v1565 = vunpack.c.h.b16 %v213
  %v1566 = vunpack.c.l.b16 %v214
  %v1567 = vunpack.c.h.b16 %v214
  %v1568 = vunpack.c.l.b16 %v215
  %v1569 = vunpack.c.h.b16 %v215
  %v1570 = vunpack.c.l.b16 %v216
  %v1571 = vunpack.c.h.b16 %v216
  %v1572 = vunpack.c.l.b16 %v217
  %v1573 = vunpack.c.h.b16 %v217
  %v1574 = vunpack.c.l.b16 %v218
  %v1575 = vunpack.c.h.b16 %v218
  %v1576 = vunpack.c.l.b16 %v219
  %v1577 = vunpack.c.h.b16 %v219
  %v1578 = vunpack.c.l.b16 %v220
  %v1579 = vunpack.c.h.b16 %v220
  %v1580 = vunpack.c.l.b16 %v221
  %v1581 = vunpack.c.h.b16 %v221
  %v1582 = vunpack.c.l.b16 %v222
  %v1583 = vunpack.c.h.b16 %v222
  %v1584 = vunpack.c.l.b16 %v223
  %v1585 = vunpack.c.h.b16 %v223
  %v1586 = vunpack.c.l.b16 %v224
  %v1587 = vunpack.c.h.b16 %v224
  %v1588 = vunpack.c.l.b16 %v225
  %v1589 = vunpack.c.h.b16 %v225
  %v1590 = vunpack.c.l.b16 %v226
  %v1591 = vunpack.c.h.b16 %v226
  %v1592 = vunpack.c.l.b16 %v227
  %v1593 = vunpack.c.h.b16 %v227
  %v1594 = vunpack.c.l.b16 %v228
  %v1595 = vunpack.c.h.b16 %v228
  %v1596 = vunpack.c.l.b16 %v229
  %v1597 = vunpack.c.h.b16 %v229
  %v1598 = vunpack.c.l.b16 %v230
  %v1599 = vunpack.c.h.b16 %v230
  %v1600 = vunpack.c.l.b16 %v231
  %v1601 = vunpack.c.h.b16 %v231
  %v1602 = vunpack.c.l.b16 %v232
  %v1603 = vunpack.c.h.b16 %v232
  %v1604 = vunpack.c.l.b16 %v233
  %v1605 = vunpack.c.h.b16 %v233
  %v1606 = vunpack.c.l.b16 %v234
  %v1607 = vunpack.c.h.b16 %v234
  %v1608 = vunpack.c.l.b16 %v235
  %v1609 = vunpack.c.h.b16 %v235
  %v1610 = vunpack.c.l.b16 %v236
  %v1611 = vunpack.c.h.b16 %v236
  %v1612 = vunpack.c.l.b16 %v237
  %v1613 = vunpack.c.h.b16 %v237
  %v1614 = vunpack.c.l.b16 %v238
  %v1615 = vunpack.c.h.b16 %v238
  %v1616 = vunpack.c.l.b16 %v239
  %v1617 = vunpack.c.h.b16 %v239
  %v1618 = vunpack.c.l.b16 %v240
  %v1619 = vunpack.c.h.b16 %v240
  %v1620 = vunpack.c.l.b16 %v241
  %v1621 = vunpack.c.h.b16 %v241
  %v1622 = vunpack.c.l.b16 %v242
  %v1623 = vunpack.c.h.b16 %v242
  %v1624 = vunpack.c.l.b16 %v243
  %v1625 = vunpack.c.h.b16 %v243
  %v1626 = vunpack.c.l.b16 %v244
  %v1627 = vunpack.c.h.b16 %v244
  %v1628 = vunpack.c.l.b16 %v245
  %v1629 = vunpack.c.h.b16 %v245
  %v1630 = vunpack.c.l.b16 %v246
  %v1631 = vunpack.c.h.b16 %v246
  %v1632 = vunpack.c.l.b16 %v247
  %v1633 = vunpack.c.h.b16 %v247
  %v1634 = vunpack.c.l.b16 %v248
  %v1635 = vunpack.c.h.b16 %v248
  %v1636 = vunpack.c.l.b16 %v249
  %v1637 = vunpack.c.h.b16 %v249
  %v1638 = vunpack.c.l.b16 %v250
  %v1639 = vunpack.c.h.b16 %v250
  %v1640 = vunpack.c.l.b16 %v251
  %v1641 = vunpack.c.h.b16 %v251
  %v1642 = vunpack.c.l.b16 %v252
  %v1643 = vunpack.c.h.b16 %v252
  %v1644 = vunpack.c.l.b16 %v253
  %v1645 = vunpack.c.h.b16 %v253
  %v1646 = vunpack.c.l.b16 %v254
  %v1647 = vunpack.c.h.b16 %v254
  %v1648 = vunpack.c.l.b16 %v255
  %v1649 = vunpack.c.h.b16 %v255
  %v1650 = vunpack.c.l.b16 %v256
  %v1651 = vunpack.c.h.b16 %v256
  %v1652 = vunpack.c.l.b16 %v257
  %v1653 = vunpack.c.h.b16 %v257
  %v1654 = vunpack.c.l.b16 %v258
  %v1655 = vunpack.c.h.b16 %v258
  %v1656 = vunpack.c.l.b16 %v259
  %v1657 = vunpack.c.h.b16 %v259
  %v1658 = vunpack.c.l.b16 %v260
  %v1659 = vunpack.c.h.b16 %v260
  %v1660 = vunpack.c.l.b16 %v261
  %v1661 = vunpack.c.h.b16 %v261
  %v1662 = vunpack.c.l.b16 %v262
  %v1663 = vunpack.c.h.b16 %v262
  %v1664 = vunpack.c.l.b16 %v263
  %v1665 = vunpack.c.h.b16 %v263
  %v1666 = vunpack.c.l.b16 %v264
  %v1667 = vunpack.c.h.b16 %v264
  %v1668 = vunpack.c.l.b16 %v265
  %v1669 = vunpack.c.h.b16 %v265
  %v1670 = vunpack.c.l.b16 %v266
  %v1671 = vunpack.c.h.b16 %v266
  %v1672 = vunpack.c.l.b16 %v267
  %v1673 = vunpack.c.h.b16 %v267
  %v1674 = vunpack.c.l.b16 %v268
  %v1675 = vunpack.c.h.b16 %v268
  %v1676 = vunpack.c.l.b16 %v269
  %v1677 = vunpack.c.h.b16 %v269
  %v1678 = vunpack.c.l.b16 %v270
  %v1679 = vunpack.c.h.b16 %v270
  %v1680 = vunpack.c.l.b16 %v271
  %v1681 = vunpack.c.h.b16 %v271
  %v1682 = vunpack.c.l.b16 %v272
  %v1683 = vunpack.c.h.b16 %v272
  %v1684 = vunpack.c.l.b16 %v273
  %v1685 = vunpack.c.h.b16 %v273
  %v1686 = vunpack.c.l.b16 %v274
  %v1687 = vunpack.c.h.b16 %v274
  %v1688 = vunpack.c.l.b16 %v275
  %v1689 = vunpack.c.h.b16 %v275
  %v1690 = vunpack.c.l.b16 %v276
  %v1691 = vunpack.c.h.b16 %v276
  %v1692 = vunpack.c.l.b16 %v277
  %v1693 = vunpack.c.h.b16 %v277
  %v1694 = vunpack.c.l.b16 %v278
  %v1695 = vunpack.c.h.b16 %v278
  %v1696 = vunpack.c.l.b16 %v279
  %v1697 = vunpack.c.h.b16 %v279
  %v1698 = vunpack.c.l.b16 %v280
  %v1699 = vunpack.c.h.b16 %v280
  %v1700 = vunpack.c.l.b16 %v281
  %v1701 = vunpack.c.h.b16 %v281
  %v1702 = vunpack.c.l.b16 %v282
  %v1703 = vunpack.c.h.b16 %v282
  %v1704 = vunpack.c.l.b16 %v283
  %v1705 = vunpack.c.h.b16 %v283
  %v1706 = vunpack.c.l.b16 %v284
  %v1707 = vunpack.c.h.b16 %v284
  %v1708 = vunpack.c.l.b16 %v285
  %v1709 = vunpack.c.h.b16 %v285
  %v1710 = vunpack.c.l.b16 %v286
  %v1711 = vunpack.c.h.b16 %v286
  %v1712 = vunpack.c.l.b16 %v287
  %v1713 = vunpack.c.h.b16 %v287
  %v1714 = vunpack.c.l.b16 %v288
  %v1715 = vunpack.c.h.b16 %v288
  %v1716 = vunpack.c.l.b16 %v289
  %v1717 = vunpack.c.h.b16 %v289
  %v1718 = vunpack.c.l.b16 %v290
  %v1719 = vunpack.c.h.b16 %v290
  %v1720 = vunpack.c.l.b16 %v291
  %v1721 = vunpack.c.h.b16 %v291
  %v1722 = vunpack.c.l.b16 %v292
  %v1723 = vunpack.c.h.b16 %v292
  %v1724 = vunpack.c.l.b16 %v293
  %v1725 = vunpack.c.h.b16 %v293
  %v1726 = vunpack.c.l.b16 %v294
  %v1727 = vunpack.c.h.b16 %v294
  %v1728 = vunpack.c.l.b16 %v295
  %v1729 = vunpack.c.h.b16 %v295
  %v1730 = vunpack.c.l.b16 %v296
  %v1731 = vunpack.c.h.b16 %v296
  %v1732 = vunpack.c.l.b16 %v297
  %v1733 = vunpack.c.h.b16 %v297
  %v1734 = vunpack.c.l.b16 %v298
  %v1735 = vunpack.c.h.b16 %v298
  %v1736 = vunpack.c.l.b16 %v299
  %v1737 = vunpack.c.h.b16 %v299
  %v1738 = vunpack.c.l.b16 %v300
  %v1739 = vunpack.c.h.b16 %v300
  %v1740 = vunpack.c.l.b16 %v301
  %v1741 = vunpack.c.h.b16 %v301
  %v1742 = vunpack.c.l.b16 %v302
  %v1743 = vunpack.c.h.b16 %v302
  %v1744 = vunpack.c.l.b16 %v303
  %v1745 = vunpack.c.h.b16 %v303
  %v1746 = vunpack.c.l.b16 %v304
  %v1747 = vunpack.c.h.b16 %v304
  %v1748 = vunpack.c.l.b16 %v305
  %v1749 = vunpack.c.h.b16 %v305
  %v1750 = vunpack.c.l.b16 %v306
  %v1751 = vunpack.c.h.b16 %v306
  %v1752 = vunpack.c.l.b16 %v307
  %v1753 = vunpack.c.h.b16 %v307
  %v1754 = vunpack.c.l.b16 %v308
  %v1755 = vunpack.c.h.b16 %v308
  %v1756 = vunpack.c.l.b16 %v309
  %v1757 = vunpack.c.h.b16 %v309
  %v1758 = vunpack.c.l.b16 %v310
  %v1759 = vunpack.c.h.b16 %v310
  %v1760 = vunpack.c.l.b16 %v311
  %v1761 = vunpack.c.h.b16 %v311
  %v1762 = vunpack.c.l.b16 %v312
  %v1763 = vunpack.c.h.b16 %v312
  %v1764 = vunpack.c.l.b16 %v313
  %v1765 = vunpack.c.h.b16 %v313
  %v1766 = vunpack.c.l.b16 %v314
  %v1767 = vunpack.c.h.b16 %v314
  %v1768 = vunpack.c.l.b16 %v315
  %v1769 = vunpack.c.h.b16 %v315
  %v1770 = vunpack.c.l.b16 %v316
  %v1771 = vunpack.c.h.b16 %v316
  %v1772 = vunpack.c.l.b16 %v317
  %v1773 = vunpack.c.h.b16 %v317
  %v1774 = vunpack.c.l.b16 %v318
  %v1775 = vunpack.c.h.b16 %v318
  %v1776 = vunpack.c.l.b16 %v319
  %v1777 = vunpack.c.h.b16 %v319
  %v1778 = vunpack.c.l.b16 %v320
  %v1779 = vunpack.c.h.b16 %v320
  %v1780 = vunpack.c.l.b16 %v321
  %v1781 = vunpack.c.h.b16 %v321
  %v1782 = vunpack.c.l.b16 %v322
  %v1783 = vunpack.c.h.b16 %v322
  %v1784 = vunpack.c.l.b16 %v323
  %v1785 = vunpack.c.h.b16 %v323
  %v1786 = vunpack.c.l.b16 %v324
  %v1787 = vunpack.c.h.b16 %v324
  %v1788 = vunpack.c.l.b16 %v325
  %v1789 = vunpack.c.h.b16 %v325
  %v1790 = vunpack.c.l.b16 %v326
  %v1791 = vunpack.c.h.b16 %v326
  %v1792 = vunpack.c.l.b16 %v327
  %v1793 = vunpack.c.h.b16 %v327
  %v1794 = vunpack.c.l.b16 %v328
  %v1795 = vunpack.c.h.b16 %v328
  %v1796 = vunpack.c.l.b16 %v329
  %v1797 = vunpack.c.h.b16 %v329
  %v1798 = vunpack.c.l.b16 %v330
  %v1799 = vunpack.c.h.b16 %v330
  %v1800 = vunpack.c.l.b16 %v331
  %v1801 = vunpack.c.h.b16 %v331
  %v1802 = vunpack.c.l.b16 %v332
  %v1803 = vunpack.c.h.b16 %v332
  %v1804 = vunpack.c.l.b16 %v333
  %v1805 = vunpack.c.h.b16 %v333
  %v1806 = vunpack.c.l.b16 %v334
  %v1807 = vunpack.c.h.b16 %v334
  %v1808 = vunpack.c.l.b16 %v335
  %v1809 = vunpack.c.h.b16 %v335
  %v1810 = vunpack.c.l.b16 %v336
  %v1811 = vunpack.c.h.b16 %v336
  %v1812 = vunpack.c.l.b16 %v337
  %v1813 = vunpack.c.h.b16 %v337
  %v1814 = vunpack.c.l.b16 %v338
  %v1815 = vunpack.c.h.b16 %v338
  %v1816 = vunpack.c.l.b16 %v339
  %v1817 = vunpack.c.h.b16 %v339
  %v1818 = vunpack.c.l.b16 %v340
  %v1819 = vunpack.c.h.b16 %v340
  %v1820 = vunpack.c.l.b16 %v341
  %v1821 = vunpack.c.h.b16 %v341
  %v1822 = vunpack.c.l.b16 %v342
  %v1823 = vunpack.c.h.b16 %v342
  %v1824 = vunpack.c.l.b16 %v343
  %v1825 = vunpack.c.h.b16 %v343
  %v1826 = vunpack.c.l.b16 %v344
  %v1827 = vunpack.c.h.b16 %v344
  %v1828 = vunpack.c.l.b16 %v345
  %v1829 = vunpack.c.h.b16 %v345
  %v1830 = vunpack.c.l.b16 %v346
  %v1831 = vunpack.c.h.b16 %v346
  %v1832 = vunpack.c.l.b16 %v347
  %v1833 = vunpack.c.h.b16 %v347
  %v1834 = vunpack.c.l.b16 %v348
  %v1835 = vunpack.c.h.b16 %v348
  %v1836 = vunpack.c.l.b16 %v349
  %v1837 = vunpack.c.h.b16 %v349
  %v1838 = vunpack.c.l.b16 %v350
  %v1839 = vunpack.c.h.b16 %v350
  %v1840 = vunpack.c.l.b16 %v351
  %v1841 = vunpack.c.h.b16 %v351
  %v1842 = vunpack.c.l.b16 %v352
  %v1843 = vunpack.c.h.b16 %v352
  %v1844 = vunpack.c.l.b16 %v353
  %v1845 = vunpack.c.h.b16 %v353
  %v1846 = vunpack.c.l.b16 %v354
  %v1847 = vunpack.c.h.b16 %v354
  %v1848 = vunpack.c.l.b16 %v355
  %v1849 = vunpack.c.h.b16 %v355
  %v1850 = vunpack.c.l.b16 %v356
  %v1851 = vunpack.c.h.b16 %v356
  %v1852 = vunpack.c.l.b16 %v357
  %v1853 = vunpack.c.h.b16 %v357
  %v1854 = vunpack.c.l.b16 %v358
  %v1855 = vunpack.c.h.b16 %v358
  %v1856 = vunpack.c.l.b16 %v359
  %v1857 = vunpack.c.h.b16 %v359
  %v1858 = vunpack.c.l.b16 %v360
  %v1859 = vunpack.c.h.b16 %v360
  %v1860 = vunpack.c.l.b16 %v361
  %v1861 = vunpack.c.h.b16 %v361
  %v1862 = vunpack.c.l.b16 %v362
  %v1863 = vunpack.c.h.b16 %v362
  %v1864 = vunpack.c.l.b16 %v363
  %v1865 = vunpack.c.h.b16 %v363
  %v1866 = vunpack.c.l.b16 %v364
  %v1867 = vunpack.c.h.b16 %v364
  %v1868 = vunpack.c.l.b16 %v365
  %v1869 = vunpack.c.h.b16 %v365
  %v1870 = vunpack.c.l.b16 %v366
  %v1871 = vunpack.c.h.b16 %v366
  %v1872 = vunpack.c.l.b16 %v367
  %v1873 = vunpack.c.h.b16 %v367
  %v1874 = vunpack.c.l.b16 %v368
  %v1875 = vunpack.c.h.b16 %v368
  %v1876 = vunpack.c.l.b16 %v369
  %v1877 = vunpack.c.h.b16 %v369
  %v1878 = vunpack.c.l.b16 %v370
  %v1879 = vunpack.c.h.b16 %v370
  %v1880 = vunpack.c.l.b16 %v371
  %v1881 = vunpack.c.h.b16 %v371
  %v1882 = vunpack.c.l.b16 %v372
  %v1883 = vunpack.c.h.b16 %v372
  %v1884 = vunpack.c.l.b16 %v373
  %v1885 = vunpack.c.h.b16 %v373
  %v1886 = vunpack.c.l.b16 %v374
  %v1887 = vunpack.c.h.b16 %v374
  %v1888 = vunpack.c.l.b16 %v375
  %v1889 = vunpack.c.h.b16 %v375
  %v1890 = vunpack.c.l.b16 %v376
  %v1891 = vunpack.c.h.b16 %v376
  %v1892 = vunpack.c.l.b16 %v377
  %v1893 = vunpack.c.h.b16 %v377
  %v1894 = vunpack.c.l.b16 %v378
  %v1895 = vunpack.c.h.b16 %v378
  %v1896 = vunpack.c.l.b16 %v379
  %v1897 = vunpack.c.h.b16 %v379
  %v1898 = vunpack.c.l.b16 %v380
  %v1899 = vunpack.c.h.b16 %v380
  %v1900 = vunpack.c.l.b16 %v381
  %v1901 = vunpack.c.h.b16 %v381
  %v1902 = vunpack.c.l.b16 %v382
  %v1903 = vunpack.c.h.b16 %v382
  %v1904 = vunpack.c.l.b16 %v383
  %v1905 = vunpack.c.h.b16 %v383
  %v1906 = vunpack.c.l.b16 %v384
  %v1907 = vunpack.c.h.b16 %v384
  %v1908 = vunpack.c.l.b16 %v385
  %v1909 = vunpack.c.h.b16 %v385
  %v1910 = vunpack.c.l.b16 %v386
  %v1911 = vunpack.c.h.b16 %v386
  %v1912 = vunpack.c.l.b16 %v387
  %v1913 = vunpack.c.h.b16 %v387
  %v1914 = vunpack.c.l.b16 %v388
  %v1915 = vunpack.c.h.b16 %v388
  %v1916 = vunpack.c.l.b16 %v389
  %v1917 = vunpack.c.h.b16 %v389
  %v1918 = vunpack.c.l.b16 %v390
  %v1919 = vunpack.c.h.b16 %v390
  %v1920 = vunpack.c.l.b16 %v391
  %v1921 = vunpack.c.h.b16 %v391
  %v1922 = vunpack.c.l.b16 %v392
  %v1923 = vunpack.c.h.b16 %v392
  %v1924 = vunpack.c.l.b16 %v393
  %v1925 = vunpack.c.h.b16 %v393
  %v1926 = vunpack.c.l.b16 %v394
  %v1927 = vunpack.c.h.b16 %v394
  %v1928 = vunpack.c.l.b16 %v395
  %v1929 = vunpack.c.h.b16 %v395
  %v1930 = vunpack.c.l.b16 %v396
  %v1931 = vunpack.c.h.b16 %v396
  %v1932 = vunpack.c.l.b16 %v397
  %v1933 = vunpack.c.h.b16 %v397
  %v1934 = vunpack.c.l.b16 %v398
  %v1935 = vunpack.c.h.b16 %v398
  %v1936 = vunpack.c.l.b16 %v399
  %v1937 = vunpack.c.h.b16 %v399
  %v1938 = vunpack.c.l.b16 %v400
  %v1939 = vunpack.c.h.b16 %v400
  %v1940 = vunpack.c.l.b16 %v401
  %v1941 = vunpack.c.h.b16 %v401
  %v1942 = vunpack.c.l.b16 %v402
  %v1943 = vunpack.c.h.b16 %v402
  %v1944 = vunpack.c.l.b16 %v403
  %v1945 = vunpack.c.h.b16 %v403
  %v1946 = vunpack.c.l.b16 %v404
  %v1947 = vunpack.c.h.b16 %v404
  %v1948 = vunpack.c.l.b16 %v405
  %v1949 = vunpack.c.h.b16 %v405
  %v1950 = vunpack.c.l.b16 %v406
  %v1951 = vunpack.c.h.b16 %v406
  %v1952 = vunpack.c.l.b16 %v407
  %v1953 = vunpack.c.h.b16 %v407
  %v1954 = vunpack.c.l.b16 %v408
  %v1955 = vunpack.c.h.b16 %v408
  %v1956 = vunpack.c.l.b16 %v409
  %v1957 = vunpack.c.h.b16 %v409
  %v1958 = vunpack.c.l.b16 %v410
  %v1959 = vunpack.c.h.b16 %v410
  %v1960 = vunpack.c.l.b16 %v411
  %v1961 = vunpack.c.h.b16 %v411
  %v1962 = vunpack.c.l.b16 %v412
  %v1963 = vunpack.c.h.b16 %v412
  %v1964 = vunpack.c.l.b16 %v413
  %v1965 = vunpack.c.h.b16 %v413
  %v1966 = vunpack.c.l.b16 %v414
  %v1967 = vunpack.c.h.b16 %v414
  %v1968 = vunpack.c.l.b16 %v415
  %v1969 = vunpack.c.h.b16 %v415
  %v1970 = vunpack.c.l.b16 %v416
  %v1971 = vunpack.c.h.b16 %v416
  %v1972 = vunpack.c.l.b16 %v417
  %v1973 = vunpack.c.h.b16 %v417
  %v1974 = vunpack.c.l.b16 %v418
  %v1975 = vunpack.c.h.b16 %v418
  %v1976 = vunpack.c.l.b16 %v419
  %v1977 = vunpack.c.h.b16 %v419
  %v1978 = vunpack.c.l.b16 %v420
  %v1979 = vunpack.c.h.b16 %v420
  %v1980 = vunpack.c.l.b16 %v421
  %v1981 = vunpack.c.h.b16 %v421
  %v1982 = vunpack.c.l.b16 %v422
  %v1983 = vunpack.c.h.b16 %v422
  %v1984 = vunpack.c.l.b16 %v423
  %v1985 = vunpack.c.h.b16 %v423
  %v1986 = vunpack.c.l.b16 %v424
  %v1987 = vunpack.c.h.b16 %v424
  %v1988 = vunpack.c.l.b16 %v425
  %v1989 = vunpack.c.h.b16 %v425
  %v1990 = vunpack.c.l.b16 %v426
  %v1991 = vunpack.c.h.b16 %v426
  %v1992 = vunpack.c.l.b16 %v427
  %v1993 = vunpack.c.h.b16 %v427
  %v1994 = vunpack.c.l.b16 %v428
  %v1995 = vunpack.c.h.b16 %v428
  %v1996 = vunpack.c.l.b16 %v429
  %v1997 = vunpack.c.h.b16 %v429
  %v1998 = vunpack.c.l.b16 %v430
  %v1999 = vunpack.c.h.b16 %v430
  %v2000 = vunpack.c.l.b16 %v431
  %v2001 = vunpack.c.h.b16 %v431
  %v2002 = vunpack.c.l.b16 %v432
  %v2003 = vunpack.c.h.b16 %v432
  %v2004 = vunpack.c.l.b16 %v433
  %v2005 = vunpack.c.h.b16 %v433
  %v2006 = vunpack.c.l.b16 %v434
  %v2007 = vunpack.c.h.b16 %v434
  %v2008 = vunpack.c.l.b16 %v435
  %v2009 = vunpack.c.h.b16 %v435
  %v2010 = vunpack.c.l.b16 %v436
  %v2011 = vunpack.c.h.b16 %v436
  %v2012 = vunpack.c.l.b16 %v437
  %v2013 = vunpack.c.h.b16 %v437
  %v2014 = vunpack.c.l.b16 %v438
  %v2015 = vunpack.c.h.b16 %v438
  %v2016 = vunpack.c.l.b16 %v439
  %v2017 = vunpack.c.h.b16 %v439
  %v2018 = vunpack.c.l.b16 %v440
  %v2019 = vunpack.c.h.b16 %v440
  %v2020 = vunpack.c.l.b16 %v441
  %v2021 = vunpack.c.h.b16 %v441
  %v2022 = vunpack.c.l.b16 %v442
  %v2023 = vunpack.c.h.b16 %v442
  %v2024 = vunpack.c.l.b16 %v443
  %v2025 = vunpack.c.h.b16 %v443
  %v2026 = vunpack.c.l.b16 %v444
  %v2027 = vunpack.c.h.b16 %v444
  %v2028 = vunpack.c.l.b16 %v445
  %v2029 = vunpack.c.h.b16 %v445
  %v2030 = vunpack.c.l.b16 %v446
  %v2031 = vunpack.c.h.b16 %v446
  %v2032 = vunpack.c.l.b16 %v447
  %v2033 = vunpack.c.h.b16 %v447
  %v2034 = vunpack.c.l.b16 %v448
  %v2035 = vunpack.c.h.b16 %v448
  %v2036 = vunpack.c.l.b16 %v449
  %v2037 = vunpack.c.h.b16 %v449
  %v2038 = vunpack.c.l.b16 %v450
  %v2039 = vunpack.c.h.b16 %v450
  %v2040 = vunpack.c.l.b16 %v451
  %v2041 = vunpack.c.h.b16 %v451
  %v2042 = vunpack.c.l.b16 %v452
  %v2043 = vunpack.c.h.b16 %v452
  %v2044 = vunpack.c.l.b16 %v453
  %v2045 = vunpack.c.h.b16 %v453
  %v2046 = vunpack.c.l.b16 %v454
  %v2047 = vunpack.c.h.b16 %v454
  %v2048 = vunpack.c.l.b16 %v455
  %v2049 = vunpack.c.h.b16 %v455
  %v2050 = vunpack.c.l.b16 %v456
  %v2051 = vunpack.c.h.b16 %v456
  %v2052 = vunpack.c.l.b16 %v457
  %v2053 = vunpack.c.h.b16 %v457
  %v2054 = vunpack.c.l.b16 %v458
  %v2055 = vunpack.c.h.b16 %v458
  %v2056 = vunpack.c.l.b16 %v459
  %v2057 = vunpack.c.h.b16 %v459
  %v2058 = vunpack.c.l.b16 %v460
  %v2059 = vunpack.c.h.b16 %v460
  %v2060 = vunpack.c.l.b16 %v461
  %v2061 = vunpack.c.h.b16 %v461
  %v2062 = vunpack.c.l.b16 %v462
  %v2063 = vunpack.c.h.b16 %v462
  %v2064 = vunpack.c.l.b16 %v463
  %v2065 = vunpack.c.h.b16 %v463
  %v2066 = vunpack.c.l.b16 %v464
  %v2067 = vunpack.c.h.b16 %v464
  %v2068 = vunpack.c.l.b16 %v465
  %v2069 = vunpack.c.h.b16 %v465
  %v2070 = vunpack.c.l.b16 %v466
  %v2071 = vunpack.c.h.b16 %v466
  %v2072 = vunpack.c.l.b16 %v467
  %v2073 = vunpack.c.h.b16 %v467
  %v2074 = vunpack.c.l.b16 %v468
  %v2075 = vunpack.c.h.b16 %v468
  %v2076 = vunpack.c.l.b16 %v469
  %v2077 = vunpack.c.h.b16 %v469
  %v2078 = vunpack.c.l.b16 %v470
  %v2079 = vunpack.c.h.b16 %v470
  %v2080 = vunpack.c.l.b16 %v471
  %v2081 = vunpack.c.h.b16 %v471
  %v2082 = vunpack.c.l.b16 %v472
  %v2083 = vunpack.c.h.b16 %v472
  %v2084 = vunpack.c.l.b16 %v473
  %v2085 = vunpack.c.h.b16 %v473
  %v2086 = vunpack.c.l.b16 %v474
  %v2087 = vunpack.c.h.b16 %v474
  %v2088 = vunpack.c.l.b16 %v475
  %v2089 = vunpack.c.h.b16 %v475
  %v2090 = vunpack.c.l.b16 %v476
  %v2091 = vunpack.c.h.b16 %v476
  %v2092 = vunpack.c.l.b16 %v477
  %v2093 = vunpack.c.h.b16 %v477
  %v2094 = vunpack.c.l.b16 %v478
  %v2095 = vunpack.c.h.b16 %v478
  %v2096 = vunpack.c.l.b16 %v479
  %v2097 = vunpack.c.h.b16 %v479
  %v2098 = vunpack.c.l.b16 %v480
  %v2099 = vunpack.c.h.b16 %v480
  %v2100 = vunpack.c.l.b16 %v481
  %v2101 = vunpack.c.h.b16 %v481
  %v2102 = vunpack.c.l.b16 %v482
  %v2103 = vunpack.c.h.b16 %v482
  %v2104 = vunpack.c.l.b16 %v483
  %v2105 = vunpack.c.h.b16 %v483
  %v2106 = vunpack.c.l.b16 %v484
  %v2107 = vunpack.c.h.b16 %v484
  %v2108 = vunpack.c.l.b16 %v485
  %v2109 = vunpack.c.h.b16 %v485
  %v2110 = vunpack.c.l.b16 %v486
  %v2111 = vunpack.c.h.b16 %v486
  %v2112 = vunpack.c.l.b16 %v487
  %v2113 = vunpack.c.h.b16 %v487
  %v2114 = vunpack.c.l.b16 %v488
  %v2115 = vunpack.c.h.b16 %v488
  %v2116 = vunpack.c.l.b16 %v489
  %v2117 = vunpack.c.h.b16 %v489
  %v2118 = vunpack.c.l.b16 %v490
  %v2119 = vunpack.c.h.b16 %v490
  %v2120 = vunpack.c.l.b16 %v491
  %v2121 = vunpack.c.h.b16 %v491
  %v2122 = vunpack.c.l.b16 %v492
  %v2123 = vunpack.c.h.b16 %v492
  %v2124 = vunpack.c.l.b16 %v493
  %v2125 = vunpack.c.h.b16 %v493
  %v2126 = vunpack.c.l.b16 %v494
  %v2127 = vunpack.c.h.b16 %v494
  %v2128 = vunpack.c.l.b16 %v495
  %v2129 = vunpack.c.h.b16 %v495
  %v2130 = vunpack.c.l.b16 %v496
  %v2131 = vunpack.c.h.b16 %v496
  %v2132 = vunpack.c.l.b16 %v497
  %v2133 = vunpack.c.h.b16 %v497
  %v2134 = vunpack.c.l.b16 %v498
  %v2135 = vunpack.c.h.b16 %v498
  %v2136 = vunpack.c.l.b16 %v499
  %v2137 = vunpack.c.h.b16 %v499
  %v2138 = vunpack.c.l.b16 %v500
  %v2139 = vunpack.c.h.b16 %v500
  %v2140 = vunpack.c.l.b16 %v501
  %v2141 = vunpack.c.h.b16 %v501
  %v2142 = vunpack.c.l.b16 %v502
  %v2143 = vunpack.c.h.b16 %v502
  %v2144 = vunpack.c.l.b16 %v503
  %v2145 = vunpack.c.h.b16 %v503
  %v2146 = vunpack.c.l.b16 %v504
  %v2147 = vunpack.c.h.b16 %v504
  %v2148 = vunpack.c.l.b16 %v505
  %v2149 = vunpack.c.h.b16 %v505
  %v2150 = vunpack.c.l.b16 %v506
  %v2151 = vunpack.c.h.b16 %v506
  %v2152 = vunpack.c.l.b16 %v507
  %v2153 = vunpack.c.h.b16 %v507
  %v2154 = vunpack.c.l.b16 %v508
  %v2155 = vunpack.c.h.b16 %v508
  %v2156 = vunpack.c.l.b16 %v509
  %v2157 = vunpack.c.h.b16 %v509
  %v2158 = vunpack.c.l.b16 %v510
  %v2159 = vunpack.c.h.b16 %v510
  %v2160 = vunpack.c.l.b16 %v511
  %v2161 = vunpack.c.h.b16 %v511
  %v2162 = vunpack.c.l.b16 %v512
  %v2163 = vunpack.c.h.b16 %v512
  %v2164 = vunpack.c.l.b16 %v513
  %v2165 = vunpack.c.h.b16 %v513
  %v2166 = vunpack.c.l.b16 %v514
  %v2167 = vunpack.c.h.b16 %v514
  %v2168 = vunpack.c.l.b16 %v515
  %v2169 = vunpack.c.h.b16 %v515
  %v2170 = vunpack.c.l.b16 %v516
  %v2171 = vunpack.c.h.b16 %v516
  %v2172 = vunpack.c.l.b16 %v517
  %v2173 = vunpack.c.h.b16 %v517
  %v2174 = vunpack.c.l.b16 %v518
  %v2175 = vunpack.c.h.b16 %v518
  %v2176 = vunpack.c.l.b16 %v519
  %v2177 = vunpack.c.h.b16 %v519
  %v2178 = vunpack.c.l.b16 %v520
  %v2179 = vunpack.c.h.b16 %v520
  %v2180 = vunpack.c.l.b16 %v521
  %v2181 = vunpack.c.h.b16 %v521
  %v2182 = vunpack.c.l.b16 %v522
  %v2183 = vunpack.c.h.b16 %v522
  %v2184 = vunpack.c.l.b16 %v523
  %v2185 = vunpack.c.h.b16 %v523
  %v2186 = vunpack.c.l.b16 %v524
  %v2187 = vunpack.c.h.b16 %v524
  %v2188 = vunpack.c.l.b16 %v525
  %v2189 = vunpack.c.h.b16 %v525
  %v2190 = vpack.c.b16 %v1332, %v1326
  %v2191 = vpack.c.b16 %v1333, %v1327
  %v2192 = vpack.c.b16 %v1334, %v1328
  %v2193 = vpack.c.b16 %v1335, %v1329
  %v2194 = vpack.c.b16 %v1336, %v1330
  %v2195 = vpack.c.b16 %v1337, %v1331
  %v2196 = vpack.c.b16 %v1344, %v1338
  %v2197 = vpack.c.b16 %v1345, %v1339
  %v2198 = vpack.c.b16 %v1346, %v1340
  %v2199 = vpack.c.b16 %v1347, %v1341
  %v2200 = vpack.c.b16 %v1348, %v1342
  %v2201 = vpack.c.b16 %v1349, %v1343
  %v2202 = vpack.c.b16 %v1356, %v1350
  %v2203 = vpack.c.b16 %v1357, %v1351
  %v2204 = vpack.c.b16 %v1358, %v1352
  %v2205 = vpack.c.b16 %v1359, %v1353
  %v2206 = vpack.c.b16 %v1360, %v1354
  %v2207 = vpack.c.b16 %v1361, %v1355
  %v2208 = vpack.c.b16 %v1368, %v1362
  %v2209 = vpack.c.b16 %v1369, %v1363
  %v2210 = vpack.c.b16 %v1370, %v1364
  %v2211 = vpack.c.b16 %v1371, %v1365
  %v2212 = vpack.c.b16 %v1372, %v1366
  %v2213 = vpack.c.b16 %v1373, %v1367
  %v2214 = vpack.c.b16 %v1380, %v1374
  %v2215 = vpack.c.b16 %v1381, %v1375
  %v2216 = vpack.c.b16 %v1382, %v1376
  %v2217 = vpack.c.b16 %v1383, %v1377
  %v2218 = vpack.c.b16 %v1384, %v1378
  %v2219 = vpack.c.b16 %v1385, %v1379
  %v2220 = vpack.c.b16 %v1392, %v1386
  %v2221 = vpack.c.b16 %v1393, %v1387
  %v2222 = vpack.c.b16 %v1394, %v1388
  %v2223 = vpack.c.b16 %v1395, %v1389
  %v2224 = vpack.c.b16 %v1396, %v1390
  %v2225 = vpack.c.b16 %v1397, %v1391
  %v2226 = vpack.c.b16 %v1404, %v1398
  %v2227 = vpack.c.b16 %v1405, %v1399
  %v2228 = vpack.c.b16 %v1406, %v1400
  %v2229 = vpack.c.b16 %v1407, %v1401
  %v2230 = vpack.c.b16 %v1408, %v1402
  %v2231 = vpack.c.b16 %v1409, %v1403
  %v2232 = vpack.c.b16 %v1416, %v1410
  %v2233 = vpack.c.b16 %v1417, %v1411
  %v2234 = vpack.c.b16 %v1418, %v1412
  %v2235 = vpack.c.b16 %v1419, %v1413
  %v2236 = vpack.c.b16 %v1420, %v1414
  %v2237 = vpack.c.b16 %v1421, %v1415
  %v2238 = vpack.c.b16 %v1428, %v1422
  %v2239 = vpack.c.b16 %v1429, %v1423
  %v2240 = vpack.c.b16 %v1430, %v1424
  %v2241 = vpack.c.b16 %v1431, %v1425
  %v2242 = vpack.c.b16 %v1432, %v1426
  %v2243 = vpack.c.b16 %v1433, %v1427
  %v2244 = vpack.c.b16 %v1440, %v1434
  %v2245 = vpack.c.b16 %v1441, %v1435
  %v2246 = vpack.c.b16 %v1442, %v1436
  %v2247 = vpack.c.b16 %v1443, %v1437
  %v2248 = vpack.c.b16 %v1444, %v1438
  %v2249 = vpack.c.b16 %v1445, %v1439
  %v2250 = vpack.c.b16 %v1452, %v1446
  %v2251 = vpack.c.b16 %v1453, %v1447
  %v2252 = vpack.c.b16 %v1454, %v1448
  %v2253 = vpack.c.b16 %v1455, %v1449
  %v2254 = vpack.c.b16 %v1456, %v1450
  %v2255 = vpack.c.b16 %v1457, %v1451
  %v2256 = vpack.c.b16 %v1464, %v1458
  %v2257 = vpack.c.b16 %v1465, %v1459
  %v2258 = vpack.c.b16 %v1466, %v1460
  %v2259 = vpack.c.b16 %v1467, %v1461
  %v2260 = vpack.c.b16 %v1468, %v1462
  %v2261 = vpack.c.b16 %v1469, %v1463
  %v2262 = vpack.c.b16 %v1476, %v1470
  %v2263 = vpack.c.b16 %v1477, %v1471
  %v2264 = vpack.c.b16 %v1478, %v1472
  %v2265 = vpack.c.b16 %v1479, %v1473
  %v2266 = vpack.c.b16 %v1480, %v1474
  %v2267 = vpack.c.b16 %v1481, %v1475
  %v2268 = vpack.c.b16 %v1488, %v1482
  %v2269 = vpack.c.b16 %v1489, %v1483
  %v2270 = vpack.c.b16 %v1490, %v1484
  %v2271 = vpack.c.b16 %v1491, %v1485
  %v2272 = vpack.c.b16 %v1492, %v1486
  %v2273 = vpack.c.b16 %v1493, %v1487
  %v2274 = vpack.c.b16 %v1500, %v1494
  %v2275 = vpack.c.b16 %v1501, %v1495
  %v2276 = vpack.c.b16 %v1502, %v1496
  %v2277 = vpack.c.b16 %v1503, %v1497
  %v2278 = vpack.c.b16 %v1504, %v1498
  %v2279 = vpack.c.b16 %v1505, %v1499
  %v2280 = vpack.c.b16 %v1512, %v1506
  %v2281 = vpack.c.b16 %v1513, %v1507
  %v2282 = vpack.c.b16 %v1514, %v1508
  %v2283 = vpack.c.b16 %v1515, %v1509
  %v2284 = vpack.c.b16 %v1516, %v1510
  %v2285 = vpack.c.b16 %v1517, %v1511
  %v2286 = vpack.c.b16 %v1524, %v1518
  %v2287 = vpack.c.b16 %v1525, %v1519
  %v2288 = vpack.c.b16 %v1526, %v1520
  %v2289 = vpack.c.b16 %v1527, %v1521
  %v2290 = vpack.c.b16 %v1528, %v1522
  %v2291 = vpack.c.b16 %v1529, %v1523
  %v2292 = vpack.c.b16 %v1536, %v1530
  %v2293 = vpack.c.b16 %v1537, %v1531
  %v2294 = vpack.c.b16 %v1538, %v1532
  %v2295 = vpack.c.b16 %v1539, %v1533
  %v2296 = vpack.c.b16 %v1540, %v1534
  %v2297 = vpack.c.b16 %v1541, %v1535
  %v2298 = vpack.c.b16 %v1548, %v1542
  %v2299 = vpack.c.b16 %v1549, %v1543
  %v2300 = vpack.c.b16 %v1550, %v1544
  %v2301 = vpack.c.b16 %v1551, %v1545
  %v2302 = vpack.c.b16 %v1552, %v1546
  %v2303 = vpack.c.b16 %v1553, %v1547
  %v2304 = vpack.c.b16 %v1560, %v1554
  %v2305 = vpack.c.b16 %v1561, %v1555
  %v2306 = vpack.c.b16 %v1562, %v1556
  %v2307 = vpack.c.b16 %v1563, %v1557
  %v2308 = vpack.c.b16 %v1564, %v1558
  %v2309 = vpack.c.b16 %v1565, %v1559
  %v2310 = vpack.c.b16 %v1572, %v1566
  %v2311 = vpack.c.b16 %v1573, %v1567
  %v2312 = vpack.c.b16 %v1574, %v1568
  %v2313 = vpack.c.b16 %v1575, %v1569
  %v2314 = vpack.c.b16 %v1576, %v1570
  %v2315 = vpack.c.b16 %v1577, %v1571
  %v2316 = vpack.c.b16 %v1584, %v1578
  %v2317 = vpack.c.b16 %v1585, %v1579
  %v2318 = vpack.c.b16 %v1586, %v1580
  %v2319 = vpack.c.b16 %v1587, %v1581
  %v2320 = vpack.c.b16 %v1588, %v1582
  %v2321 = vpack.c.b16 %v1589, %v1583
  %v2322 = vpack.c.b16 %v1596, %v1590
  %v2323 = vpack.c.b16 %v1597, %v1591
  %v2324 = vpack.c.b16 %v1598, %v1592
  %v2325 = vpack.c.b16 %v1599, %v1593
  %v2326 = vpack.c.b16 %v1600, %v1594
  %v2327 = vpack.c.b16 %v1601, %v1595
  %v2328 = vpack.c.b16 %v1608, %v1602
  %v2329 = vpack.c.b16 %v1609, %v1603
  %v2330 = vpack.c.b16 %v1610, %v1604
  %v2331 = vpack.c.b16 %v1611, %v1605
  %v2332 = vpack.c.b16 %v1612, %v1606
  %v2333 = vpack.c.b16 %v1613, %v1607
  %v2334 = vpack.c.b16 %v1620, %v1614
  %v2335 = vpack.c.b16 %v1621, %v1615
  %v2336 = vpack.c.b16 %v1622, %v1616
  %v2337 = vpack.c.b16 %v1623, %v1617
  %v2338 = vpack.c.b16 %v1624, %v1618
  %v2339 = vpack.c.b16 %v1625, %v1619
  %v2340 = vpack.c.b16 %v1632, %v1626
  %v2341 = vpack.c.b16 %v1633, %v1627
  %v2342 = vpack.c.b16 %v1634, %v1628
  %v2343 = vpack.c.b16 %v1635, %v1629
  %v2344 = vpack.c.b16 %v1636, %v1630
  %v2345 = vpack.c.b16 %v1637, %v1631
  %v2346 = vpack.c.b16 %v1644, %v1638
  %v2347 = vpack.c.b16 %v1645, %v1639
  %v2348 = vpack.c.b16 %v1646, %v1640
  %v2349 = vpack.c.b16 %v1647, %v1641
  %v2350 = vpack.c.b16 %v1648, %v1642
  %v2351 = vpack.c.b16 %v1649, %v1643
  %v2352 = vpack.c.b16 %v1656, %v1650
  %v2353 = vpack.c.b16 %v1657, %v1651
  %v2354 = vpack.c.b16 %v1658, %v1652
  %v2355 = vpack.c.b16 %v1659, %v1653
  %v2356 = vpack.c.b16 %v1660, %v1654
  %v2357 = vpack.c.b16 %v1661, %v1655
  %v2358 = vpack.c.b16 %v1668, %v1662
  %v2359 = vpack.c.b16 %v1669, %v1663
  %v2360 = vpack.c.b16 %v1670, %v1664
  %v2361 = vpack.c.b16 %v1671, %v1665
  %v2362 = vpack.c.b16 %v1672, %v1666
  %v2363 = vpack.c.b16 %v1673, %v1667
  %v2364 = vpack.c.b16 %v1680, %v1674
  %v2365 = vpack.c.b16 %v1681, %v1675
  %v2366 = vpack.c.b16 %v1682, %v1676
  %v2367 = vpack.c.b16 %v1683, %v1677
  %v2368 = vpack.c.b16 %v1684, %v1678
  %v2369 = vpack.c.b16 %v1685, %v1679
  %v2370 = vpack.c.b16 %v1692, %v1686
  %v2371 = vpack.c.b16 %v1693, %v1687
  %v2372 = vpack.c.b16 %v1694, %v1688
  %v2373 = vpack.c.b16 %v1695, %v1689
  %v2374 = vpack.c.b16 %v1696, %v1690
  %v2375 = vpack.c.b16 %v1697, %v1691
  %v2376 = vpack.c.b16 %v1704, %v1698
  %v2377 = vpack.c.b16 %v1705, %v1699
  %v2378 = vpack.c.b16 %v1706, %v1700
  %v2379 = vpack.c.b16 %v1707, %v1701
  %v2380 = vpack.c.b16 %v1708, %v1702
  %v2381 = vpack.c.b16 %v1709, %v1703
  %v2382 = vpack.c.b16 %v1716, %v1710
  %v2383 = vpack.c.b16 %v1717, %v1711
  %v2384 = vpack.c.b16 %v1718, %v1712
  %v2385 = vpack.c.b16 %v1719, %v1713
  %v2386 = vpack.c.b16 %v1720, %v1714
  %v2387 = vpack.c.b16 %v1721, %v1715
  %v2388 = vpack.c.b16 %v1728, %v1722
  %v2389 = vpack.c.b16 %v1729, %v1723
  %v2390 = vpack.c.b16 %v1730, %v1724
  %v2391 = vpack.c.b16 %v1731, %v1725
  %v2392 = vpack.c.b16 %v1732, %v1726
  %v2393 = vpack.c.b16 %v1733, %v1727
  %v2394 = vpack.c.b16 %v1740, %v1734
  %v2395 = vpack.c.b16 %v1741, %v1735
  %v2396 = vpack.c.b16 %v1742, %v1736
  %v2397 = vpack.c.b16 %v1743, %v1737
  %v2398 = vpack.c.b16 %v1744, %v1738
  %v2399 = vpack.c.b16 %v1745, %v1739
  %v2400 = vpack.c.b16 %v1752, %v1746
  %v2401 = vpack.c.b16 %v1753, %v1747
  %v2402 = vpack.c.b16 %v1754, %v1748
  %v2403 = vpack.c.b16 %v1755, %v1749
  %v2404 = vpack.c.b16 %v1756, %v1750
  %v2405 = vpack.c.b16 %v1757, %v1751
  %v2406 = vpack.c.b16 %v1764, %v1758
  %v2407 = vpack.c.b16 %v1765, %v1759
  %v2408 = vpack.c.b16 %v1766, %v1760
  %v2409 = vpack.c.b16 %v1767, %v1761
  %v2410 = vpack.c.b16 %v1768, %v1762
  %v2411 = vpack.c.b16 %v1769, %v1763
  %v2412 = vpack.c.b16 %v1776, %v1770
  %v2413 = vpack.c.b16 %v1777, %v1771
  %v2414 = vpack.c.b16 %v1778, %v1772
  %v2415 = vpack.c.b16 %v1779, %v1773
  %v2416 = vpack.c.b16 %v1780, %v1774
  %v2417 = vpack.c.b16 %v1781, %v1775
  %v2418 = vpack.c.b16 %v1788, %v1782
  %v2419 = vpack.c.b16 %v1789, %v1783
  %v2420 = vpack.c.b16 %v1790, %v1784
  %v2421 = vpack.c.b16 %v1791, %v1785
  %v2422 = vpack.c.b16 %v1792, %v1786
  %v2423 = vpack.c.b16 %v1793, %v1787
  %v2424 = vpack.c.b16 %v1800, %v1794
  %v2425 = vpack.c.b16 %v1801, %v1795
  %v2426 = vpack.c.b16 %v1802, %v1796
  %v2427 = vpack.c.b16 %v1803, %v1797
  %v2428 = vpack.c.b16 %v1804, %v1798
  %v2429 = vpack.c.b16 %v1805, %v1799
  %v2430 = vpack.c.b16 %v1812, %v1806
  %v2431 = vpack.c.b16 %v1813, %v1807
  %v2432 = vpack.c.b16 %v1814, %v1808
  %v2433 = vpack.c.b16 %v1815, %v1809
  %v2434 = vpack.c.b16 %v1816, %v1810
  %v2435 = vpack.c.b16 %v1817, %v1811
  %v2436 = vpack.c.b16 %v1824, %v1818
  %v2437 = vpack.c.b16 %v1825, %v1819
  %v2438 = vpack.c.b16 %v1826, %v1820
  %v2439 = vpack.c.b16 %v1827, %v1821
  %v2440 = vpack.c.b16 %v1828, %v1822
  %v2441 = vpack.c.b16 %v1829, %v1823
  %v2442 = vpack.c.b16 %v1836, %v1830
  %v2443 = vpack.c.b16 %v1837, %v1831
  %v2444 = vpack.c.b16 %v1838, %v1832
  %v2445 = vpack.c.b16 %v1839, %v1833
  %v2446 = vpack.c.b16 %v1840, %v1834
  %v2447 = vpack.c.b16 %v1841, %v1835
  %v2448 = vpack.c.b16 %v1848, %v1842
  %v2449 = vpack.c.b16 %v1849, %v1843
  %v2450 = vpack.c.b16 %v1850, %v1844
  %v2451 = vpack.c.b16 %v1851, %v1845
  %v2452 = vpack.c.b16 %v1852, %v1846
  %v2453 = vpack.c.b16 %v1853, %v1847
  %v2454 = vpack.c.b16 %v1860, %v1854
  %v2455 = vpack.c.b16 %v1861, %v1855
  %v2456 = vpack.c.b16 %v1862, %v1856
  %v2457 = vpack.c.b16 %v1863, %v1857
  %v2458 = vpack.c.b16 %v1864, %v1858
  %v2459 = vpack.c.b16 %v1865, %v1859
  %v2460 = vpack.c.b16 %v1872, %v1866
  %v2461 = vpack.c.b16 %v1873, %v1867
  %v2462 = vpack.c.b16 %v1874, %v1868
  %v2463 = vpack.c.b16 %v1875, %v1869
  %v2464 = vpack.c.b16 %v1876, %v1870
  %v2465 = vpack.c.b16 %v1877, %v1871
  %v2466 = vpack.c.b16 %v1884, %v1878
  %v2467 = vpack.c.b16 %v1885, %v1879
  %v2468 = vpack.c.b16 %v1886, %v1880
  %v2469 = vpack.c.b16 %v1887, %v1881
  %v2470 = vpack.c.b16 %v1888, %v1882
  %v2471 = vpack.c.b16 %v1889, %v1883
  %v2472 = vpack.c.b16 %v1896, %v1890
  %v2473 = vpack.c.b16 %v1897, %v1891
  %v2474 = vpack.c.b16 %v1898, %v1892
  %v2475 = vpack.c.b16 %v1899, %v1893
  %v2476 = vpack.c.b16 %v1900, %v1894
  %v2477 = vpack.c.b16 %v1901, %v1895
  %v2478 = vpack.c.b16 %v1908, %v1902
  %v2479 = vpack.c.b16 %v1909, %v1903
  %v2480 = vpack.c.b16 %v1910, %v1904
  %v2481 = vpack.c.b16 %v1911, %v1905
  %v2482 = vpack.c.b16 %v1912, %v1906
  %v2483 = vpack.c.b16 %v1913, %v1907
  %v2484 = vpack.c.b16 %v1920, %v1914
  %v2485 = vpack.c.b16 %v1921, %v1915
  %v2486 = vpack.c.b16 %v1922, %v1916
  %v2487 = vpack.c.b16 %v1923, %v1917
  %v2488 = vpack.c.b16 %v1924, %v1918
  %v2489 = vpack.c.b16 %v1925, %v1919
  %v2490 = vpack.c.b16 %v1932, %v1926
  %v2491 = vpack.c.b16 %v1933, %v1927
  %v2492 = vpack.c.b16 %v1934, %v1928
  %v2493 = vpack.c.b16 %v1935, %v1929
  %v2494 = vpack.c.b16 %v1936, %v1930
  %v2495 = vpack.c.b16 %v1937, %v1931
  %v2496 = vpack.c.b16 %v1944, %v1938
  %v2497 = vpack.c.b16 %v1945, %v1939
  %v2498 = vpack.c.b16 %v1946, %v1940
  %v2499 = vpack.c.b16 %v1947, %v1941
  %v2500 = vpack.c.b16 %v1948, %v1942
  %v2501 = vpack.c.b16 %v1949, %v1943
  %v2502 = vpack.c.b16 %v1956, %v1950
  %v2503 = vpack.c.b16 %v1957, %v1951
  %v2504 = vpack.c.b16 %v1958, %v1952
  %v2505 = vpack.c.b16 %v1959, %v1953
  %v2506 = vpack.c.b16 %v1960, %v1954
  %v2507 = vpack.c.b16 %v1961, %v1955
  %v2508 = vpack.c.b16 %v1968, %v1962
  %v2509 = vpack.c.b16 %v1969, %v1963
  %v2510 = vpack.c.b16 %v1970, %v1964
  %v2511 = vpack.c.b16 %v1971, %v1965
  %v2512 = vpack.c.b16 %v1972, %v1966
  %v2513 = vpack.c.b16 %v1973, %v1967
  %v2514 = vpack.c.b16 %v1980, %v1974
  %v2515 = vpack.c.b16 %v1981, %v1975
  %v2516 = vpack.c.b16 %v1982, %v1976
  %v2517 = vpack.c.b16 %v1983, %v1977
  %v2518 = vpack.c.b16 %v1984, %v1978
  %v2519 = vpack.c.b16 %v1985, %v1979
  %v2520 = vpack.c.b16 %v1992, %v1986
  %v2521 = vpack.c.b16 %v1993, %v1987
  %v2522 = vpack.c.b16 %v1994, %v1988
  %v2523 = vpack.c.b16 %v1995, %v1989
  %v2524 = vpack.c.b16 %v1996, %v1990
  %v2525 = vpack.c.b16 %v1997, %v1991
  %v2526 = vpack.c.b16 %v2004, %v1998
  %v2527 = vpack.c.b16 %v2005, %v1999
  %v2528 = vpack.c.b16 %v2006, %v2000
  %v2529 = vpack.c.b16 %v2007, %v2001
  %v2530 = vpack.c.b16 %v2008, %v2002
  %v2531 = vpack.c.b16 %v2009, %v2003
  %v2532 = vpack.c.b16 %v2016, %v2010
  %v2533 = vpack.c.b16 %v2017, %v2011
  %v2534 = vpack.c.b16 %v2018, %v2012
  %v2535 = vpack.c.b16 %v2019, %v2013
  %v2536 = vpack.c.b16 %v2020, %v2014
  %v2537 = vpack.c.b16 %v2021, %v2015
  %v2538 = vpack.c.b16 %v2028, %v2022
  %v2539 = vpack.c.b16 %v2029, %v2023
  %v2540 = vpack.c.b16 %v2030, %v2024
  %v2541 = vpack.c.b16 %v2031, %v2025
  %v2542 = vpack.c.b16 %v2032, %v2026
  %v2543 = vpack.c.b16 %v2033, %v2027
  %v2544 = vpack.c.b16 %v2040, %v2034
  %v2545 = vpack.c.b16 %v2041, %v2035
  %v2546 = vpack.c.b16 %v2042, %v2036
  %v2547 = vpack.c.b16 %v2043, %v2037
  %v2548 = vpack.c.b16 %v2044, %v2038
  %v2549 = vpack.c.b16 %v2045, %v2039
  %v2550 = vpack.c.b16 %v2052, %v2046
  %v2551 = vpack.c.b16 %v2053, %v2047
  %v2552 = vpack.c.b16 %v2054, %v2048
  %v2553 = vpack.c.b16 %v2055, %v2049
  %v2554 = vpack.c.b16 %v2056, %v2050
  %v2555 = vpack.c.b16 %v2057, %v2051
  %v2556 = vpack.c.b16 %v2064, %v2058
  %v2557 = vpack.c.b16 %v2065, %v2059
  %v2558 = vpack.c.b16 %v2066, %v2060
  %v2559 = vpack.c.b16 %v2067, %v2061
  %v2560 = vpack.c.b16 %v2068, %v2062
  %v2561 = vpack.c.b16 %v2069, %v2063
  %v2562 = vpack.c.b16 %v2076, %v2070
  %v2563 = vpack.c.b16 %v2077, %v2071
  %v2564 = vpack.c.b16 %v2078, %v2072
  %v2565 = vpack.c.b16 %v2079, %v2073
  %v2566 = vpack.c.b16 %v2080, %v2074
  %v2567 = vpack.c.b16 %v2081, %v2075
  %v2568 = vpack.c.b16 %v2088, %v2082
  %v2569 = vpack.c.b16 %v2089, %v2083
  %v2570 = vpack.c.b16 %v2090, %v2084
  %v2571 = vpack.c.b16 %v2091, %v2085
  %v2572 = vpack.c.b16 %v2092, %v2086
  %v2573 = vpack.c.b16 %v2093, %v2087
  %v2574 = vpack.c.b16 %v2100, %v2094
  %v2575 = vpack.c.b16 %v2101, %v2095
  %v2576 = vpack.c.b16 %v2102, %v2096
  %v2577 = vpack.c.b16 %v2103, %v2097
  %v2578 = vpack.c.b16 %v2104, %v2098
  %v2579 = vpack.c.b16 %v2105, %v2099
  %v2580 = vpack.c.b16 %v2112, %v2106
  %v2581 = vpack.c.b16 %v2113, %v2107
  %v2582 = vpack.c.b16 %v2114, %v2108
  %v2583 = vpack.c.b16 %v2115, %v2109
  %v2584 = vpack.c.b16 %v2116, %v2110
  %v2585 = vpack.c.b16 %v2117, %v2111
  %v2586 = vpack.c.b16 %v2124, %v2118
  %v2587 = vpack.c.b16 %v2125, %v2119
  %v2588 = vpack.c.b16 %v2126, %v2120
  %v2589 = vpack.c.b16 %v2127, %v2121
  %v2590 = vpack.c.b16 %v2128, %v2122
  %v2591 = vpack.c.b16 %v2129, %v2123
  %v2592 = vpack.c.b16 %v2136, %v2130
  %v2593 = vpack.c.b16 %v2137, %v2131
  %v2594 = vpack.c.b16 %v2138, %v2132
  %v2595 = vpack.c.b16 %v2139, %v2133
  %v2596 = vpack.c.b16 %v2140, %v2134
  %v2597 = vpack.c.b16 %v2141, %v2135
  %v2598 = vpack.c.b16 %v2148, %v2142
  %v2599 = vpack.c.b16 %v2149, %v2143
  %v2600 = vpack.c.b16 %v2150, %v2144
  %v2601 = vpack.c.b16 %v2151, %v2145
  %v2602 = vpack.c.b16 %v2152, %v2146
  %v2603 = vpack.c.b16 %v2153, %v2147
  %v2604 = vpack.c.b16 %v2160, %v2154
  %v2605 = vpack.c.b16 %v2161, %v2155
  %v2606 = vpack.c.b16 %v2162, %v2156
  %v2607 = vpack.c.b16 %v2163, %v2157
  %v2608 = vpack.c.b16 %v2164, %v2158
  %v2609 = vpack.c.b16 %v2165, %v2159
  %v2610 = vpack.c.b16 %v2172, %v2166
  %v2611 = vpack.c.b16 %v2173, %v2167
  %v2612 = vpack.c.b16 %v2174, %v2168
  %v2613 = vpack.c.b16 %v2175, %v2169
  %v2614 = vpack.c.b16 %v2176, %v2170
  %v2615 = vpack.c.b16 %v2177, %v2171
  %v2616 = vpack.c.b16 %v2184, %v2178
  %v2617 = vpack.c.b16 %v2185, %v2179
  %v2618 = vpack.c.b16 %v2186, %v2180
  %v2619 = vpack.c.b16 %v2187, %v2181
  %v2620 = vpack.c.b16 %v2188, %v2182
  %v2621 = vpack.c.b16 %v2189, %v2183
  %3054 = vmatpush.bf16.msra.mxu0 %v2232
  %3055 = vmatpush.bf16.msra.mxu0 %v2226
  %3056 = vmatpush.bf16.msra.mxu0 %v2220
  %3057 = vmatpush.bf16.msra.mxu0 %v2214
  %3058 = vmatpush.bf16.msra.mxu0 %v2208
  %3059 = vmatpush.bf16.msra.mxu0 %v2202
  %3060 = vmatpush.bf16.msra.mxu0 %v2196
  %3061 = vmatpush.bf16.msra.mxu0 %v2190
  %3062 = vmatmul.bf16.gmra.mxu0 %v750
  %v3063 = vpop.f32.mrf.mxu0
  %v3064 = vadd.f32 0.0, %v3063
  %v3065 = vpop.f32.mrf.mxu0
  %v3066 = vadd.f32 0.0, %v3065
  %3067 = vmatmul.bf16.gmra.mxu0 %v759
  %v3068 = vpop.f32.mrf.mxu0
  %v3069 = vadd.f32 0.0, %v3068
  %v3070 = vpop.f32.mrf.mxu0
  %v3071 = vadd.f32 0.0, %v3070
  %3072 = vmatmul.bf16.gmra.mxu0 %v768
  %v3073 = vpop.f32.mrf.mxu0
  %v3074 = vadd.f32 0.0, %v3073
  %v3075 = vpop.f32.mrf.mxu0
  %v3076 = vadd.f32 0.0, %v3075
  %3077 = vmatmul.bf16.gmra.mxu0 %v777
  %v3078 = vpop.f32.mrf.mxu0
  %v3079 = vadd.f32 0.0, %v3078
  %v3080 = vpop.f32.mrf.mxu0
  %v3081 = vadd.f32 0.0, %v3080
  %3082 = vmatmul.bf16.gmra.mxu0 %v786
  %v3083 = vpop.f32.mrf.mxu0
  %v3084 = vadd.f32 0.0, %v3083
  %v3085 = vpop.f32.mrf.mxu0
  %v3086 = vadd.f32 0.0, %v3085
  %3087 = vmatmul.bf16.gmra.mxu0 %v795
  %v3088 = vpop.f32.mrf.mxu0
  %v3089 = vadd.f32 0.0, %v3088
  %v3090 = vpop.f32.mrf.mxu0
  %v3091 = vadd.f32 0.0, %v3090
  %3092 = vmatmul.bf16.gmra.mxu0 %v804
  %v3093 = vpop.f32.mrf.mxu0
  %v3094 = vadd.f32 0.0, %v3093
  %v3095 = vpop.f32.mrf.mxu0
  %v3096 = vadd.f32 0.0, %v3095
  %3097 = vmatmul.bf16.gmra.mxu0 %v813
  %v3098 = vpop.f32.mrf.mxu0
  %v3099 = vadd.f32 0.0, %v3098
  %v3100 = vpop.f32.mrf.mxu0
  %v3101 = vadd.f32 0.0, %v3100
  %3102 = vdwg.mxu0
  %3103 = vmatpush.bf16.msra.mxu0 %v2280
  %3104 = vmatpush.bf16.msra.mxu0 %v2274
  %3105 = vmatpush.bf16.msra.mxu0 %v2268
  %3106 = vmatpush.bf16.msra.mxu0 %v2262
  %3107 = vmatpush.bf16.msra.mxu0 %v2256
  %3108 = vmatpush.bf16.msra.mxu0 %v2250
  %3109 = vmatpush.bf16.msra.mxu0 %v2244
  %3110 = vmatpush.bf16.msra.mxu0 %v2238
  %3111 = vmatmul.bf16.gmra.mxu0 %v751
  %v3112 = vpop.f32.mrf.mxu0
  %v3113 = vadd.f32 %v3064, %v3112
  %v3114 = vpop.f32.mrf.mxu0
  %v3115 = vadd.f32 %v3066, %v3114
  %3116 = vmatmul.bf16.gmra.mxu0 %v760
  %v3117 = vpop.f32.mrf.mxu0
  %v3118 = vadd.f32 %v3069, %v3117
  %v3119 = vpop.f32.mrf.mxu0
  %v3120 = vadd.f32 %v3071, %v3119
  %3121 = vmatmul.bf16.gmra.mxu0 %v769
  %v3122 = vpop.f32.mrf.mxu0
  %v3123 = vadd.f32 %v3074, %v3122
  %v3124 = vpop.f32.mrf.mxu0
  %v3125 = vadd.f32 %v3076, %v3124
  %3126 = vmatmul.bf16.gmra.mxu0 %v778
  %v3127 = vpop.f32.mrf.mxu0
  %v3128 = vadd.f32 %v3079, %v3127
  %v3129 = vpop.f32.mrf.mxu0
  %v3130 = vadd.f32 %v3081, %v3129
  %3131 = vmatmul.bf16.gmra.mxu0 %v787
  %v3132 = vpop.f32.mrf.mxu0
  %v3133 = vadd.f32 %v3084, %v3132
  %v3134 = vpop.f32.mrf.mxu0
  %v3135 = vadd.f32 %v3086, %v3134
  %3136 = vmatmul.bf16.gmra.mxu0 %v796
  %v3137 = vpop.f32.mrf.mxu0
  %v3138 = vadd.f32 %v3089, %v3137
  %v3139 = vpop.f32.mrf.mxu0
  %v3140 = vadd.f32 %v3091, %v3139
  %3141 = vmatmul.bf16.gmra.mxu0 %v805
  %v3142 = vpop.f32.mrf.mxu0
  %v3143 = vadd.f32 %v3094, %v3142
  %v3144 = vpop.f32.mrf.mxu0
  %v3145 = vadd.f32 %v3096, %v3144
  %3146 = vmatmul.bf16.gmra.mxu0 %v814
  %v3147 = vpop.f32.mrf.mxu0
  %v3148 = vadd.f32 %v3099, %v3147
  %v3149 = vpop.f32.mrf.mxu0
  %v3150 = vadd.f32 %v3101, %v3149
  %3151 = vdwg.mxu0
  %3152 = vmatpush.bf16.msra.mxu0 %v2328
  %3153 = vmatpush.bf16.msra.mxu0 %v2322
  %3154 = vmatpush.bf16.msra.mxu0 %v2316
  %3155 = vmatpush.bf16.msra.mxu0 %v2310
  %3156 = vmatpush.bf16.msra.mxu0 %v2304
  %3157 = vmatpush.bf16.msra.mxu0 %v2298
  %3158 = vmatpush.bf16.msra.mxu0 %v2292
  %3159 = vmatpush.bf16.msra.mxu0 %v2286
  %3160 = vmatmul.bf16.gmra.mxu0 %v752
  %v3161 = vpop.f32.mrf.mxu0
  %v3162 = vadd.f32 %v3113, %v3161
  %v3163 = vpop.f32.mrf.mxu0
  %v3164 = vadd.f32 %v3115, %v3163
  %3165 = vmatmul.bf16.gmra.mxu0 %v761
  %v3166 = vpop.f32.mrf.mxu0
  %v3167 = vadd.f32 %v3118, %v3166
  %v3168 = vpop.f32.mrf.mxu0
  %v3169 = vadd.f32 %v3120, %v3168
  %3170 = vmatmul.bf16.gmra.mxu0 %v770
  %v3171 = vpop.f32.mrf.mxu0
  %v3172 = vadd.f32 %v3123, %v3171
  %v3173 = vpop.f32.mrf.mxu0
  %v3174 = vadd.f32 %v3125, %v3173
  %3175 = vmatmul.bf16.gmra.mxu0 %v779
  %v3176 = vpop.f32.mrf.mxu0
  %v3177 = vadd.f32 %v3128, %v3176
  %v3178 = vpop.f32.mrf.mxu0
  %v3179 = vadd.f32 %v3130, %v3178
  %3180 = vmatmul.bf16.gmra.mxu0 %v788
  %v3181 = vpop.f32.mrf.mxu0
  %v3182 = vadd.f32 %v3133, %v3181
  %v3183 = vpop.f32.mrf.mxu0
  %v3184 = vadd.f32 %v3135, %v3183
  %3185 = vmatmul.bf16.gmra.mxu0 %v797
  %v3186 = vpop.f32.mrf.mxu0
  %v3187 = vadd.f32 %v3138, %v3186
  %v3188 = vpop.f32.mrf.mxu0
  %v3189 = vadd.f32 %v3140, %v3188
  %3190 = vmatmul.bf16.gmra.mxu0 %v806
  %v3191 = vpop.f32.mrf.mxu0
  %v3192 = vadd.f32 %v3143, %v3191
  %v3193 = vpop.f32.mrf.mxu0
  %v3194 = vadd.f32 %v3145, %v3193
  %3195 = vmatmul.bf16.gmra.mxu0 %v815
  %v3196 = vpop.f32.mrf.mxu0
  %v3197 = vadd.f32 %v3148, %v3196
  %v3198 = vpop.f32.mrf.mxu0
  %v3199 = vadd.f32 %v3150, %v3198
  %3200 = vdwg.mxu0
  %3201 = vmatpush.bf16.msra.mxu0 %v2376
  %3202 = vmatpush.bf16.msra.mxu0 %v2370
  %3203 = vmatpush.bf16.msra.mxu0 %v2364
  %3204 = vmatpush.bf16.msra.mxu0 %v2358
  %3205 = vmatpush.bf16.msra.mxu0 %v2352
  %3206 = vmatpush.bf16.msra.mxu0 %v2346
  %3207 = vmatpush.bf16.msra.mxu0 %v2340
  %3208 = vmatpush.bf16.msra.mxu0 %v2334
  %3209 = vmatmul.bf16.gmra.mxu0 %v753
  %v3210 = vpop.f32.mrf.mxu0
  %v3211 = vadd.f32 %v3162, %v3210
  %v3212 = vpop.f32.mrf.mxu0
  %v3213 = vadd.f32 %v3164, %v3212
  %3214 = vmatmul.bf16.gmra.mxu0 %v762
  %v3215 = vpop.f32.mrf.mxu0
  %v3216 = vadd.f32 %v3167, %v3215
  %v3217 = vpop.f32.mrf.mxu0
  %v3218 = vadd.f32 %v3169, %v3217
  %3219 = vmatmul.bf16.gmra.mxu0 %v771
  %v3220 = vpop.f32.mrf.mxu0
  %v3221 = vadd.f32 %v3172, %v3220
  %v3222 = vpop.f32.mrf.mxu0
  %v3223 = vadd.f32 %v3174, %v3222
  %3224 = vmatmul.bf16.gmra.mxu0 %v780
  %v3225 = vpop.f32.mrf.mxu0
  %v3226 = vadd.f32 %v3177, %v3225
  %v3227 = vpop.f32.mrf.mxu0
  %v3228 = vadd.f32 %v3179, %v3227
  %3229 = vmatmul.bf16.gmra.mxu0 %v789
  %v3230 = vpop.f32.mrf.mxu0
  %v3231 = vadd.f32 %v3182, %v3230
  %v3232 = vpop.f32.mrf.mxu0
  %v3233 = vadd.f32 %v3184, %v3232
  %3234 = vmatmul.bf16.gmra.mxu0 %v798
  %v3235 = vpop.f32.mrf.mxu0
  %v3236 = vadd.f32 %v3187, %v3235
  %v3237 = vpop.f32.mrf.mxu0
  %v3238 = vadd.f32 %v3189, %v3237
  %3239 = vmatmul.bf16.gmra.mxu0 %v807
  %v3240 = vpop.f32.mrf.mxu0
  %v3241 = vadd.f32 %v3192, %v3240
  %v3242 = vpop.f32.mrf.mxu0
  %v3243 = vadd.f32 %v3194, %v3242
  %3244 = vmatmul.bf16.gmra.mxu0 %v816
  %v3245 = vpop.f32.mrf.mxu0
  %v3246 = vadd.f32 %v3197, %v3245
  %v3247 = vpop.f32.mrf.mxu0
  %v3248 = vadd.f32 %v3199, %v3247
  %3249 = vdwg.mxu0
  %3250 = vmatpush.bf16.msra.mxu0 %v2424
  %3251 = vmatpush.bf16.msra.mxu0 %v2418
  %3252 = vmatpush.bf16.msra.mxu0 %v2412
  %3253 = vmatpush.bf16.msra.mxu0 %v2406
  %3254 = vmatpush.bf16.msra.mxu0 %v2400
  %3255 = vmatpush.bf16.msra.mxu0 %v2394
  %3256 = vmatpush.bf16.msra.mxu0 %v2388
  %3257 = vmatpush.bf16.msra.mxu0 %v2382
  %3258 = vmatmul.bf16.gmra.mxu0 %v754
  %v3259 = vpop.f32.mrf.mxu0
  %v3260 = vadd.f32 %v3211, %v3259
  %v3261 = vpop.f32.mrf.mxu0
  %v3262 = vadd.f32 %v3213, %v3261
  %3263 = vmatmul.bf16.gmra.mxu0 %v763
  %v3264 = vpop.f32.mrf.mxu0
  %v3265 = vadd.f32 %v3216, %v3264
  %v3266 = vpop.f32.mrf.mxu0
  %v3267 = vadd.f32 %v3218, %v3266
  %3268 = vmatmul.bf16.gmra.mxu0 %v772
  %v3269 = vpop.f32.mrf.mxu0
  %v3270 = vadd.f32 %v3221, %v3269
  %v3271 = vpop.f32.mrf.mxu0
  %v3272 = vadd.f32 %v3223, %v3271
  %3273 = vmatmul.bf16.gmra.mxu0 %v781
  %v3274 = vpop.f32.mrf.mxu0
  %v3275 = vadd.f32 %v3226, %v3274
  %v3276 = vpop.f32.mrf.mxu0
  %v3277 = vadd.f32 %v3228, %v3276
  %3278 = vmatmul.bf16.gmra.mxu0 %v790
  %v3279 = vpop.f32.mrf.mxu0
  %v3280 = vadd.f32 %v3231, %v3279
  %v3281 = vpop.f32.mrf.mxu0
  %v3282 = vadd.f32 %v3233, %v3281
  %3283 = vmatmul.bf16.gmra.mxu0 %v799
  %v3284 = vpop.f32.mrf.mxu0
  %v3285 = vadd.f32 %v3236, %v3284
  %v3286 = vpop.f32.mrf.mxu0
  %v3287 = vadd.f32 %v3238, %v3286
  %3288 = vmatmul.bf16.gmra.mxu0 %v808
  %v3289 = vpop.f32.mrf.mxu0
  %v3290 = vadd.f32 %v3241, %v3289
  %v3291 = vpop.f32.mrf.mxu0
  %v3292 = vadd.f32 %v3243, %v3291
  %3293 = vmatmul.bf16.gmra.mxu0 %v817
  %v3294 = vpop.f32.mrf.mxu0
  %v3295 = vadd.f32 %v3246, %v3294
  %v3296 = vpop.f32.mrf.mxu0
  %v3297 = vadd.f32 %v3248, %v3296
  %3298 = vdwg.mxu0
  %3299 = vmatpush.bf16.msra.mxu0 %v2472
  %3300 = vmatpush.bf16.msra.mxu0 %v2466
  %3301 = vmatpush.bf16.msra.mxu0 %v2460
  %3302 = vmatpush.bf16.msra.mxu0 %v2454
  %3303 = vmatpush.bf16.msra.mxu0 %v2448
  %3304 = vmatpush.bf16.msra.mxu0 %v2442
  %3305 = vmatpush.bf16.msra.mxu0 %v2436
  %3306 = vmatpush.bf16.msra.mxu0 %v2430
  %3307 = vmatmul.bf16.gmra.mxu0 %v755
  %v3308 = vpop.f32.mrf.mxu0
  %v3309 = vadd.f32 %v3260, %v3308
  %v3310 = vpop.f32.mrf.mxu0
  %v3311 = vadd.f32 %v3262, %v3310
  %3312 = vmatmul.bf16.gmra.mxu0 %v764
  %v3313 = vpop.f32.mrf.mxu0
  %v3314 = vadd.f32 %v3265, %v3313
  %v3315 = vpop.f32.mrf.mxu0
  %v3316 = vadd.f32 %v3267, %v3315
  %3317 = vmatmul.bf16.gmra.mxu0 %v773
  %v3318 = vpop.f32.mrf.mxu0
  %v3319 = vadd.f32 %v3270, %v3318
  %v3320 = vpop.f32.mrf.mxu0
  %v3321 = vadd.f32 %v3272, %v3320
  %3322 = vmatmul.bf16.gmra.mxu0 %v782
  %v3323 = vpop.f32.mrf.mxu0
  %v3324 = vadd.f32 %v3275, %v3323
  %v3325 = vpop.f32.mrf.mxu0
  %v3326 = vadd.f32 %v3277, %v3325
  %3327 = vmatmul.bf16.gmra.mxu0 %v791
  %v3328 = vpop.f32.mrf.mxu0
  %v3329 = vadd.f32 %v3280, %v3328
  %v3330 = vpop.f32.mrf.mxu0
  %v3331 = vadd.f32 %v3282, %v3330
  %3332 = vmatmul.bf16.gmra.mxu0 %v800
  %v3333 = vpop.f32.mrf.mxu0
  %v3334 = vadd.f32 %v3285, %v3333
  %v3335 = vpop.f32.mrf.mxu0
  %v3336 = vadd.f32 %v3287, %v3335
  %3337 = vmatmul.bf16.gmra.mxu0 %v809
  %v3338 = vpop.f32.mrf.mxu0
  %v3339 = vadd.f32 %v3290, %v3338
  %v3340 = vpop.f32.mrf.mxu0
  %v3341 = vadd.f32 %v3292, %v3340
  %3342 = vmatmul.bf16.gmra.mxu0 %v818
  %v3343 = vpop.f32.mrf.mxu0
  %v3344 = vadd.f32 %v3295, %v3343
  %v3345 = vpop.f32.mrf.mxu0
  %v3346 = vadd.f32 %v3297, %v3345
  %3347 = vdwg.mxu0
  %3348 = vmatpush.bf16.msra.mxu0 %v2520
  %3349 = vmatpush.bf16.msra.mxu0 %v2514
  %3350 = vmatpush.bf16.msra.mxu0 %v2508
  %3351 = vmatpush.bf16.msra.mxu0 %v2502
  %3352 = vmatpush.bf16.msra.mxu0 %v2496
  %3353 = vmatpush.bf16.msra.mxu0 %v2490
  %3354 = vmatpush.bf16.msra.mxu0 %v2484
  %3355 = vmatpush.bf16.msra.mxu0 %v2478
  %3356 = vmatmul.bf16.gmra.mxu0 %v756
  %v3357 = vpop.f32.mrf.mxu0
  %v3358 = vadd.f32 %v3309, %v3357
  %v3359 = vpop.f32.mrf.mxu0
  %v3360 = vadd.f32 %v3311, %v3359
  %3361 = vmatmul.bf16.gmra.mxu0 %v765
  %v3362 = vpop.f32.mrf.mxu0
  %v3363 = vadd.f32 %v3314, %v3362
  %v3364 = vpop.f32.mrf.mxu0
  %v3365 = vadd.f32 %v3316, %v3364
  %3366 = vmatmul.bf16.gmra.mxu0 %v774
  %v3367 = vpop.f32.mrf.mxu0
  %v3368 = vadd.f32 %v3319, %v3367
  %v3369 = vpop.f32.mrf.mxu0
  %v3370 = vadd.f32 %v3321, %v3369
  %3371 = vmatmul.bf16.gmra.mxu0 %v783
  %v3372 = vpop.f32.mrf.mxu0
  %v3373 = vadd.f32 %v3324, %v3372
  %v3374 = vpop.f32.mrf.mxu0
  %v3375 = vadd.f32 %v3326, %v3374
  %3376 = vmatmul.bf16.gmra.mxu0 %v792
  %v3377 = vpop.f32.mrf.mxu0
  %v3378 = vadd.f32 %v3329, %v3377
  %v3379 = vpop.f32.mrf.mxu0
  %v3380 = vadd.f32 %v3331, %v3379
  %3381 = vmatmul.bf16.gmra.mxu0 %v801
  %v3382 = vpop.f32.mrf.mxu0
  %v3383 = vadd.f32 %v3334, %v3382
  %v3384 = vpop.f32.mrf.mxu0
  %v3385 = vadd.f32 %v3336, %v3384
  %3386 = vmatmul.bf16.gmra.mxu0 %v810
  %v3387 = vpop.f32.mrf.mxu0
  %v3388 = vadd.f32 %v3339, %v3387
  %v3389 = vpop.f32.mrf.mxu0
  %v3390 = vadd.f32 %v3341, %v3389
  %3391 = vmatmul.bf16.gmra.mxu0 %v819
  %v3392 = vpop.f32.mrf.mxu0
  %v3393 = vadd.f32 %v3344, %v3392
  %v3394 = vpop.f32.mrf.mxu0
  %v3395 = vadd.f32 %v3346, %v3394
  %3396 = vdwg.mxu0
  %3397 = vmatpush.bf16.msra.mxu0 %v2568
  %3398 = vmatpush.bf16.msra.mxu0 %v2562
  %3399 = vmatpush.bf16.msra.mxu0 %v2556
  %3400 = vmatpush.bf16.msra.mxu0 %v2550
  %3401 = vmatpush.bf16.msra.mxu0 %v2544
  %3402 = vmatpush.bf16.msra.mxu0 %v2538
  %3403 = vmatpush.bf16.msra.mxu0 %v2532
  %3404 = vmatpush.bf16.msra.mxu0 %v2526
  %3405 = vmatmul.bf16.gmra.mxu0 %v757
  %v3406 = vpop.f32.mrf.mxu0
  %v3407 = vadd.f32 %v3358, %v3406
  %v3408 = vpop.f32.mrf.mxu0
  %v3409 = vadd.f32 %v3360, %v3408
  %3410 = vmatmul.bf16.gmra.mxu0 %v766
  %v3411 = vpop.f32.mrf.mxu0
  %v3412 = vadd.f32 %v3363, %v3411
  %v3413 = vpop.f32.mrf.mxu0
  %v3414 = vadd.f32 %v3365, %v3413
  %3415 = vmatmul.bf16.gmra.mxu0 %v775
  %v3416 = vpop.f32.mrf.mxu0
  %v3417 = vadd.f32 %v3368, %v3416
  %v3418 = vpop.f32.mrf.mxu0
  %v3419 = vadd.f32 %v3370, %v3418
  %3420 = vmatmul.bf16.gmra.mxu0 %v784
  %v3421 = vpop.f32.mrf.mxu0
  %v3422 = vadd.f32 %v3373, %v3421
  %v3423 = vpop.f32.mrf.mxu0
  %v3424 = vadd.f32 %v3375, %v3423
  %3425 = vmatmul.bf16.gmra.mxu0 %v793
  %v3426 = vpop.f32.mrf.mxu0
  %v3427 = vadd.f32 %v3378, %v3426
  %v3428 = vpop.f32.mrf.mxu0
  %v3429 = vadd.f32 %v3380, %v3428
  %3430 = vmatmul.bf16.gmra.mxu0 %v802
  %v3431 = vpop.f32.mrf.mxu0
  %v3432 = vadd.f32 %v3383, %v3431
  %v3433 = vpop.f32.mrf.mxu0
  %v3434 = vadd.f32 %v3385, %v3433
  %3435 = vmatmul.bf16.gmra.mxu0 %v811
  %v3436 = vpop.f32.mrf.mxu0
  %v3437 = vadd.f32 %v3388, %v3436
  %v3438 = vpop.f32.mrf.mxu0
  %v3439 = vadd.f32 %v3390, %v3438
  %3440 = vmatmul.bf16.gmra.mxu0 %v820
  %v3441 = vpop.f32.mrf.mxu0
  %v3442 = vadd.f32 %v3393, %v3441
  %v3443 = vpop.f32.mrf.mxu0
  %v3444 = vadd.f32 %v3395, %v3443
  %3445 = vdwg.mxu0
  %3446 = vmatpush.bf16.msra.mxu0 %v2616
  %3447 = vmatpush.bf16.msra.mxu0 %v2610
  %3448 = vmatpush.bf16.msra.mxu0 %v2604
  %3449 = vmatpush.bf16.msra.mxu0 %v2598
  %3450 = vmatpush.bf16.msra.mxu0 %v2592
  %3451 = vmatpush.bf16.msra.mxu0 %v2586
  %3452 = vmatpush.bf16.msra.mxu0 %v2580
  %3453 = vmatpush.bf16.msra.mxu0 %v2574
  %3454 = vmatmul.bf16.gmra.mxu0 %v758
  %v3455 = vpop.f32.mrf.mxu0
  %v3456 = vadd.f32 %v3407, %v3455
  %v3457 = vpop.f32.mrf.mxu0
  %v3458 = vadd.f32 %v3409, %v3457
  %3459 = vmatmul.bf16.gmra.mxu0 %v767
  %v3460 = vpop.f32.mrf.mxu0
  %v3461 = vadd.f32 %v3412, %v3460
  %v3462 = vpop.f32.mrf.mxu0
  %v3463 = vadd.f32 %v3414, %v3462
  %3464 = vmatmul.bf16.gmra.mxu0 %v776
  %v3465 = vpop.f32.mrf.mxu0
  %v3466 = vadd.f32 %v3417, %v3465
  %v3467 = vpop.f32.mrf.mxu0
  %v3468 = vadd.f32 %v3419, %v3467
  %3469 = vmatmul.bf16.gmra.mxu0 %v785
  %v3470 = vpop.f32.mrf.mxu0
  %v3471 = vadd.f32 %v3422, %v3470
  %v3472 = vpop.f32.mrf.mxu0
  %v3473 = vadd.f32 %v3424, %v3472
  %3474 = vmatmul.bf16.gmra.mxu0 %v794
  %v3475 = vpop.f32.mrf.mxu0
  %v3476 = vadd.f32 %v3427, %v3475
  %v3477 = vpop.f32.mrf.mxu0
  %v3478 = vadd.f32 %v3429, %v3477
  %3479 = vmatmul.bf16.gmra.mxu0 %v803
  %v3480 = vpop.f32.mrf.mxu0
  %v3481 = vadd.f32 %v3432, %v3480
  %v3482 = vpop.f32.mrf.mxu0
  %v3483 = vadd.f32 %v3434, %v3482
  %3484 = vmatmul.bf16.gmra.mxu0 %v812
  %v3485 = vpop.f32.mrf.mxu0
  %v3486 = vadd.f32 %v3437, %v3485
  %v3487 = vpop.f32.mrf.mxu0
  %v3488 = vadd.f32 %v3439, %v3487
  %3489 = vmatmul.bf16.gmra.mxu0 %v821
  %v3490 = vpop.f32.mrf.mxu0
  %v3491 = vadd.f32 %v3442, %v3490
  %v3492 = vpop.f32.mrf.mxu0
  %v3493 = vadd.f32 %v3444, %v3492
  %3494 = vdwg.mxu0
  %3495 = vmatpush.bf16.msra.mxu0 %v2233
  %3496 = vmatpush.bf16.msra.mxu0 %v2227
  %3497 = vmatpush.bf16.msra.mxu0 %v2221
  %3498 = vmatpush.bf16.msra.mxu0 %v2215
  %3499 = vmatpush.bf16.msra.mxu0 %v2209
  %3500 = vmatpush.bf16.msra.mxu0 %v2203
  %3501 = vmatpush.bf16.msra.mxu0 %v2197
  %3502 = vmatpush.bf16.msra.mxu0 %v2191
  %3503 = vmatmul.bf16.gmra.mxu0 %v750
  %v3504 = vpop.f32.mrf.mxu0
  %v3505 = vadd.f32 0.0, %v3504
  %v3506 = vpop.f32.mrf.mxu0
  %v3507 = vadd.f32 0.0, %v3506
  %3508 = vmatmul.bf16.gmra.mxu0 %v759
  %v3509 = vpop.f32.mrf.mxu0
  %v3510 = vadd.f32 0.0, %v3509
  %v3511 = vpop.f32.mrf.mxu0
  %v3512 = vadd.f32 0.0, %v3511
  %3513 = vmatmul.bf16.gmra.mxu0 %v768
  %v3514 = vpop.f32.mrf.mxu0
  %v3515 = vadd.f32 0.0, %v3514
  %v3516 = vpop.f32.mrf.mxu0
  %v3517 = vadd.f32 0.0, %v3516
  %3518 = vmatmul.bf16.gmra.mxu0 %v777
  %v3519 = vpop.f32.mrf.mxu0
  %v3520 = vadd.f32 0.0, %v3519
  %v3521 = vpop.f32.mrf.mxu0
  %v3522 = vadd.f32 0.0, %v3521
  %3523 = vmatmul.bf16.gmra.mxu0 %v786
  %v3524 = vpop.f32.mrf.mxu0
  %v3525 = vadd.f32 0.0, %v3524
  %v3526 = vpop.f32.mrf.mxu0
  %v3527 = vadd.f32 0.0, %v3526
  %3528 = vmatmul.bf16.gmra.mxu0 %v795
  %v3529 = vpop.f32.mrf.mxu0
  %v3530 = vadd.f32 0.0, %v3529
  %v3531 = vpop.f32.mrf.mxu0
  %v3532 = vadd.f32 0.0, %v3531
  %3533 = vmatmul.bf16.gmra.mxu0 %v804
  %v3534 = vpop.f32.mrf.mxu0
  %v3535 = vadd.f32 0.0, %v3534
  %v3536 = vpop.f32.mrf.mxu0
  %v3537 = vadd.f32 0.0, %v3536
  %3538 = vmatmul.bf16.gmra.mxu0 %v813
  %v3539 = vpop.f32.mrf.mxu0
  %v3540 = vadd.f32 0.0, %v3539
  %v3541 = vpop.f32.mrf.mxu0
  %v3542 = vadd.f32 0.0, %v3541
  %3543 = vdwg.mxu0
  %3544 = vmatpush.bf16.msra.mxu0 %v2281
  %3545 = vmatpush.bf16.msra.mxu0 %v2275
  %3546 = vmatpush.bf16.msra.mxu0 %v2269
  %3547 = vmatpush.bf16.msra.mxu0 %v2263
  %3548 = vmatpush.bf16.msra.mxu0 %v2257
  %3549 = vmatpush.bf16.msra.mxu0 %v2251
  %3550 = vmatpush.bf16.msra.mxu0 %v2245
  %3551 = vmatpush.bf16.msra.mxu0 %v2239
  %3552 = vmatmul.bf16.gmra.mxu0 %v751
  %v3553 = vpop.f32.mrf.mxu0
  %v3554 = vadd.f32 %v3505, %v3553
  %v3555 = vpop.f32.mrf.mxu0
  %v3556 = vadd.f32 %v3507, %v3555
  %3557 = vmatmul.bf16.gmra.mxu0 %v760
  %v3558 = vpop.f32.mrf.mxu0
  %v3559 = vadd.f32 %v3510, %v3558
  %v3560 = vpop.f32.mrf.mxu0
  %v3561 = vadd.f32 %v3512, %v3560
  %3562 = vmatmul.bf16.gmra.mxu0 %v769
  %v3563 = vpop.f32.mrf.mxu0
  %v3564 = vadd.f32 %v3515, %v3563
  %v3565 = vpop.f32.mrf.mxu0
  %v3566 = vadd.f32 %v3517, %v3565
  %3567 = vmatmul.bf16.gmra.mxu0 %v778
  %v3568 = vpop.f32.mrf.mxu0
  %v3569 = vadd.f32 %v3520, %v3568
  %v3570 = vpop.f32.mrf.mxu0
  %v3571 = vadd.f32 %v3522, %v3570
  %3572 = vmatmul.bf16.gmra.mxu0 %v787
  %v3573 = vpop.f32.mrf.mxu0
  %v3574 = vadd.f32 %v3525, %v3573
  %v3575 = vpop.f32.mrf.mxu0
  %v3576 = vadd.f32 %v3527, %v3575
  %3577 = vmatmul.bf16.gmra.mxu0 %v796
  %v3578 = vpop.f32.mrf.mxu0
  %v3579 = vadd.f32 %v3530, %v3578
  %v3580 = vpop.f32.mrf.mxu0
  %v3581 = vadd.f32 %v3532, %v3580
  %3582 = vmatmul.bf16.gmra.mxu0 %v805
  %v3583 = vpop.f32.mrf.mxu0
  %v3584 = vadd.f32 %v3535, %v3583
  %v3585 = vpop.f32.mrf.mxu0
  %v3586 = vadd.f32 %v3537, %v3585
  %3587 = vmatmul.bf16.gmra.mxu0 %v814
  %v3588 = vpop.f32.mrf.mxu0
  %v3589 = vadd.f32 %v3540, %v3588
  %v3590 = vpop.f32.mrf.mxu0
  %v3591 = vadd.f32 %v3542, %v3590
  %3592 = vdwg.mxu0
  %3593 = vmatpush.bf16.msra.mxu0 %v2329
  %3594 = vmatpush.bf16.msra.mxu0 %v2323
  %3595 = vmatpush.bf16.msra.mxu0 %v2317
  %3596 = vmatpush.bf16.msra.mxu0 %v2311
  %3597 = vmatpush.bf16.msra.mxu0 %v2305
  %3598 = vmatpush.bf16.msra.mxu0 %v2299
  %3599 = vmatpush.bf16.msra.mxu0 %v2293
  %3600 = vmatpush.bf16.msra.mxu0 %v2287
  %3601 = vmatmul.bf16.gmra.mxu0 %v752
  %v3602 = vpop.f32.mrf.mxu0
  %v3603 = vadd.f32 %v3554, %v3602
  %v3604 = vpop.f32.mrf.mxu0
  %v3605 = vadd.f32 %v3556, %v3604
  %3606 = vmatmul.bf16.gmra.mxu0 %v761
  %v3607 = vpop.f32.mrf.mxu0
  %v3608 = vadd.f32 %v3559, %v3607
  %v3609 = vpop.f32.mrf.mxu0
  %v3610 = vadd.f32 %v3561, %v3609
  %3611 = vmatmul.bf16.gmra.mxu0 %v770
  %v3612 = vpop.f32.mrf.mxu0
  %v3613 = vadd.f32 %v3564, %v3612
  %v3614 = vpop.f32.mrf.mxu0
  %v3615 = vadd.f32 %v3566, %v3614
  %3616 = vmatmul.bf16.gmra.mxu0 %v779
  %v3617 = vpop.f32.mrf.mxu0
  %v3618 = vadd.f32 %v3569, %v3617
  %v3619 = vpop.f32.mrf.mxu0
  %v3620 = vadd.f32 %v3571, %v3619
  %3621 = vmatmul.bf16.gmra.mxu0 %v788
  %v3622 = vpop.f32.mrf.mxu0
  %v3623 = vadd.f32 %v3574, %v3622
  %v3624 = vpop.f32.mrf.mxu0
  %v3625 = vadd.f32 %v3576, %v3624
  %3626 = vmatmul.bf16.gmra.mxu0 %v797
  %v3627 = vpop.f32.mrf.mxu0
  %v3628 = vadd.f32 %v3579, %v3627
  %v3629 = vpop.f32.mrf.mxu0
  %v3630 = vadd.f32 %v3581, %v3629
  %3631 = vmatmul.bf16.gmra.mxu0 %v806
  %v3632 = vpop.f32.mrf.mxu0
  %v3633 = vadd.f32 %v3584, %v3632
  %v3634 = vpop.f32.mrf.mxu0
  %v3635 = vadd.f32 %v3586, %v3634
  %3636 = vmatmul.bf16.gmra.mxu0 %v815
  %v3637 = vpop.f32.mrf.mxu0
  %v3638 = vadd.f32 %v3589, %v3637
  %v3639 = vpop.f32.mrf.mxu0
  %v3640 = vadd.f32 %v3591, %v3639
  %3641 = vdwg.mxu0
  %3642 = vmatpush.bf16.msra.mxu0 %v2377
  %3643 = vmatpush.bf16.msra.mxu0 %v2371
  %3644 = vmatpush.bf16.msra.mxu0 %v2365
  %3645 = vmatpush.bf16.msra.mxu0 %v2359
  %3646 = vmatpush.bf16.msra.mxu0 %v2353
  %3647 = vmatpush.bf16.msra.mxu0 %v2347
  %3648 = vmatpush.bf16.msra.mxu0 %v2341
  %3649 = vmatpush.bf16.msra.mxu0 %v2335
  %3650 = vmatmul.bf16.gmra.mxu0 %v753
  %v3651 = vpop.f32.mrf.mxu0
  %v3652 = vadd.f32 %v3603, %v3651
  %v3653 = vpop.f32.mrf.mxu0
  %v3654 = vadd.f32 %v3605, %v3653
  %3655 = vmatmul.bf16.gmra.mxu0 %v762
  %v3656 = vpop.f32.mrf.mxu0
  %v3657 = vadd.f32 %v3608, %v3656
  %v3658 = vpop.f32.mrf.mxu0
  %v3659 = vadd.f32 %v3610, %v3658
  %3660 = vmatmul.bf16.gmra.mxu0 %v771
  %v3661 = vpop.f32.mrf.mxu0
  %v3662 = vadd.f32 %v3613, %v3661
  %v3663 = vpop.f32.mrf.mxu0
  %v3664 = vadd.f32 %v3615, %v3663
  %3665 = vmatmul.bf16.gmra.mxu0 %v780
  %v3666 = vpop.f32.mrf.mxu0
  %v3667 = vadd.f32 %v3618, %v3666
  %v3668 = vpop.f32.mrf.mxu0
  %v3669 = vadd.f32 %v3620, %v3668
  %3670 = vmatmul.bf16.gmra.mxu0 %v789
  %v3671 = vpop.f32.mrf.mxu0
  %v3672 = vadd.f32 %v3623, %v3671
  %v3673 = vpop.f32.mrf.mxu0
  %v3674 = vadd.f32 %v3625, %v3673
  %3675 = vmatmul.bf16.gmra.mxu0 %v798
  %v3676 = vpop.f32.mrf.mxu0
  %v3677 = vadd.f32 %v3628, %v3676
  %v3678 = vpop.f32.mrf.mxu0
  %v3679 = vadd.f32 %v3630, %v3678
  %3680 = vmatmul.bf16.gmra.mxu0 %v807
  %v3681 = vpop.f32.mrf.mxu0
  %v3682 = vadd.f32 %v3633, %v3681
  %v3683 = vpop.f32.mrf.mxu0
  %v3684 = vadd.f32 %v3635, %v3683
  %3685 = vmatmul.bf16.gmra.mxu0 %v816
  %v3686 = vpop.f32.mrf.mxu0
  %v3687 = vadd.f32 %v3638, %v3686
  %v3688 = vpop.f32.mrf.mxu0
  %v3689 = vadd.f32 %v3640, %v3688
  %3690 = vdwg.mxu0
  %3691 = vmatpush.bf16.msra.mxu0 %v2425
  %3692 = vmatpush.bf16.msra.mxu0 %v2419
  %3693 = vmatpush.bf16.msra.mxu0 %v2413
  %3694 = vmatpush.bf16.msra.mxu0 %v2407
  %3695 = vmatpush.bf16.msra.mxu0 %v2401
  %3696 = vmatpush.bf16.msra.mxu0 %v2395
  %3697 = vmatpush.bf16.msra.mxu0 %v2389
  %3698 = vmatpush.bf16.msra.mxu0 %v2383
  %3699 = vmatmul.bf16.gmra.mxu0 %v754
  %v3700 = vpop.f32.mrf.mxu0
  %v3701 = vadd.f32 %v3652, %v3700
  %v3702 = vpop.f32.mrf.mxu0
  %v3703 = vadd.f32 %v3654, %v3702
  %3704 = vmatmul.bf16.gmra.mxu0 %v763
  %v3705 = vpop.f32.mrf.mxu0
  %v3706 = vadd.f32 %v3657, %v3705
  %v3707 = vpop.f32.mrf.mxu0
  %v3708 = vadd.f32 %v3659, %v3707
  %3709 = vmatmul.bf16.gmra.mxu0 %v772
  %v3710 = vpop.f32.mrf.mxu0
  %v3711 = vadd.f32 %v3662, %v3710
  %v3712 = vpop.f32.mrf.mxu0
  %v3713 = vadd.f32 %v3664, %v3712
  %3714 = vmatmul.bf16.gmra.mxu0 %v781
  %v3715 = vpop.f32.mrf.mxu0
  %v3716 = vadd.f32 %v3667, %v3715
  %v3717 = vpop.f32.mrf.mxu0
  %v3718 = vadd.f32 %v3669, %v3717
  %3719 = vmatmul.bf16.gmra.mxu0 %v790
  %v3720 = vpop.f32.mrf.mxu0
  %v3721 = vadd.f32 %v3672, %v3720
  %v3722 = vpop.f32.mrf.mxu0
  %v3723 = vadd.f32 %v3674, %v3722
  %3724 = vmatmul.bf16.gmra.mxu0 %v799
  %v3725 = vpop.f32.mrf.mxu0
  %v3726 = vadd.f32 %v3677, %v3725
  %v3727 = vpop.f32.mrf.mxu0
  %v3728 = vadd.f32 %v3679, %v3727
  %3729 = vmatmul.bf16.gmra.mxu0 %v808
  %v3730 = vpop.f32.mrf.mxu0
  %v3731 = vadd.f32 %v3682, %v3730
  %v3732 = vpop.f32.mrf.mxu0
  %v3733 = vadd.f32 %v3684, %v3732
  %3734 = vmatmul.bf16.gmra.mxu0 %v817
  %v3735 = vpop.f32.mrf.mxu0
  %v3736 = vadd.f32 %v3687, %v3735
  %v3737 = vpop.f32.mrf.mxu0
  %v3738 = vadd.f32 %v3689, %v3737
  %3739 = vdwg.mxu0
  %3740 = vmatpush.bf16.msra.mxu0 %v2473
  %3741 = vmatpush.bf16.msra.mxu0 %v2467
  %3742 = vmatpush.bf16.msra.mxu0 %v2461
  %3743 = vmatpush.bf16.msra.mxu0 %v2455
  %3744 = vmatpush.bf16.msra.mxu0 %v2449
  %3745 = vmatpush.bf16.msra.mxu0 %v2443
  %3746 = vmatpush.bf16.msra.mxu0 %v2437
  %3747 = vmatpush.bf16.msra.mxu0 %v2431
  %3748 = vmatmul.bf16.gmra.mxu0 %v755
  %v3749 = vpop.f32.mrf.mxu0
  %v3750 = vadd.f32 %v3701, %v3749
  %v3751 = vpop.f32.mrf.mxu0
  %v3752 = vadd.f32 %v3703, %v3751
  %3753 = vmatmul.bf16.gmra.mxu0 %v764
  %v3754 = vpop.f32.mrf.mxu0
  %v3755 = vadd.f32 %v3706, %v3754
  %v3756 = vpop.f32.mrf.mxu0
  %v3757 = vadd.f32 %v3708, %v3756
  %3758 = vmatmul.bf16.gmra.mxu0 %v773
  %v3759 = vpop.f32.mrf.mxu0
  %v3760 = vadd.f32 %v3711, %v3759
  %v3761 = vpop.f32.mrf.mxu0
  %v3762 = vadd.f32 %v3713, %v3761
  %3763 = vmatmul.bf16.gmra.mxu0 %v782
  %v3764 = vpop.f32.mrf.mxu0
  %v3765 = vadd.f32 %v3716, %v3764
  %v3766 = vpop.f32.mrf.mxu0
  %v3767 = vadd.f32 %v3718, %v3766
  %3768 = vmatmul.bf16.gmra.mxu0 %v791
  %v3769 = vpop.f32.mrf.mxu0
  %v3770 = vadd.f32 %v3721, %v3769
  %v3771 = vpop.f32.mrf.mxu0
  %v3772 = vadd.f32 %v3723, %v3771
  %3773 = vmatmul.bf16.gmra.mxu0 %v800
  %v3774 = vpop.f32.mrf.mxu0
  %v3775 = vadd.f32 %v3726, %v3774
  %v3776 = vpop.f32.mrf.mxu0
  %v3777 = vadd.f32 %v3728, %v3776
  %3778 = vmatmul.bf16.gmra.mxu0 %v809
  %v3779 = vpop.f32.mrf.mxu0
  %v3780 = vadd.f32 %v3731, %v3779
  %v3781 = vpop.f32.mrf.mxu0
  %v3782 = vadd.f32 %v3733, %v3781
  %3783 = vmatmul.bf16.gmra.mxu0 %v818
  %v3784 = vpop.f32.mrf.mxu0
  %v3785 = vadd.f32 %v3736, %v3784
  %v3786 = vpop.f32.mrf.mxu0
  %v3787 = vadd.f32 %v3738, %v3786
  %3788 = vdwg.mxu0
  %3789 = vmatpush.bf16.msra.mxu0 %v2521
  %3790 = vmatpush.bf16.msra.mxu0 %v2515
  %3791 = vmatpush.bf16.msra.mxu0 %v2509
  %3792 = vmatpush.bf16.msra.mxu0 %v2503
  %3793 = vmatpush.bf16.msra.mxu0 %v2497
  %3794 = vmatpush.bf16.msra.mxu0 %v2491
  %3795 = vmatpush.bf16.msra.mxu0 %v2485
  %3796 = vmatpush.bf16.msra.mxu0 %v2479
  %3797 = vmatmul.bf16.gmra.mxu0 %v756
  %v3798 = vpop.f32.mrf.mxu0
  %v3799 = vadd.f32 %v3750, %v3798
  %v3800 = vpop.f32.mrf.mxu0
  %v3801 = vadd.f32 %v3752, %v3800
  %3802 = vmatmul.bf16.gmra.mxu0 %v765
  %v3803 = vpop.f32.mrf.mxu0
  %v3804 = vadd.f32 %v3755, %v3803
  %v3805 = vpop.f32.mrf.mxu0
  %v3806 = vadd.f32 %v3757, %v3805
  %3807 = vmatmul.bf16.gmra.mxu0 %v774
  %v3808 = vpop.f32.mrf.mxu0
  %v3809 = vadd.f32 %v3760, %v3808
  %v3810 = vpop.f32.mrf.mxu0
  %v3811 = vadd.f32 %v3762, %v3810
  %3812 = vmatmul.bf16.gmra.mxu0 %v783
  %v3813 = vpop.f32.mrf.mxu0
  %v3814 = vadd.f32 %v3765, %v3813
  %v3815 = vpop.f32.mrf.mxu0
  %v3816 = vadd.f32 %v3767, %v3815
  %3817 = vmatmul.bf16.gmra.mxu0 %v792
  %v3818 = vpop.f32.mrf.mxu0
  %v3819 = vadd.f32 %v3770, %v3818
  %v3820 = vpop.f32.mrf.mxu0
  %v3821 = vadd.f32 %v3772, %v3820
  %3822 = vmatmul.bf16.gmra.mxu0 %v801
  %v3823 = vpop.f32.mrf.mxu0
  %v3824 = vadd.f32 %v3775, %v3823
  %v3825 = vpop.f32.mrf.mxu0
  %v3826 = vadd.f32 %v3777, %v3825
  %3827 = vmatmul.bf16.gmra.mxu0 %v810
  %v3828 = vpop.f32.mrf.mxu0
  %v3829 = vadd.f32 %v3780, %v3828
  %v3830 = vpop.f32.mrf.mxu0
  %v3831 = vadd.f32 %v3782, %v3830
  %3832 = vmatmul.bf16.gmra.mxu0 %v819
  %v3833 = vpop.f32.mrf.mxu0
  %v3834 = vadd.f32 %v3785, %v3833
  %v3835 = vpop.f32.mrf.mxu0
  %v3836 = vadd.f32 %v3787, %v3835
  %3837 = vdwg.mxu0
  %3838 = vmatpush.bf16.msra.mxu0 %v2569
  %3839 = vmatpush.bf16.msra.mxu0 %v2563
  %3840 = vmatpush.bf16.msra.mxu0 %v2557
  %3841 = vmatpush.bf16.msra.mxu0 %v2551
  %3842 = vmatpush.bf16.msra.mxu0 %v2545
  %3843 = vmatpush.bf16.msra.mxu0 %v2539
  %3844 = vmatpush.bf16.msra.mxu0 %v2533
  %3845 = vmatpush.bf16.msra.mxu0 %v2527
  %3846 = vmatmul.bf16.gmra.mxu0 %v757
  %v3847 = vpop.f32.mrf.mxu0
  %v3848 = vadd.f32 %v3799, %v3847
  %v3849 = vpop.f32.mrf.mxu0
  %v3850 = vadd.f32 %v3801, %v3849
  %3851 = vmatmul.bf16.gmra.mxu0 %v766
  %v3852 = vpop.f32.mrf.mxu0
  %v3853 = vadd.f32 %v3804, %v3852
  %v3854 = vpop.f32.mrf.mxu0
  %v3855 = vadd.f32 %v3806, %v3854
  %3856 = vmatmul.bf16.gmra.mxu0 %v775
  %v3857 = vpop.f32.mrf.mxu0
  %v3858 = vadd.f32 %v3809, %v3857
  %v3859 = vpop.f32.mrf.mxu0
  %v3860 = vadd.f32 %v3811, %v3859
  %3861 = vmatmul.bf16.gmra.mxu0 %v784
  %v3862 = vpop.f32.mrf.mxu0
  %v3863 = vadd.f32 %v3814, %v3862
  %v3864 = vpop.f32.mrf.mxu0
  %v3865 = vadd.f32 %v3816, %v3864
  %3866 = vmatmul.bf16.gmra.mxu0 %v793
  %v3867 = vpop.f32.mrf.mxu0
  %v3868 = vadd.f32 %v3819, %v3867
  %v3869 = vpop.f32.mrf.mxu0
  %v3870 = vadd.f32 %v3821, %v3869
  %3871 = vmatmul.bf16.gmra.mxu0 %v802
  %v3872 = vpop.f32.mrf.mxu0
  %v3873 = vadd.f32 %v3824, %v3872
  %v3874 = vpop.f32.mrf.mxu0
  %v3875 = vadd.f32 %v3826, %v3874
  %3876 = vmatmul.bf16.gmra.mxu0 %v811
  %v3877 = vpop.f32.mrf.mxu0
  %v3878 = vadd.f32 %v3829, %v3877
  %v3879 = vpop.f32.mrf.mxu0
  %v3880 = vadd.f32 %v3831, %v3879
  %3881 = vmatmul.bf16.gmra.mxu0 %v820
  %v3882 = vpop.f32.mrf.mxu0
  %v3883 = vadd.f32 %v3834, %v3882
  %v3884 = vpop.f32.mrf.mxu0
  %v3885 = vadd.f32 %v3836, %v3884
  %3886 = vdwg.mxu0
  %3887 = vmatpush.bf16.msra.mxu0 %v2617
  %3888 = vmatpush.bf16.msra.mxu0 %v2611
  %3889 = vmatpush.bf16.msra.mxu0 %v2605
  %3890 = vmatpush.bf16.msra.mxu0 %v2599
  %3891 = vmatpush.bf16.msra.mxu0 %v2593
  %3892 = vmatpush.bf16.msra.mxu0 %v2587
  %3893 = vmatpush.bf16.msra.mxu0 %v2581
  %3894 = vmatpush.bf16.msra.mxu0 %v2575
  %3895 = vmatmul.bf16.gmra.mxu0 %v758
  %v3896 = vpop.f32.mrf.mxu0
  %v3897 = vadd.f32 %v3848, %v3896
  %v3898 = vpop.f32.mrf.mxu0
  %v3899 = vadd.f32 %v3850, %v3898
  %3900 = vmatmul.bf16.gmra.mxu0 %v767
  %v3901 = vpop.f32.mrf.mxu0
  %v3902 = vadd.f32 %v3853, %v3901
  %v3903 = vpop.f32.mrf.mxu0
  %v3904 = vadd.f32 %v3855, %v3903
  %3905 = vmatmul.bf16.gmra.mxu0 %v776
  %v3906 = vpop.f32.mrf.mxu0
  %v3907 = vadd.f32 %v3858, %v3906
  %v3908 = vpop.f32.mrf.mxu0
  %v3909 = vadd.f32 %v3860, %v3908
  %3910 = vmatmul.bf16.gmra.mxu0 %v785
  %v3911 = vpop.f32.mrf.mxu0
  %v3912 = vadd.f32 %v3863, %v3911
  %v3913 = vpop.f32.mrf.mxu0
  %v3914 = vadd.f32 %v3865, %v3913
  %3915 = vmatmul.bf16.gmra.mxu0 %v794
  %v3916 = vpop.f32.mrf.mxu0
  %v3917 = vadd.f32 %v3868, %v3916
  %v3918 = vpop.f32.mrf.mxu0
  %v3919 = vadd.f32 %v3870, %v3918
  %3920 = vmatmul.bf16.gmra.mxu0 %v803
  %v3921 = vpop.f32.mrf.mxu0
  %v3922 = vadd.f32 %v3873, %v3921
  %v3923 = vpop.f32.mrf.mxu0
  %v3924 = vadd.f32 %v3875, %v3923
  %3925 = vmatmul.bf16.gmra.mxu0 %v812
  %v3926 = vpop.f32.mrf.mxu0
  %v3927 = vadd.f32 %v3878, %v3926
  %v3928 = vpop.f32.mrf.mxu0
  %v3929 = vadd.f32 %v3880, %v3928
  %3930 = vmatmul.bf16.gmra.mxu0 %v821
  %v3931 = vpop.f32.mrf.mxu0
  %v3932 = vadd.f32 %v3883, %v3931
  %v3933 = vpop.f32.mrf.mxu0
  %v3934 = vadd.f32 %v3885, %v3933
  %3935 = vdwg.mxu0
  %3936 = vmatpush.bf16.msra.mxu0 %v2234
  %3937 = vmatpush.bf16.msra.mxu0 %v2228
  %3938 = vmatpush.bf16.msra.mxu0 %v2222
  %3939 = vmatpush.bf16.msra.mxu0 %v2216
  %3940 = vmatpush.bf16.msra.mxu0 %v2210
  %3941 = vmatpush.bf16.msra.mxu0 %v2204
  %3942 = vmatpush.bf16.msra.mxu0 %v2198
  %3943 = vmatpush.bf16.msra.mxu0 %v2192
  %3944 = vmatmul.bf16.gmra.mxu0 %v750
  %v3945 = vpop.f32.mrf.mxu0
  %v3946 = vadd.f32 0.0, %v3945
  %v3947 = vpop.f32.mrf.mxu0
  %v3948 = vadd.f32 0.0, %v3947
  %3949 = vmatmul.bf16.gmra.mxu0 %v759
  %v3950 = vpop.f32.mrf.mxu0
  %v3951 = vadd.f32 0.0, %v3950
  %v3952 = vpop.f32.mrf.mxu0
  %v3953 = vadd.f32 0.0, %v3952
  %3954 = vmatmul.bf16.gmra.mxu0 %v768
  %v3955 = vpop.f32.mrf.mxu0
  %v3956 = vadd.f32 0.0, %v3955
  %v3957 = vpop.f32.mrf.mxu0
  %v3958 = vadd.f32 0.0, %v3957
  %3959 = vmatmul.bf16.gmra.mxu0 %v777
  %v3960 = vpop.f32.mrf.mxu0
  %v3961 = vadd.f32 0.0, %v3960
  %v3962 = vpop.f32.mrf.mxu0
  %v3963 = vadd.f32 0.0, %v3962
  %3964 = vmatmul.bf16.gmra.mxu0 %v786
  %v3965 = vpop.f32.mrf.mxu0
  %v3966 = vadd.f32 0.0, %v3965
  %v3967 = vpop.f32.mrf.mxu0
  %v3968 = vadd.f32 0.0, %v3967
  %3969 = vmatmul.bf16.gmra.mxu0 %v795
  %v3970 = vpop.f32.mrf.mxu0
  %v3971 = vadd.f32 0.0, %v3970
  %v3972 = vpop.f32.mrf.mxu0
  %v3973 = vadd.f32 0.0, %v3972
  %3974 = vmatmul.bf16.gmra.mxu0 %v804
  %v3975 = vpop.f32.mrf.mxu0
  %v3976 = vadd.f32 0.0, %v3975
  %v3977 = vpop.f32.mrf.mxu0
  %v3978 = vadd.f32 0.0, %v3977
  %3979 = vmatmul.bf16.gmra.mxu0 %v813
  %v3980 = vpop.f32.mrf.mxu0
  %v3981 = vadd.f32 0.0, %v3980
  %v3982 = vpop.f32.mrf.mxu0
  %v3983 = vadd.f32 0.0, %v3982
  %3984 = vdwg.mxu0
  %3985 = vmatpush.bf16.msra.mxu0 %v2282
  %3986 = vmatpush.bf16.msra.mxu0 %v2276
  %3987 = vmatpush.bf16.msra.mxu0 %v2270
  %3988 = vmatpush.bf16.msra.mxu0 %v2264
  %3989 = vmatpush.bf16.msra.mxu0 %v2258
  %3990 = vmatpush.bf16.msra.mxu0 %v2252
  %3991 = vmatpush.bf16.msra.mxu0 %v2246
  %3992 = vmatpush.bf16.msra.mxu0 %v2240
  %3993 = vmatmul.bf16.gmra.mxu0 %v751
  %v3994 = vpop.f32.mrf.mxu0
  %v3995 = vadd.f32 %v3946, %v3994
  %v3996 = vpop.f32.mrf.mxu0
  %v3997 = vadd.f32 %v3948, %v3996
  %3998 = vmatmul.bf16.gmra.mxu0 %v760
  %v3999 = vpop.f32.mrf.mxu0
  %v4000 = vadd.f32 %v3951, %v3999
  %v4001 = vpop.f32.mrf.mxu0
  %v4002 = vadd.f32 %v3953, %v4001
  %4003 = vmatmul.bf16.gmra.mxu0 %v769
  %v4004 = vpop.f32.mrf.mxu0
  %v4005 = vadd.f32 %v3956, %v4004
  %v4006 = vpop.f32.mrf.mxu0
  %v4007 = vadd.f32 %v3958, %v4006
  %4008 = vmatmul.bf16.gmra.mxu0 %v778
  %v4009 = vpop.f32.mrf.mxu0
  %v4010 = vadd.f32 %v3961, %v4009
  %v4011 = vpop.f32.mrf.mxu0
  %v4012 = vadd.f32 %v3963, %v4011
  %4013 = vmatmul.bf16.gmra.mxu0 %v787
  %v4014 = vpop.f32.mrf.mxu0
  %v4015 = vadd.f32 %v3966, %v4014
  %v4016 = vpop.f32.mrf.mxu0
  %v4017 = vadd.f32 %v3968, %v4016
  %4018 = vmatmul.bf16.gmra.mxu0 %v796
  %v4019 = vpop.f32.mrf.mxu0
  %v4020 = vadd.f32 %v3971, %v4019
  %v4021 = vpop.f32.mrf.mxu0
  %v4022 = vadd.f32 %v3973, %v4021
  %4023 = vmatmul.bf16.gmra.mxu0 %v805
  %v4024 = vpop.f32.mrf.mxu0
  %v4025 = vadd.f32 %v3976, %v4024
  %v4026 = vpop.f32.mrf.mxu0
  %v4027 = vadd.f32 %v3978, %v4026
  %4028 = vmatmul.bf16.gmra.mxu0 %v814
  %v4029 = vpop.f32.mrf.mxu0
  %v4030 = vadd.f32 %v3981, %v4029
  %v4031 = vpop.f32.mrf.mxu0
  %v4032 = vadd.f32 %v3983, %v4031
  %4033 = vdwg.mxu0
  %4034 = vmatpush.bf16.msra.mxu0 %v2330
  %4035 = vmatpush.bf16.msra.mxu0 %v2324
  %4036 = vmatpush.bf16.msra.mxu0 %v2318
  %4037 = vmatpush.bf16.msra.mxu0 %v2312
  %4038 = vmatpush.bf16.msra.mxu0 %v2306
  %4039 = vmatpush.bf16.msra.mxu0 %v2300
  %4040 = vmatpush.bf16.msra.mxu0 %v2294
  %4041 = vmatpush.bf16.msra.mxu0 %v2288
  %4042 = vmatmul.bf16.gmra.mxu0 %v752
  %v4043 = vpop.f32.mrf.mxu0
  %v4044 = vadd.f32 %v3995, %v4043
  %v4045 = vpop.f32.mrf.mxu0
  %v4046 = vadd.f32 %v3997, %v4045
  %4047 = vmatmul.bf16.gmra.mxu0 %v761
  %v4048 = vpop.f32.mrf.mxu0
  %v4049 = vadd.f32 %v4000, %v4048
  %v4050 = vpop.f32.mrf.mxu0
  %v4051 = vadd.f32 %v4002, %v4050
  %4052 = vmatmul.bf16.gmra.mxu0 %v770
  %v4053 = vpop.f32.mrf.mxu0
  %v4054 = vadd.f32 %v4005, %v4053
  %v4055 = vpop.f32.mrf.mxu0
  %v4056 = vadd.f32 %v4007, %v4055
  %4057 = vmatmul.bf16.gmra.mxu0 %v779
  %v4058 = vpop.f32.mrf.mxu0
  %v4059 = vadd.f32 %v4010, %v4058
  %v4060 = vpop.f32.mrf.mxu0
  %v4061 = vadd.f32 %v4012, %v4060
  %4062 = vmatmul.bf16.gmra.mxu0 %v788
  %v4063 = vpop.f32.mrf.mxu0
  %v4064 = vadd.f32 %v4015, %v4063
  %v4065 = vpop.f32.mrf.mxu0
  %v4066 = vadd.f32 %v4017, %v4065
  %4067 = vmatmul.bf16.gmra.mxu0 %v797
  %v4068 = vpop.f32.mrf.mxu0
  %v4069 = vadd.f32 %v4020, %v4068
  %v4070 = vpop.f32.mrf.mxu0
  %v4071 = vadd.f32 %v4022, %v4070
  %4072 = vmatmul.bf16.gmra.mxu0 %v806
  %v4073 = vpop.f32.mrf.mxu0
  %v4074 = vadd.f32 %v4025, %v4073
  %v4075 = vpop.f32.mrf.mxu0
  %v4076 = vadd.f32 %v4027, %v4075
  %4077 = vmatmul.bf16.gmra.mxu0 %v815
  %v4078 = vpop.f32.mrf.mxu0
  %v4079 = vadd.f32 %v4030, %v4078
  %v4080 = vpop.f32.mrf.mxu0
  %v4081 = vadd.f32 %v4032, %v4080
  %4082 = vdwg.mxu0
  %4083 = vmatpush.bf16.msra.mxu0 %v2378
  %4084 = vmatpush.bf16.msra.mxu0 %v2372
  %4085 = vmatpush.bf16.msra.mxu0 %v2366
  %4086 = vmatpush.bf16.msra.mxu0 %v2360
  %4087 = vmatpush.bf16.msra.mxu0 %v2354
  %4088 = vmatpush.bf16.msra.mxu0 %v2348
  %4089 = vmatpush.bf16.msra.mxu0 %v2342
  %4090 = vmatpush.bf16.msra.mxu0 %v2336
  %4091 = vmatmul.bf16.gmra.mxu0 %v753
  %v4092 = vpop.f32.mrf.mxu0
  %v4093 = vadd.f32 %v4044, %v4092
  %v4094 = vpop.f32.mrf.mxu0
  %v4095 = vadd.f32 %v4046, %v4094
  %4096 = vmatmul.bf16.gmra.mxu0 %v762
  %v4097 = vpop.f32.mrf.mxu0
  %v4098 = vadd.f32 %v4049, %v4097
  %v4099 = vpop.f32.mrf.mxu0
  %v4100 = vadd.f32 %v4051, %v4099
  %4101 = vmatmul.bf16.gmra.mxu0 %v771
  %v4102 = vpop.f32.mrf.mxu0
  %v4103 = vadd.f32 %v4054, %v4102
  %v4104 = vpop.f32.mrf.mxu0
  %v4105 = vadd.f32 %v4056, %v4104
  %4106 = vmatmul.bf16.gmra.mxu0 %v780
  %v4107 = vpop.f32.mrf.mxu0
  %v4108 = vadd.f32 %v4059, %v4107
  %v4109 = vpop.f32.mrf.mxu0
  %v4110 = vadd.f32 %v4061, %v4109
  %4111 = vmatmul.bf16.gmra.mxu0 %v789
  %v4112 = vpop.f32.mrf.mxu0
  %v4113 = vadd.f32 %v4064, %v4112
  %v4114 = vpop.f32.mrf.mxu0
  %v4115 = vadd.f32 %v4066, %v4114
  %4116 = vmatmul.bf16.gmra.mxu0 %v798
  %v4117 = vpop.f32.mrf.mxu0
  %v4118 = vadd.f32 %v4069, %v4117
  %v4119 = vpop.f32.mrf.mxu0
  %v4120 = vadd.f32 %v4071, %v4119
  %4121 = vmatmul.bf16.gmra.mxu0 %v807
  %v4122 = vpop.f32.mrf.mxu0
  %v4123 = vadd.f32 %v4074, %v4122
  %v4124 = vpop.f32.mrf.mxu0
  %v4125 = vadd.f32 %v4076, %v4124
  %4126 = vmatmul.bf16.gmra.mxu0 %v816
  %v4127 = vpop.f32.mrf.mxu0
  %v4128 = vadd.f32 %v4079, %v4127
  %v4129 = vpop.f32.mrf.mxu0
  %v4130 = vadd.f32 %v4081, %v4129
  %4131 = vdwg.mxu0
  %4132 = vmatpush.bf16.msra.mxu0 %v2426
  %4133 = vmatpush.bf16.msra.mxu0 %v2420
  %4134 = vmatpush.bf16.msra.mxu0 %v2414
  %4135 = vmatpush.bf16.msra.mxu0 %v2408
  %4136 = vmatpush.bf16.msra.mxu0 %v2402
  %4137 = vmatpush.bf16.msra.mxu0 %v2396
  %4138 = vmatpush.bf16.msra.mxu0 %v2390
  %4139 = vmatpush.bf16.msra.mxu0 %v2384
  %4140 = vmatmul.bf16.gmra.mxu0 %v754
  %v4141 = vpop.f32.mrf.mxu0
  %v4142 = vadd.f32 %v4093, %v4141
  %v4143 = vpop.f32.mrf.mxu0
  %v4144 = vadd.f32 %v4095, %v4143
  %4145 = vmatmul.bf16.gmra.mxu0 %v763
  %v4146 = vpop.f32.mrf.mxu0
  %v4147 = vadd.f32 %v4098, %v4146
  %v4148 = vpop.f32.mrf.mxu0
  %v4149 = vadd.f32 %v4100, %v4148
  %4150 = vmatmul.bf16.gmra.mxu0 %v772
  %v4151 = vpop.f32.mrf.mxu0
  %v4152 = vadd.f32 %v4103, %v4151
  %v4153 = vpop.f32.mrf.mxu0
  %v4154 = vadd.f32 %v4105, %v4153
  %4155 = vmatmul.bf16.gmra.mxu0 %v781
  %v4156 = vpop.f32.mrf.mxu0
  %v4157 = vadd.f32 %v4108, %v4156
  %v4158 = vpop.f32.mrf.mxu0
  %v4159 = vadd.f32 %v4110, %v4158
  %4160 = vmatmul.bf16.gmra.mxu0 %v790
  %v4161 = vpop.f32.mrf.mxu0
  %v4162 = vadd.f32 %v4113, %v4161
  %v4163 = vpop.f32.mrf.mxu0
  %v4164 = vadd.f32 %v4115, %v4163
  %4165 = vmatmul.bf16.gmra.mxu0 %v799
  %v4166 = vpop.f32.mrf.mxu0
  %v4167 = vadd.f32 %v4118, %v4166
  %v4168 = vpop.f32.mrf.mxu0
  %v4169 = vadd.f32 %v4120, %v4168
  %4170 = vmatmul.bf16.gmra.mxu0 %v808
  %v4171 = vpop.f32.mrf.mxu0
  %v4172 = vadd.f32 %v4123, %v4171
  %v4173 = vpop.f32.mrf.mxu0
  %v4174 = vadd.f32 %v4125, %v4173
  %4175 = vmatmul.bf16.gmra.mxu0 %v817
  %v4176 = vpop.f32.mrf.mxu0
  %v4177 = vadd.f32 %v4128, %v4176
  %v4178 = vpop.f32.mrf.mxu0
  %v4179 = vadd.f32 %v4130, %v4178
  %4180 = vdwg.mxu0
  %4181 = vmatpush.bf16.msra.mxu0 %v2474
  %4182 = vmatpush.bf16.msra.mxu0 %v2468
  %4183 = vmatpush.bf16.msra.mxu0 %v2462
  %4184 = vmatpush.bf16.msra.mxu0 %v2456
  %4185 = vmatpush.bf16.msra.mxu0 %v2450
  %4186 = vmatpush.bf16.msra.mxu0 %v2444
  %4187 = vmatpush.bf16.msra.mxu0 %v2438
  %4188 = vmatpush.bf16.msra.mxu0 %v2432
  %4189 = vmatmul.bf16.gmra.mxu0 %v755
  %v4190 = vpop.f32.mrf.mxu0
  %v4191 = vadd.f32 %v4142, %v4190
  %v4192 = vpop.f32.mrf.mxu0
  %v4193 = vadd.f32 %v4144, %v4192
  %4194 = vmatmul.bf16.gmra.mxu0 %v764
  %v4195 = vpop.f32.mrf.mxu0
  %v4196 = vadd.f32 %v4147, %v4195
  %v4197 = vpop.f32.mrf.mxu0
  %v4198 = vadd.f32 %v4149, %v4197
  %4199 = vmatmul.bf16.gmra.mxu0 %v773
  %v4200 = vpop.f32.mrf.mxu0
  %v4201 = vadd.f32 %v4152, %v4200
  %v4202 = vpop.f32.mrf.mxu0
  %v4203 = vadd.f32 %v4154, %v4202
  %4204 = vmatmul.bf16.gmra.mxu0 %v782
  %v4205 = vpop.f32.mrf.mxu0
  %v4206 = vadd.f32 %v4157, %v4205
  %v4207 = vpop.f32.mrf.mxu0
  %v4208 = vadd.f32 %v4159, %v4207
  %4209 = vmatmul.bf16.gmra.mxu0 %v791
  %v4210 = vpop.f32.mrf.mxu0
  %v4211 = vadd.f32 %v4162, %v4210
  %v4212 = vpop.f32.mrf.mxu0
  %v4213 = vadd.f32 %v4164, %v4212
  %4214 = vmatmul.bf16.gmra.mxu0 %v800
  %v4215 = vpop.f32.mrf.mxu0
  %v4216 = vadd.f32 %v4167, %v4215
  %v4217 = vpop.f32.mrf.mxu0
  %v4218 = vadd.f32 %v4169, %v4217
  %4219 = vmatmul.bf16.gmra.mxu0 %v809
  %v4220 = vpop.f32.mrf.mxu0
  %v4221 = vadd.f32 %v4172, %v4220
  %v4222 = vpop.f32.mrf.mxu0
  %v4223 = vadd.f32 %v4174, %v4222
  %4224 = vmatmul.bf16.gmra.mxu0 %v818
  %v4225 = vpop.f32.mrf.mxu0
  %v4226 = vadd.f32 %v4177, %v4225
  %v4227 = vpop.f32.mrf.mxu0
  %v4228 = vadd.f32 %v4179, %v4227
  %4229 = vdwg.mxu0
  %4230 = vmatpush.bf16.msra.mxu0 %v2522
  %4231 = vmatpush.bf16.msra.mxu0 %v2516
  %4232 = vmatpush.bf16.msra.mxu0 %v2510
  %4233 = vmatpush.bf16.msra.mxu0 %v2504
  %4234 = vmatpush.bf16.msra.mxu0 %v2498
  %4235 = vmatpush.bf16.msra.mxu0 %v2492
  %4236 = vmatpush.bf16.msra.mxu0 %v2486
  %4237 = vmatpush.bf16.msra.mxu0 %v2480
  %4238 = vmatmul.bf16.gmra.mxu0 %v756
  %v4239 = vpop.f32.mrf.mxu0
  %v4240 = vadd.f32 %v4191, %v4239
  %v4241 = vpop.f32.mrf.mxu0
  %v4242 = vadd.f32 %v4193, %v4241
  %4243 = vmatmul.bf16.gmra.mxu0 %v765
  %v4244 = vpop.f32.mrf.mxu0
  %v4245 = vadd.f32 %v4196, %v4244
  %v4246 = vpop.f32.mrf.mxu0
  %v4247 = vadd.f32 %v4198, %v4246
  %4248 = vmatmul.bf16.gmra.mxu0 %v774
  %v4249 = vpop.f32.mrf.mxu0
  %v4250 = vadd.f32 %v4201, %v4249
  %v4251 = vpop.f32.mrf.mxu0
  %v4252 = vadd.f32 %v4203, %v4251
  %4253 = vmatmul.bf16.gmra.mxu0 %v783
  %v4254 = vpop.f32.mrf.mxu0
  %v4255 = vadd.f32 %v4206, %v4254
  %v4256 = vpop.f32.mrf.mxu0
  %v4257 = vadd.f32 %v4208, %v4256
  %4258 = vmatmul.bf16.gmra.mxu0 %v792
  %v4259 = vpop.f32.mrf.mxu0
  %v4260 = vadd.f32 %v4211, %v4259
  %v4261 = vpop.f32.mrf.mxu0
  %v4262 = vadd.f32 %v4213, %v4261
  %4263 = vmatmul.bf16.gmra.mxu0 %v801
  %v4264 = vpop.f32.mrf.mxu0
  %v4265 = vadd.f32 %v4216, %v4264
  %v4266 = vpop.f32.mrf.mxu0
  %v4267 = vadd.f32 %v4218, %v4266
  %4268 = vmatmul.bf16.gmra.mxu0 %v810
  %v4269 = vpop.f32.mrf.mxu0
  %v4270 = vadd.f32 %v4221, %v4269
  %v4271 = vpop.f32.mrf.mxu0
  %v4272 = vadd.f32 %v4223, %v4271
  %4273 = vmatmul.bf16.gmra.mxu0 %v819
  %v4274 = vpop.f32.mrf.mxu0
  %v4275 = vadd.f32 %v4226, %v4274
  %v4276 = vpop.f32.mrf.mxu0
  %v4277 = vadd.f32 %v4228, %v4276
  %4278 = vdwg.mxu0
  %4279 = vmatpush.bf16.msra.mxu0 %v2570
  %4280 = vmatpush.bf16.msra.mxu0 %v2564
  %4281 = vmatpush.bf16.msra.mxu0 %v2558
  %4282 = vmatpush.bf16.msra.mxu0 %v2552
  %4283 = vmatpush.bf16.msra.mxu0 %v2546
  %4284 = vmatpush.bf16.msra.mxu0 %v2540
  %4285 = vmatpush.bf16.msra.mxu0 %v2534
  %4286 = vmatpush.bf16.msra.mxu0 %v2528
  %4287 = vmatmul.bf16.gmra.mxu0 %v757
  %v4288 = vpop.f32.mrf.mxu0
  %v4289 = vadd.f32 %v4240, %v4288
  %v4290 = vpop.f32.mrf.mxu0
  %v4291 = vadd.f32 %v4242, %v4290
  %4292 = vmatmul.bf16.gmra.mxu0 %v766
  %v4293 = vpop.f32.mrf.mxu0
  %v4294 = vadd.f32 %v4245, %v4293
  %v4295 = vpop.f32.mrf.mxu0
  %v4296 = vadd.f32 %v4247, %v4295
  %4297 = vmatmul.bf16.gmra.mxu0 %v775
  %v4298 = vpop.f32.mrf.mxu0
  %v4299 = vadd.f32 %v4250, %v4298
  %v4300 = vpop.f32.mrf.mxu0
  %v4301 = vadd.f32 %v4252, %v4300
  %4302 = vmatmul.bf16.gmra.mxu0 %v784
  %v4303 = vpop.f32.mrf.mxu0
  %v4304 = vadd.f32 %v4255, %v4303
  %v4305 = vpop.f32.mrf.mxu0
  %v4306 = vadd.f32 %v4257, %v4305
  %4307 = vmatmul.bf16.gmra.mxu0 %v793
  %v4308 = vpop.f32.mrf.mxu0
  %v4309 = vadd.f32 %v4260, %v4308
  %v4310 = vpop.f32.mrf.mxu0
  %v4311 = vadd.f32 %v4262, %v4310
  %4312 = vmatmul.bf16.gmra.mxu0 %v802
  %v4313 = vpop.f32.mrf.mxu0
  %v4314 = vadd.f32 %v4265, %v4313
  %v4315 = vpop.f32.mrf.mxu0
  %v4316 = vadd.f32 %v4267, %v4315
  %4317 = vmatmul.bf16.gmra.mxu0 %v811
  %v4318 = vpop.f32.mrf.mxu0
  %v4319 = vadd.f32 %v4270, %v4318
  %v4320 = vpop.f32.mrf.mxu0
  %v4321 = vadd.f32 %v4272, %v4320
  %4322 = vmatmul.bf16.gmra.mxu0 %v820
  %v4323 = vpop.f32.mrf.mxu0
  %v4324 = vadd.f32 %v4275, %v4323
  %v4325 = vpop.f32.mrf.mxu0
  %v4326 = vadd.f32 %v4277, %v4325
  %4327 = vdwg.mxu0
  %4328 = vmatpush.bf16.msra.mxu0 %v2618
  %4329 = vmatpush.bf16.msra.mxu0 %v2612
  %4330 = vmatpush.bf16.msra.mxu0 %v2606
  %4331 = vmatpush.bf16.msra.mxu0 %v2600
  %4332 = vmatpush.bf16.msra.mxu0 %v2594
  %4333 = vmatpush.bf16.msra.mxu0 %v2588
  %4334 = vmatpush.bf16.msra.mxu0 %v2582
  %4335 = vmatpush.bf16.msra.mxu0 %v2576
  %4336 = vmatmul.bf16.gmra.mxu0 %v758
  %v4337 = vpop.f32.mrf.mxu0
  %v4338 = vadd.f32 %v4289, %v4337
  %v4339 = vpop.f32.mrf.mxu0
  %v4340 = vadd.f32 %v4291, %v4339
  %4341 = vmatmul.bf16.gmra.mxu0 %v767
  %v4342 = vpop.f32.mrf.mxu0
  %v4343 = vadd.f32 %v4294, %v4342
  %v4344 = vpop.f32.mrf.mxu0
  %v4345 = vadd.f32 %v4296, %v4344
  %4346 = vmatmul.bf16.gmra.mxu0 %v776
  %v4347 = vpop.f32.mrf.mxu0
  %v4348 = vadd.f32 %v4299, %v4347
  %v4349 = vpop.f32.mrf.mxu0
  %v4350 = vadd.f32 %v4301, %v4349
  %4351 = vmatmul.bf16.gmra.mxu0 %v785
  %v4352 = vpop.f32.mrf.mxu0
  %v4353 = vadd.f32 %v4304, %v4352
  %v4354 = vpop.f32.mrf.mxu0
  %v4355 = vadd.f32 %v4306, %v4354
  %4356 = vmatmul.bf16.gmra.mxu0 %v794
  %v4357 = vpop.f32.mrf.mxu0
  %v4358 = vadd.f32 %v4309, %v4357
  %v4359 = vpop.f32.mrf.mxu0
  %v4360 = vadd.f32 %v4311, %v4359
  %4361 = vmatmul.bf16.gmra.mxu0 %v803
  %v4362 = vpop.f32.mrf.mxu0
  %v4363 = vadd.f32 %v4314, %v4362
  %v4364 = vpop.f32.mrf.mxu0
  %v4365 = vadd.f32 %v4316, %v4364
  %4366 = vmatmul.bf16.gmra.mxu0 %v812
  %v4367 = vpop.f32.mrf.mxu0
  %v4368 = vadd.f32 %v4319, %v4367
  %v4369 = vpop.f32.mrf.mxu0
  %v4370 = vadd.f32 %v4321, %v4369
  %4371 = vmatmul.bf16.gmra.mxu0 %v821
  %v4372 = vpop.f32.mrf.mxu0
  %v4373 = vadd.f32 %v4324, %v4372
  %v4374 = vpop.f32.mrf.mxu0
  %v4375 = vadd.f32 %v4326, %v4374
  %4376 = vdwg.mxu0
  %4377 = vmatpush.bf16.msra.mxu0 %v2235
  %4378 = vmatpush.bf16.msra.mxu0 %v2229
  %4379 = vmatpush.bf16.msra.mxu0 %v2223
  %4380 = vmatpush.bf16.msra.mxu0 %v2217
  %4381 = vmatpush.bf16.msra.mxu0 %v2211
  %4382 = vmatpush.bf16.msra.mxu0 %v2205
  %4383 = vmatpush.bf16.msra.mxu0 %v2199
  %4384 = vmatpush.bf16.msra.mxu0 %v2193
  %4385 = vmatmul.bf16.gmra.mxu0 %v750
  %v4386 = vpop.f32.mrf.mxu0
  %v4387 = vadd.f32 0.0, %v4386
  %v4388 = vpop.f32.mrf.mxu0
  %v4389 = vadd.f32 0.0, %v4388
  %4390 = vmatmul.bf16.gmra.mxu0 %v759
  %v4391 = vpop.f32.mrf.mxu0
  %v4392 = vadd.f32 0.0, %v4391
  %v4393 = vpop.f32.mrf.mxu0
  %v4394 = vadd.f32 0.0, %v4393
  %4395 = vmatmul.bf16.gmra.mxu0 %v768
  %v4396 = vpop.f32.mrf.mxu0
  %v4397 = vadd.f32 0.0, %v4396
  %v4398 = vpop.f32.mrf.mxu0
  %v4399 = vadd.f32 0.0, %v4398
  %4400 = vmatmul.bf16.gmra.mxu0 %v777
  %v4401 = vpop.f32.mrf.mxu0
  %v4402 = vadd.f32 0.0, %v4401
  %v4403 = vpop.f32.mrf.mxu0
  %v4404 = vadd.f32 0.0, %v4403
  %4405 = vmatmul.bf16.gmra.mxu0 %v786
  %v4406 = vpop.f32.mrf.mxu0
  %v4407 = vadd.f32 0.0, %v4406
  %v4408 = vpop.f32.mrf.mxu0
  %v4409 = vadd.f32 0.0, %v4408
  %4410 = vmatmul.bf16.gmra.mxu0 %v795
  %v4411 = vpop.f32.mrf.mxu0
  %v4412 = vadd.f32 0.0, %v4411
  %v4413 = vpop.f32.mrf.mxu0
  %v4414 = vadd.f32 0.0, %v4413
  %4415 = vmatmul.bf16.gmra.mxu0 %v804
  %v4416 = vpop.f32.mrf.mxu0
  %v4417 = vadd.f32 0.0, %v4416
  %v4418 = vpop.f32.mrf.mxu0
  %v4419 = vadd.f32 0.0, %v4418
  %4420 = vmatmul.bf16.gmra.mxu0 %v813
  %v4421 = vpop.f32.mrf.mxu0
  %v4422 = vadd.f32 0.0, %v4421
  %v4423 = vpop.f32.mrf.mxu0
  %v4424 = vadd.f32 0.0, %v4423
  %4425 = vdwg.mxu0
  %4426 = vmatpush.bf16.msra.mxu0 %v2283
  %4427 = vmatpush.bf16.msra.mxu0 %v2277
  %4428 = vmatpush.bf16.msra.mxu0 %v2271
  %4429 = vmatpush.bf16.msra.mxu0 %v2265
  %4430 = vmatpush.bf16.msra.mxu0 %v2259
  %4431 = vmatpush.bf16.msra.mxu0 %v2253
  %4432 = vmatpush.bf16.msra.mxu0 %v2247
  %4433 = vmatpush.bf16.msra.mxu0 %v2241
  %4434 = vmatmul.bf16.gmra.mxu0 %v751
  %v4435 = vpop.f32.mrf.mxu0
  %v4436 = vadd.f32 %v4387, %v4435
  %v4437 = vpop.f32.mrf.mxu0
  %v4438 = vadd.f32 %v4389, %v4437
  %4439 = vmatmul.bf16.gmra.mxu0 %v760
  %v4440 = vpop.f32.mrf.mxu0
  %v4441 = vadd.f32 %v4392, %v4440
  %v4442 = vpop.f32.mrf.mxu0
  %v4443 = vadd.f32 %v4394, %v4442
  %4444 = vmatmul.bf16.gmra.mxu0 %v769
  %v4445 = vpop.f32.mrf.mxu0
  %v4446 = vadd.f32 %v4397, %v4445
  %v4447 = vpop.f32.mrf.mxu0
  %v4448 = vadd.f32 %v4399, %v4447
  %4449 = vmatmul.bf16.gmra.mxu0 %v778
  %v4450 = vpop.f32.mrf.mxu0
  %v4451 = vadd.f32 %v4402, %v4450
  %v4452 = vpop.f32.mrf.mxu0
  %v4453 = vadd.f32 %v4404, %v4452
  %4454 = vmatmul.bf16.gmra.mxu0 %v787
  %v4455 = vpop.f32.mrf.mxu0
  %v4456 = vadd.f32 %v4407, %v4455
  %v4457 = vpop.f32.mrf.mxu0
  %v4458 = vadd.f32 %v4409, %v4457
  %4459 = vmatmul.bf16.gmra.mxu0 %v796
  %v4460 = vpop.f32.mrf.mxu0
  %v4461 = vadd.f32 %v4412, %v4460
  %v4462 = vpop.f32.mrf.mxu0
  %v4463 = vadd.f32 %v4414, %v4462
  %4464 = vmatmul.bf16.gmra.mxu0 %v805
  %v4465 = vpop.f32.mrf.mxu0
  %v4466 = vadd.f32 %v4417, %v4465
  %v4467 = vpop.f32.mrf.mxu0
  %v4468 = vadd.f32 %v4419, %v4467
  %4469 = vmatmul.bf16.gmra.mxu0 %v814
  %v4470 = vpop.f32.mrf.mxu0
  %v4471 = vadd.f32 %v4422, %v4470
  %v4472 = vpop.f32.mrf.mxu0
  %v4473 = vadd.f32 %v4424, %v4472
  %4474 = vdwg.mxu0
  %4475 = vmatpush.bf16.msra.mxu0 %v2331
  %4476 = vmatpush.bf16.msra.mxu0 %v2325
  %4477 = vmatpush.bf16.msra.mxu0 %v2319
  %4478 = vmatpush.bf16.msra.mxu0 %v2313
  %4479 = vmatpush.bf16.msra.mxu0 %v2307
  %4480 = vmatpush.bf16.msra.mxu0 %v2301
  %4481 = vmatpush.bf16.msra.mxu0 %v2295
  %4482 = vmatpush.bf16.msra.mxu0 %v2289
  %4483 = vmatmul.bf16.gmra.mxu0 %v752
  %v4484 = vpop.f32.mrf.mxu0
  %v4485 = vadd.f32 %v4436, %v4484
  %v4486 = vpop.f32.mrf.mxu0
  %v4487 = vadd.f32 %v4438, %v4486
  %4488 = vmatmul.bf16.gmra.mxu0 %v761
  %v4489 = vpop.f32.mrf.mxu0
  %v4490 = vadd.f32 %v4441, %v4489
  %v4491 = vpop.f32.mrf.mxu0
  %v4492 = vadd.f32 %v4443, %v4491
  %4493 = vmatmul.bf16.gmra.mxu0 %v770
  %v4494 = vpop.f32.mrf.mxu0
  %v4495 = vadd.f32 %v4446, %v4494
  %v4496 = vpop.f32.mrf.mxu0
  %v4497 = vadd.f32 %v4448, %v4496
  %4498 = vmatmul.bf16.gmra.mxu0 %v779
  %v4499 = vpop.f32.mrf.mxu0
  %v4500 = vadd.f32 %v4451, %v4499
  %v4501 = vpop.f32.mrf.mxu0
  %v4502 = vadd.f32 %v4453, %v4501
  %4503 = vmatmul.bf16.gmra.mxu0 %v788
  %v4504 = vpop.f32.mrf.mxu0
  %v4505 = vadd.f32 %v4456, %v4504
  %v4506 = vpop.f32.mrf.mxu0
  %v4507 = vadd.f32 %v4458, %v4506
  %4508 = vmatmul.bf16.gmra.mxu0 %v797
  %v4509 = vpop.f32.mrf.mxu0
  %v4510 = vadd.f32 %v4461, %v4509
  %v4511 = vpop.f32.mrf.mxu0
  %v4512 = vadd.f32 %v4463, %v4511
  %4513 = vmatmul.bf16.gmra.mxu0 %v806
  %v4514 = vpop.f32.mrf.mxu0
  %v4515 = vadd.f32 %v4466, %v4514
  %v4516 = vpop.f32.mrf.mxu0
  %v4517 = vadd.f32 %v4468, %v4516
  %4518 = vmatmul.bf16.gmra.mxu0 %v815
  %v4519 = vpop.f32.mrf.mxu0
  %v4520 = vadd.f32 %v4471, %v4519
  %v4521 = vpop.f32.mrf.mxu0
  %v4522 = vadd.f32 %v4473, %v4521
  %4523 = vdwg.mxu0
  %4524 = vmatpush.bf16.msra.mxu0 %v2379
  %4525 = vmatpush.bf16.msra.mxu0 %v2373
  %4526 = vmatpush.bf16.msra.mxu0 %v2367
  %4527 = vmatpush.bf16.msra.mxu0 %v2361
  %4528 = vmatpush.bf16.msra.mxu0 %v2355
  %4529 = vmatpush.bf16.msra.mxu0 %v2349
  %4530 = vmatpush.bf16.msra.mxu0 %v2343
  %4531 = vmatpush.bf16.msra.mxu0 %v2337
  %4532 = vmatmul.bf16.gmra.mxu0 %v753
  %v4533 = vpop.f32.mrf.mxu0
  %v4534 = vadd.f32 %v4485, %v4533
  %v4535 = vpop.f32.mrf.mxu0
  %v4536 = vadd.f32 %v4487, %v4535
  %4537 = vmatmul.bf16.gmra.mxu0 %v762
  %v4538 = vpop.f32.mrf.mxu0
  %v4539 = vadd.f32 %v4490, %v4538
  %v4540 = vpop.f32.mrf.mxu0
  %v4541 = vadd.f32 %v4492, %v4540
  %4542 = vmatmul.bf16.gmra.mxu0 %v771
  %v4543 = vpop.f32.mrf.mxu0
  %v4544 = vadd.f32 %v4495, %v4543
  %v4545 = vpop.f32.mrf.mxu0
  %v4546 = vadd.f32 %v4497, %v4545
  %4547 = vmatmul.bf16.gmra.mxu0 %v780
  %v4548 = vpop.f32.mrf.mxu0
  %v4549 = vadd.f32 %v4500, %v4548
  %v4550 = vpop.f32.mrf.mxu0
  %v4551 = vadd.f32 %v4502, %v4550
  %4552 = vmatmul.bf16.gmra.mxu0 %v789
  %v4553 = vpop.f32.mrf.mxu0
  %v4554 = vadd.f32 %v4505, %v4553
  %v4555 = vpop.f32.mrf.mxu0
  %v4556 = vadd.f32 %v4507, %v4555
  %4557 = vmatmul.bf16.gmra.mxu0 %v798
  %v4558 = vpop.f32.mrf.mxu0
  %v4559 = vadd.f32 %v4510, %v4558
  %v4560 = vpop.f32.mrf.mxu0
  %v4561 = vadd.f32 %v4512, %v4560
  %4562 = vmatmul.bf16.gmra.mxu0 %v807
  %v4563 = vpop.f32.mrf.mxu0
  %v4564 = vadd.f32 %v4515, %v4563
  %v4565 = vpop.f32.mrf.mxu0
  %v4566 = vadd.f32 %v4517, %v4565
  %4567 = vmatmul.bf16.gmra.mxu0 %v816
  %v4568 = vpop.f32.mrf.mxu0
  %v4569 = vadd.f32 %v4520, %v4568
  %v4570 = vpop.f32.mrf.mxu0
  %v4571 = vadd.f32 %v4522, %v4570
  %4572 = vdwg.mxu0
  %4573 = vmatpush.bf16.msra.mxu0 %v2427
  %4574 = vmatpush.bf16.msra.mxu0 %v2421
  %4575 = vmatpush.bf16.msra.mxu0 %v2415
  %4576 = vmatpush.bf16.msra.mxu0 %v2409
  %4577 = vmatpush.bf16.msra.mxu0 %v2403
  %4578 = vmatpush.bf16.msra.mxu0 %v2397
  %4579 = vmatpush.bf16.msra.mxu0 %v2391
  %4580 = vmatpush.bf16.msra.mxu0 %v2385
  %4581 = vmatmul.bf16.gmra.mxu0 %v754
  %v4582 = vpop.f32.mrf.mxu0
  %v4583 = vadd.f32 %v4534, %v4582
  %v4584 = vpop.f32.mrf.mxu0
  %v4585 = vadd.f32 %v4536, %v4584
  %4586 = vmatmul.bf16.gmra.mxu0 %v763
  %v4587 = vpop.f32.mrf.mxu0
  %v4588 = vadd.f32 %v4539, %v4587
  %v4589 = vpop.f32.mrf.mxu0
  %v4590 = vadd.f32 %v4541, %v4589
  %4591 = vmatmul.bf16.gmra.mxu0 %v772
  %v4592 = vpop.f32.mrf.mxu0
  %v4593 = vadd.f32 %v4544, %v4592
  %v4594 = vpop.f32.mrf.mxu0
  %v4595 = vadd.f32 %v4546, %v4594
  %4596 = vmatmul.bf16.gmra.mxu0 %v781
  %v4597 = vpop.f32.mrf.mxu0
  %v4598 = vadd.f32 %v4549, %v4597
  %v4599 = vpop.f32.mrf.mxu0
  %v4600 = vadd.f32 %v4551, %v4599
  %4601 = vmatmul.bf16.gmra.mxu0 %v790
  %v4602 = vpop.f32.mrf.mxu0
  %v4603 = vadd.f32 %v4554, %v4602
  %v4604 = vpop.f32.mrf.mxu0
  %v4605 = vadd.f32 %v4556, %v4604
  %4606 = vmatmul.bf16.gmra.mxu0 %v799
  %v4607 = vpop.f32.mrf.mxu0
  %v4608 = vadd.f32 %v4559, %v4607
  %v4609 = vpop.f32.mrf.mxu0
  %v4610 = vadd.f32 %v4561, %v4609
  %4611 = vmatmul.bf16.gmra.mxu0 %v808
  %v4612 = vpop.f32.mrf.mxu0
  %v4613 = vadd.f32 %v4564, %v4612
  %v4614 = vpop.f32.mrf.mxu0
  %v4615 = vadd.f32 %v4566, %v4614
  %4616 = vmatmul.bf16.gmra.mxu0 %v817
  %v4617 = vpop.f32.mrf.mxu0
  %v4618 = vadd.f32 %v4569, %v4617
  %v4619 = vpop.f32.mrf.mxu0
  %v4620 = vadd.f32 %v4571, %v4619
  %4621 = vdwg.mxu0
  %4622 = vmatpush.bf16.msra.mxu0 %v2475
  %4623 = vmatpush.bf16.msra.mxu0 %v2469
  %4624 = vmatpush.bf16.msra.mxu0 %v2463
  %4625 = vmatpush.bf16.msra.mxu0 %v2457
  %4626 = vmatpush.bf16.msra.mxu0 %v2451
  %4627 = vmatpush.bf16.msra.mxu0 %v2445
  %4628 = vmatpush.bf16.msra.mxu0 %v2439
  %4629 = vmatpush.bf16.msra.mxu0 %v2433
  %4630 = vmatmul.bf16.gmra.mxu0 %v755
  %v4631 = vpop.f32.mrf.mxu0
  %v4632 = vadd.f32 %v4583, %v4631
  %v4633 = vpop.f32.mrf.mxu0
  %v4634 = vadd.f32 %v4585, %v4633
  %4635 = vmatmul.bf16.gmra.mxu0 %v764
  %v4636 = vpop.f32.mrf.mxu0
  %v4637 = vadd.f32 %v4588, %v4636
  %v4638 = vpop.f32.mrf.mxu0
  %v4639 = vadd.f32 %v4590, %v4638
  %4640 = vmatmul.bf16.gmra.mxu0 %v773
  %v4641 = vpop.f32.mrf.mxu0
  %v4642 = vadd.f32 %v4593, %v4641
  %v4643 = vpop.f32.mrf.mxu0
  %v4644 = vadd.f32 %v4595, %v4643
  %4645 = vmatmul.bf16.gmra.mxu0 %v782
  %v4646 = vpop.f32.mrf.mxu0
  %v4647 = vadd.f32 %v4598, %v4646
  %v4648 = vpop.f32.mrf.mxu0
  %v4649 = vadd.f32 %v4600, %v4648
  %4650 = vmatmul.bf16.gmra.mxu0 %v791
  %v4651 = vpop.f32.mrf.mxu0
  %v4652 = vadd.f32 %v4603, %v4651
  %v4653 = vpop.f32.mrf.mxu0
  %v4654 = vadd.f32 %v4605, %v4653
  %4655 = vmatmul.bf16.gmra.mxu0 %v800
  %v4656 = vpop.f32.mrf.mxu0
  %v4657 = vadd.f32 %v4608, %v4656
  %v4658 = vpop.f32.mrf.mxu0
  %v4659 = vadd.f32 %v4610, %v4658
  %4660 = vmatmul.bf16.gmra.mxu0 %v809
  %v4661 = vpop.f32.mrf.mxu0
  %v4662 = vadd.f32 %v4613, %v4661
  %v4663 = vpop.f32.mrf.mxu0
  %v4664 = vadd.f32 %v4615, %v4663
  %4665 = vmatmul.bf16.gmra.mxu0 %v818
  %v4666 = vpop.f32.mrf.mxu0
  %v4667 = vadd.f32 %v4618, %v4666
  %v4668 = vpop.f32.mrf.mxu0
  %v4669 = vadd.f32 %v4620, %v4668
  %4670 = vdwg.mxu0
  %4671 = vmatpush.bf16.msra.mxu0 %v2523
  %4672 = vmatpush.bf16.msra.mxu0 %v2517
  %4673 = vmatpush.bf16.msra.mxu0 %v2511
  %4674 = vmatpush.bf16.msra.mxu0 %v2505
  %4675 = vmatpush.bf16.msra.mxu0 %v2499
  %4676 = vmatpush.bf16.msra.mxu0 %v2493
  %4677 = vmatpush.bf16.msra.mxu0 %v2487
  %4678 = vmatpush.bf16.msra.mxu0 %v2481
  %4679 = vmatmul.bf16.gmra.mxu0 %v756
  %v4680 = vpop.f32.mrf.mxu0
  %v4681 = vadd.f32 %v4632, %v4680
  %v4682 = vpop.f32.mrf.mxu0
  %v4683 = vadd.f32 %v4634, %v4682
  %4684 = vmatmul.bf16.gmra.mxu0 %v765
  %v4685 = vpop.f32.mrf.mxu0
  %v4686 = vadd.f32 %v4637, %v4685
  %v4687 = vpop.f32.mrf.mxu0
  %v4688 = vadd.f32 %v4639, %v4687
  %4689 = vmatmul.bf16.gmra.mxu0 %v774
  %v4690 = vpop.f32.mrf.mxu0
  %v4691 = vadd.f32 %v4642, %v4690
  %v4692 = vpop.f32.mrf.mxu0
  %v4693 = vadd.f32 %v4644, %v4692
  %4694 = vmatmul.bf16.gmra.mxu0 %v783
  %v4695 = vpop.f32.mrf.mxu0
  %v4696 = vadd.f32 %v4647, %v4695
  %v4697 = vpop.f32.mrf.mxu0
  %v4698 = vadd.f32 %v4649, %v4697
  %4699 = vmatmul.bf16.gmra.mxu0 %v792
  %v4700 = vpop.f32.mrf.mxu0
  %v4701 = vadd.f32 %v4652, %v4700
  %v4702 = vpop.f32.mrf.mxu0
  %v4703 = vadd.f32 %v4654, %v4702
  %4704 = vmatmul.bf16.gmra.mxu0 %v801
  %v4705 = vpop.f32.mrf.mxu0
  %v4706 = vadd.f32 %v4657, %v4705
  %v4707 = vpop.f32.mrf.mxu0
  %v4708 = vadd.f32 %v4659, %v4707
  %4709 = vmatmul.bf16.gmra.mxu0 %v810
  %v4710 = vpop.f32.mrf.mxu0
  %v4711 = vadd.f32 %v4662, %v4710
  %v4712 = vpop.f32.mrf.mxu0
  %v4713 = vadd.f32 %v4664, %v4712
  %4714 = vmatmul.bf16.gmra.mxu0 %v819
  %v4715 = vpop.f32.mrf.mxu0
  %v4716 = vadd.f32 %v4667, %v4715
  %v4717 = vpop.f32.mrf.mxu0
  %v4718 = vadd.f32 %v4669, %v4717
  %4719 = vdwg.mxu0
  %4720 = vmatpush.bf16.msra.mxu0 %v2571
  %4721 = vmatpush.bf16.msra.mxu0 %v2565
  %4722 = vmatpush.bf16.msra.mxu0 %v2559
  %4723 = vmatpush.bf16.msra.mxu0 %v2553
  %4724 = vmatpush.bf16.msra.mxu0 %v2547
  %4725 = vmatpush.bf16.msra.mxu0 %v2541
  %4726 = vmatpush.bf16.msra.mxu0 %v2535
  %4727 = vmatpush.bf16.msra.mxu0 %v2529
  %4728 = vmatmul.bf16.gmra.mxu0 %v757
  %v4729 = vpop.f32.mrf.mxu0
  %v4730 = vadd.f32 %v4681, %v4729
  %v4731 = vpop.f32.mrf.mxu0
  %v4732 = vadd.f32 %v4683, %v4731
  %4733 = vmatmul.bf16.gmra.mxu0 %v766
  %v4734 = vpop.f32.mrf.mxu0
  %v4735 = vadd.f32 %v4686, %v4734
  %v4736 = vpop.f32.mrf.mxu0
  %v4737 = vadd.f32 %v4688, %v4736
  %4738 = vmatmul.bf16.gmra.mxu0 %v775
  %v4739 = vpop.f32.mrf.mxu0
  %v4740 = vadd.f32 %v4691, %v4739
  %v4741 = vpop.f32.mrf.mxu0
  %v4742 = vadd.f32 %v4693, %v4741
  %4743 = vmatmul.bf16.gmra.mxu0 %v784
  %v4744 = vpop.f32.mrf.mxu0
  %v4745 = vadd.f32 %v4696, %v4744
  %v4746 = vpop.f32.mrf.mxu0
  %v4747 = vadd.f32 %v4698, %v4746
  %4748 = vmatmul.bf16.gmra.mxu0 %v793
  %v4749 = vpop.f32.mrf.mxu0
  %v4750 = vadd.f32 %v4701, %v4749
  %v4751 = vpop.f32.mrf.mxu0
  %v4752 = vadd.f32 %v4703, %v4751
  %4753 = vmatmul.bf16.gmra.mxu0 %v802
  %v4754 = vpop.f32.mrf.mxu0
  %v4755 = vadd.f32 %v4706, %v4754
  %v4756 = vpop.f32.mrf.mxu0
  %v4757 = vadd.f32 %v4708, %v4756
  %4758 = vmatmul.bf16.gmra.mxu0 %v811
  %v4759 = vpop.f32.mrf.mxu0
  %v4760 = vadd.f32 %v4711, %v4759
  %v4761 = vpop.f32.mrf.mxu0
  %v4762 = vadd.f32 %v4713, %v4761
  %4763 = vmatmul.bf16.gmra.mxu0 %v820
  %v4764 = vpop.f32.mrf.mxu0
  %v4765 = vadd.f32 %v4716, %v4764
  %v4766 = vpop.f32.mrf.mxu0
  %v4767 = vadd.f32 %v4718, %v4766
  %4768 = vdwg.mxu0
  %4769 = vmatpush.bf16.msra.mxu0 %v2619
  %4770 = vmatpush.bf16.msra.mxu0 %v2613
  %4771 = vmatpush.bf16.msra.mxu0 %v2607
  %4772 = vmatpush.bf16.msra.mxu0 %v2601
  %4773 = vmatpush.bf16.msra.mxu0 %v2595
  %4774 = vmatpush.bf16.msra.mxu0 %v2589
  %4775 = vmatpush.bf16.msra.mxu0 %v2583
  %4776 = vmatpush.bf16.msra.mxu0 %v2577
  %4777 = vmatmul.bf16.gmra.mxu0 %v758
  %v4778 = vpop.f32.mrf.mxu0
  %v4779 = vadd.f32 %v4730, %v4778
  %v4780 = vpop.f32.mrf.mxu0
  %v4781 = vadd.f32 %v4732, %v4780
  %4782 = vmatmul.bf16.gmra.mxu0 %v767
  %v4783 = vpop.f32.mrf.mxu0
  %v4784 = vadd.f32 %v4735, %v4783
  %v4785 = vpop.f32.mrf.mxu0
  %v4786 = vadd.f32 %v4737, %v4785
  %4787 = vmatmul.bf16.gmra.mxu0 %v776
  %v4788 = vpop.f32.mrf.mxu0
  %v4789 = vadd.f32 %v4740, %v4788
  %v4790 = vpop.f32.mrf.mxu0
  %v4791 = vadd.f32 %v4742, %v4790
  %4792 = vmatmul.bf16.gmra.mxu0 %v785
  %v4793 = vpop.f32.mrf.mxu0
  %v4794 = vadd.f32 %v4745, %v4793
  %v4795 = vpop.f32.mrf.mxu0
  %v4796 = vadd.f32 %v4747, %v4795
  %4797 = vmatmul.bf16.gmra.mxu0 %v794
  %v4798 = vpop.f32.mrf.mxu0
  %v4799 = vadd.f32 %v4750, %v4798
  %v4800 = vpop.f32.mrf.mxu0
  %v4801 = vadd.f32 %v4752, %v4800
  %4802 = vmatmul.bf16.gmra.mxu0 %v803
  %v4803 = vpop.f32.mrf.mxu0
  %v4804 = vadd.f32 %v4755, %v4803
  %v4805 = vpop.f32.mrf.mxu0
  %v4806 = vadd.f32 %v4757, %v4805
  %4807 = vmatmul.bf16.gmra.mxu0 %v812
  %v4808 = vpop.f32.mrf.mxu0
  %v4809 = vadd.f32 %v4760, %v4808
  %v4810 = vpop.f32.mrf.mxu0
  %v4811 = vadd.f32 %v4762, %v4810
  %4812 = vmatmul.bf16.gmra.mxu0 %v821
  %v4813 = vpop.f32.mrf.mxu0
  %v4814 = vadd.f32 %v4765, %v4813
  %v4815 = vpop.f32.mrf.mxu0
  %v4816 = vadd.f32 %v4767, %v4815
  %4817 = vdwg.mxu0
  %4818 = vmatpush.bf16.msra.mxu0 %v2236
  %4819 = vmatpush.bf16.msra.mxu0 %v2230
  %4820 = vmatpush.bf16.msra.mxu0 %v2224
  %4821 = vmatpush.bf16.msra.mxu0 %v2218
  %4822 = vmatpush.bf16.msra.mxu0 %v2212
  %4823 = vmatpush.bf16.msra.mxu0 %v2206
  %4824 = vmatpush.bf16.msra.mxu0 %v2200
  %4825 = vmatpush.bf16.msra.mxu0 %v2194
  %4826 = vmatmul.bf16.gmra.mxu0 %v750
  %v4827 = vpop.f32.mrf.mxu0
  %v4828 = vadd.f32 0.0, %v4827
  %v4829 = vpop.f32.mrf.mxu0
  %v4830 = vadd.f32 0.0, %v4829
  %4831 = vmatmul.bf16.gmra.mxu0 %v759
  %v4832 = vpop.f32.mrf.mxu0
  %v4833 = vadd.f32 0.0, %v4832
  %v4834 = vpop.f32.mrf.mxu0
  %v4835 = vadd.f32 0.0, %v4834
  %4836 = vmatmul.bf16.gmra.mxu0 %v768
  %v4837 = vpop.f32.mrf.mxu0
  %v4838 = vadd.f32 0.0, %v4837
  %v4839 = vpop.f32.mrf.mxu0
  %v4840 = vadd.f32 0.0, %v4839
  %4841 = vmatmul.bf16.gmra.mxu0 %v777
  %v4842 = vpop.f32.mrf.mxu0
  %v4843 = vadd.f32 0.0, %v4842
  %v4844 = vpop.f32.mrf.mxu0
  %v4845 = vadd.f32 0.0, %v4844
  %4846 = vmatmul.bf16.gmra.mxu0 %v786
  %v4847 = vpop.f32.mrf.mxu0
  %v4848 = vadd.f32 0.0, %v4847
  %v4849 = vpop.f32.mrf.mxu0
  %v4850 = vadd.f32 0.0, %v4849
  %4851 = vmatmul.bf16.gmra.mxu0 %v795
  %v4852 = vpop.f32.mrf.mxu0
  %v4853 = vadd.f32 0.0, %v4852
  %v4854 = vpop.f32.mrf.mxu0
  %v4855 = vadd.f32 0.0, %v4854
  %4856 = vmatmul.bf16.gmra.mxu0 %v804
  %v4857 = vpop.f32.mrf.mxu0
  %v4858 = vadd.f32 0.0, %v4857
  %v4859 = vpop.f32.mrf.mxu0
  %v4860 = vadd.f32 0.0, %v4859
  %4861 = vmatmul.bf16.gmra.mxu0 %v813
  %v4862 = vpop.f32.mrf.mxu0
  %v4863 = vadd.f32 0.0, %v4862
  %v4864 = vpop.f32.mrf.mxu0
  %v4865 = vadd.f32 0.0, %v4864
  %4866 = vdwg.mxu0
  %4867 = vmatpush.bf16.msra.mxu0 %v2284
  %4868 = vmatpush.bf16.msra.mxu0 %v2278
  %4869 = vmatpush.bf16.msra.mxu0 %v2272
  %4870 = vmatpush.bf16.msra.mxu0 %v2266
  %4871 = vmatpush.bf16.msra.mxu0 %v2260
  %4872 = vmatpush.bf16.msra.mxu0 %v2254
  %4873 = vmatpush.bf16.msra.mxu0 %v2248
  %4874 = vmatpush.bf16.msra.mxu0 %v2242
  %4875 = vmatmul.bf16.gmra.mxu0 %v751
  %v4876 = vpop.f32.mrf.mxu0
  %v4877 = vadd.f32 %v4828, %v4876
  %v4878 = vpop.f32.mrf.mxu0
  %v4879 = vadd.f32 %v4830, %v4878
  %4880 = vmatmul.bf16.gmra.mxu0 %v760
  %v4881 = vpop.f32.mrf.mxu0
  %v4882 = vadd.f32 %v4833, %v4881
  %v4883 = vpop.f32.mrf.mxu0
  %v4884 = vadd.f32 %v4835, %v4883
  %4885 = vmatmul.bf16.gmra.mxu0 %v769
  %v4886 = vpop.f32.mrf.mxu0
  %v4887 = vadd.f32 %v4838, %v4886
  %v4888 = vpop.f32.mrf.mxu0
  %v4889 = vadd.f32 %v4840, %v4888
  %4890 = vmatmul.bf16.gmra.mxu0 %v778
  %v4891 = vpop.f32.mrf.mxu0
  %v4892 = vadd.f32 %v4843, %v4891
  %v4893 = vpop.f32.mrf.mxu0
  %v4894 = vadd.f32 %v4845, %v4893
  %4895 = vmatmul.bf16.gmra.mxu0 %v787
  %v4896 = vpop.f32.mrf.mxu0
  %v4897 = vadd.f32 %v4848, %v4896
  %v4898 = vpop.f32.mrf.mxu0
  %v4899 = vadd.f32 %v4850, %v4898
  %4900 = vmatmul.bf16.gmra.mxu0 %v796
  %v4901 = vpop.f32.mrf.mxu0
  %v4902 = vadd.f32 %v4853, %v4901
  %v4903 = vpop.f32.mrf.mxu0
  %v4904 = vadd.f32 %v4855, %v4903
  %4905 = vmatmul.bf16.gmra.mxu0 %v805
  %v4906 = vpop.f32.mrf.mxu0
  %v4907 = vadd.f32 %v4858, %v4906
  %v4908 = vpop.f32.mrf.mxu0
  %v4909 = vadd.f32 %v4860, %v4908
  %4910 = vmatmul.bf16.gmra.mxu0 %v814
  %v4911 = vpop.f32.mrf.mxu0
  %v4912 = vadd.f32 %v4863, %v4911
  %v4913 = vpop.f32.mrf.mxu0
  %v4914 = vadd.f32 %v4865, %v4913
  %4915 = vdwg.mxu0
  %4916 = vmatpush.bf16.msra.mxu0 %v2332
  %4917 = vmatpush.bf16.msra.mxu0 %v2326
  %4918 = vmatpush.bf16.msra.mxu0 %v2320
  %4919 = vmatpush.bf16.msra.mxu0 %v2314
  %4920 = vmatpush.bf16.msra.mxu0 %v2308
  %4921 = vmatpush.bf16.msra.mxu0 %v2302
  %4922 = vmatpush.bf16.msra.mxu0 %v2296
  %4923 = vmatpush.bf16.msra.mxu0 %v2290
  %4924 = vmatmul.bf16.gmra.mxu0 %v752
  %v4925 = vpop.f32.mrf.mxu0
  %v4926 = vadd.f32 %v4877, %v4925
  %v4927 = vpop.f32.mrf.mxu0
  %v4928 = vadd.f32 %v4879, %v4927
  %4929 = vmatmul.bf16.gmra.mxu0 %v761
  %v4930 = vpop.f32.mrf.mxu0
  %v4931 = vadd.f32 %v4882, %v4930
  %v4932 = vpop.f32.mrf.mxu0
  %v4933 = vadd.f32 %v4884, %v4932
  %4934 = vmatmul.bf16.gmra.mxu0 %v770
  %v4935 = vpop.f32.mrf.mxu0
  %v4936 = vadd.f32 %v4887, %v4935
  %v4937 = vpop.f32.mrf.mxu0
  %v4938 = vadd.f32 %v4889, %v4937
  %4939 = vmatmul.bf16.gmra.mxu0 %v779
  %v4940 = vpop.f32.mrf.mxu0
  %v4941 = vadd.f32 %v4892, %v4940
  %v4942 = vpop.f32.mrf.mxu0
  %v4943 = vadd.f32 %v4894, %v4942
  %4944 = vmatmul.bf16.gmra.mxu0 %v788
  %v4945 = vpop.f32.mrf.mxu0
  %v4946 = vadd.f32 %v4897, %v4945
  %v4947 = vpop.f32.mrf.mxu0
  %v4948 = vadd.f32 %v4899, %v4947
  %4949 = vmatmul.bf16.gmra.mxu0 %v797
  %v4950 = vpop.f32.mrf.mxu0
  %v4951 = vadd.f32 %v4902, %v4950
  %v4952 = vpop.f32.mrf.mxu0
  %v4953 = vadd.f32 %v4904, %v4952
  %4954 = vmatmul.bf16.gmra.mxu0 %v806
  %v4955 = vpop.f32.mrf.mxu0
  %v4956 = vadd.f32 %v4907, %v4955
  %v4957 = vpop.f32.mrf.mxu0
  %v4958 = vadd.f32 %v4909, %v4957
  %4959 = vmatmul.bf16.gmra.mxu0 %v815
  %v4960 = vpop.f32.mrf.mxu0
  %v4961 = vadd.f32 %v4912, %v4960
  %v4962 = vpop.f32.mrf.mxu0
  %v4963 = vadd.f32 %v4914, %v4962
  %4964 = vdwg.mxu0
  %4965 = vmatpush.bf16.msra.mxu0 %v2380
  %4966 = vmatpush.bf16.msra.mxu0 %v2374
  %4967 = vmatpush.bf16.msra.mxu0 %v2368
  %4968 = vmatpush.bf16.msra.mxu0 %v2362
  %4969 = vmatpush.bf16.msra.mxu0 %v2356
  %4970 = vmatpush.bf16.msra.mxu0 %v2350
  %4971 = vmatpush.bf16.msra.mxu0 %v2344
  %4972 = vmatpush.bf16.msra.mxu0 %v2338
  %4973 = vmatmul.bf16.gmra.mxu0 %v753
  %v4974 = vpop.f32.mrf.mxu0
  %v4975 = vadd.f32 %v4926, %v4974
  %v4976 = vpop.f32.mrf.mxu0
  %v4977 = vadd.f32 %v4928, %v4976
  %4978 = vmatmul.bf16.gmra.mxu0 %v762
  %v4979 = vpop.f32.mrf.mxu0
  %v4980 = vadd.f32 %v4931, %v4979
  %v4981 = vpop.f32.mrf.mxu0
  %v4982 = vadd.f32 %v4933, %v4981
  %4983 = vmatmul.bf16.gmra.mxu0 %v771
  %v4984 = vpop.f32.mrf.mxu0
  %v4985 = vadd.f32 %v4936, %v4984
  %v4986 = vpop.f32.mrf.mxu0
  %v4987 = vadd.f32 %v4938, %v4986
  %4988 = vmatmul.bf16.gmra.mxu0 %v780
  %v4989 = vpop.f32.mrf.mxu0
  %v4990 = vadd.f32 %v4941, %v4989
  %v4991 = vpop.f32.mrf.mxu0
  %v4992 = vadd.f32 %v4943, %v4991
  %4993 = vmatmul.bf16.gmra.mxu0 %v789
  %v4994 = vpop.f32.mrf.mxu0
  %v4995 = vadd.f32 %v4946, %v4994
  %v4996 = vpop.f32.mrf.mxu0
  %v4997 = vadd.f32 %v4948, %v4996
  %4998 = vmatmul.bf16.gmra.mxu0 %v798
  %v4999 = vpop.f32.mrf.mxu0
  %v5000 = vadd.f32 %v4951, %v4999
  %v5001 = vpop.f32.mrf.mxu0
  %v5002 = vadd.f32 %v4953, %v5001
  %5003 = vmatmul.bf16.gmra.mxu0 %v807
  %v5004 = vpop.f32.mrf.mxu0
  %v5005 = vadd.f32 %v4956, %v5004
  %v5006 = vpop.f32.mrf.mxu0
  %v5007 = vadd.f32 %v4958, %v5006
  %5008 = vmatmul.bf16.gmra.mxu0 %v816
  %v5009 = vpop.f32.mrf.mxu0
  %v5010 = vadd.f32 %v4961, %v5009
  %v5011 = vpop.f32.mrf.mxu0
  %v5012 = vadd.f32 %v4963, %v5011
  %5013 = vdwg.mxu0
  %5014 = vmatpush.bf16.msra.mxu0 %v2428
  %5015 = vmatpush.bf16.msra.mxu0 %v2422
  %5016 = vmatpush.bf16.msra.mxu0 %v2416
  %5017 = vmatpush.bf16.msra.mxu0 %v2410
  %5018 = vmatpush.bf16.msra.mxu0 %v2404
  %5019 = vmatpush.bf16.msra.mxu0 %v2398
  %5020 = vmatpush.bf16.msra.mxu0 %v2392
  %5021 = vmatpush.bf16.msra.mxu0 %v2386
  %5022 = vmatmul.bf16.gmra.mxu0 %v754
  %v5023 = vpop.f32.mrf.mxu0
  %v5024 = vadd.f32 %v4975, %v5023
  %v5025 = vpop.f32.mrf.mxu0
  %v5026 = vadd.f32 %v4977, %v5025
  %5027 = vmatmul.bf16.gmra.mxu0 %v763
  %v5028 = vpop.f32.mrf.mxu0
  %v5029 = vadd.f32 %v4980, %v5028
  %v5030 = vpop.f32.mrf.mxu0
  %v5031 = vadd.f32 %v4982, %v5030
  %5032 = vmatmul.bf16.gmra.mxu0 %v772
  %v5033 = vpop.f32.mrf.mxu0
  %v5034 = vadd.f32 %v4985, %v5033
  %v5035 = vpop.f32.mrf.mxu0
  %v5036 = vadd.f32 %v4987, %v5035
  %5037 = vmatmul.bf16.gmra.mxu0 %v781
  %v5038 = vpop.f32.mrf.mxu0
  %v5039 = vadd.f32 %v4990, %v5038
  %v5040 = vpop.f32.mrf.mxu0
  %v5041 = vadd.f32 %v4992, %v5040
  %5042 = vmatmul.bf16.gmra.mxu0 %v790
  %v5043 = vpop.f32.mrf.mxu0
  %v5044 = vadd.f32 %v4995, %v5043
  %v5045 = vpop.f32.mrf.mxu0
  %v5046 = vadd.f32 %v4997, %v5045
  %5047 = vmatmul.bf16.gmra.mxu0 %v799
  %v5048 = vpop.f32.mrf.mxu0
  %v5049 = vadd.f32 %v5000, %v5048
  %v5050 = vpop.f32.mrf.mxu0
  %v5051 = vadd.f32 %v5002, %v5050
  %5052 = vmatmul.bf16.gmra.mxu0 %v808
  %v5053 = vpop.f32.mrf.mxu0
  %v5054 = vadd.f32 %v5005, %v5053
  %v5055 = vpop.f32.mrf.mxu0
  %v5056 = vadd.f32 %v5007, %v5055
  %5057 = vmatmul.bf16.gmra.mxu0 %v817
  %v5058 = vpop.f32.mrf.mxu0
  %v5059 = vadd.f32 %v5010, %v5058
  %v5060 = vpop.f32.mrf.mxu0
  %v5061 = vadd.f32 %v5012, %v5060
  %5062 = vdwg.mxu0
  %5063 = vmatpush.bf16.msra.mxu0 %v2476
  %5064 = vmatpush.bf16.msra.mxu0 %v2470
  %5065 = vmatpush.bf16.msra.mxu0 %v2464
  %5066 = vmatpush.bf16.msra.mxu0 %v2458
  %5067 = vmatpush.bf16.msra.mxu0 %v2452
  %5068 = vmatpush.bf16.msra.mxu0 %v2446
  %5069 = vmatpush.bf16.msra.mxu0 %v2440
  %5070 = vmatpush.bf16.msra.mxu0 %v2434
  %5071 = vmatmul.bf16.gmra.mxu0 %v755
  %v5072 = vpop.f32.mrf.mxu0
  %v5073 = vadd.f32 %v5024, %v5072
  %v5074 = vpop.f32.mrf.mxu0
  %v5075 = vadd.f32 %v5026, %v5074
  %5076 = vmatmul.bf16.gmra.mxu0 %v764
  %v5077 = vpop.f32.mrf.mxu0
  %v5078 = vadd.f32 %v5029, %v5077
  %v5079 = vpop.f32.mrf.mxu0
  %v5080 = vadd.f32 %v5031, %v5079
  %5081 = vmatmul.bf16.gmra.mxu0 %v773
  %v5082 = vpop.f32.mrf.mxu0
  %v5083 = vadd.f32 %v5034, %v5082
  %v5084 = vpop.f32.mrf.mxu0
  %v5085 = vadd.f32 %v5036, %v5084
  %5086 = vmatmul.bf16.gmra.mxu0 %v782
  %v5087 = vpop.f32.mrf.mxu0
  %v5088 = vadd.f32 %v5039, %v5087
  %v5089 = vpop.f32.mrf.mxu0
  %v5090 = vadd.f32 %v5041, %v5089
  %5091 = vmatmul.bf16.gmra.mxu0 %v791
  %v5092 = vpop.f32.mrf.mxu0
  %v5093 = vadd.f32 %v5044, %v5092
  %v5094 = vpop.f32.mrf.mxu0
  %v5095 = vadd.f32 %v5046, %v5094
  %5096 = vmatmul.bf16.gmra.mxu0 %v800
  %v5097 = vpop.f32.mrf.mxu0
  %v5098 = vadd.f32 %v5049, %v5097
  %v5099 = vpop.f32.mrf.mxu0
  %v5100 = vadd.f32 %v5051, %v5099
  %5101 = vmatmul.bf16.gmra.mxu0 %v809
  %v5102 = vpop.f32.mrf.mxu0
  %v5103 = vadd.f32 %v5054, %v5102
  %v5104 = vpop.f32.mrf.mxu0
  %v5105 = vadd.f32 %v5056, %v5104
  %5106 = vmatmul.bf16.gmra.mxu0 %v818
  %v5107 = vpop.f32.mrf.mxu0
  %v5108 = vadd.f32 %v5059, %v5107
  %v5109 = vpop.f32.mrf.mxu0
  %v5110 = vadd.f32 %v5061, %v5109
  %5111 = vdwg.mxu0
  %5112 = vmatpush.bf16.msra.mxu0 %v2524
  %5113 = vmatpush.bf16.msra.mxu0 %v2518
  %5114 = vmatpush.bf16.msra.mxu0 %v2512
  %5115 = vmatpush.bf16.msra.mxu0 %v2506
  %5116 = vmatpush.bf16.msra.mxu0 %v2500
  %5117 = vmatpush.bf16.msra.mxu0 %v2494
  %5118 = vmatpush.bf16.msra.mxu0 %v2488
  %5119 = vmatpush.bf16.msra.mxu0 %v2482
  %5120 = vmatmul.bf16.gmra.mxu0 %v756
  %v5121 = vpop.f32.mrf.mxu0
  %v5122 = vadd.f32 %v5073, %v5121
  %v5123 = vpop.f32.mrf.mxu0
  %v5124 = vadd.f32 %v5075, %v5123
  %5125 = vmatmul.bf16.gmra.mxu0 %v765
  %v5126 = vpop.f32.mrf.mxu0
  %v5127 = vadd.f32 %v5078, %v5126
  %v5128 = vpop.f32.mrf.mxu0
  %v5129 = vadd.f32 %v5080, %v5128
  %5130 = vmatmul.bf16.gmra.mxu0 %v774
  %v5131 = vpop.f32.mrf.mxu0
  %v5132 = vadd.f32 %v5083, %v5131
  %v5133 = vpop.f32.mrf.mxu0
  %v5134 = vadd.f32 %v5085, %v5133
  %5135 = vmatmul.bf16.gmra.mxu0 %v783
  %v5136 = vpop.f32.mrf.mxu0
  %v5137 = vadd.f32 %v5088, %v5136
  %v5138 = vpop.f32.mrf.mxu0
  %v5139 = vadd.f32 %v5090, %v5138
  %5140 = vmatmul.bf16.gmra.mxu0 %v792
  %v5141 = vpop.f32.mrf.mxu0
  %v5142 = vadd.f32 %v5093, %v5141
  %v5143 = vpop.f32.mrf.mxu0
  %v5144 = vadd.f32 %v5095, %v5143
  %5145 = vmatmul.bf16.gmra.mxu0 %v801
  %v5146 = vpop.f32.mrf.mxu0
  %v5147 = vadd.f32 %v5098, %v5146
  %v5148 = vpop.f32.mrf.mxu0
  %v5149 = vadd.f32 %v5100, %v5148
  %5150 = vmatmul.bf16.gmra.mxu0 %v810
  %v5151 = vpop.f32.mrf.mxu0
  %v5152 = vadd.f32 %v5103, %v5151
  %v5153 = vpop.f32.mrf.mxu0
  %v5154 = vadd.f32 %v5105, %v5153
  %5155 = vmatmul.bf16.gmra.mxu0 %v819
  %v5156 = vpop.f32.mrf.mxu0
  %v5157 = vadd.f32 %v5108, %v5156
  %v5158 = vpop.f32.mrf.mxu0
  %v5159 = vadd.f32 %v5110, %v5158
  %5160 = vdwg.mxu0
  %5161 = vmatpush.bf16.msra.mxu0 %v2572
  %5162 = vmatpush.bf16.msra.mxu0 %v2566
  %5163 = vmatpush.bf16.msra.mxu0 %v2560
  %5164 = vmatpush.bf16.msra.mxu0 %v2554
  %5165 = vmatpush.bf16.msra.mxu0 %v2548
  %5166 = vmatpush.bf16.msra.mxu0 %v2542
  %5167 = vmatpush.bf16.msra.mxu0 %v2536
  %5168 = vmatpush.bf16.msra.mxu0 %v2530
  %5169 = vmatmul.bf16.gmra.mxu0 %v757
  %v5170 = vpop.f32.mrf.mxu0
  %v5171 = vadd.f32 %v5122, %v5170
  %v5172 = vpop.f32.mrf.mxu0
  %v5173 = vadd.f32 %v5124, %v5172
  %5174 = vmatmul.bf16.gmra.mxu0 %v766
  %v5175 = vpop.f32.mrf.mxu0
  %v5176 = vadd.f32 %v5127, %v5175
  %v5177 = vpop.f32.mrf.mxu0
  %v5178 = vadd.f32 %v5129, %v5177
  %5179 = vmatmul.bf16.gmra.mxu0 %v775
  %v5180 = vpop.f32.mrf.mxu0
  %v5181 = vadd.f32 %v5132, %v5180
  %v5182 = vpop.f32.mrf.mxu0
  %v5183 = vadd.f32 %v5134, %v5182
  %5184 = vmatmul.bf16.gmra.mxu0 %v784
  %v5185 = vpop.f32.mrf.mxu0
  %v5186 = vadd.f32 %v5137, %v5185
  %v5187 = vpop.f32.mrf.mxu0
  %v5188 = vadd.f32 %v5139, %v5187
  %5189 = vmatmul.bf16.gmra.mxu0 %v793
  %v5190 = vpop.f32.mrf.mxu0
  %v5191 = vadd.f32 %v5142, %v5190
  %v5192 = vpop.f32.mrf.mxu0
  %v5193 = vadd.f32 %v5144, %v5192
  %5194 = vmatmul.bf16.gmra.mxu0 %v802
  %v5195 = vpop.f32.mrf.mxu0
  %v5196 = vadd.f32 %v5147, %v5195
  %v5197 = vpop.f32.mrf.mxu0
  %v5198 = vadd.f32 %v5149, %v5197
  %5199 = vmatmul.bf16.gmra.mxu0 %v811
  %v5200 = vpop.f32.mrf.mxu0
  %v5201 = vadd.f32 %v5152, %v5200
  %v5202 = vpop.f32.mrf.mxu0
  %v5203 = vadd.f32 %v5154, %v5202
  %5204 = vmatmul.bf16.gmra.mxu0 %v820
  %v5205 = vpop.f32.mrf.mxu0
  %v5206 = vadd.f32 %v5157, %v5205
  %v5207 = vpop.f32.mrf.mxu0
  %v5208 = vadd.f32 %v5159, %v5207
  %5209 = vdwg.mxu0
  %5210 = vmatpush.bf16.msra.mxu0 %v2620
  %5211 = vmatpush.bf16.msra.mxu0 %v2614
  %5212 = vmatpush.bf16.msra.mxu0 %v2608
  %5213 = vmatpush.bf16.msra.mxu0 %v2602
  %5214 = vmatpush.bf16.msra.mxu0 %v2596
  %5215 = vmatpush.bf16.msra.mxu0 %v2590
  %5216 = vmatpush.bf16.msra.mxu0 %v2584
  %5217 = vmatpush.bf16.msra.mxu0 %v2578
  %5218 = vmatmul.bf16.gmra.mxu0 %v758
  %v5219 = vpop.f32.mrf.mxu0
  %v5220 = vadd.f32 %v5171, %v5219
  %v5221 = vpop.f32.mrf.mxu0
  %v5222 = vadd.f32 %v5173, %v5221
  %5223 = vmatmul.bf16.gmra.mxu0 %v767
  %v5224 = vpop.f32.mrf.mxu0
  %v5225 = vadd.f32 %v5176, %v5224
  %v5226 = vpop.f32.mrf.mxu0
  %v5227 = vadd.f32 %v5178, %v5226
  %5228 = vmatmul.bf16.gmra.mxu0 %v776
  %v5229 = vpop.f32.mrf.mxu0
  %v5230 = vadd.f32 %v5181, %v5229
  %v5231 = vpop.f32.mrf.mxu0
  %v5232 = vadd.f32 %v5183, %v5231
  %5233 = vmatmul.bf16.gmra.mxu0 %v785
  %v5234 = vpop.f32.mrf.mxu0
  %v5235 = vadd.f32 %v5186, %v5234
  %v5236 = vpop.f32.mrf.mxu0
  %v5237 = vadd.f32 %v5188, %v5236
  %5238 = vmatmul.bf16.gmra.mxu0 %v794
  %v5239 = vpop.f32.mrf.mxu0
  %v5240 = vadd.f32 %v5191, %v5239
  %v5241 = vpop.f32.mrf.mxu0
  %v5242 = vadd.f32 %v5193, %v5241
  %5243 = vmatmul.bf16.gmra.mxu0 %v803
  %v5244 = vpop.f32.mrf.mxu0
  %v5245 = vadd.f32 %v5196, %v5244
  %v5246 = vpop.f32.mrf.mxu0
  %v5247 = vadd.f32 %v5198, %v5246
  %5248 = vmatmul.bf16.gmra.mxu0 %v812
  %v5249 = vpop.f32.mrf.mxu0
  %v5250 = vadd.f32 %v5201, %v5249
  %v5251 = vpop.f32.mrf.mxu0
  %v5252 = vadd.f32 %v5203, %v5251
  %5253 = vmatmul.bf16.gmra.mxu0 %v821
  %v5254 = vpop.f32.mrf.mxu0
  %v5255 = vadd.f32 %v5206, %v5254
  %v5256 = vpop.f32.mrf.mxu0
  %v5257 = vadd.f32 %v5208, %v5256
  %5258 = vdwg.mxu0
  %5259 = vmatpush.bf16.msra.mxu0 %v2237
  %5260 = vmatpush.bf16.msra.mxu0 %v2231
  %5261 = vmatpush.bf16.msra.mxu0 %v2225
  %5262 = vmatpush.bf16.msra.mxu0 %v2219
  %5263 = vmatpush.bf16.msra.mxu0 %v2213
  %5264 = vmatpush.bf16.msra.mxu0 %v2207
  %5265 = vmatpush.bf16.msra.mxu0 %v2201
  %5266 = vmatpush.bf16.msra.mxu0 %v2195
  %5267 = vmatmul.bf16.gmra.mxu0 %v750
  %v5268 = vpop.f32.mrf.mxu0
  %v5269 = vadd.f32 0.0, %v5268
  %v5270 = vpop.f32.mrf.mxu0
  %v5271 = vadd.f32 0.0, %v5270
  %5272 = vmatmul.bf16.gmra.mxu0 %v759
  %v5273 = vpop.f32.mrf.mxu0
  %v5274 = vadd.f32 0.0, %v5273
  %v5275 = vpop.f32.mrf.mxu0
  %v5276 = vadd.f32 0.0, %v5275
  %5277 = vmatmul.bf16.gmra.mxu0 %v768
  %v5278 = vpop.f32.mrf.mxu0
  %v5279 = vadd.f32 0.0, %v5278
  %v5280 = vpop.f32.mrf.mxu0
  %v5281 = vadd.f32 0.0, %v5280
  %5282 = vmatmul.bf16.gmra.mxu0 %v777
  %v5283 = vpop.f32.mrf.mxu0
  %v5284 = vadd.f32 0.0, %v5283
  %v5285 = vpop.f32.mrf.mxu0
  %v5286 = vadd.f32 0.0, %v5285
  %5287 = vmatmul.bf16.gmra.mxu0 %v786
  %v5288 = vpop.f32.mrf.mxu0
  %v5289 = vadd.f32 0.0, %v5288
  %v5290 = vpop.f32.mrf.mxu0
  %v5291 = vadd.f32 0.0, %v5290
  %5292 = vmatmul.bf16.gmra.mxu0 %v795
  %v5293 = vpop.f32.mrf.mxu0
  %v5294 = vadd.f32 0.0, %v5293
  %v5295 = vpop.f32.mrf.mxu0
  %v5296 = vadd.f32 0.0, %v5295
  %5297 = vmatmul.bf16.gmra.mxu0 %v804
  %v5298 = vpop.f32.mrf.mxu0
  %v5299 = vadd.f32 0.0, %v5298
  %v5300 = vpop.f32.mrf.mxu0
  %v5301 = vadd.f32 0.0, %v5300
  %5302 = vmatmul.bf16.gmra.mxu0 %v813
  %v5303 = vpop.f32.mrf.mxu0
  %v5304 = vadd.f32 0.0, %v5303
  %v5305 = vpop.f32.mrf.mxu0
  %v5306 = vadd.f32 0.0, %v5305
  %5307 = vdwg.mxu0
  %5308 = vmatpush.bf16.msra.mxu0 %v2285
  %5309 = vmatpush.bf16.msra.mxu0 %v2279
  %5310 = vmatpush.bf16.msra.mxu0 %v2273
  %5311 = vmatpush.bf16.msra.mxu0 %v2267
  %5312 = vmatpush.bf16.msra.mxu0 %v2261
  %5313 = vmatpush.bf16.msra.mxu0 %v2255
  %5314 = vmatpush.bf16.msra.mxu0 %v2249
  %5315 = vmatpush.bf16.msra.mxu0 %v2243
  %5316 = vmatmul.bf16.gmra.mxu0 %v751
  %v5317 = vpop.f32.mrf.mxu0
  %v5318 = vadd.f32 %v5269, %v5317
  %v5319 = vpop.f32.mrf.mxu0
  %v5320 = vadd.f32 %v5271, %v5319
  %5321 = vmatmul.bf16.gmra.mxu0 %v760
  %v5322 = vpop.f32.mrf.mxu0
  %v5323 = vadd.f32 %v5274, %v5322
  %v5324 = vpop.f32.mrf.mxu0
  %v5325 = vadd.f32 %v5276, %v5324
  %5326 = vmatmul.bf16.gmra.mxu0 %v769
  %v5327 = vpop.f32.mrf.mxu0
  %v5328 = vadd.f32 %v5279, %v5327
  %v5329 = vpop.f32.mrf.mxu0
  %v5330 = vadd.f32 %v5281, %v5329
  %5331 = vmatmul.bf16.gmra.mxu0 %v778
  %v5332 = vpop.f32.mrf.mxu0
  %v5333 = vadd.f32 %v5284, %v5332
  %v5334 = vpop.f32.mrf.mxu0
  %v5335 = vadd.f32 %v5286, %v5334
  %5336 = vmatmul.bf16.gmra.mxu0 %v787
  %v5337 = vpop.f32.mrf.mxu0
  %v5338 = vadd.f32 %v5289, %v5337
  %v5339 = vpop.f32.mrf.mxu0
  %v5340 = vadd.f32 %v5291, %v5339
  %5341 = vmatmul.bf16.gmra.mxu0 %v796
  %v5342 = vpop.f32.mrf.mxu0
  %v5343 = vadd.f32 %v5294, %v5342
  %v5344 = vpop.f32.mrf.mxu0
  %v5345 = vadd.f32 %v5296, %v5344
  %5346 = vmatmul.bf16.gmra.mxu0 %v805
  %v5347 = vpop.f32.mrf.mxu0
  %v5348 = vadd.f32 %v5299, %v5347
  %v5349 = vpop.f32.mrf.mxu0
  %v5350 = vadd.f32 %v5301, %v5349
  %5351 = vmatmul.bf16.gmra.mxu0 %v814
  %v5352 = vpop.f32.mrf.mxu0
  %v5353 = vadd.f32 %v5304, %v5352
  %v5354 = vpop.f32.mrf.mxu0
  %v5355 = vadd.f32 %v5306, %v5354
  %5356 = vdwg.mxu0
  %5357 = vmatpush.bf16.msra.mxu0 %v2333
  %5358 = vmatpush.bf16.msra.mxu0 %v2327
  %5359 = vmatpush.bf16.msra.mxu0 %v2321
  %5360 = vmatpush.bf16.msra.mxu0 %v2315
  %5361 = vmatpush.bf16.msra.mxu0 %v2309
  %5362 = vmatpush.bf16.msra.mxu0 %v2303
  %5363 = vmatpush.bf16.msra.mxu0 %v2297
  %5364 = vmatpush.bf16.msra.mxu0 %v2291
  %5365 = vmatmul.bf16.gmra.mxu0 %v752
  %v5366 = vpop.f32.mrf.mxu0
  %v5367 = vadd.f32 %v5318, %v5366
  %v5368 = vpop.f32.mrf.mxu0
  %v5369 = vadd.f32 %v5320, %v5368
  %5370 = vmatmul.bf16.gmra.mxu0 %v761
  %v5371 = vpop.f32.mrf.mxu0
  %v5372 = vadd.f32 %v5323, %v5371
  %v5373 = vpop.f32.mrf.mxu0
  %v5374 = vadd.f32 %v5325, %v5373
  %5375 = vmatmul.bf16.gmra.mxu0 %v770
  %v5376 = vpop.f32.mrf.mxu0
  %v5377 = vadd.f32 %v5328, %v5376
  %v5378 = vpop.f32.mrf.mxu0
  %v5379 = vadd.f32 %v5330, %v5378
  %5380 = vmatmul.bf16.gmra.mxu0 %v779
  %v5381 = vpop.f32.mrf.mxu0
  %v5382 = vadd.f32 %v5333, %v5381
  %v5383 = vpop.f32.mrf.mxu0
  %v5384 = vadd.f32 %v5335, %v5383
  %5385 = vmatmul.bf16.gmra.mxu0 %v788
  %v5386 = vpop.f32.mrf.mxu0
  %v5387 = vadd.f32 %v5338, %v5386
  %v5388 = vpop.f32.mrf.mxu0
  %v5389 = vadd.f32 %v5340, %v5388
  %5390 = vmatmul.bf16.gmra.mxu0 %v797
  %v5391 = vpop.f32.mrf.mxu0
  %v5392 = vadd.f32 %v5343, %v5391
  %v5393 = vpop.f32.mrf.mxu0
  %v5394 = vadd.f32 %v5345, %v5393
  %5395 = vmatmul.bf16.gmra.mxu0 %v806
  %v5396 = vpop.f32.mrf.mxu0
  %v5397 = vadd.f32 %v5348, %v5396
  %v5398 = vpop.f32.mrf.mxu0
  %v5399 = vadd.f32 %v5350, %v5398
  %5400 = vmatmul.bf16.gmra.mxu0 %v815
  %v5401 = vpop.f32.mrf.mxu0
  %v5402 = vadd.f32 %v5353, %v5401
  %v5403 = vpop.f32.mrf.mxu0
  %v5404 = vadd.f32 %v5355, %v5403
  %5405 = vdwg.mxu0
  %5406 = vmatpush.bf16.msra.mxu0 %v2381
  %5407 = vmatpush.bf16.msra.mxu0 %v2375
  %5408 = vmatpush.bf16.msra.mxu0 %v2369
  %5409 = vmatpush.bf16.msra.mxu0 %v2363
  %5410 = vmatpush.bf16.msra.mxu0 %v2357
  %5411 = vmatpush.bf16.msra.mxu0 %v2351
  %5412 = vmatpush.bf16.msra.mxu0 %v2345
  %5413 = vmatpush.bf16.msra.mxu0 %v2339
  %5414 = vmatmul.bf16.gmra.mxu0 %v753
  %v5415 = vpop.f32.mrf.mxu0
  %v5416 = vadd.f32 %v5367, %v5415
  %v5417 = vpop.f32.mrf.mxu0
  %v5418 = vadd.f32 %v5369, %v5417
  %5419 = vmatmul.bf16.gmra.mxu0 %v762
  %v5420 = vpop.f32.mrf.mxu0
  %v5421 = vadd.f32 %v5372, %v5420
  %v5422 = vpop.f32.mrf.mxu0
  %v5423 = vadd.f32 %v5374, %v5422
  %5424 = vmatmul.bf16.gmra.mxu0 %v771
  %v5425 = vpop.f32.mrf.mxu0
  %v5426 = vadd.f32 %v5377, %v5425
  %v5427 = vpop.f32.mrf.mxu0
  %v5428 = vadd.f32 %v5379, %v5427
  %5429 = vmatmul.bf16.gmra.mxu0 %v780
  %v5430 = vpop.f32.mrf.mxu0
  %v5431 = vadd.f32 %v5382, %v5430
  %v5432 = vpop.f32.mrf.mxu0
  %v5433 = vadd.f32 %v5384, %v5432
  %5434 = vmatmul.bf16.gmra.mxu0 %v789
  %v5435 = vpop.f32.mrf.mxu0
  %v5436 = vadd.f32 %v5387, %v5435
  %v5437 = vpop.f32.mrf.mxu0
  %v5438 = vadd.f32 %v5389, %v5437
  %5439 = vmatmul.bf16.gmra.mxu0 %v798
  %v5440 = vpop.f32.mrf.mxu0
  %v5441 = vadd.f32 %v5392, %v5440
  %v5442 = vpop.f32.mrf.mxu0
  %v5443 = vadd.f32 %v5394, %v5442
  %5444 = vmatmul.bf16.gmra.mxu0 %v807
  %v5445 = vpop.f32.mrf.mxu0
  %v5446 = vadd.f32 %v5397, %v5445
  %v5447 = vpop.f32.mrf.mxu0
  %v5448 = vadd.f32 %v5399, %v5447
  %5449 = vmatmul.bf16.gmra.mxu0 %v816
  %v5450 = vpop.f32.mrf.mxu0
  %v5451 = vadd.f32 %v5402, %v5450
  %v5452 = vpop.f32.mrf.mxu0
  %v5453 = vadd.f32 %v5404, %v5452
  %5454 = vdwg.mxu0
  %5455 = vmatpush.bf16.msra.mxu0 %v2429
  %5456 = vmatpush.bf16.msra.mxu0 %v2423
  %5457 = vmatpush.bf16.msra.mxu0 %v2417
  %5458 = vmatpush.bf16.msra.mxu0 %v2411
  %5459 = vmatpush.bf16.msra.mxu0 %v2405
  %5460 = vmatpush.bf16.msra.mxu0 %v2399
  %5461 = vmatpush.bf16.msra.mxu0 %v2393
  %5462 = vmatpush.bf16.msra.mxu0 %v2387
  %5463 = vmatmul.bf16.gmra.mxu0 %v754
  %v5464 = vpop.f32.mrf.mxu0
  %v5465 = vadd.f32 %v5416, %v5464
  %v5466 = vpop.f32.mrf.mxu0
  %v5467 = vadd.f32 %v5418, %v5466
  %5468 = vmatmul.bf16.gmra.mxu0 %v763
  %v5469 = vpop.f32.mrf.mxu0
  %v5470 = vadd.f32 %v5421, %v5469
  %v5471 = vpop.f32.mrf.mxu0
  %v5472 = vadd.f32 %v5423, %v5471
  %5473 = vmatmul.bf16.gmra.mxu0 %v772
  %v5474 = vpop.f32.mrf.mxu0
  %v5475 = vadd.f32 %v5426, %v5474
  %v5476 = vpop.f32.mrf.mxu0
  %v5477 = vadd.f32 %v5428, %v5476
  %5478 = vmatmul.bf16.gmra.mxu0 %v781
  %v5479 = vpop.f32.mrf.mxu0
  %v5480 = vadd.f32 %v5431, %v5479
  %v5481 = vpop.f32.mrf.mxu0
  %v5482 = vadd.f32 %v5433, %v5481
  %5483 = vmatmul.bf16.gmra.mxu0 %v790
  %v5484 = vpop.f32.mrf.mxu0
  %v5485 = vadd.f32 %v5436, %v5484
  %v5486 = vpop.f32.mrf.mxu0
  %v5487 = vadd.f32 %v5438, %v5486
  %5488 = vmatmul.bf16.gmra.mxu0 %v799
  %v5489 = vpop.f32.mrf.mxu0
  %v5490 = vadd.f32 %v5441, %v5489
  %v5491 = vpop.f32.mrf.mxu0
  %v5492 = vadd.f32 %v5443, %v5491
  %5493 = vmatmul.bf16.gmra.mxu0 %v808
  %v5494 = vpop.f32.mrf.mxu0
  %v5495 = vadd.f32 %v5446, %v5494
  %v5496 = vpop.f32.mrf.mxu0
  %v5497 = vadd.f32 %v5448, %v5496
  %5498 = vmatmul.bf16.gmra.mxu0 %v817
  %v5499 = vpop.f32.mrf.mxu0
  %v5500 = vadd.f32 %v5451, %v5499
  %v5501 = vpop.f32.mrf.mxu0
  %v5502 = vadd.f32 %v5453, %v5501
  %5503 = vdwg.mxu0
  %5504 = vmatpush.bf16.msra.mxu0 %v2477
  %5505 = vmatpush.bf16.msra.mxu0 %v2471
  %5506 = vmatpush.bf16.msra.mxu0 %v2465
  %5507 = vmatpush.bf16.msra.mxu0 %v2459
  %5508 = vmatpush.bf16.msra.mxu0 %v2453
  %5509 = vmatpush.bf16.msra.mxu0 %v2447
  %5510 = vmatpush.bf16.msra.mxu0 %v2441
  %5511 = vmatpush.bf16.msra.mxu0 %v2435
  %5512 = vmatmul.bf16.gmra.mxu0 %v755
  %v5513 = vpop.f32.mrf.mxu0
  %v5514 = vadd.f32 %v5465, %v5513
  %v5515 = vpop.f32.mrf.mxu0
  %v5516 = vadd.f32 %v5467, %v5515
  %5517 = vmatmul.bf16.gmra.mxu0 %v764
  %v5518 = vpop.f32.mrf.mxu0
  %v5519 = vadd.f32 %v5470, %v5518
  %v5520 = vpop.f32.mrf.mxu0
  %v5521 = vadd.f32 %v5472, %v5520
  %5522 = vmatmul.bf16.gmra.mxu0 %v773
  %v5523 = vpop.f32.mrf.mxu0
  %v5524 = vadd.f32 %v5475, %v5523
  %v5525 = vpop.f32.mrf.mxu0
  %v5526 = vadd.f32 %v5477, %v5525
  %5527 = vmatmul.bf16.gmra.mxu0 %v782
  %v5528 = vpop.f32.mrf.mxu0
  %v5529 = vadd.f32 %v5480, %v5528
  %v5530 = vpop.f32.mrf.mxu0
  %v5531 = vadd.f32 %v5482, %v5530
  %5532 = vmatmul.bf16.gmra.mxu0 %v791
  %v5533 = vpop.f32.mrf.mxu0
  %v5534 = vadd.f32 %v5485, %v5533
  %v5535 = vpop.f32.mrf.mxu0
  %v5536 = vadd.f32 %v5487, %v5535
  %5537 = vmatmul.bf16.gmra.mxu0 %v800
  %v5538 = vpop.f32.mrf.mxu0
  %v5539 = vadd.f32 %v5490, %v5538
  %v5540 = vpop.f32.mrf.mxu0
  %v5541 = vadd.f32 %v5492, %v5540
  %5542 = vmatmul.bf16.gmra.mxu0 %v809
  %v5543 = vpop.f32.mrf.mxu0
  %v5544 = vadd.f32 %v5495, %v5543
  %v5545 = vpop.f32.mrf.mxu0
  %v5546 = vadd.f32 %v5497, %v5545
  %5547 = vmatmul.bf16.gmra.mxu0 %v818
  %v5548 = vpop.f32.mrf.mxu0
  %v5549 = vadd.f32 %v5500, %v5548
  %v5550 = vpop.f32.mrf.mxu0
  %v5551 = vadd.f32 %v5502, %v5550
  %5552 = vdwg.mxu0
  %5553 = vmatpush.bf16.msra.mxu0 %v2525
  %5554 = vmatpush.bf16.msra.mxu0 %v2519
  %5555 = vmatpush.bf16.msra.mxu0 %v2513
  %5556 = vmatpush.bf16.msra.mxu0 %v2507
  %5557 = vmatpush.bf16.msra.mxu0 %v2501
  %5558 = vmatpush.bf16.msra.mxu0 %v2495
  %5559 = vmatpush.bf16.msra.mxu0 %v2489
  %5560 = vmatpush.bf16.msra.mxu0 %v2483
  %5561 = vmatmul.bf16.gmra.mxu0 %v756
  %v5562 = vpop.f32.mrf.mxu0
  %v5563 = vadd.f32 %v5514, %v5562
  %v5564 = vpop.f32.mrf.mxu0
  %v5565 = vadd.f32 %v5516, %v5564
  %5566 = vmatmul.bf16.gmra.mxu0 %v765
  %v5567 = vpop.f32.mrf.mxu0
  %v5568 = vadd.f32 %v5519, %v5567
  %v5569 = vpop.f32.mrf.mxu0
  %v5570 = vadd.f32 %v5521, %v5569
  %5571 = vmatmul.bf16.gmra.mxu0 %v774
  %v5572 = vpop.f32.mrf.mxu0
  %v5573 = vadd.f32 %v5524, %v5572
  %v5574 = vpop.f32.mrf.mxu0
  %v5575 = vadd.f32 %v5526, %v5574
  %5576 = vmatmul.bf16.gmra.mxu0 %v783
  %v5577 = vpop.f32.mrf.mxu0
  %v5578 = vadd.f32 %v5529, %v5577
  %v5579 = vpop.f32.mrf.mxu0
  %v5580 = vadd.f32 %v5531, %v5579
  %5581 = vmatmul.bf16.gmra.mxu0 %v792
  %v5582 = vpop.f32.mrf.mxu0
  %v5583 = vadd.f32 %v5534, %v5582
  %v5584 = vpop.f32.mrf.mxu0
  %v5585 = vadd.f32 %v5536, %v5584
  %5586 = vmatmul.bf16.gmra.mxu0 %v801
  %v5587 = vpop.f32.mrf.mxu0
  %v5588 = vadd.f32 %v5539, %v5587
  %v5589 = vpop.f32.mrf.mxu0
  %v5590 = vadd.f32 %v5541, %v5589
  %5591 = vmatmul.bf16.gmra.mxu0 %v810
  %v5592 = vpop.f32.mrf.mxu0
  %v5593 = vadd.f32 %v5544, %v5592
  %v5594 = vpop.f32.mrf.mxu0
  %v5595 = vadd.f32 %v5546, %v5594
  %5596 = vmatmul.bf16.gmra.mxu0 %v819
  %v5597 = vpop.f32.mrf.mxu0
  %v5598 = vadd.f32 %v5549, %v5597
  %v5599 = vpop.f32.mrf.mxu0
  %v5600 = vadd.f32 %v5551, %v5599
  %5601 = vdwg.mxu0
  %5602 = vmatpush.bf16.msra.mxu0 %v2573
  %5603 = vmatpush.bf16.msra.mxu0 %v2567
  %5604 = vmatpush.bf16.msra.mxu0 %v2561
  %5605 = vmatpush.bf16.msra.mxu0 %v2555
  %5606 = vmatpush.bf16.msra.mxu0 %v2549
  %5607 = vmatpush.bf16.msra.mxu0 %v2543
  %5608 = vmatpush.bf16.msra.mxu0 %v2537
  %5609 = vmatpush.bf16.msra.mxu0 %v2531
  %5610 = vmatmul.bf16.gmra.mxu0 %v757
  %v5611 = vpop.f32.mrf.mxu0
  %v5612 = vadd.f32 %v5563, %v5611
  %v5613 = vpop.f32.mrf.mxu0
  %v5614 = vadd.f32 %v5565, %v5613
  %5615 = vmatmul.bf16.gmra.mxu0 %v766
  %v5616 = vpop.f32.mrf.mxu0
  %v5617 = vadd.f32 %v5568, %v5616
  %v5618 = vpop.f32.mrf.mxu0
  %v5619 = vadd.f32 %v5570, %v5618
  %5620 = vmatmul.bf16.gmra.mxu0 %v775
  %v5621 = vpop.f32.mrf.mxu0
  %v5622 = vadd.f32 %v5573, %v5621
  %v5623 = vpop.f32.mrf.mxu0
  %v5624 = vadd.f32 %v5575, %v5623
  %5625 = vmatmul.bf16.gmra.mxu0 %v784
  %v5626 = vpop.f32.mrf.mxu0
  %v5627 = vadd.f32 %v5578, %v5626
  %v5628 = vpop.f32.mrf.mxu0
  %v5629 = vadd.f32 %v5580, %v5628
  %5630 = vmatmul.bf16.gmra.mxu0 %v793
  %v5631 = vpop.f32.mrf.mxu0
  %v5632 = vadd.f32 %v5583, %v5631
  %v5633 = vpop.f32.mrf.mxu0
  %v5634 = vadd.f32 %v5585, %v5633
  %5635 = vmatmul.bf16.gmra.mxu0 %v802
  %v5636 = vpop.f32.mrf.mxu0
  %v5637 = vadd.f32 %v5588, %v5636
  %v5638 = vpop.f32.mrf.mxu0
  %v5639 = vadd.f32 %v5590, %v5638
  %5640 = vmatmul.bf16.gmra.mxu0 %v811
  %v5641 = vpop.f32.mrf.mxu0
  %v5642 = vadd.f32 %v5593, %v5641
  %v5643 = vpop.f32.mrf.mxu0
  %v5644 = vadd.f32 %v5595, %v5643
  %5645 = vmatmul.bf16.gmra.mxu0 %v820
  %v5646 = vpop.f32.mrf.mxu0
  %v5647 = vadd.f32 %v5598, %v5646
  %v5648 = vpop.f32.mrf.mxu0
  %v5649 = vadd.f32 %v5600, %v5648
  %5650 = vdwg.mxu0
  %5651 = vmatpush.bf16.msra.mxu0 %v2621
  %5652 = vmatpush.bf16.msra.mxu0 %v2615
  %5653 = vmatpush.bf16.msra.mxu0 %v2609
  %5654 = vmatpush.bf16.msra.mxu0 %v2603
  %5655 = vmatpush.bf16.msra.mxu0 %v2597
  %5656 = vmatpush.bf16.msra.mxu0 %v2591
  %5657 = vmatpush.bf16.msra.mxu0 %v2585
  %5658 = vmatpush.bf16.msra.mxu0 %v2579
  %5659 = vmatmul.bf16.gmra.mxu0 %v758
  %v5660 = vpop.f32.mrf.mxu0
  %v5661 = vadd.f32 %v5612, %v5660
  %v5662 = vpop.f32.mrf.mxu0
  %v5663 = vadd.f32 %v5614, %v5662
  %5664 = vmatmul.bf16.gmra.mxu0 %v767
  %v5665 = vpop.f32.mrf.mxu0
  %v5666 = vadd.f32 %v5617, %v5665
  %v5667 = vpop.f32.mrf.mxu0
  %v5668 = vadd.f32 %v5619, %v5667
  %5669 = vmatmul.bf16.gmra.mxu0 %v776
  %v5670 = vpop.f32.mrf.mxu0
  %v5671 = vadd.f32 %v5622, %v5670
  %v5672 = vpop.f32.mrf.mxu0
  %v5673 = vadd.f32 %v5624, %v5672
  %5674 = vmatmul.bf16.gmra.mxu0 %v785
  %v5675 = vpop.f32.mrf.mxu0
  %v5676 = vadd.f32 %v5627, %v5675
  %v5677 = vpop.f32.mrf.mxu0
  %v5678 = vadd.f32 %v5629, %v5677
  %5679 = vmatmul.bf16.gmra.mxu0 %v794
  %v5680 = vpop.f32.mrf.mxu0
  %v5681 = vadd.f32 %v5632, %v5680
  %v5682 = vpop.f32.mrf.mxu0
  %v5683 = vadd.f32 %v5634, %v5682
  %5684 = vmatmul.bf16.gmra.mxu0 %v803
  %v5685 = vpop.f32.mrf.mxu0
  %v5686 = vadd.f32 %v5637, %v5685
  %v5687 = vpop.f32.mrf.mxu0
  %v5688 = vadd.f32 %v5639, %v5687
  %5689 = vmatmul.bf16.gmra.mxu0 %v812
  %v5690 = vpop.f32.mrf.mxu0
  %v5691 = vadd.f32 %v5642, %v5690
  %v5692 = vpop.f32.mrf.mxu0
  %v5693 = vadd.f32 %v5644, %v5692
  %5694 = vmatmul.bf16.gmra.mxu0 %v821
  %v5695 = vpop.f32.mrf.mxu0
  %v5696 = vadd.f32 %v5647, %v5695
  %v5697 = vpop.f32.mrf.mxu0
  %v5698 = vadd.f32 %v5649, %v5697
  %5699 = vdwg.mxu0
  %v5700 = vmax.f32 %v3456, %v3466
  %v5701 = vmax.f32 %v3897, %v3907
  %v5702 = vmax.f32 %v4338, %v4348
  %v5703 = vmax.f32 %v4779, %v4789
  %v5704 = vmax.f32 %v5220, %v5230
  %v5705 = vmax.f32 %v5661, %v5671
  %v5706 = vmax.f32 %v3458, %v3468
  %v5707 = vmax.f32 %v3899, %v3909
  %v5708 = vmax.f32 %v4340, %v4350
  %v5709 = vmax.f32 %v4781, %v4791
  %v5710 = vmax.f32 %v5222, %v5232
  %v5711 = vmax.f32 %v5663, %v5673
  %v5712 = vmax.f32 %v3461, %v3471
  %v5713 = vmax.f32 %v3902, %v3912
  %v5714 = vmax.f32 %v4343, %v4353
  %v5715 = vmax.f32 %v4784, %v4794
  %v5716 = vmax.f32 %v5225, %v5235
  %v5717 = vmax.f32 %v5666, %v5676
  %v5718 = vmax.f32 %v3463, %v3473
  %v5719 = vmax.f32 %v3904, %v3914
  %v5720 = vmax.f32 %v4345, %v4355
  %v5721 = vmax.f32 %v4786, %v4796
  %v5722 = vmax.f32 %v5227, %v5237
  %v5723 = vmax.f32 %v5668, %v5678
  %v5724 = vmax.f32 %v3476, %v3486
  %v5725 = vmax.f32 %v3917, %v3927
  %v5726 = vmax.f32 %v4358, %v4368
  %v5727 = vmax.f32 %v4799, %v4809
  %v5728 = vmax.f32 %v5240, %v5250
  %v5729 = vmax.f32 %v5681, %v5691
  %v5730 = vmax.f32 %v3478, %v3488
  %v5731 = vmax.f32 %v3919, %v3929
  %v5732 = vmax.f32 %v4360, %v4370
  %v5733 = vmax.f32 %v4801, %v4811
  %v5734 = vmax.f32 %v5242, %v5252
  %v5735 = vmax.f32 %v5683, %v5693
  %v5736 = vmax.f32 %v3481, %v3491
  %v5737 = vmax.f32 %v3922, %v3932
  %v5738 = vmax.f32 %v4363, %v4373
  %v5739 = vmax.f32 %v4804, %v4814
  %v5740 = vmax.f32 %v5245, %v5255
  %v5741 = vmax.f32 %v5686, %v5696
  %v5742 = vmax.f32 %v3483, %v3493
  %v5743 = vmax.f32 %v3924, %v3934
  %v5744 = vmax.f32 %v4365, %v4375
  %v5745 = vmax.f32 %v4806, %v4816
  %v5746 = vmax.f32 %v5247, %v5257
  %v5747 = vmax.f32 %v5688, %v5698
  %v5748 = vmax.f32 %v5700, %v5724
  %v5749 = vmax.f32 %v5701, %v5725
  %v5750 = vmax.f32 %v5702, %v5726
  %v5751 = vmax.f32 %v5703, %v5727
  %v5752 = vmax.f32 %v5704, %v5728
  %v5753 = vmax.f32 %v5705, %v5729
  %v5754 = vmax.f32 %v5706, %v5730
  %v5755 = vmax.f32 %v5707, %v5731
  %v5756 = vmax.f32 %v5708, %v5732
  %v5757 = vmax.f32 %v5709, %v5733
  %v5758 = vmax.f32 %v5710, %v5734
  %v5759 = vmax.f32 %v5711, %v5735
  %v5760 = vmax.f32 %v5712, %v5736
  %v5761 = vmax.f32 %v5713, %v5737
  %v5762 = vmax.f32 %v5714, %v5738
  %v5763 = vmax.f32 %v5715, %v5739
  %v5764 = vmax.f32 %v5716, %v5740
  %v5765 = vmax.f32 %v5717, %v5741
  %v5766 = vmax.f32 %v5718, %v5742
  %v5767 = vmax.f32 %v5719, %v5743
  %v5768 = vmax.f32 %v5720, %v5744
  %v5769 = vmax.f32 %v5721, %v5745
  %v5770 = vmax.f32 %v5722, %v5746
  %v5771 = vmax.f32 %v5723, %v5747
  %v5772 = vld [vmem:[%s2] sm:$0xff]
  %v5773 = vld [vmem:[%s2 + $0x8] sm:$0xff]
  %v5774 = vld [vmem:[%s2 + $0x10] sm:$0xff]
  %v5775 = vld [vmem:[%s2 + $0x18] sm:$0xff]
  %5777 = vset.pattern.permute.xlu0 0
  %5778 = vperm.xlu0 %5777, %v5772
  %v5779 = vpop.permute.xlu0 %5778
  %5782 = vset.pattern.permute.xlu0 0
  %5783 = vperm.xlu0 %5782, %v5773
  %v5784 = vpop.permute.xlu0 %5783
  %5787 = vset.pattern.permute.xlu0 0
  %5788 = vperm.xlu0 %5787, %v5774
  %v5789 = vpop.permute.xlu0 %5788
  %5792 = vset.pattern.permute.xlu0 0
  %5793 = vperm.xlu0 %5792, %v5775
  %v5794 = vpop.permute.xlu0 %5793
  %v5796 = vadd.f32 %v5748, %v5779
  %v5797 = vadd.f32 %v5749, %v5779
  %v5798 = vadd.f32 %v5750, %v5779
  %v5799 = vadd.f32 %v5751, %v5779
  %v5800 = vadd.f32 %v5752, %v5779
  %v5801 = vadd.f32 %v5753, %v5779
  %v5802 = vadd.f32 %v5754, %v5784
  %v5803 = vadd.f32 %v5755, %v5784
  %v5804 = vadd.f32 %v5756, %v5784
  %v5805 = vadd.f32 %v5757, %v5784
  %v5806 = vadd.f32 %v5758, %v5784
  %v5807 = vadd.f32 %v5759, %v5784
  %v5808 = vadd.f32 %v5760, %v5789
  %v5809 = vadd.f32 %v5761, %v5789
  %v5810 = vadd.f32 %v5762, %v5789
  %v5811 = vadd.f32 %v5763, %v5789
  %v5812 = vadd.f32 %v5764, %v5789
  %v5813 = vadd.f32 %v5765, %v5789
  %v5814 = vadd.f32 %v5766, %v5794
  %v5815 = vadd.f32 %v5767, %v5794
  %v5816 = vadd.f32 %v5768, %v5794
  %v5817 = vadd.f32 %v5769, %v5794
  %v5818 = vadd.f32 %v5770, %v5794
  %v5819 = vadd.f32 %v5771, %v5794
  %v5820 = vmax.f32 %v5796, 0.0
  %v5821 = vmax.f32 %v5797, 0.0
  %v5822 = vmax.f32 %v5798, 0.0
  %v5823 = vmax.f32 %v5799, 0.0
  %v5824 = vmax.f32 %v5800, 0.0
  %v5825 = vmax.f32 %v5801, 0.0
  %v5826 = vmax.f32 %v5802, 0.0
  %v5827 = vmax.f32 %v5803, 0.0
  %v5828 = vmax.f32 %v5804, 0.0
  %v5829 = vmax.f32 %v5805, 0.0
  %v5830 = vmax.f32 %v5806, 0.0
  %v5831 = vmax.f32 %v5807, 0.0
  %v5832 = vmax.f32 %v5808, 0.0
  %v5833 = vmax.f32 %v5809, 0.0
  %v5834 = vmax.f32 %v5810, 0.0
  %v5835 = vmax.f32 %v5811, 0.0
  %v5836 = vmax.f32 %v5812, 0.0
  %v5837 = vmax.f32 %v5813, 0.0
  %v5838 = vmax.f32 %v5814, 0.0
  %v5839 = vmax.f32 %v5815, 0.0
  %v5840 = vmax.f32 %v5816, 0.0
  %v5841 = vmax.f32 %v5817, 0.0
  %v5842 = vmax.f32 %v5818, 0.0
  %v5843 = vmax.f32 %v5819, 0.0
  %v5844 = vpack.c.bf16 %v5821, %v5820
  %v5845 = vpack.c.bf16 %v5823, %v5822
  %v5846 = vpack.c.bf16 %v5825, %v5824
  %v5847 = vpack.c.bf16 %v5827, %v5826
  %v5848 = vpack.c.bf16 %v5829, %v5828
  %v5849 = vpack.c.bf16 %v5831, %v5830
  %v5850 = vpack.c.bf16 %v5833, %v5832
  %v5851 = vpack.c.bf16 %v5835, %v5834
  %v5852 = vpack.c.bf16 %v5837, %v5836
  %v5853 = vpack.c.bf16 %v5839, %v5838
  %v5854 = vpack.c.bf16 %v5841, %v5840
  %v5855 = vpack.c.bf16 %v5843, %v5842
  %5856 = vst [vmem:[%s3] sm:$0xff] %v5844
  %5857 = vst [vmem:[%s3 + $0x8] sm:$0xff] %v5845
  %5858 = vst [vmem:[%s3 + $0x10] sm:$0xff] %v5846
  %5859 = vst [vmem:[%s3 + $0x18] sm:$0xff] %v5847
  %5860 = vst [vmem:[%s3 + $0x20] sm:$0xff] %v5848
  %5861 = vst [vmem:[%s3 + $0x28] sm:$0xff] %v5849
  %5862 = vst [vmem:[%s3 + $0x30] sm:$0xff] %v5850
  %5863 = vst [vmem:[%s3 + $0x38] sm:$0xff] %v5851
  %5864 = vst [vmem:[%s3 + $0x40] sm:$0xff] %v5852
  %5865 = vst [vmem:[%s3 + $0x48] sm:$0xff] %v5853
  %5866 = vst [vmem:[%s3 + $0x50] sm:$0xff] %v5854
  %5867 = vst [vmem:[%s3 + $0x58] sm:$0xff] %v5855
  // Predicated region
  $region14: #{client_model_forward.5} parent=0 // pred_check
    _
  $region15: #{client_model_forward.5} parent=0 // pred_check_branch
    %5869 = sbr.rel (0) target = $region17
  $region16: #{client_model_forward.5} parent=0 // pred_region
    _
  $region17: #{client_model_forward.5} parent=0 // pred_fallthru
    _
  // Predicated region
  $region18: #{client_model_forward.5} parent=0 // pred_check
    _
  $region19: #{client_model_forward.5} parent=0 // pred_check_branch
    %5871 = sbr.rel (0) target = $region21
  $region20: #{client_model_forward.5} parent=0 // pred_region
    _
  $region21: #{client_model_forward.5} parent=0 // pred_fallthru
    _

// kernel: client_model_forward.6
$region0: #{client_model_forward.6}
  #allocation0 [shape = 'u32[]', space=smem, size = 0x4, offset = 0x4, fixed_abs, tag = 'smem constant byte address 0x4 - core index']
  #allocation1 [shape = 'u32[72,128]{1,0:T(1,128)}', space=vmem, size = 0x9000, scoped, tag = 'internal scratch']
  %s0 = inlined_call_operand.vmem [shape: bf16[1152,128], index: 0, kind: input, shape index: {}]
  %s1 = inlined_call_operand.vmem [shape: bf16[128,1152], index: 1, kind: input, shape index: {}]
  %s2 = inlined_call_operand.vmem [shape: f32[32,1], index: 2, kind: input, shape index: {}]
  %s3 = inlined_call_operand.vmem [shape: bf16[32,128], index: 3, kind: output, shape index: {}]
  %s4 = sld [smem:[#allocation0]]
  $region22: #{client_model_forward.6} parent=0
    _
  %s6 = ssub.s32 1, %s4
  %s7 = scalar_select 0, %s6, %s4
  // Predicated region
  $region2: #{client_model_forward.6} parent=0 // pred_check
    _
  $region3: #{client_model_forward.6} parent=0 // pred_check_branch
    %9 = sbr.rel (0) target = $region5
  $region4: #{client_model_forward.6} parent=0 // pred_region
    _
  $region5: #{client_model_forward.6} parent=0 // pred_fallthru
    _
  // Predicated region
  $region6: #{client_model_forward.6} parent=0 // pred_check
    _
  $region7: #{client_model_forward.6} parent=0 // pred_check_branch
    %11 = sbr.rel (0) target = $region9
  $region8: #{client_model_forward.6} parent=0 // pred_region
    _
  $region9: #{client_model_forward.6} parent=0 // pred_fallthru
    _
  // Predicated region
  $region10: #{client_model_forward.6} parent=0 // pred_check
    _
  $region11: #{client_model_forward.6} parent=0 // pred_check_branch
    %13 = sbr.rel (0) target = $region13
  $region12: #{client_model_forward.6} parent=0 // pred_region
    _
  $region13: #{client_model_forward.6} parent=0 // pred_fallthru
    _
  %v14 = vld [vmem:[%s1] sm:$0xff]
  %v15 = vld [vmem:[%s1 + $0x8] sm:$0xff]
  %v16 = vld [vmem:[%s1 + $0x10] sm:$0xff]
  %v17 = vld [vmem:[%s1 + $0x18] sm:$0xff]
  %v18 = vld [vmem:[%s1 + $0x20] sm:$0xf]
  %v19 = vld [vmem:[%s1 + $0x24] sm:$0xff]
  %v20 = vld [vmem:[%s1 + $0x2c] sm:$0xff]
  %v21 = vld [vmem:[%s1 + $0x34] sm:$0xff]
  %v22 = vld [vmem:[%s1 + $0x3c] sm:$0xff]
  %v23 = vld [vmem:[%s1 + $0x44] sm:$0xf]
  %v24 = vld [vmem:[%s1 + $0x48] sm:$0xff]
  %v25 = vld [vmem:[%s1 + $0x50] sm:$0xff]
  %v26 = vld [vmem:[%s1 + $0x58] sm:$0xff]
  %v27 = vld [vmem:[%s1 + $0x60] sm:$0xff]
  %v28 = vld [vmem:[%s1 + $0x68] sm:$0xf]
  %v29 = vld [vmem:[%s1 + $0x6c] sm:$0xff]
  %v30 = vld [vmem:[%s1 + $0x74] sm:$0xff]
  %v31 = vld [vmem:[%s1 + $0x7c] sm:$0xff]
  %v32 = vld [vmem:[%s1 + $0x84] sm:$0xff]
  %v33 = vld [vmem:[%s1 + $0x8c] sm:$0xf]
  %v34 = vld [vmem:[%s1 + $0x90] sm:$0xff]
  %v35 = vld [vmem:[%s1 + $0x98] sm:$0xff]
  %v36 = vld [vmem:[%s1 + $0xa0] sm:$0xff]
  %v37 = vld [vmem:[%s1 + $0xa8] sm:$0xff]
  %v38 = vld [vmem:[%s1 + $0xb0] sm:$0xf]
  %v39 = vld [vmem:[%s1 + $0xb4] sm:$0xff]
  %v40 = vld [vmem:[%s1 + $0xbc] sm:$0xff]
  %v41 = vld [vmem:[%s1 + $0xc4] sm:$0xff]
  %v42 = vld [vmem:[%s1 + $0xcc] sm:$0xff]
  %v43 = vld [vmem:[%s1 + $0xd4] sm:$0xf]
  %v44 = vld [vmem:[%s1 + $0xd8] sm:$0xff]
  %v45 = vld [vmem:[%s1 + $0xe0] sm:$0xff]
  %v46 = vld [vmem:[%s1 + $0xe8] sm:$0xff]
  %v47 = vld [vmem:[%s1 + $0xf0] sm:$0xff]
  %v48 = vld [vmem:[%s1 + $0xf8] sm:$0xf]
  %v49 = vld [vmem:[%s1 + $0xfc] sm:$0xff]
  %v50 = vld [vmem:[%s1 + $0x104] sm:$0xff]
  %v51 = vld [vmem:[%s1 + $0x10c] sm:$0xff]
  %v52 = vld [vmem:[%s1 + $0x114] sm:$0xff]
  %v53 = vld [vmem:[%s1 + $0x11c] sm:$0xf]
  %v54 = vld [vmem:[%s1 + $0x120] sm:$0xff]
  %v55 = vld [vmem:[%s1 + $0x128] sm:$0xff]
  %v56 = vld [vmem:[%s1 + $0x130] sm:$0xff]
  %v57 = vld [vmem:[%s1 + $0x138] sm:$0xff]
  %v58 = vld [vmem:[%s1 + $0x140] sm:$0xf]
  %v59 = vld [vmem:[%s1 + $0x144] sm:$0xff]
  %v60 = vld [vmem:[%s1 + $0x14c] sm:$0xff]
  %v61 = vld [vmem:[%s1 + $0x154] sm:$0xff]
  %v62 = vld [vmem:[%s1 + $0x15c] sm:$0xff]
  %v63 = vld [vmem:[%s1 + $0x164] sm:$0xf]
  %v64 = vld [vmem:[%s1 + $0x168] sm:$0xff]
  %v65 = vld [vmem:[%s1 + $0x170] sm:$0xff]
  %v66 = vld [vmem:[%s1 + $0x178] sm:$0xff]
  %v67 = vld [vmem:[%s1 + $0x180] sm:$0xff]
  %v68 = vld [vmem:[%s1 + $0x188] sm:$0xf]
  %v69 = vld [vmem:[%s1 + $0x18c] sm:$0xff]
  %v70 = vld [vmem:[%s1 + $0x194] sm:$0xff]
  %v71 = vld [vmem:[%s1 + $0x19c] sm:$0xff]
  %v72 = vld [vmem:[%s1 + $0x1a4] sm:$0xff]
  %v73 = vld [vmem:[%s1 + $0x1ac] sm:$0xf]
  %v74 = vld [vmem:[%s1 + $0x1b0] sm:$0xff]
  %v75 = vld [vmem:[%s1 + $0x1b8] sm:$0xff]
  %v76 = vld [vmem:[%s1 + $0x1c0] sm:$0xff]
  %v77 = vld [vmem:[%s1 + $0x1c8] sm:$0xff]
  %v78 = vld [vmem:[%s1 + $0x1d0] sm:$0xf]
  %v79 = vld [vmem:[%s1 + $0x1d4] sm:$0xff]
  %v80 = vld [vmem:[%s1 + $0x1dc] sm:$0xff]
  %v81 = vld [vmem:[%s1 + $0x1e4] sm:$0xff]
  %v82 = vld [vmem:[%s1 + $0x1ec] sm:$0xff]
  %v83 = vld [vmem:[%s1 + $0x1f4] sm:$0xf]
  %v84 = vld [vmem:[%s1 + $0x1f8] sm:$0xff]
  %v85 = vld [vmem:[%s1 + $0x200] sm:$0xff]
  %v86 = vld [vmem:[%s1 + $0x208] sm:$0xff]
  %v87 = vld [vmem:[%s1 + $0x210] sm:$0xff]
  %v88 = vld [vmem:[%s1 + $0x218] sm:$0xf]
  %v89 = vld [vmem:[%s1 + $0x21c] sm:$0xff]
  %v90 = vld [vmem:[%s1 + $0x224] sm:$0xff]
  %v91 = vld [vmem:[%s1 + $0x22c] sm:$0xff]
  %v92 = vld [vmem:[%s1 + $0x234] sm:$0xff]
  %v93 = vld [vmem:[%s1 + $0x23c] sm:$0xf]
  %v94 = vld [vmem:[%s0] sm:$0xf]
  %v95 = vld [vmem:[%s0 + $0x4] sm:$0xf]
  %v96 = vld [vmem:[%s0 + $0x8] sm:$0xf]
  %v97 = vld [vmem:[%s0 + $0xc] sm:$0xf]
  %v98 = vld [vmem:[%s0 + $0x10] sm:$0xf]
  %v99 = vld [vmem:[%s0 + $0x14] sm:$0xf]
  %v100 = vld [vmem:[%s0 + $0x18] sm:$0xf]
  %v101 = vld [vmem:[%s0 + $0x1c] sm:$0xf]
  %v102 = vld [vmem:[%s0 + $0x20] sm:$0xf]
  %v103 = vld [vmem:[%s0 + $0x24] sm:$0xf]
  %v104 = vld [vmem:[%s0 + $0x28] sm:$0xf]
  %v105 = vld [vmem:[%s0 + $0x2c] sm:$0xf]
  %v106 = vld [vmem:[%s0 + $0x30] sm:$0xf]
  %v107 = vld [vmem:[%s0 + $0x34] sm:$0xf]
  %v108 = vld [vmem:[%s0 + $0x38] sm:$0xf]
  %v109 = vld [vmem:[%s0 + $0x3c] sm:$0xf]
  %v110 = vld [vmem:[%s0 + $0x40] sm:$0xf]
  %v111 = vld [vmem:[%s0 + $0x44] sm:$0xf]
  %v112 = vld [vmem:[%s0 + $0x48] sm:$0xf]
  %v113 = vld [vmem:[%s0 + $0x4c] sm:$0xf]
  %v114 = vld [vmem:[%s0 + $0x50] sm:$0xf]
  %v115 = vld [vmem:[%s0 + $0x54] sm:$0xf]
  %v116 = vld [vmem:[%s0 + $0x58] sm:$0xf]
  %v117 = vld [vmem:[%s0 + $0x5c] sm:$0xf]
  %v118 = vld [vmem:[%s0 + $0x60] sm:$0xf]
  %v119 = vld [vmem:[%s0 + $0x64] sm:$0xf]
  %v120 = vld [vmem:[%s0 + $0x68] sm:$0xf]
  %v121 = vld [vmem:[%s0 + $0x6c] sm:$0xf]
  %v122 = vld [vmem:[%s0 + $0x70] sm:$0xf]
  %v123 = vld [vmem:[%s0 + $0x74] sm:$0xf]
  %v124 = vld [vmem:[%s0 + $0x78] sm:$0xf]
  %v125 = vld [vmem:[%s0 + $0x7c] sm:$0xf]
  %v126 = vld [vmem:[%s0 + $0x80] sm:$0xf]
  %v127 = vld [vmem:[%s0 + $0x84] sm:$0xf]
  %v128 = vld [vmem:[%s0 + $0x88] sm:$0xf]
  %v129 = vld [vmem:[%s0 + $0x8c] sm:$0xf]
  %v130 = vld [vmem:[%s0 + $0x90] sm:$0xf]
  %v131 = vld [vmem:[%s0 + $0x94] sm:$0xf]
  %v132 = vld [vmem:[%s0 + $0x98] sm:$0xf]
  %v133 = vld [vmem:[%s0 + $0x9c] sm:$0xf]
  %v134 = vld [vmem:[%s0 + $0xa0] sm:$0xf]
  %v135 = vld [vmem:[%s0 + $0xa4] sm:$0xf]
  %v136 = vld [vmem:[%s0 + $0xa8] sm:$0xf]
  %v137 = vld [vmem:[%s0 + $0xac] sm:$0xf]
  %v138 = vld [vmem:[%s0 + $0xb0] sm:$0xf]
  %v139 = vld [vmem:[%s0 + $0xb4] sm:$0xf]
  %v140 = vld [vmem:[%s0 + $0xb8] sm:$0xf]
  %v141 = vld [vmem:[%s0 + $0xbc] sm:$0xf]
  %v142 = vld [vmem:[%s0 + $0xc0] sm:$0xf]
  %v143 = vld [vmem:[%s0 + $0xc4] sm:$0xf]
  %v144 = vld [vmem:[%s0 + $0xc8] sm:$0xf]
  %v145 = vld [vmem:[%s0 + $0xcc] sm:$0xf]
  %v146 = vld [vmem:[%s0 + $0xd0] sm:$0xf]
  %v147 = vld [vmem:[%s0 + $0xd4] sm:$0xf]
  %v148 = vld [vmem:[%s0 + $0xd8] sm:$0xf]
  %v149 = vld [vmem:[%s0 + $0xdc] sm:$0xf]
  %v150 = vld [vmem:[%s0 + $0xe0] sm:$0xf]
  %v151 = vld [vmem:[%s0 + $0xe4] sm:$0xf]
  %v152 = vld [vmem:[%s0 + $0xe8] sm:$0xf]
  %v153 = vld [vmem:[%s0 + $0xec] sm:$0xf]
  %v154 = vld [vmem:[%s0 + $0xf0] sm:$0xf]
  %v155 = vld [vmem:[%s0 + $0xf4] sm:$0xf]
  %v156 = vld [vmem:[%s0 + $0xf8] sm:$0xf]
  %v157 = vld [vmem:[%s0 + $0xfc] sm:$0xf]
  %v158 = vld [vmem:[%s0 + $0x100] sm:$0xf]
  %v159 = vld [vmem:[%s0 + $0x104] sm:$0xf]
  %v160 = vld [vmem:[%s0 + $0x108] sm:$0xf]
  %v161 = vld [vmem:[%s0 + $0x10c] sm:$0xf]
  %v162 = vld [vmem:[%s0 + $0x110] sm:$0xf]
  %v163 = vld [vmem:[%s0 + $0x114] sm:$0xf]
  %v164 = vld [vmem:[%s0 + $0x118] sm:$0xf]
  %v165 = vld [vmem:[%s0 + $0x11c] sm:$0xf]
  %v166 = vld [vmem:[%s0 + $0x120] sm:$0xf]
  %v167 = vld [vmem:[%s0 + $0x124] sm:$0xf]
  %v168 = vld [vmem:[%s0 + $0x128] sm:$0xf]
  %v169 = vld [vmem:[%s0 + $0x12c] sm:$0xf]
  %v170 = vld [vmem:[%s0 + $0x130] sm:$0xf]
  %v171 = vld [vmem:[%s0 + $0x134] sm:$0xf]
  %v172 = vld [vmem:[%s0 + $0x138] sm:$0xf]
  %v173 = vld [vmem:[%s0 + $0x13c] sm:$0xf]
  %v174 = vld [vmem:[%s0 + $0x140] sm:$0xf]
  %v175 = vld [vmem:[%s0 + $0x144] sm:$0xf]
  %v176 = vld [vmem:[%s0 + $0x148] sm:$0xf]
  %v177 = vld [vmem:[%s0 + $0x14c] sm:$0xf]
  %v178 = vld [vmem:[%s0 + $0x150] sm:$0xf]
  %v179 = vld [vmem:[%s0 + $0x154] sm:$0xf]
  %v180 = vld [vmem:[%s0 + $0x158] sm:$0xf]
  %v181 = vld [vmem:[%s0 + $0x15c] sm:$0xf]
  %v182 = vld [vmem:[%s0 + $0x160] sm:$0xf]
  %v183 = vld [vmem:[%s0 + $0x164] sm:$0xf]
  %v184 = vld [vmem:[%s0 + $0x168] sm:$0xf]
  %v185 = vld [vmem:[%s0 + $0x16c] sm:$0xf]
  %v186 = vld [vmem:[%s0 + $0x170] sm:$0xf]
  %v187 = vld [vmem:[%s0 + $0x174] sm:$0xf]
  %v188 = vld [vmem:[%s0 + $0x178] sm:$0xf]
  %v189 = vld [vmem:[%s0 + $0x17c] sm:$0xf]
  %v190 = vld [vmem:[%s0 + $0x180] sm:$0xf]
  %v191 = vld [vmem:[%s0 + $0x184] sm:$0xf]
  %v192 = vld [vmem:[%s0 + $0x188] sm:$0xf]
  %v193 = vld [vmem:[%s0 + $0x18c] sm:$0xf]
  %v194 = vld [vmem:[%s0 + $0x190] sm:$0xf]
  %v195 = vld [vmem:[%s0 + $0x194] sm:$0xf]
  %v196 = vld [vmem:[%s0 + $0x198] sm:$0xf]
  %v197 = vld [vmem:[%s0 + $0x19c] sm:$0xf]
  %v198 = vld [vmem:[%s0 + $0x1a0] sm:$0xf]
  %v199 = vld [vmem:[%s0 + $0x1a4] sm:$0xf]
  %v200 = vld [vmem:[%s0 + $0x1a8] sm:$0xf]
  %v201 = vld [vmem:[%s0 + $0x1ac] sm:$0xf]
  %v202 = vld [vmem:[%s0 + $0x1b0] sm:$0xf]
  %v203 = vld [vmem:[%s0 + $0x1b4] sm:$0xf]
  %v204 = vld [vmem:[%s0 + $0x1b8] sm:$0xf]
  %v205 = vld [vmem:[%s0 + $0x1bc] sm:$0xf]
  %v206 = vld [vmem:[%s0 + $0x1c0] sm:$0xf]
  %v207 = vld [vmem:[%s0 + $0x1c4] sm:$0xf]
  %v208 = vld [vmem:[%s0 + $0x1c8] sm:$0xf]
  %v209 = vld [vmem:[%s0 + $0x1cc] sm:$0xf]
  %v210 = vld [vmem:[%s0 + $0x1d0] sm:$0xf]
  %v211 = vld [vmem:[%s0 + $0x1d4] sm:$0xf]
  %v212 = vld [vmem:[%s0 + $0x1d8] sm:$0xf]
  %v213 = vld [vmem:[%s0 + $0x1dc] sm:$0xf]
  %v214 = vld [vmem:[%s0 + $0x1e0] sm:$0xf]
  %v215 = vld [vmem:[%s0 + $0x1e4] sm:$0xf]
  %v216 = vld [vmem:[%s0 + $0x1e8] sm:$0xf]
  %v217 = vld [vmem:[%s0 + $0x1ec] sm:$0xf]
  %v218 = vld [vmem:[%s0 + $0x1f0] sm:$0xf]
  %v219 = vld [vmem:[%s0 + $0x1f4] sm:$0xf]
  %v220 = vld [vmem:[%s0 + $0x1f8] sm:$0xf]
  %v221 = vld [vmem:[%s0 + $0x1fc] sm:$0xf]
  %v222 = vld [vmem:[%s0 + $0x200] sm:$0xf]
  %v223 = vld [vmem:[%s0 + $0x204] sm:$0xf]
  %v224 = vld [vmem:[%s0 + $0x208] sm:$0xf]
  %v225 = vld [vmem:[%s0 + $0x20c] sm:$0xf]
  %v226 = vld [vmem:[%s0 + $0x210] sm:$0xf]
  %v227 = vld [vmem:[%s0 + $0x214] sm:$0xf]
  %v228 = vld [vmem:[%s0 + $0x218] sm:$0xf]
  %v229 = vld [vmem:[%s0 + $0x21c] sm:$0xf]
  %v230 = vld [vmem:[%s0 + $0x220] sm:$0xf]
  %v231 = vld [vmem:[%s0 + $0x224] sm:$0xf]
  %v232 = vld [vmem:[%s0 + $0x228] sm:$0xf]
  %v233 = vld [vmem:[%s0 + $0x22c] sm:$0xf]
  %v234 = vld [vmem:[%s0 + $0x230] sm:$0xf]
  %v235 = vld [vmem:[%s0 + $0x234] sm:$0xf]
  %v236 = vld [vmem:[%s0 + $0x238] sm:$0xf]
  %v237 = vld [vmem:[%s0 + $0x23c] sm:$0xf]
  %v318 = vunpack.c.l.b16 %v14
  %v319 = vunpack.c.h.b16 %v14
  %v320 = vunpack.c.l.b16 %v15
  %v321 = vunpack.c.h.b16 %v15
  %v322 = vunpack.c.l.b16 %v16
  %v323 = vunpack.c.h.b16 %v16
  %v324 = vunpack.c.l.b16 %v17
  %v325 = vunpack.c.h.b16 %v17
  %v326 = vunpack.c.l.b16 %v18
  %v327 = vunpack.c.l.b16 %v19
  %v328 = vunpack.c.h.b16 %v19
  %v329 = vunpack.c.l.b16 %v20
  %v330 = vunpack.c.h.b16 %v20
  %v331 = vunpack.c.l.b16 %v21
  %v332 = vunpack.c.h.b16 %v21
  %v333 = vunpack.c.l.b16 %v22
  %v334 = vunpack.c.h.b16 %v22
  %v335 = vunpack.c.l.b16 %v23
  %v336 = vunpack.c.l.b16 %v24
  %v337 = vunpack.c.h.b16 %v24
  %v338 = vunpack.c.l.b16 %v25
  %v339 = vunpack.c.h.b16 %v25
  %v340 = vunpack.c.l.b16 %v26
  %v341 = vunpack.c.h.b16 %v26
  %v342 = vunpack.c.l.b16 %v27
  %v343 = vunpack.c.h.b16 %v27
  %v344 = vunpack.c.l.b16 %v28
  %v345 = vunpack.c.l.b16 %v29
  %v346 = vunpack.c.h.b16 %v29
  %v347 = vunpack.c.l.b16 %v30
  %v348 = vunpack.c.h.b16 %v30
  %v349 = vunpack.c.l.b16 %v31
  %v350 = vunpack.c.h.b16 %v31
  %v351 = vunpack.c.l.b16 %v32
  %v352 = vunpack.c.h.b16 %v32
  %v353 = vunpack.c.l.b16 %v33
  %v354 = vunpack.c.l.b16 %v34
  %v355 = vunpack.c.h.b16 %v34
  %v356 = vunpack.c.l.b16 %v35
  %v357 = vunpack.c.h.b16 %v35
  %v358 = vunpack.c.l.b16 %v36
  %v359 = vunpack.c.h.b16 %v36
  %v360 = vunpack.c.l.b16 %v37
  %v361 = vunpack.c.h.b16 %v37
  %v362 = vunpack.c.l.b16 %v38
  %v363 = vunpack.c.l.b16 %v39
  %v364 = vunpack.c.h.b16 %v39
  %v365 = vunpack.c.l.b16 %v40
  %v366 = vunpack.c.h.b16 %v40
  %v367 = vunpack.c.l.b16 %v41
  %v368 = vunpack.c.h.b16 %v41
  %v369 = vunpack.c.l.b16 %v42
  %v370 = vunpack.c.h.b16 %v42
  %v371 = vunpack.c.l.b16 %v43
  %v372 = vunpack.c.l.b16 %v44
  %v373 = vunpack.c.h.b16 %v44
  %v374 = vunpack.c.l.b16 %v45
  %v375 = vunpack.c.h.b16 %v45
  %v376 = vunpack.c.l.b16 %v46
  %v377 = vunpack.c.h.b16 %v46
  %v378 = vunpack.c.l.b16 %v47
  %v379 = vunpack.c.h.b16 %v47
  %v380 = vunpack.c.l.b16 %v48
  %v381 = vunpack.c.l.b16 %v49
  %v382 = vunpack.c.h.b16 %v49
  %v383 = vunpack.c.l.b16 %v50
  %v384 = vunpack.c.h.b16 %v50
  %v385 = vunpack.c.l.b16 %v51
  %v386 = vunpack.c.h.b16 %v51
  %v387 = vunpack.c.l.b16 %v52
  %v388 = vunpack.c.h.b16 %v52
  %v389 = vunpack.c.l.b16 %v53
  %v390 = vunpack.c.l.b16 %v54
  %v391 = vunpack.c.h.b16 %v54
  %v392 = vunpack.c.l.b16 %v55
  %v393 = vunpack.c.h.b16 %v55
  %v394 = vunpack.c.l.b16 %v56
  %v395 = vunpack.c.h.b16 %v56
  %v396 = vunpack.c.l.b16 %v57
  %v397 = vunpack.c.h.b16 %v57
  %v398 = vunpack.c.l.b16 %v58
  %v399 = vunpack.c.l.b16 %v59
  %v400 = vunpack.c.h.b16 %v59
  %v401 = vunpack.c.l.b16 %v60
  %v402 = vunpack.c.h.b16 %v60
  %v403 = vunpack.c.l.b16 %v61
  %v404 = vunpack.c.h.b16 %v61
  %v405 = vunpack.c.l.b16 %v62
  %v406 = vunpack.c.h.b16 %v62
  %v407 = vunpack.c.l.b16 %v63
  %v408 = vunpack.c.l.b16 %v64
  %v409 = vunpack.c.h.b16 %v64
  %v410 = vunpack.c.l.b16 %v65
  %v411 = vunpack.c.h.b16 %v65
  %v412 = vunpack.c.l.b16 %v66
  %v413 = vunpack.c.h.b16 %v66
  %v414 = vunpack.c.l.b16 %v67
  %v415 = vunpack.c.h.b16 %v67
  %v416 = vunpack.c.l.b16 %v68
  %v417 = vunpack.c.l.b16 %v69
  %v418 = vunpack.c.h.b16 %v69
  %v419 = vunpack.c.l.b16 %v70
  %v420 = vunpack.c.h.b16 %v70
  %v421 = vunpack.c.l.b16 %v71
  %v422 = vunpack.c.h.b16 %v71
  %v423 = vunpack.c.l.b16 %v72
  %v424 = vunpack.c.h.b16 %v72
  %v425 = vunpack.c.l.b16 %v73
  %v426 = vunpack.c.l.b16 %v74
  %v427 = vunpack.c.h.b16 %v74
  %v428 = vunpack.c.l.b16 %v75
  %v429 = vunpack.c.h.b16 %v75
  %v430 = vunpack.c.l.b16 %v76
  %v431 = vunpack.c.h.b16 %v76
  %v432 = vunpack.c.l.b16 %v77
  %v433 = vunpack.c.h.b16 %v77
  %v434 = vunpack.c.l.b16 %v78
  %v435 = vunpack.c.l.b16 %v79
  %v436 = vunpack.c.h.b16 %v79
  %v437 = vunpack.c.l.b16 %v80
  %v438 = vunpack.c.h.b16 %v80
  %v439 = vunpack.c.l.b16 %v81
  %v440 = vunpack.c.h.b16 %v81
  %v441 = vunpack.c.l.b16 %v82
  %v442 = vunpack.c.h.b16 %v82
  %v443 = vunpack.c.l.b16 %v83
  %v444 = vunpack.c.l.b16 %v84
  %v445 = vunpack.c.h.b16 %v84
  %v446 = vunpack.c.l.b16 %v85
  %v447 = vunpack.c.h.b16 %v85
  %v448 = vunpack.c.l.b16 %v86
  %v449 = vunpack.c.h.b16 %v86
  %v450 = vunpack.c.l.b16 %v87
  %v451 = vunpack.c.h.b16 %v87
  %v452 = vunpack.c.l.b16 %v88
  %v453 = vunpack.c.l.b16 %v89
  %v454 = vunpack.c.h.b16 %v89
  %v455 = vunpack.c.l.b16 %v90
  %v456 = vunpack.c.h.b16 %v90
  %v457 = vunpack.c.l.b16 %v91
  %v458 = vunpack.c.h.b16 %v91
  %v459 = vunpack.c.l.b16 %v92
  %v460 = vunpack.c.h.b16 %v92
  %v461 = vunpack.c.l.b16 %v93
  %v462 = vpack.c.b16 %v327, %v318
  %v463 = vpack.c.b16 %v328, %v319
  %v464 = vpack.c.b16 %v329, %v320
  %v465 = vpack.c.b16 %v330, %v321
  %v466 = vpack.c.b16 %v331, %v322
  %v467 = vpack.c.b16 %v332, %v323
  %v468 = vpack.c.b16 %v333, %v324
  %v469 = vpack.c.b16 %v334, %v325
  %v470 = vpack.c.b16 %v335, %v326
  %v471 = vpack.c.b16 %v345, %v336
  %v472 = vpack.c.b16 %v346, %v337
  %v473 = vpack.c.b16 %v347, %v338
  %v474 = vpack.c.b16 %v348, %v339
  %v475 = vpack.c.b16 %v349, %v340
  %v476 = vpack.c.b16 %v350, %v341
  %v477 = vpack.c.b16 %v351, %v342
  %v478 = vpack.c.b16 %v352, %v343
  %v479 = vpack.c.b16 %v353, %v344
  %v480 = vpack.c.b16 %v363, %v354
  %v481 = vpack.c.b16 %v364, %v355
  %v482 = vpack.c.b16 %v365, %v356
  %v483 = vpack.c.b16 %v366, %v357
  %v484 = vpack.c.b16 %v367, %v358
  %v485 = vpack.c.b16 %v368, %v359
  %v486 = vpack.c.b16 %v369, %v360
  %v487 = vpack.c.b16 %v370, %v361
  %v488 = vpack.c.b16 %v371, %v362
  %v489 = vpack.c.b16 %v381, %v372
  %v490 = vpack.c.b16 %v382, %v373
  %v491 = vpack.c.b16 %v383, %v374
  %v492 = vpack.c.b16 %v384, %v375
  %v493 = vpack.c.b16 %v385, %v376
  %v494 = vpack.c.b16 %v386, %v377
  %v495 = vpack.c.b16 %v387, %v378
  %v496 = vpack.c.b16 %v388, %v379
  %v497 = vpack.c.b16 %v389, %v380
  %v498 = vpack.c.b16 %v399, %v390
  %v499 = vpack.c.b16 %v400, %v391
  %v500 = vpack.c.b16 %v401, %v392
  %v501 = vpack.c.b16 %v402, %v393
  %v502 = vpack.c.b16 %v403, %v394
  %v503 = vpack.c.b16 %v404, %v395
  %v504 = vpack.c.b16 %v405, %v396
  %v505 = vpack.c.b16 %v406, %v397
  %v506 = vpack.c.b16 %v407, %v398
  %v507 = vpack.c.b16 %v417, %v408
  %v508 = vpack.c.b16 %v418, %v409
  %v509 = vpack.c.b16 %v419, %v410
  %v510 = vpack.c.b16 %v420, %v411
  %v511 = vpack.c.b16 %v421, %v412
  %v512 = vpack.c.b16 %v422, %v413
  %v513 = vpack.c.b16 %v423, %v414
  %v514 = vpack.c.b16 %v424, %v415
  %v515 = vpack.c.b16 %v425, %v416
  %v516 = vpack.c.b16 %v435, %v426
  %v517 = vpack.c.b16 %v436, %v427
  %v518 = vpack.c.b16 %v437, %v428
  %v519 = vpack.c.b16 %v438, %v429
  %v520 = vpack.c.b16 %v439, %v430
  %v521 = vpack.c.b16 %v440, %v431
  %v522 = vpack.c.b16 %v441, %v432
  %v523 = vpack.c.b16 %v442, %v433
  %v524 = vpack.c.b16 %v443, %v434
  %v525 = vpack.c.b16 %v453, %v444
  %v526 = vpack.c.b16 %v454, %v445
  %v527 = vpack.c.b16 %v455, %v446
  %v528 = vpack.c.b16 %v456, %v447
  %v529 = vpack.c.b16 %v457, %v448
  %v530 = vpack.c.b16 %v458, %v449
  %v531 = vpack.c.b16 %v459, %v450
  %v532 = vpack.c.b16 %v460, %v451
  %v533 = vpack.c.b16 %v461, %v452
  %v750 = vunpack.c.l.b16 %v94
  %v751 = vunpack.c.l.b16 %v95
  %v752 = vunpack.c.l.b16 %v96
  %v753 = vunpack.c.l.b16 %v97
  %v754 = vunpack.c.l.b16 %v98
  %v755 = vunpack.c.l.b16 %v99
  %v756 = vunpack.c.l.b16 %v100
  %v757 = vunpack.c.l.b16 %v101
  %v758 = vunpack.c.l.b16 %v102
  %v759 = vunpack.c.l.b16 %v103
  %v760 = vunpack.c.l.b16 %v104
  %v761 = vunpack.c.l.b16 %v105
  %v762 = vunpack.c.l.b16 %v106
  %v763 = vunpack.c.l.b16 %v107
  %v764 = vunpack.c.l.b16 %v108
  %v765 = vunpack.c.l.b16 %v109
  %v766 = vunpack.c.l.b16 %v110
  %v767 = vunpack.c.l.b16 %v111
  %v768 = vunpack.c.l.b16 %v112
  %v769 = vunpack.c.l.b16 %v113
  %v770 = vunpack.c.l.b16 %v114
  %v771 = vunpack.c.l.b16 %v115
  %v772 = vunpack.c.l.b16 %v116
  %v773 = vunpack.c.l.b16 %v117
  %v774 = vunpack.c.l.b16 %v118
  %v775 = vunpack.c.l.b16 %v119
  %v776 = vunpack.c.l.b16 %v120
  %v777 = vunpack.c.l.b16 %v121
  %v778 = vunpack.c.l.b16 %v122
  %v779 = vunpack.c.l.b16 %v123
  %v780 = vunpack.c.l.b16 %v124
  %v781 = vunpack.c.l.b16 %v125
  %v782 = vunpack.c.l.b16 %v126
  %v783 = vunpack.c.l.b16 %v127
  %v784 = vunpack.c.l.b16 %v128
  %v785 = vunpack.c.l.b16 %v129
  %v786 = vunpack.c.l.b16 %v130
  %v787 = vunpack.c.l.b16 %v131
  %v788 = vunpack.c.l.b16 %v132
  %v789 = vunpack.c.l.b16 %v133
  %v790 = vunpack.c.l.b16 %v134
  %v791 = vunpack.c.l.b16 %v135
  %v792 = vunpack.c.l.b16 %v136
  %v793 = vunpack.c.l.b16 %v137
  %v794 = vunpack.c.l.b16 %v138
  %v795 = vunpack.c.l.b16 %v139
  %v796 = vunpack.c.l.b16 %v140
  %v797 = vunpack.c.l.b16 %v141
  %v798 = vunpack.c.l.b16 %v142
  %v799 = vunpack.c.l.b16 %v143
  %v800 = vunpack.c.l.b16 %v144
  %v801 = vunpack.c.l.b16 %v145
  %v802 = vunpack.c.l.b16 %v146
  %v803 = vunpack.c.l.b16 %v147
  %v804 = vunpack.c.l.b16 %v148
  %v805 = vunpack.c.l.b16 %v149
  %v806 = vunpack.c.l.b16 %v150
  %v807 = vunpack.c.l.b16 %v151
  %v808 = vunpack.c.l.b16 %v152
  %v809 = vunpack.c.l.b16 %v153
  %v810 = vunpack.c.l.b16 %v154
  %v811 = vunpack.c.l.b16 %v155
  %v812 = vunpack.c.l.b16 %v156
  %v813 = vunpack.c.l.b16 %v157
  %v814 = vunpack.c.l.b16 %v158
  %v815 = vunpack.c.l.b16 %v159
  %v816 = vunpack.c.l.b16 %v160
  %v817 = vunpack.c.l.b16 %v161
  %v818 = vunpack.c.l.b16 %v162
  %v819 = vunpack.c.l.b16 %v163
  %v820 = vunpack.c.l.b16 %v164
  %v821 = vunpack.c.l.b16 %v165
  %v822 = vunpack.c.l.b16 %v166
  %v823 = vunpack.c.l.b16 %v167
  %v824 = vunpack.c.l.b16 %v168
  %v825 = vunpack.c.l.b16 %v169
  %v826 = vunpack.c.l.b16 %v170
  %v827 = vunpack.c.l.b16 %v171
  %v828 = vunpack.c.l.b16 %v172
  %v829 = vunpack.c.l.b16 %v173
  %v830 = vunpack.c.l.b16 %v174
  %v831 = vunpack.c.l.b16 %v175
  %v832 = vunpack.c.l.b16 %v176
  %v833 = vunpack.c.l.b16 %v177
  %v834 = vunpack.c.l.b16 %v178
  %v835 = vunpack.c.l.b16 %v179
  %v836 = vunpack.c.l.b16 %v180
  %v837 = vunpack.c.l.b16 %v181
  %v838 = vunpack.c.l.b16 %v182
  %v839 = vunpack.c.l.b16 %v183
  %v840 = vunpack.c.l.b16 %v184
  %v841 = vunpack.c.l.b16 %v185
  %v842 = vunpack.c.l.b16 %v186
  %v843 = vunpack.c.l.b16 %v187
  %v844 = vunpack.c.l.b16 %v188
  %v845 = vunpack.c.l.b16 %v189
  %v846 = vunpack.c.l.b16 %v190
  %v847 = vunpack.c.l.b16 %v191
  %v848 = vunpack.c.l.b16 %v192
  %v849 = vunpack.c.l.b16 %v193
  %v850 = vunpack.c.l.b16 %v194
  %v851 = vunpack.c.l.b16 %v195
  %v852 = vunpack.c.l.b16 %v196
  %v853 = vunpack.c.l.b16 %v197
  %v854 = vunpack.c.l.b16 %v198
  %v855 = vunpack.c.l.b16 %v199
  %v856 = vunpack.c.l.b16 %v200
  %v857 = vunpack.c.l.b16 %v201
  %v858 = vunpack.c.l.b16 %v202
  %v859 = vunpack.c.l.b16 %v203
  %v860 = vunpack.c.l.b16 %v204
  %v861 = vunpack.c.l.b16 %v205
  %v862 = vunpack.c.l.b16 %v206
  %v863 = vunpack.c.l.b16 %v207
  %v864 = vunpack.c.l.b16 %v208
  %v865 = vunpack.c.l.b16 %v209
  %v866 = vunpack.c.l.b16 %v210
  %v867 = vunpack.c.l.b16 %v211
  %v868 = vunpack.c.l.b16 %v212
  %v869 = vunpack.c.l.b16 %v213
  %v870 = vunpack.c.l.b16 %v214
  %v871 = vunpack.c.l.b16 %v215
  %v872 = vunpack.c.l.b16 %v216
  %v873 = vunpack.c.l.b16 %v217
  %v874 = vunpack.c.l.b16 %v218
  %v875 = vunpack.c.l.b16 %v219
  %v876 = vunpack.c.l.b16 %v220
  %v877 = vunpack.c.l.b16 %v221
  %v878 = vunpack.c.l.b16 %v222
  %v879 = vunpack.c.l.b16 %v223
  %v880 = vunpack.c.l.b16 %v224
  %v881 = vunpack.c.l.b16 %v225
  %v882 = vunpack.c.l.b16 %v226
  %v883 = vunpack.c.l.b16 %v227
  %v884 = vunpack.c.l.b16 %v228
  %v885 = vunpack.c.l.b16 %v229
  %v886 = vunpack.c.l.b16 %v230
  %v887 = vunpack.c.l.b16 %v231
  %v888 = vunpack.c.l.b16 %v232
  %v889 = vunpack.c.l.b16 %v233
  %v890 = vunpack.c.l.b16 %v234
  %v891 = vunpack.c.l.b16 %v235
  %v892 = vunpack.c.l.b16 %v236
  %v893 = vunpack.c.l.b16 %v237
  %v894 = vpack.c.b16 %v751, %v750
  %v895 = vpack.c.b16 %v753, %v752
  %v896 = vpack.c.b16 %v755, %v754
  %v897 = vpack.c.b16 %v757, %v756
  %v898 = vpack.c.b16 %v759, %v758
  %v899 = vpack.c.b16 %v761, %v760
  %v900 = vpack.c.b16 %v763, %v762
  %v901 = vpack.c.b16 %v765, %v764
  %v902 = vpack.c.b16 %v767, %v766
  %v903 = vpack.c.b16 %v769, %v768
  %v904 = vpack.c.b16 %v771, %v770
  %v905 = vpack.c.b16 %v773, %v772
  %v906 = vpack.c.b16 %v775, %v774
  %v907 = vpack.c.b16 %v777, %v776
  %v908 = vpack.c.b16 %v779, %v778
  %v909 = vpack.c.b16 %v781, %v780
  %v910 = vpack.c.b16 %v783, %v782
  %v911 = vpack.c.b16 %v785, %v784
  %v912 = vpack.c.b16 %v787, %v786
  %v913 = vpack.c.b16 %v789, %v788
  %v914 = vpack.c.b16 %v791, %v790
  %v915 = vpack.c.b16 %v793, %v792
  %v916 = vpack.c.b16 %v795, %v794
  %v917 = vpack.c.b16 %v797, %v796
  %v918 = vpack.c.b16 %v799, %v798
  %v919 = vpack.c.b16 %v801, %v800
  %v920 = vpack.c.b16 %v803, %v802
  %v921 = vpack.c.b16 %v805, %v804
  %v922 = vpack.c.b16 %v807, %v806
  %v923 = vpack.c.b16 %v809, %v808
  %v924 = vpack.c.b16 %v811, %v810
  %v925 = vpack.c.b16 %v813, %v812
  %v926 = vpack.c.b16 %v815, %v814
  %v927 = vpack.c.b16 %v817, %v816
  %v928 = vpack.c.b16 %v819, %v818
  %v929 = vpack.c.b16 %v821, %v820
  %v930 = vpack.c.b16 %v823, %v822
  %v931 = vpack.c.b16 %v825, %v824
  %v932 = vpack.c.b16 %v827, %v826
  %v933 = vpack.c.b16 %v829, %v828
  %v934 = vpack.c.b16 %v831, %v830
  %v935 = vpack.c.b16 %v833, %v832
  %v936 = vpack.c.b16 %v835, %v834
  %v937 = vpack.c.b16 %v837, %v836
  %v938 = vpack.c.b16 %v839, %v838
  %v939 = vpack.c.b16 %v841, %v840
  %v940 = vpack.c.b16 %v843, %v842
  %v941 = vpack.c.b16 %v845, %v844
  %v942 = vpack.c.b16 %v847, %v846
  %v943 = vpack.c.b16 %v849, %v848
  %v944 = vpack.c.b16 %v851, %v850
  %v945 = vpack.c.b16 %v853, %v852
  %v946 = vpack.c.b16 %v855, %v854
  %v947 = vpack.c.b16 %v857, %v856
  %v948 = vpack.c.b16 %v859, %v858
  %v949 = vpack.c.b16 %v861, %v860
  %v950 = vpack.c.b16 %v863, %v862
  %v951 = vpack.c.b16 %v865, %v864
  %v952 = vpack.c.b16 %v867, %v866
  %v953 = vpack.c.b16 %v869, %v868
  %v954 = vpack.c.b16 %v871, %v870
  %v955 = vpack.c.b16 %v873, %v872
  %v956 = vpack.c.b16 %v875, %v874
  %v957 = vpack.c.b16 %v877, %v876
  %v958 = vpack.c.b16 %v879, %v878
  %v959 = vpack.c.b16 %v881, %v880
  %v960 = vpack.c.b16 %v883, %v882
  %v961 = vpack.c.b16 %v885, %v884
  %v962 = vpack.c.b16 %v887, %v886
  %v963 = vpack.c.b16 %v889, %v888
  %v964 = vpack.c.b16 %v891, %v890
  %v965 = vpack.c.b16 %v893, %v892
  %1038 = vmatpush.bf16.msra.mxu0 %v901
  %1039 = vmatpush.bf16.msra.mxu0 %v900
  %1040 = vmatpush.bf16.msra.mxu0 %v899
  %1041 = vmatpush.bf16.msra.mxu0 %v898
  %1042 = vmatpush.bf16.msra.mxu0 %v897
  %1043 = vmatpush.bf16.msra.mxu0 %v896
  %1044 = vmatpush.bf16.msra.mxu0 %v895
  %1045 = vmatpush.bf16.msra.mxu0 %v894
  %1046 = vmatmul.bf16.gmra.mxu0 %v462
  %v1047 = vpop.f32.mrf.mxu0
  %v1048 = vadd.f32 0.0, %v1047
  %v1049 = vpop.f32.mrf.mxu0
  %v1050 = vadd.f32 0.0, %v1049
  %1051 = vmatmul.bf16.gmra.mxu0 %v471
  %v1052 = vpop.f32.mrf.mxu0
  %v1053 = vadd.f32 0.0, %v1052
  %v1054 = vpop.f32.mrf.mxu0
  %v1055 = vadd.f32 0.0, %v1054
  %1056 = vmatmul.bf16.gmra.mxu0 %v480
  %v1057 = vpop.f32.mrf.mxu0
  %v1058 = vadd.f32 0.0, %v1057
  %v1059 = vpop.f32.mrf.mxu0
  %v1060 = vadd.f32 0.0, %v1059
  %1061 = vmatmul.bf16.gmra.mxu0 %v489
  %v1062 = vpop.f32.mrf.mxu0
  %v1063 = vadd.f32 0.0, %v1062
  %v1064 = vpop.f32.mrf.mxu0
  %v1065 = vadd.f32 0.0, %v1064
  %1066 = vmatmul.bf16.gmra.mxu0 %v498
  %v1067 = vpop.f32.mrf.mxu0
  %v1068 = vadd.f32 0.0, %v1067
  %v1069 = vpop.f32.mrf.mxu0
  %v1070 = vadd.f32 0.0, %v1069
  %1071 = vmatmul.bf16.gmra.mxu0 %v507
  %v1072 = vpop.f32.mrf.mxu0
  %v1073 = vadd.f32 0.0, %v1072
  %v1074 = vpop.f32.mrf.mxu0
  %v1075 = vadd.f32 0.0, %v1074
  %1076 = vmatmul.bf16.gmra.mxu0 %v516
  %v1077 = vpop.f32.mrf.mxu0
  %v1078 = vadd.f32 0.0, %v1077
  %v1079 = vpop.f32.mrf.mxu0
  %v1080 = vadd.f32 0.0, %v1079
  %1081 = vmatmul.bf16.gmra.mxu0 %v525
  %v1082 = vpop.f32.mrf.mxu0
  %v1083 = vadd.f32 0.0, %v1082
  %v1084 = vpop.f32.mrf.mxu0
  %v1085 = vadd.f32 0.0, %v1084
  %1086 = vdwg.mxu0
  %1087 = vmatpush.bf16.msra.mxu0 %v909
  %1088 = vmatpush.bf16.msra.mxu0 %v908
  %1089 = vmatpush.bf16.msra.mxu0 %v907
  %1090 = vmatpush.bf16.msra.mxu0 %v906
  %1091 = vmatpush.bf16.msra.mxu0 %v905
  %1092 = vmatpush.bf16.msra.mxu0 %v904
  %1093 = vmatpush.bf16.msra.mxu0 %v903
  %1094 = vmatpush.bf16.msra.mxu0 %v902
  %1095 = vmatmul.bf16.gmra.mxu0 %v463
  %v1096 = vpop.f32.mrf.mxu0
  %v1097 = vadd.f32 %v1048, %v1096
  %v1098 = vpop.f32.mrf.mxu0
  %v1099 = vadd.f32 %v1050, %v1098
  %1100 = vmatmul.bf16.gmra.mxu0 %v472
  %v1101 = vpop.f32.mrf.mxu0
  %v1102 = vadd.f32 %v1053, %v1101
  %v1103 = vpop.f32.mrf.mxu0
  %v1104 = vadd.f32 %v1055, %v1103
  %1105 = vmatmul.bf16.gmra.mxu0 %v481
  %v1106 = vpop.f32.mrf.mxu0
  %v1107 = vadd.f32 %v1058, %v1106
  %v1108 = vpop.f32.mrf.mxu0
  %v1109 = vadd.f32 %v1060, %v1108
  %1110 = vmatmul.bf16.gmra.mxu0 %v490
  %v1111 = vpop.f32.mrf.mxu0
  %v1112 = vadd.f32 %v1063, %v1111
  %v1113 = vpop.f32.mrf.mxu0
  %v1114 = vadd.f32 %v1065, %v1113
  %1115 = vmatmul.bf16.gmra.mxu0 %v499
  %v1116 = vpop.f32.mrf.mxu0
  %v1117 = vadd.f32 %v1068, %v1116
  %v1118 = vpop.f32.mrf.mxu0
  %v1119 = vadd.f32 %v1070, %v1118
  %1120 = vmatmul.bf16.gmra.mxu0 %v508
  %v1121 = vpop.f32.mrf.mxu0
  %v1122 = vadd.f32 %v1073, %v1121
  %v1123 = vpop.f32.mrf.mxu0
  %v1124 = vadd.f32 %v1075, %v1123
  %1125 = vmatmul.bf16.gmra.mxu0 %v517
  %v1126 = vpop.f32.mrf.mxu0
  %v1127 = vadd.f32 %v1078, %v1126
  %v1128 = vpop.f32.mrf.mxu0
  %v1129 = vadd.f32 %v1080, %v1128
  %1130 = vmatmul.bf16.gmra.mxu0 %v526
  %v1131 = vpop.f32.mrf.mxu0
  %v1132 = vadd.f32 %v1083, %v1131
  %v1133 = vpop.f32.mrf.mxu0
  %v1134 = vadd.f32 %v1085, %v1133
  %1135 = vdwg.mxu0
  %1136 = vmatpush.bf16.msra.mxu0 %v917
  %1137 = vmatpush.bf16.msra.mxu0 %v916
  %1138 = vmatpush.bf16.msra.mxu0 %v915
  %1139 = vmatpush.bf16.msra.mxu0 %v914
  %1140 = vmatpush.bf16.msra.mxu0 %v913
  %1141 = vmatpush.bf16.msra.mxu0 %v912
  %1142 = vmatpush.bf16.msra.mxu0 %v911
  %1143 = vmatpush.bf16.msra.mxu0 %v910
  %1144 = vmatmul.bf16.gmra.mxu0 %v464
  %v1145 = vpop.f32.mrf.mxu0
  %v1146 = vadd.f32 %v1097, %v1145
  %v1147 = vpop.f32.mrf.mxu0
  %v1148 = vadd.f32 %v1099, %v1147
  %1149 = vmatmul.bf16.gmra.mxu0 %v473
  %v1150 = vpop.f32.mrf.mxu0
  %v1151 = vadd.f32 %v1102, %v1150
  %v1152 = vpop.f32.mrf.mxu0
  %v1153 = vadd.f32 %v1104, %v1152
  %1154 = vmatmul.bf16.gmra.mxu0 %v482
  %v1155 = vpop.f32.mrf.mxu0
  %v1156 = vadd.f32 %v1107, %v1155
  %v1157 = vpop.f32.mrf.mxu0
  %v1158 = vadd.f32 %v1109, %v1157
  %1159 = vmatmul.bf16.gmra.mxu0 %v491
  %v1160 = vpop.f32.mrf.mxu0
  %v1161 = vadd.f32 %v1112, %v1160
  %v1162 = vpop.f32.mrf.mxu0
  %v1163 = vadd.f32 %v1114, %v1162
  %1164 = vmatmul.bf16.gmra.mxu0 %v500
  %v1165 = vpop.f32.mrf.mxu0
  %v1166 = vadd.f32 %v1117, %v1165
  %v1167 = vpop.f32.mrf.mxu0
  %v1168 = vadd.f32 %v1119, %v1167
  %1169 = vmatmul.bf16.gmra.mxu0 %v509
  %v1170 = vpop.f32.mrf.mxu0
  %v1171 = vadd.f32 %v1122, %v1170
  %v1172 = vpop.f32.mrf.mxu0
  %v1173 = vadd.f32 %v1124, %v1172
  %1174 = vmatmul.bf16.gmra.mxu0 %v518
  %v1175 = vpop.f32.mrf.mxu0
  %v1176 = vadd.f32 %v1127, %v1175
  %v1177 = vpop.f32.mrf.mxu0
  %v1178 = vadd.f32 %v1129, %v1177
  %1179 = vmatmul.bf16.gmra.mxu0 %v527
  %v1180 = vpop.f32.mrf.mxu0
  %v1181 = vadd.f32 %v1132, %v1180
  %v1182 = vpop.f32.mrf.mxu0
  %v1183 = vadd.f32 %v1134, %v1182
  %1184 = vdwg.mxu0
  %1185 = vmatpush.bf16.msra.mxu0 %v925
  %1186 = vmatpush.bf16.msra.mxu0 %v924
  %1187 = vmatpush.bf16.msra.mxu0 %v923
  %1188 = vmatpush.bf16.msra.mxu0 %v922
  %1189 = vmatpush.bf16.msra.mxu0 %v921
  %1190 = vmatpush.bf16.msra.mxu0 %v920
  %1191 = vmatpush.bf16.msra.mxu0 %v919
  %1192 = vmatpush.bf16.msra.mxu0 %v918
  %1193 = vmatmul.bf16.gmra.mxu0 %v465
  %v1194 = vpop.f32.mrf.mxu0
  %v1195 = vadd.f32 %v1146, %v1194
  %v1196 = vpop.f32.mrf.mxu0
  %v1197 = vadd.f32 %v1148, %v1196
  %1198 = vmatmul.bf16.gmra.mxu0 %v474
  %v1199 = vpop.f32.mrf.mxu0
  %v1200 = vadd.f32 %v1151, %v1199
  %v1201 = vpop.f32.mrf.mxu0
  %v1202 = vadd.f32 %v1153, %v1201
  %1203 = vmatmul.bf16.gmra.mxu0 %v483
  %v1204 = vpop.f32.mrf.mxu0
  %v1205 = vadd.f32 %v1156, %v1204
  %v1206 = vpop.f32.mrf.mxu0
  %v1207 = vadd.f32 %v1158, %v1206
  %1208 = vmatmul.bf16.gmra.mxu0 %v492
  %v1209 = vpop.f32.mrf.mxu0
  %v1210 = vadd.f32 %v1161, %v1209
  %v1211 = vpop.f32.mrf.mxu0
  %v1212 = vadd.f32 %v1163, %v1211
  %1213 = vmatmul.bf16.gmra.mxu0 %v501
  %v1214 = vpop.f32.mrf.mxu0
  %v1215 = vadd.f32 %v1166, %v1214
  %v1216 = vpop.f32.mrf.mxu0
  %v1217 = vadd.f32 %v1168, %v1216
  %1218 = vmatmul.bf16.gmra.mxu0 %v510
  %v1219 = vpop.f32.mrf.mxu0
  %v1220 = vadd.f32 %v1171, %v1219
  %v1221 = vpop.f32.mrf.mxu0
  %v1222 = vadd.f32 %v1173, %v1221
  %1223 = vmatmul.bf16.gmra.mxu0 %v519
  %v1224 = vpop.f32.mrf.mxu0
  %v1225 = vadd.f32 %v1176, %v1224
  %v1226 = vpop.f32.mrf.mxu0
  %v1227 = vadd.f32 %v1178, %v1226
  %1228 = vmatmul.bf16.gmra.mxu0 %v528
  %v1229 = vpop.f32.mrf.mxu0
  %v1230 = vadd.f32 %v1181, %v1229
  %v1231 = vpop.f32.mrf.mxu0
  %v1232 = vadd.f32 %v1183, %v1231
  %1233 = vdwg.mxu0
  %1234 = vmatpush.bf16.msra.mxu0 %v933
  %1235 = vmatpush.bf16.msra.mxu0 %v932
  %1236 = vmatpush.bf16.msra.mxu0 %v931
  %1237 = vmatpush.bf16.msra.mxu0 %v930
  %1238 = vmatpush.bf16.msra.mxu0 %v929
  %1239 = vmatpush.bf16.msra.mxu0 %v928
  %1240 = vmatpush.bf16.msra.mxu0 %v927
  %1241 = vmatpush.bf16.msra.mxu0 %v926
  %1242 = vmatmul.bf16.gmra.mxu0 %v466
  %v1243 = vpop.f32.mrf.mxu0
  %v1244 = vadd.f32 %v1195, %v1243
  %v1245 = vpop.f32.mrf.mxu0
  %v1246 = vadd.f32 %v1197, %v1245
  %1247 = vmatmul.bf16.gmra.mxu0 %v475
  %v1248 = vpop.f32.mrf.mxu0
  %v1249 = vadd.f32 %v1200, %v1248
  %v1250 = vpop.f32.mrf.mxu0
  %v1251 = vadd.f32 %v1202, %v1250
  %1252 = vmatmul.bf16.gmra.mxu0 %v484
  %v1253 = vpop.f32.mrf.mxu0
  %v1254 = vadd.f32 %v1205, %v1253
  %v1255 = vpop.f32.mrf.mxu0
  %v1256 = vadd.f32 %v1207, %v1255
  %1257 = vmatmul.bf16.gmra.mxu0 %v493
  %v1258 = vpop.f32.mrf.mxu0
  %v1259 = vadd.f32 %v1210, %v1258
  %v1260 = vpop.f32.mrf.mxu0
  %v1261 = vadd.f32 %v1212, %v1260
  %1262 = vmatmul.bf16.gmra.mxu0 %v502
  %v1263 = vpop.f32.mrf.mxu0
  %v1264 = vadd.f32 %v1215, %v1263
  %v1265 = vpop.f32.mrf.mxu0
  %v1266 = vadd.f32 %v1217, %v1265
  %1267 = vmatmul.bf16.gmra.mxu0 %v511
  %v1268 = vpop.f32.mrf.mxu0
  %v1269 = vadd.f32 %v1220, %v1268
  %v1270 = vpop.f32.mrf.mxu0
  %v1271 = vadd.f32 %v1222, %v1270
  %1272 = vmatmul.bf16.gmra.mxu0 %v520
  %v1273 = vpop.f32.mrf.mxu0
  %v1274 = vadd.f32 %v1225, %v1273
  %v1275 = vpop.f32.mrf.mxu0
  %v1276 = vadd.f32 %v1227, %v1275
  %1277 = vmatmul.bf16.gmra.mxu0 %v529
  %v1278 = vpop.f32.mrf.mxu0
  %v1279 = vadd.f32 %v1230, %v1278
  %v1280 = vpop.f32.mrf.mxu0
  %v1281 = vadd.f32 %v1232, %v1280
  %1282 = vdwg.mxu0
  %1283 = vmatpush.bf16.msra.mxu0 %v941
  %1284 = vmatpush.bf16.msra.mxu0 %v940
  %1285 = vmatpush.bf16.msra.mxu0 %v939
  %1286 = vmatpush.bf16.msra.mxu0 %v938
  %1287 = vmatpush.bf16.msra.mxu0 %v937
  %1288 = vmatpush.bf16.msra.mxu0 %v936
  %1289 = vmatpush.bf16.msra.mxu0 %v935
  %1290 = vmatpush.bf16.msra.mxu0 %v934
  %1291 = vmatmul.bf16.gmra.mxu0 %v467
  %v1292 = vpop.f32.mrf.mxu0
  %v1293 = vadd.f32 %v1244, %v1292
  %v1294 = vpop.f32.mrf.mxu0
  %v1295 = vadd.f32 %v1246, %v1294
  %1296 = vmatmul.bf16.gmra.mxu0 %v476
  %v1297 = vpop.f32.mrf.mxu0
  %v1298 = vadd.f32 %v1249, %v1297
  %v1299 = vpop.f32.mrf.mxu0
  %v1300 = vadd.f32 %v1251, %v1299
  %1301 = vmatmul.bf16.gmra.mxu0 %v485
  %v1302 = vpop.f32.mrf.mxu0
  %v1303 = vadd.f32 %v1254, %v1302
  %v1304 = vpop.f32.mrf.mxu0
  %v1305 = vadd.f32 %v1256, %v1304
  %1306 = vmatmul.bf16.gmra.mxu0 %v494
  %v1307 = vpop.f32.mrf.mxu0
  %v1308 = vadd.f32 %v1259, %v1307
  %v1309 = vpop.f32.mrf.mxu0
  %v1310 = vadd.f32 %v1261, %v1309
  %1311 = vmatmul.bf16.gmra.mxu0 %v503
  %v1312 = vpop.f32.mrf.mxu0
  %v1313 = vadd.f32 %v1264, %v1312
  %v1314 = vpop.f32.mrf.mxu0
  %v1315 = vadd.f32 %v1266, %v1314
  %1316 = vmatmul.bf16.gmra.mxu0 %v512
  %v1317 = vpop.f32.mrf.mxu0
  %v1318 = vadd.f32 %v1269, %v1317
  %v1319 = vpop.f32.mrf.mxu0
  %v1320 = vadd.f32 %v1271, %v1319
  %1321 = vmatmul.bf16.gmra.mxu0 %v521
  %v1322 = vpop.f32.mrf.mxu0
  %v1323 = vadd.f32 %v1274, %v1322
  %v1324 = vpop.f32.mrf.mxu0
  %v1325 = vadd.f32 %v1276, %v1324
  %1326 = vmatmul.bf16.gmra.mxu0 %v530
  %v1327 = vpop.f32.mrf.mxu0
  %v1328 = vadd.f32 %v1279, %v1327
  %v1329 = vpop.f32.mrf.mxu0
  %v1330 = vadd.f32 %v1281, %v1329
  %1331 = vdwg.mxu0
  %1332 = vmatpush.bf16.msra.mxu0 %v949
  %1333 = vmatpush.bf16.msra.mxu0 %v948
  %1334 = vmatpush.bf16.msra.mxu0 %v947
  %1335 = vmatpush.bf16.msra.mxu0 %v946
  %1336 = vmatpush.bf16.msra.mxu0 %v945
  %1337 = vmatpush.bf16.msra.mxu0 %v944
  %1338 = vmatpush.bf16.msra.mxu0 %v943
  %1339 = vmatpush.bf16.msra.mxu0 %v942
  %1340 = vmatmul.bf16.gmra.mxu0 %v468
  %v1341 = vpop.f32.mrf.mxu0
  %v1342 = vadd.f32 %v1293, %v1341
  %v1343 = vpop.f32.mrf.mxu0
  %v1344 = vadd.f32 %v1295, %v1343
  %1345 = vmatmul.bf16.gmra.mxu0 %v477
  %v1346 = vpop.f32.mrf.mxu0
  %v1347 = vadd.f32 %v1298, %v1346
  %v1348 = vpop.f32.mrf.mxu0
  %v1349 = vadd.f32 %v1300, %v1348
  %1350 = vmatmul.bf16.gmra.mxu0 %v486
  %v1351 = vpop.f32.mrf.mxu0
  %v1352 = vadd.f32 %v1303, %v1351
  %v1353 = vpop.f32.mrf.mxu0
  %v1354 = vadd.f32 %v1305, %v1353
  %1355 = vmatmul.bf16.gmra.mxu0 %v495
  %v1356 = vpop.f32.mrf.mxu0
  %v1357 = vadd.f32 %v1308, %v1356
  %v1358 = vpop.f32.mrf.mxu0
  %v1359 = vadd.f32 %v1310, %v1358
  %1360 = vmatmul.bf16.gmra.mxu0 %v504
  %v1361 = vpop.f32.mrf.mxu0
  %v1362 = vadd.f32 %v1313, %v1361
  %v1363 = vpop.f32.mrf.mxu0
  %v1364 = vadd.f32 %v1315, %v1363
  %1365 = vmatmul.bf16.gmra.mxu0 %v513
  %v1366 = vpop.f32.mrf.mxu0
  %v1367 = vadd.f32 %v1318, %v1366
  %v1368 = vpop.f32.mrf.mxu0
  %v1369 = vadd.f32 %v1320, %v1368
  %1370 = vmatmul.bf16.gmra.mxu0 %v522
  %v1371 = vpop.f32.mrf.mxu0
  %v1372 = vadd.f32 %v1323, %v1371
  %v1373 = vpop.f32.mrf.mxu0
  %v1374 = vadd.f32 %v1325, %v1373
  %1375 = vmatmul.bf16.gmra.mxu0 %v531
  %v1376 = vpop.f32.mrf.mxu0
  %v1377 = vadd.f32 %v1328, %v1376
  %v1378 = vpop.f32.mrf.mxu0
  %v1379 = vadd.f32 %v1330, %v1378
  %1380 = vdwg.mxu0
  %1381 = vmatpush.bf16.msra.mxu0 %v957
  %1382 = vmatpush.bf16.msra.mxu0 %v956
  %1383 = vmatpush.bf16.msra.mxu0 %v955
  %1384 = vmatpush.bf16.msra.mxu0 %v954
  %1385 = vmatpush.bf16.msra.mxu0 %v953
  %1386 = vmatpush.bf16.msra.mxu0 %v952
  %1387 = vmatpush.bf16.msra.mxu0 %v951
  %1388 = vmatpush.bf16.msra.mxu0 %v950
  %1389 = vmatmul.bf16.gmra.mxu0 %v469
  %v1390 = vpop.f32.mrf.mxu0
  %v1391 = vadd.f32 %v1342, %v1390
  %v1392 = vpop.f32.mrf.mxu0
  %v1393 = vadd.f32 %v1344, %v1392
  %1394 = vmatmul.bf16.gmra.mxu0 %v478
  %v1395 = vpop.f32.mrf.mxu0
  %v1396 = vadd.f32 %v1347, %v1395
  %v1397 = vpop.f32.mrf.mxu0
  %v1398 = vadd.f32 %v1349, %v1397
  %1399 = vmatmul.bf16.gmra.mxu0 %v487
  %v1400 = vpop.f32.mrf.mxu0
  %v1401 = vadd.f32 %v1352, %v1400
  %v1402 = vpop.f32.mrf.mxu0
  %v1403 = vadd.f32 %v1354, %v1402
  %1404 = vmatmul.bf16.gmra.mxu0 %v496
  %v1405 = vpop.f32.mrf.mxu0
  %v1406 = vadd.f32 %v1357, %v1405
  %v1407 = vpop.f32.mrf.mxu0
  %v1408 = vadd.f32 %v1359, %v1407
  %1409 = vmatmul.bf16.gmra.mxu0 %v505
  %v1410 = vpop.f32.mrf.mxu0
  %v1411 = vadd.f32 %v1362, %v1410
  %v1412 = vpop.f32.mrf.mxu0
  %v1413 = vadd.f32 %v1364, %v1412
  %1414 = vmatmul.bf16.gmra.mxu0 %v514
  %v1415 = vpop.f32.mrf.mxu0
  %v1416 = vadd.f32 %v1367, %v1415
  %v1417 = vpop.f32.mrf.mxu0
  %v1418 = vadd.f32 %v1369, %v1417
  %1419 = vmatmul.bf16.gmra.mxu0 %v523
  %v1420 = vpop.f32.mrf.mxu0
  %v1421 = vadd.f32 %v1372, %v1420
  %v1422 = vpop.f32.mrf.mxu0
  %v1423 = vadd.f32 %v1374, %v1422
  %1424 = vmatmul.bf16.gmra.mxu0 %v532
  %v1425 = vpop.f32.mrf.mxu0
  %v1426 = vadd.f32 %v1377, %v1425
  %v1427 = vpop.f32.mrf.mxu0
  %v1428 = vadd.f32 %v1379, %v1427
  %1429 = vdwg.mxu0
  %1430 = vmatpush.bf16.msra.mxu0 %v965
  %1431 = vmatpush.bf16.msra.mxu0 %v964
  %1432 = vmatpush.bf16.msra.mxu0 %v963
  %1433 = vmatpush.bf16.msra.mxu0 %v962
  %1434 = vmatpush.bf16.msra.mxu0 %v961
  %1435 = vmatpush.bf16.msra.mxu0 %v960
  %1436 = vmatpush.bf16.msra.mxu0 %v959
  %1437 = vmatpush.bf16.msra.mxu0 %v958
  %1438 = vmatmul.bf16.gmra.mxu0 %v470
  %v1439 = vpop.f32.mrf.mxu0
  %v1440 = vadd.f32 %v1391, %v1439
  %v1441 = vpop.f32.mrf.mxu0
  %v1442 = vadd.f32 %v1393, %v1441
  %1443 = vmatmul.bf16.gmra.mxu0 %v479
  %v1444 = vpop.f32.mrf.mxu0
  %v1445 = vadd.f32 %v1396, %v1444
  %v1446 = vpop.f32.mrf.mxu0
  %v1447 = vadd.f32 %v1398, %v1446
  %1448 = vmatmul.bf16.gmra.mxu0 %v488
  %v1449 = vpop.f32.mrf.mxu0
  %v1450 = vadd.f32 %v1401, %v1449
  %v1451 = vpop.f32.mrf.mxu0
  %v1452 = vadd.f32 %v1403, %v1451
  %1453 = vmatmul.bf16.gmra.mxu0 %v497
  %v1454 = vpop.f32.mrf.mxu0
  %v1455 = vadd.f32 %v1406, %v1454
  %v1456 = vpop.f32.mrf.mxu0
  %v1457 = vadd.f32 %v1408, %v1456
  %1458 = vmatmul.bf16.gmra.mxu0 %v506
  %v1459 = vpop.f32.mrf.mxu0
  %v1460 = vadd.f32 %v1411, %v1459
  %v1461 = vpop.f32.mrf.mxu0
  %v1462 = vadd.f32 %v1413, %v1461
  %1463 = vmatmul.bf16.gmra.mxu0 %v515
  %v1464 = vpop.f32.mrf.mxu0
  %v1465 = vadd.f32 %v1416, %v1464
  %v1466 = vpop.f32.mrf.mxu0
  %v1467 = vadd.f32 %v1418, %v1466
  %1468 = vmatmul.bf16.gmra.mxu0 %v524
  %v1469 = vpop.f32.mrf.mxu0
  %v1470 = vadd.f32 %v1421, %v1469
  %v1471 = vpop.f32.mrf.mxu0
  %v1472 = vadd.f32 %v1423, %v1471
  %1473 = vmatmul.bf16.gmra.mxu0 %v533
  %v1474 = vpop.f32.mrf.mxu0
  %v1475 = vadd.f32 %v1426, %v1474
  %v1476 = vpop.f32.mrf.mxu0
  %v1477 = vadd.f32 %v1428, %v1476
  %1478 = vdwg.mxu0
  %v1479 = vmax.f32 %v1440, %v1450
  %v1480 = vmax.f32 %v1442, %v1452
  %v1481 = vmax.f32 %v1445, %v1455
  %v1482 = vmax.f32 %v1447, %v1457
  %v1483 = vmax.f32 %v1460, %v1470
  %v1484 = vmax.f32 %v1462, %v1472
  %v1485 = vmax.f32 %v1465, %v1475
  %v1486 = vmax.f32 %v1467, %v1477
  %v1487 = vmax.f32 %v1479, %v1483
  %v1488 = vmax.f32 %v1480, %v1484
  %v1489 = vmax.f32 %v1481, %v1485
  %v1490 = vmax.f32 %v1482, %v1486
  %v1491 = vld [vmem:[%s2] sm:$0xff]
  %v1492 = vld [vmem:[%s2 + $0x8] sm:$0xff]
  %v1493 = vld [vmem:[%s2 + $0x10] sm:$0xff]
  %v1494 = vld [vmem:[%s2 + $0x18] sm:$0xff]
  %1496 = vset.pattern.permute.xlu0 0
  %1497 = vperm.xlu0 %1496, %v1491
  %v1498 = vpop.permute.xlu0 %1497
  %1501 = vset.pattern.permute.xlu0 0
  %1502 = vperm.xlu0 %1501, %v1492
  %v1503 = vpop.permute.xlu0 %1502
  %1506 = vset.pattern.permute.xlu0 0
  %1507 = vperm.xlu0 %1506, %v1493
  %v1508 = vpop.permute.xlu0 %1507
  %1511 = vset.pattern.permute.xlu0 0
  %1512 = vperm.xlu0 %1511, %v1494
  %v1513 = vpop.permute.xlu0 %1512
  %v1515 = vadd.f32 %v1487, %v1498
  %v1516 = vadd.f32 %v1488, %v1503
  %v1517 = vadd.f32 %v1489, %v1508
  %v1518 = vadd.f32 %v1490, %v1513
  %v1519 = vmax.f32 %v1515, 0.0
  %v1520 = vmax.f32 %v1516, 0.0
  %v1521 = vmax.f32 %v1517, 0.0
  %v1522 = vmax.f32 %v1518, 0.0
  %v1523 = vpack.c.bf16 %v1519, %v1519
  %v1524 = vpack.c.bf16 %v1520, %v1520
  %v1525 = vpack.c.bf16 %v1521, %v1521
  %v1526 = vpack.c.bf16 %v1522, %v1522
  %1527 = vst [vmem:[%s3] sm:$0xf] %v1523
  %1528 = vst [vmem:[%s3 + $0x4] sm:$0xf] %v1524
  %1529 = vst [vmem:[%s3 + $0x8] sm:$0xf] %v1525
  %1530 = vst [vmem:[%s3 + $0xc] sm:$0xf] %v1526
  // Predicated region
  $region14: #{client_model_forward.6} parent=0 // pred_check
    _
  $region15: #{client_model_forward.6} parent=0 // pred_check_branch
    %1532 = sbr.rel (0) target = $region17
  $region16: #{client_model_forward.6} parent=0 // pred_region
    _
  $region17: #{client_model_forward.6} parent=0 // pred_fallthru
    _
  // Predicated region
  $region18: #{client_model_forward.6} parent=0 // pred_check
    _
  $region19: #{client_model_forward.6} parent=0 // pred_check_branch
    %1534 = sbr.rel (0) target = $region21
  $region20: #{client_model_forward.6} parent=0 // pred_region
    _
  $region21: #{client_model_forward.6} parent=0 // pred_fallthru
    _

// kernel: client_model_forward.7
$region0: #{client_model_forward.7}
  #allocation0 [shape = 'u32[]', space=smem, size = 0x4, offset = 0x4, fixed_abs, tag = 'smem constant byte address 0x4 - core index']
  #allocation1 [shape = 'u32[72,128]{1,0:T(1,128)}', space=vmem, size = 0x9000, scoped, tag = 'internal scratch']
  %s0 = inlined_call_operand.vmem [shape: bf16[1152,128], index: 0, kind: input, shape index: {}]
  %s1 = inlined_call_operand.vmem [shape: bf16[128,1152], index: 1, kind: input, shape index: {}]
  %s2 = inlined_call_operand.vmem [shape: f32[32,1], index: 2, kind: input, shape index: {}]
  %s3 = inlined_call_operand.vmem [shape: f32[32,128], index: 3, kind: output, shape index: {}]
  %s4 = sld [smem:[#allocation0]]
  $region22: #{client_model_forward.7} parent=0
    _
  %s6 = ssub.s32 1, %s4
  %s7 = scalar_select 0, %s6, %s4
  // Predicated region
  $region2: #{client_model_forward.7} parent=0 // pred_check
    _
  $region3: #{client_model_forward.7} parent=0 // pred_check_branch
    %9 = sbr.rel (0) target = $region5
  $region4: #{client_model_forward.7} parent=0 // pred_region
    _
  $region5: #{client_model_forward.7} parent=0 // pred_fallthru
    _
  // Predicated region
  $region6: #{client_model_forward.7} parent=0 // pred_check
    _
  $region7: #{client_model_forward.7} parent=0 // pred_check_branch
    %11 = sbr.rel (0) target = $region9
  $region8: #{client_model_forward.7} parent=0 // pred_region
    _
  $region9: #{client_model_forward.7} parent=0 // pred_fallthru
    _
  // Predicated region
  $region10: #{client_model_forward.7} parent=0 // pred_check
    _
  $region11: #{client_model_forward.7} parent=0 // pred_check_branch
    %13 = sbr.rel (0) target = $region13
  $region12: #{client_model_forward.7} parent=0 // pred_region
    _
  $region13: #{client_model_forward.7} parent=0 // pred_fallthru
    _
  %v14 = vld [vmem:[%s1] sm:$0xff]
  %v15 = vld [vmem:[%s1 + $0x8] sm:$0xff]
  %v16 = vld [vmem:[%s1 + $0x10] sm:$0xff]
  %v17 = vld [vmem:[%s1 + $0x18] sm:$0xff]
  %v18 = vld [vmem:[%s1 + $0x20] sm:$0xf]
  %v19 = vld [vmem:[%s1 + $0x24] sm:$0xff]
  %v20 = vld [vmem:[%s1 + $0x2c] sm:$0xff]
  %v21 = vld [vmem:[%s1 + $0x34] sm:$0xff]
  %v22 = vld [vmem:[%s1 + $0x3c] sm:$0xff]
  %v23 = vld [vmem:[%s1 + $0x44] sm:$0xf]
  %v24 = vld [vmem:[%s1 + $0x48] sm:$0xff]
  %v25 = vld [vmem:[%s1 + $0x50] sm:$0xff]
  %v26 = vld [vmem:[%s1 + $0x58] sm:$0xff]
  %v27 = vld [vmem:[%s1 + $0x60] sm:$0xff]
  %v28 = vld [vmem:[%s1 + $0x68] sm:$0xf]
  %v29 = vld [vmem:[%s1 + $0x6c] sm:$0xff]
  %v30 = vld [vmem:[%s1 + $0x74] sm:$0xff]
  %v31 = vld [vmem:[%s1 + $0x7c] sm:$0xff]
  %v32 = vld [vmem:[%s1 + $0x84] sm:$0xff]
  %v33 = vld [vmem:[%s1 + $0x8c] sm:$0xf]
  %v34 = vld [vmem:[%s1 + $0x90] sm:$0xff]
  %v35 = vld [vmem:[%s1 + $0x98] sm:$0xff]
  %v36 = vld [vmem:[%s1 + $0xa0] sm:$0xff]
  %v37 = vld [vmem:[%s1 + $0xa8] sm:$0xff]
  %v38 = vld [vmem:[%s1 + $0xb0] sm:$0xf]
  %v39 = vld [vmem:[%s1 + $0xb4] sm:$0xff]
  %v40 = vld [vmem:[%s1 + $0xbc] sm:$0xff]
  %v41 = vld [vmem:[%s1 + $0xc4] sm:$0xff]
  %v42 = vld [vmem:[%s1 + $0xcc] sm:$0xff]
  %v43 = vld [vmem:[%s1 + $0xd4] sm:$0xf]
  %v44 = vld [vmem:[%s1 + $0xd8] sm:$0xff]
  %v45 = vld [vmem:[%s1 + $0xe0] sm:$0xff]
  %v46 = vld [vmem:[%s1 + $0xe8] sm:$0xff]
  %v47 = vld [vmem:[%s1 + $0xf0] sm:$0xff]
  %v48 = vld [vmem:[%s1 + $0xf8] sm:$0xf]
  %v49 = vld [vmem:[%s1 + $0xfc] sm:$0xff]
  %v50 = vld [vmem:[%s1 + $0x104] sm:$0xff]
  %v51 = vld [vmem:[%s1 + $0x10c] sm:$0xff]
  %v52 = vld [vmem:[%s1 + $0x114] sm:$0xff]
  %v53 = vld [vmem:[%s1 + $0x11c] sm:$0xf]
  %v54 = vld [vmem:[%s1 + $0x120] sm:$0xff]
  %v55 = vld [vmem:[%s1 + $0x128] sm:$0xff]
  %v56 = vld [vmem:[%s1 + $0x130] sm:$0xff]
  %v57 = vld [vmem:[%s1 + $0x138] sm:$0xff]
  %v58 = vld [vmem:[%s1 + $0x140] sm:$0xf]
  %v59 = vld [vmem:[%s1 + $0x144] sm:$0xff]
  %v60 = vld [vmem:[%s1 + $0x14c] sm:$0xff]
  %v61 = vld [vmem:[%s1 + $0x154] sm:$0xff]
  %v62 = vld [vmem:[%s1 + $0x15c] sm:$0xff]
  %v63 = vld [vmem:[%s1 + $0x164] sm:$0xf]
  %v64 = vld [vmem:[%s1 + $0x168] sm:$0xff]
  %v65 = vld [vmem:[%s1 + $0x170] sm:$0xff]
  %v66 = vld [vmem:[%s1 + $0x178] sm:$0xff]
  %v67 = vld [vmem:[%s1 + $0x180] sm:$0xff]
  %v68 = vld [vmem:[%s1 + $0x188] sm:$0xf]
  %v69 = vld [vmem:[%s1 + $0x18c] sm:$0xff]
  %v70 = vld [vmem:[%s1 + $0x194] sm:$0xff]
  %v71 = vld [vmem:[%s1 + $0x19c] sm:$0xff]
  %v72 = vld [vmem:[%s1 + $0x1a4] sm:$0xff]
  %v73 = vld [vmem:[%s1 + $0x1ac] sm:$0xf]
  %v74 = vld [vmem:[%s1 + $0x1b0] sm:$0xff]
  %v75 = vld [vmem:[%s1 + $0x1b8] sm:$0xff]
  %v76 = vld [vmem:[%s1 + $0x1c0] sm:$0xff]
  %v77 = vld [vmem:[%s1 + $0x1c8] sm:$0xff]
  %v78 = vld [vmem:[%s1 + $0x1d0] sm:$0xf]
  %v79 = vld [vmem:[%s1 + $0x1d4] sm:$0xff]
  %v80 = vld [vmem:[%s1 + $0x1dc] sm:$0xff]
  %v81 = vld [vmem:[%s1 + $0x1e4] sm:$0xff]
  %v82 = vld [vmem:[%s1 + $0x1ec] sm:$0xff]
  %v83 = vld [vmem:[%s1 + $0x1f4] sm:$0xf]
  %v84 = vld [vmem:[%s1 + $0x1f8] sm:$0xff]
  %v85 = vld [vmem:[%s1 + $0x200] sm:$0xff]
  %v86 = vld [vmem:[%s1 + $0x208] sm:$0xff]
  %v87 = vld [vmem:[%s1 + $0x210] sm:$0xff]
  %v88 = vld [vmem:[%s1 + $0x218] sm:$0xf]
  %v89 = vld [vmem:[%s1 + $0x21c] sm:$0xff]
  %v90 = vld [vmem:[%s1 + $0x224] sm:$0xff]
  %v91 = vld [vmem:[%s1 + $0x22c] sm:$0xff]
  %v92 = vld [vmem:[%s1 + $0x234] sm:$0xff]
  %v93 = vld [vmem:[%s1 + $0x23c] sm:$0xf]
  %v94 = vld [vmem:[%s0] sm:$0xf]
  %v95 = vld [vmem:[%s0 + $0x4] sm:$0xf]
  %v96 = vld [vmem:[%s0 + $0x8] sm:$0xf]
  %v97 = vld [vmem:[%s0 + $0xc] sm:$0xf]
  %v98 = vld [vmem:[%s0 + $0x10] sm:$0xf]
  %v99 = vld [vmem:[%s0 + $0x14] sm:$0xf]
  %v100 = vld [vmem:[%s0 + $0x18] sm:$0xf]
  %v101 = vld [vmem:[%s0 + $0x1c] sm:$0xf]
  %v102 = vld [vmem:[%s0 + $0x20] sm:$0xf]
  %v103 = vld [vmem:[%s0 + $0x24] sm:$0xf]
  %v104 = vld [vmem:[%s0 + $0x28] sm:$0xf]
  %v105 = vld [vmem:[%s0 + $0x2c] sm:$0xf]
  %v106 = vld [vmem:[%s0 + $0x30] sm:$0xf]
  %v107 = vld [vmem:[%s0 + $0x34] sm:$0xf]
  %v108 = vld [vmem:[%s0 + $0x38] sm:$0xf]
  %v109 = vld [vmem:[%s0 + $0x3c] sm:$0xf]
  %v110 = vld [vmem:[%s0 + $0x40] sm:$0xf]
  %v111 = vld [vmem:[%s0 + $0x44] sm:$0xf]
  %v112 = vld [vmem:[%s0 + $0x48] sm:$0xf]
  %v113 = vld [vmem:[%s0 + $0x4c] sm:$0xf]
  %v114 = vld [vmem:[%s0 + $0x50] sm:$0xf]
  %v115 = vld [vmem:[%s0 + $0x54] sm:$0xf]
  %v116 = vld [vmem:[%s0 + $0x58] sm:$0xf]
  %v117 = vld [vmem:[%s0 + $0x5c] sm:$0xf]
  %v118 = vld [vmem:[%s0 + $0x60] sm:$0xf]
  %v119 = vld [vmem:[%s0 + $0x64] sm:$0xf]
  %v120 = vld [vmem:[%s0 + $0x68] sm:$0xf]
  %v121 = vld [vmem:[%s0 + $0x6c] sm:$0xf]
  %v122 = vld [vmem:[%s0 + $0x70] sm:$0xf]
  %v123 = vld [vmem:[%s0 + $0x74] sm:$0xf]
  %v124 = vld [vmem:[%s0 + $0x78] sm:$0xf]
  %v125 = vld [vmem:[%s0 + $0x7c] sm:$0xf]
  %v126 = vld [vmem:[%s0 + $0x80] sm:$0xf]
  %v127 = vld [vmem:[%s0 + $0x84] sm:$0xf]
  %v128 = vld [vmem:[%s0 + $0x88] sm:$0xf]
  %v129 = vld [vmem:[%s0 + $0x8c] sm:$0xf]
  %v130 = vld [vmem:[%s0 + $0x90] sm:$0xf]
  %v131 = vld [vmem:[%s0 + $0x94] sm:$0xf]
  %v132 = vld [vmem:[%s0 + $0x98] sm:$0xf]
  %v133 = vld [vmem:[%s0 + $0x9c] sm:$0xf]
  %v134 = vld [vmem:[%s0 + $0xa0] sm:$0xf]
  %v135 = vld [vmem:[%s0 + $0xa4] sm:$0xf]
  %v136 = vld [vmem:[%s0 + $0xa8] sm:$0xf]
  %v137 = vld [vmem:[%s0 + $0xac] sm:$0xf]
  %v138 = vld [vmem:[%s0 + $0xb0] sm:$0xf]
  %v139 = vld [vmem:[%s0 + $0xb4] sm:$0xf]
  %v140 = vld [vmem:[%s0 + $0xb8] sm:$0xf]
  %v141 = vld [vmem:[%s0 + $0xbc] sm:$0xf]
  %v142 = vld [vmem:[%s0 + $0xc0] sm:$0xf]
  %v143 = vld [vmem:[%s0 + $0xc4] sm:$0xf]
  %v144 = vld [vmem:[%s0 + $0xc8] sm:$0xf]
  %v145 = vld [vmem:[%s0 + $0xcc] sm:$0xf]
  %v146 = vld [vmem:[%s0 + $0xd0] sm:$0xf]
  %v147 = vld [vmem:[%s0 + $0xd4] sm:$0xf]
  %v148 = vld [vmem:[%s0 + $0xd8] sm:$0xf]
  %v149 = vld [vmem:[%s0 + $0xdc] sm:$0xf]
  %v150 = vld [vmem:[%s0 + $0xe0] sm:$0xf]
  %v151 = vld [vmem:[%s0 + $0xe4] sm:$0xf]
  %v152 = vld [vmem:[%s0 + $0xe8] sm:$0xf]
  %v153 = vld [vmem:[%s0 + $0xec] sm:$0xf]
  %v154 = vld [vmem:[%s0 + $0xf0] sm:$0xf]
  %v155 = vld [vmem:[%s0 + $0xf4] sm:$0xf]
  %v156 = vld [vmem:[%s0 + $0xf8] sm:$0xf]
  %v157 = vld [vmem:[%s0 + $0xfc] sm:$0xf]
  %v158 = vld [vmem:[%s0 + $0x100] sm:$0xf]
  %v159 = vld [vmem:[%s0 + $0x104] sm:$0xf]
  %v160 = vld [vmem:[%s0 + $0x108] sm:$0xf]
  %v161 = vld [vmem:[%s0 + $0x10c] sm:$0xf]
  %v162 = vld [vmem:[%s0 + $0x110] sm:$0xf]
  %v163 = vld [vmem:[%s0 + $0x114] sm:$0xf]
  %v164 = vld [vmem:[%s0 + $0x118] sm:$0xf]
  %v165 = vld [vmem:[%s0 + $0x11c] sm:$0xf]
  %v166 = vld [vmem:[%s0 + $0x120] sm:$0xf]
  %v167 = vld [vmem:[%s0 + $0x124] sm:$0xf]
  %v168 = vld [vmem:[%s0 + $0x128] sm:$0xf]
  %v169 = vld [vmem:[%s0 + $0x12c] sm:$0xf]
  %v170 = vld [vmem:[%s0 + $0x130] sm:$0xf]
  %v171 = vld [vmem:[%s0 + $0x134] sm:$0xf]
  %v172 = vld [vmem:[%s0 + $0x138] sm:$0xf]
  %v173 = vld [vmem:[%s0 + $0x13c] sm:$0xf]
  %v174 = vld [vmem:[%s0 + $0x140] sm:$0xf]
  %v175 = vld [vmem:[%s0 + $0x144] sm:$0xf]
  %v176 = vld [vmem:[%s0 + $0x148] sm:$0xf]
  %v177 = vld [vmem:[%s0 + $0x14c] sm:$0xf]
  %v178 = vld [vmem:[%s0 + $0x150] sm:$0xf]
  %v179 = vld [vmem:[%s0 + $0x154] sm:$0xf]
  %v180 = vld [vmem:[%s0 + $0x158] sm:$0xf]
  %v181 = vld [vmem:[%s0 + $0x15c] sm:$0xf]
  %v182 = vld [vmem:[%s0 + $0x160] sm:$0xf]
  %v183 = vld [vmem:[%s0 + $0x164] sm:$0xf]
  %v184 = vld [vmem:[%s0 + $0x168] sm:$0xf]
  %v185 = vld [vmem:[%s0 + $0x16c] sm:$0xf]
  %v186 = vld [vmem:[%s0 + $0x170] sm:$0xf]
  %v187 = vld [vmem:[%s0 + $0x174] sm:$0xf]
  %v188 = vld [vmem:[%s0 + $0x178] sm:$0xf]
  %v189 = vld [vmem:[%s0 + $0x17c] sm:$0xf]
  %v190 = vld [vmem:[%s0 + $0x180] sm:$0xf]
  %v191 = vld [vmem:[%s0 + $0x184] sm:$0xf]
  %v192 = vld [vmem:[%s0 + $0x188] sm:$0xf]
  %v193 = vld [vmem:[%s0 + $0x18c] sm:$0xf]
  %v194 = vld [vmem:[%s0 + $0x190] sm:$0xf]
  %v195 = vld [vmem:[%s0 + $0x194] sm:$0xf]
  %v196 = vld [vmem:[%s0 + $0x198] sm:$0xf]
  %v197 = vld [vmem:[%s0 + $0x19c] sm:$0xf]
  %v198 = vld [vmem:[%s0 + $0x1a0] sm:$0xf]
  %v199 = vld [vmem:[%s0 + $0x1a4] sm:$0xf]
  %v200 = vld [vmem:[%s0 + $0x1a8] sm:$0xf]
  %v201 = vld [vmem:[%s0 + $0x1ac] sm:$0xf]
  %v202 = vld [vmem:[%s0 + $0x1b0] sm:$0xf]
  %v203 = vld [vmem:[%s0 + $0x1b4] sm:$0xf]
  %v204 = vld [vmem:[%s0 + $0x1b8] sm:$0xf]
  %v205 = vld [vmem:[%s0 + $0x1bc] sm:$0xf]
  %v206 = vld [vmem:[%s0 + $0x1c0] sm:$0xf]
  %v207 = vld [vmem:[%s0 + $0x1c4] sm:$0xf]
  %v208 = vld [vmem:[%s0 + $0x1c8] sm:$0xf]
  %v209 = vld [vmem:[%s0 + $0x1cc] sm:$0xf]
  %v210 = vld [vmem:[%s0 + $0x1d0] sm:$0xf]
  %v211 = vld [vmem:[%s0 + $0x1d4] sm:$0xf]
  %v212 = vld [vmem:[%s0 + $0x1d8] sm:$0xf]
  %v213 = vld [vmem:[%s0 + $0x1dc] sm:$0xf]
  %v214 = vld [vmem:[%s0 + $0x1e0] sm:$0xf]
  %v215 = vld [vmem:[%s0 + $0x1e4] sm:$0xf]
  %v216 = vld [vmem:[%s0 + $0x1e8] sm:$0xf]
  %v217 = vld [vmem:[%s0 + $0x1ec] sm:$0xf]
  %v218 = vld [vmem:[%s0 + $0x1f0] sm:$0xf]
  %v219 = vld [vmem:[%s0 + $0x1f4] sm:$0xf]
  %v220 = vld [vmem:[%s0 + $0x1f8] sm:$0xf]
  %v221 = vld [vmem:[%s0 + $0x1fc] sm:$0xf]
  %v222 = vld [vmem:[%s0 + $0x200] sm:$0xf]
  %v223 = vld [vmem:[%s0 + $0x204] sm:$0xf]
  %v224 = vld [vmem:[%s0 + $0x208] sm:$0xf]
  %v225 = vld [vmem:[%s0 + $0x20c] sm:$0xf]
  %v226 = vld [vmem:[%s0 + $0x210] sm:$0xf]
  %v227 = vld [vmem:[%s0 + $0x214] sm:$0xf]
  %v228 = vld [vmem:[%s0 + $0x218] sm:$0xf]
  %v229 = vld [vmem:[%s0 + $0x21c] sm:$0xf]
  %v230 = vld [vmem:[%s0 + $0x220] sm:$0xf]
  %v231 = vld [vmem:[%s0 + $0x224] sm:$0xf]
  %v232 = vld [vmem:[%s0 + $0x228] sm:$0xf]
  %v233 = vld [vmem:[%s0 + $0x22c] sm:$0xf]
  %v234 = vld [vmem:[%s0 + $0x230] sm:$0xf]
  %v235 = vld [vmem:[%s0 + $0x234] sm:$0xf]
  %v236 = vld [vmem:[%s0 + $0x238] sm:$0xf]
  %v237 = vld [vmem:[%s0 + $0x23c] sm:$0xf]
  %v318 = vunpack.c.l.b16 %v14
  %v319 = vunpack.c.h.b16 %v14
  %v320 = vunpack.c.l.b16 %v15
  %v321 = vunpack.c.h.b16 %v15
  %v322 = vunpack.c.l.b16 %v16
  %v323 = vunpack.c.h.b16 %v16
  %v324 = vunpack.c.l.b16 %v17
  %v325 = vunpack.c.h.b16 %v17
  %v326 = vunpack.c.l.b16 %v18
  %v327 = vunpack.c.l.b16 %v19
  %v328 = vunpack.c.h.b16 %v19
  %v329 = vunpack.c.l.b16 %v20
  %v330 = vunpack.c.h.b16 %v20
  %v331 = vunpack.c.l.b16 %v21
  %v332 = vunpack.c.h.b16 %v21
  %v333 = vunpack.c.l.b16 %v22
  %v334 = vunpack.c.h.b16 %v22
  %v335 = vunpack.c.l.b16 %v23
  %v336 = vunpack.c.l.b16 %v24
  %v337 = vunpack.c.h.b16 %v24
  %v338 = vunpack.c.l.b16 %v25
  %v339 = vunpack.c.h.b16 %v25
  %v340 = vunpack.c.l.b16 %v26
  %v341 = vunpack.c.h.b16 %v26
  %v342 = vunpack.c.l.b16 %v27
  %v343 = vunpack.c.h.b16 %v27
  %v344 = vunpack.c.l.b16 %v28
  %v345 = vunpack.c.l.b16 %v29
  %v346 = vunpack.c.h.b16 %v29
  %v347 = vunpack.c.l.b16 %v30
  %v348 = vunpack.c.h.b16 %v30
  %v349 = vunpack.c.l.b16 %v31
  %v350 = vunpack.c.h.b16 %v31
  %v351 = vunpack.c.l.b16 %v32
  %v352 = vunpack.c.h.b16 %v32
  %v353 = vunpack.c.l.b16 %v33
  %v354 = vunpack.c.l.b16 %v34
  %v355 = vunpack.c.h.b16 %v34
  %v356 = vunpack.c.l.b16 %v35
  %v357 = vunpack.c.h.b16 %v35
  %v358 = vunpack.c.l.b16 %v36
  %v359 = vunpack.c.h.b16 %v36
  %v360 = vunpack.c.l.b16 %v37
  %v361 = vunpack.c.h.b16 %v37
  %v362 = vunpack.c.l.b16 %v38
  %v363 = vunpack.c.l.b16 %v39
  %v364 = vunpack.c.h.b16 %v39
  %v365 = vunpack.c.l.b16 %v40
  %v366 = vunpack.c.h.b16 %v40
  %v367 = vunpack.c.l.b16 %v41
  %v368 = vunpack.c.h.b16 %v41
  %v369 = vunpack.c.l.b16 %v42
  %v370 = vunpack.c.h.b16 %v42
  %v371 = vunpack.c.l.b16 %v43
  %v372 = vunpack.c.l.b16 %v44
  %v373 = vunpack.c.h.b16 %v44
  %v374 = vunpack.c.l.b16 %v45
  %v375 = vunpack.c.h.b16 %v45
  %v376 = vunpack.c.l.b16 %v46
  %v377 = vunpack.c.h.b16 %v46
  %v378 = vunpack.c.l.b16 %v47
  %v379 = vunpack.c.h.b16 %v47
  %v380 = vunpack.c.l.b16 %v48
  %v381 = vunpack.c.l.b16 %v49
  %v382 = vunpack.c.h.b16 %v49
  %v383 = vunpack.c.l.b16 %v50
  %v384 = vunpack.c.h.b16 %v50
  %v385 = vunpack.c.l.b16 %v51
  %v386 = vunpack.c.h.b16 %v51
  %v387 = vunpack.c.l.b16 %v52
  %v388 = vunpack.c.h.b16 %v52
  %v389 = vunpack.c.l.b16 %v53
  %v390 = vunpack.c.l.b16 %v54
  %v391 = vunpack.c.h.b16 %v54
  %v392 = vunpack.c.l.b16 %v55
  %v393 = vunpack.c.h.b16 %v55
  %v394 = vunpack.c.l.b16 %v56
  %v395 = vunpack.c.h.b16 %v56
  %v396 = vunpack.c.l.b16 %v57
  %v397 = vunpack.c.h.b16 %v57
  %v398 = vunpack.c.l.b16 %v58
  %v399 = vunpack.c.l.b16 %v59
  %v400 = vunpack.c.h.b16 %v59
  %v401 = vunpack.c.l.b16 %v60
  %v402 = vunpack.c.h.b16 %v60
  %v403 = vunpack.c.l.b16 %v61
  %v404 = vunpack.c.h.b16 %v61
  %v405 = vunpack.c.l.b16 %v62
  %v406 = vunpack.c.h.b16 %v62
  %v407 = vunpack.c.l.b16 %v63
  %v408 = vunpack.c.l.b16 %v64
  %v409 = vunpack.c.h.b16 %v64
  %v410 = vunpack.c.l.b16 %v65
  %v411 = vunpack.c.h.b16 %v65
  %v412 = vunpack.c.l.b16 %v66
  %v413 = vunpack.c.h.b16 %v66
  %v414 = vunpack.c.l.b16 %v67
  %v415 = vunpack.c.h.b16 %v67
  %v416 = vunpack.c.l.b16 %v68
  %v417 = vunpack.c.l.b16 %v69
  %v418 = vunpack.c.h.b16 %v69
  %v419 = vunpack.c.l.b16 %v70
  %v420 = vunpack.c.h.b16 %v70
  %v421 = vunpack.c.l.b16 %v71
  %v422 = vunpack.c.h.b16 %v71
  %v423 = vunpack.c.l.b16 %v72
  %v424 = vunpack.c.h.b16 %v72
  %v425 = vunpack.c.l.b16 %v73
  %v426 = vunpack.c.l.b16 %v74
  %v427 = vunpack.c.h.b16 %v74
  %v428 = vunpack.c.l.b16 %v75
  %v429 = vunpack.c.h.b16 %v75
  %v430 = vunpack.c.l.b16 %v76
  %v431 = vunpack.c.h.b16 %v76
  %v432 = vunpack.c.l.b16 %v77
  %v433 = vunpack.c.h.b16 %v77
  %v434 = vunpack.c.l.b16 %v78
  %v435 = vunpack.c.l.b16 %v79
  %v436 = vunpack.c.h.b16 %v79
  %v437 = vunpack.c.l.b16 %v80
  %v438 = vunpack.c.h.b16 %v80
  %v439 = vunpack.c.l.b16 %v81
  %v440 = vunpack.c.h.b16 %v81
  %v441 = vunpack.c.l.b16 %v82
  %v442 = vunpack.c.h.b16 %v82
  %v443 = vunpack.c.l.b16 %v83
  %v444 = vunpack.c.l.b16 %v84
  %v445 = vunpack.c.h.b16 %v84
  %v446 = vunpack.c.l.b16 %v85
  %v447 = vunpack.c.h.b16 %v85
  %v448 = vunpack.c.l.b16 %v86
  %v449 = vunpack.c.h.b16 %v86
  %v450 = vunpack.c.l.b16 %v87
  %v451 = vunpack.c.h.b16 %v87
  %v452 = vunpack.c.l.b16 %v88
  %v453 = vunpack.c.l.b16 %v89
  %v454 = vunpack.c.h.b16 %v89
  %v455 = vunpack.c.l.b16 %v90
  %v456 = vunpack.c.h.b16 %v90
  %v457 = vunpack.c.l.b16 %v91
  %v458 = vunpack.c.h.b16 %v91
  %v459 = vunpack.c.l.b16 %v92
  %v460 = vunpack.c.h.b16 %v92
  %v461 = vunpack.c.l.b16 %v93
  %v462 = vpack.c.b16 %v327, %v318
  %v463 = vpack.c.b16 %v328, %v319
  %v464 = vpack.c.b16 %v329, %v320
  %v465 = vpack.c.b16 %v330, %v321
  %v466 = vpack.c.b16 %v331, %v322
  %v467 = vpack.c.b16 %v332, %v323
  %v468 = vpack.c.b16 %v333, %v324
  %v469 = vpack.c.b16 %v334, %v325
  %v470 = vpack.c.b16 %v335, %v326
  %v471 = vpack.c.b16 %v345, %v336
  %v472 = vpack.c.b16 %v346, %v337
  %v473 = vpack.c.b16 %v347, %v338
  %v474 = vpack.c.b16 %v348, %v339
  %v475 = vpack.c.b16 %v349, %v340
  %v476 = vpack.c.b16 %v350, %v341
  %v477 = vpack.c.b16 %v351, %v342
  %v478 = vpack.c.b16 %v352, %v343
  %v479 = vpack.c.b16 %v353, %v344
  %v480 = vpack.c.b16 %v363, %v354
  %v481 = vpack.c.b16 %v364, %v355
  %v482 = vpack.c.b16 %v365, %v356
  %v483 = vpack.c.b16 %v366, %v357
  %v484 = vpack.c.b16 %v367, %v358
  %v485 = vpack.c.b16 %v368, %v359
  %v486 = vpack.c.b16 %v369, %v360
  %v487 = vpack.c.b16 %v370, %v361
  %v488 = vpack.c.b16 %v371, %v362
  %v489 = vpack.c.b16 %v381, %v372
  %v490 = vpack.c.b16 %v382, %v373
  %v491 = vpack.c.b16 %v383, %v374
  %v492 = vpack.c.b16 %v384, %v375
  %v493 = vpack.c.b16 %v385, %v376
  %v494 = vpack.c.b16 %v386, %v377
  %v495 = vpack.c.b16 %v387, %v378
  %v496 = vpack.c.b16 %v388, %v379
  %v497 = vpack.c.b16 %v389, %v380
  %v498 = vpack.c.b16 %v399, %v390
  %v499 = vpack.c.b16 %v400, %v391
  %v500 = vpack.c.b16 %v401, %v392
  %v501 = vpack.c.b16 %v402, %v393
  %v502 = vpack.c.b16 %v403, %v394
  %v503 = vpack.c.b16 %v404, %v395
  %v504 = vpack.c.b16 %v405, %v396
  %v505 = vpack.c.b16 %v406, %v397
  %v506 = vpack.c.b16 %v407, %v398
  %v507 = vpack.c.b16 %v417, %v408
  %v508 = vpack.c.b16 %v418, %v409
  %v509 = vpack.c.b16 %v419, %v410
  %v510 = vpack.c.b16 %v420, %v411
  %v511 = vpack.c.b16 %v421, %v412
  %v512 = vpack.c.b16 %v422, %v413
  %v513 = vpack.c.b16 %v423, %v414
  %v514 = vpack.c.b16 %v424, %v415
  %v515 = vpack.c.b16 %v425, %v416
  %v516 = vpack.c.b16 %v435, %v426
  %v517 = vpack.c.b16 %v436, %v427
  %v518 = vpack.c.b16 %v437, %v428
  %v519 = vpack.c.b16 %v438, %v429
  %v520 = vpack.c.b16 %v439, %v430
  %v521 = vpack.c.b16 %v440, %v431
  %v522 = vpack.c.b16 %v441, %v432
  %v523 = vpack.c.b16 %v442, %v433
  %v524 = vpack.c.b16 %v443, %v434
  %v525 = vpack.c.b16 %v453, %v444
  %v526 = vpack.c.b16 %v454, %v445
  %v527 = vpack.c.b16 %v455, %v446
  %v528 = vpack.c.b16 %v456, %v447
  %v529 = vpack.c.b16 %v457, %v448
  %v530 = vpack.c.b16 %v458, %v449
  %v531 = vpack.c.b16 %v459, %v450
  %v532 = vpack.c.b16 %v460, %v451
  %v533 = vpack.c.b16 %v461, %v452
  %v750 = vunpack.c.l.b16 %v94
  %v751 = vunpack.c.l.b16 %v95
  %v752 = vunpack.c.l.b16 %v96
  %v753 = vunpack.c.l.b16 %v97
  %v754 = vunpack.c.l.b16 %v98
  %v755 = vunpack.c.l.b16 %v99
  %v756 = vunpack.c.l.b16 %v100
  %v757 = vunpack.c.l.b16 %v101
  %v758 = vunpack.c.l.b16 %v102
  %v759 = vunpack.c.l.b16 %v103
  %v760 = vunpack.c.l.b16 %v104
  %v761 = vunpack.c.l.b16 %v105
  %v762 = vunpack.c.l.b16 %v106
  %v763 = vunpack.c.l.b16 %v107
  %v764 = vunpack.c.l.b16 %v108
  %v765 = vunpack.c.l.b16 %v109
  %v766 = vunpack.c.l.b16 %v110
  %v767 = vunpack.c.l.b16 %v111
  %v768 = vunpack.c.l.b16 %v112
  %v769 = vunpack.c.l.b16 %v113
  %v770 = vunpack.c.l.b16 %v114
  %v771 = vunpack.c.l.b16 %v115
  %v772 = vunpack.c.l.b16 %v116
  %v773 = vunpack.c.l.b16 %v117
  %v774 = vunpack.c.l.b16 %v118
  %v775 = vunpack.c.l.b16 %v119
  %v776 = vunpack.c.l.b16 %v120
  %v777 = vunpack.c.l.b16 %v121
  %v778 = vunpack.c.l.b16 %v122
  %v779 = vunpack.c.l.b16 %v123
  %v780 = vunpack.c.l.b16 %v124
  %v781 = vunpack.c.l.b16 %v125
  %v782 = vunpack.c.l.b16 %v126
  %v783 = vunpack.c.l.b16 %v127
  %v784 = vunpack.c.l.b16 %v128
  %v785 = vunpack.c.l.b16 %v129
  %v786 = vunpack.c.l.b16 %v130
  %v787 = vunpack.c.l.b16 %v131
  %v788 = vunpack.c.l.b16 %v132
  %v789 = vunpack.c.l.b16 %v133
  %v790 = vunpack.c.l.b16 %v134
  %v791 = vunpack.c.l.b16 %v135
  %v792 = vunpack.c.l.b16 %v136
  %v793 = vunpack.c.l.b16 %v137
  %v794 = vunpack.c.l.b16 %v138
  %v795 = vunpack.c.l.b16 %v139
  %v796 = vunpack.c.l.b16 %v140
  %v797 = vunpack.c.l.b16 %v141
  %v798 = vunpack.c.l.b16 %v142
  %v799 = vunpack.c.l.b16 %v143
  %v800 = vunpack.c.l.b16 %v144
  %v801 = vunpack.c.l.b16 %v145
  %v802 = vunpack.c.l.b16 %v146
  %v803 = vunpack.c.l.b16 %v147
  %v804 = vunpack.c.l.b16 %v148
  %v805 = vunpack.c.l.b16 %v149
  %v806 = vunpack.c.l.b16 %v150
  %v807 = vunpack.c.l.b16 %v151
  %v808 = vunpack.c.l.b16 %v152
  %v809 = vunpack.c.l.b16 %v153
  %v810 = vunpack.c.l.b16 %v154
  %v811 = vunpack.c.l.b16 %v155
  %v812 = vunpack.c.l.b16 %v156
  %v813 = vunpack.c.l.b16 %v157
  %v814 = vunpack.c.l.b16 %v158
  %v815 = vunpack.c.l.b16 %v159
  %v816 = vunpack.c.l.b16 %v160
  %v817 = vunpack.c.l.b16 %v161
  %v818 = vunpack.c.l.b16 %v162
  %v819 = vunpack.c.l.b16 %v163
  %v820 = vunpack.c.l.b16 %v164
  %v821 = vunpack.c.l.b16 %v165
  %v822 = vunpack.c.l.b16 %v166
  %v823 = vunpack.c.l.b16 %v167
  %v824 = vunpack.c.l.b16 %v168
  %v825 = vunpack.c.l.b16 %v169
  %v826 = vunpack.c.l.b16 %v170
  %v827 = vunpack.c.l.b16 %v171
  %v828 = vunpack.c.l.b16 %v172
  %v829 = vunpack.c.l.b16 %v173
  %v830 = vunpack.c.l.b16 %v174
  %v831 = vunpack.c.l.b16 %v175
  %v832 = vunpack.c.l.b16 %v176
  %v833 = vunpack.c.l.b16 %v177
  %v834 = vunpack.c.l.b16 %v178
  %v835 = vunpack.c.l.b16 %v179
  %v836 = vunpack.c.l.b16 %v180
  %v837 = vunpack.c.l.b16 %v181
  %v838 = vunpack.c.l.b16 %v182
  %v839 = vunpack.c.l.b16 %v183
  %v840 = vunpack.c.l.b16 %v184
  %v841 = vunpack.c.l.b16 %v185
  %v842 = vunpack.c.l.b16 %v186
  %v843 = vunpack.c.l.b16 %v187
  %v844 = vunpack.c.l.b16 %v188
  %v845 = vunpack.c.l.b16 %v189
  %v846 = vunpack.c.l.b16 %v190
  %v847 = vunpack.c.l.b16 %v191
  %v848 = vunpack.c.l.b16 %v192
  %v849 = vunpack.c.l.b16 %v193
  %v850 = vunpack.c.l.b16 %v194
  %v851 = vunpack.c.l.b16 %v195
  %v852 = vunpack.c.l.b16 %v196
  %v853 = vunpack.c.l.b16 %v197
  %v854 = vunpack.c.l.b16 %v198
  %v855 = vunpack.c.l.b16 %v199
  %v856 = vunpack.c.l.b16 %v200
  %v857 = vunpack.c.l.b16 %v201
  %v858 = vunpack.c.l.b16 %v202
  %v859 = vunpack.c.l.b16 %v203
  %v860 = vunpack.c.l.b16 %v204
  %v861 = vunpack.c.l.b16 %v205
  %v862 = vunpack.c.l.b16 %v206
  %v863 = vunpack.c.l.b16 %v207
  %v864 = vunpack.c.l.b16 %v208
  %v865 = vunpack.c.l.b16 %v209
  %v866 = vunpack.c.l.b16 %v210
  %v867 = vunpack.c.l.b16 %v211
  %v868 = vunpack.c.l.b16 %v212
  %v869 = vunpack.c.l.b16 %v213
  %v870 = vunpack.c.l.b16 %v214
  %v871 = vunpack.c.l.b16 %v215
  %v872 = vunpack.c.l.b16 %v216
  %v873 = vunpack.c.l.b16 %v217
  %v874 = vunpack.c.l.b16 %v218
  %v875 = vunpack.c.l.b16 %v219
  %v876 = vunpack.c.l.b16 %v220
  %v877 = vunpack.c.l.b16 %v221
  %v878 = vunpack.c.l.b16 %v222
  %v879 = vunpack.c.l.b16 %v223
  %v880 = vunpack.c.l.b16 %v224
  %v881 = vunpack.c.l.b16 %v225
  %v882 = vunpack.c.l.b16 %v226
  %v883 = vunpack.c.l.b16 %v227
  %v884 = vunpack.c.l.b16 %v228
  %v885 = vunpack.c.l.b16 %v229
  %v886 = vunpack.c.l.b16 %v230
  %v887 = vunpack.c.l.b16 %v231
  %v888 = vunpack.c.l.b16 %v232
  %v889 = vunpack.c.l.b16 %v233
  %v890 = vunpack.c.l.b16 %v234
  %v891 = vunpack.c.l.b16 %v235
  %v892 = vunpack.c.l.b16 %v236
  %v893 = vunpack.c.l.b16 %v237
  %v894 = vpack.c.b16 %v751, %v750
  %v895 = vpack.c.b16 %v753, %v752
  %v896 = vpack.c.b16 %v755, %v754
  %v897 = vpack.c.b16 %v757, %v756
  %v898 = vpack.c.b16 %v759, %v758
  %v899 = vpack.c.b16 %v761, %v760
  %v900 = vpack.c.b16 %v763, %v762
  %v901 = vpack.c.b16 %v765, %v764
  %v902 = vpack.c.b16 %v767, %v766
  %v903 = vpack.c.b16 %v769, %v768
  %v904 = vpack.c.b16 %v771, %v770
  %v905 = vpack.c.b16 %v773, %v772
  %v906 = vpack.c.b16 %v775, %v774
  %v907 = vpack.c.b16 %v777, %v776
  %v908 = vpack.c.b16 %v779, %v778
  %v909 = vpack.c.b16 %v781, %v780
  %v910 = vpack.c.b16 %v783, %v782
  %v911 = vpack.c.b16 %v785, %v784
  %v912 = vpack.c.b16 %v787, %v786
  %v913 = vpack.c.b16 %v789, %v788
  %v914 = vpack.c.b16 %v791, %v790
  %v915 = vpack.c.b16 %v793, %v792
  %v916 = vpack.c.b16 %v795, %v794
  %v917 = vpack.c.b16 %v797, %v796
  %v918 = vpack.c.b16 %v799, %v798
  %v919 = vpack.c.b16 %v801, %v800
  %v920 = vpack.c.b16 %v803, %v802
  %v921 = vpack.c.b16 %v805, %v804
  %v922 = vpack.c.b16 %v807, %v806
  %v923 = vpack.c.b16 %v809, %v808
  %v924 = vpack.c.b16 %v811, %v810
  %v925 = vpack.c.b16 %v813, %v812
  %v926 = vpack.c.b16 %v815, %v814
  %v927 = vpack.c.b16 %v817, %v816
  %v928 = vpack.c.b16 %v819, %v818
  %v929 = vpack.c.b16 %v821, %v820
  %v930 = vpack.c.b16 %v823, %v822
  %v931 = vpack.c.b16 %v825, %v824
  %v932 = vpack.c.b16 %v827, %v826
  %v933 = vpack.c.b16 %v829, %v828
  %v934 = vpack.c.b16 %v831, %v830
  %v935 = vpack.c.b16 %v833, %v832
  %v936 = vpack.c.b16 %v835, %v834
  %v937 = vpack.c.b16 %v837, %v836
  %v938 = vpack.c.b16 %v839, %v838
  %v939 = vpack.c.b16 %v841, %v840
  %v940 = vpack.c.b16 %v843, %v842
  %v941 = vpack.c.b16 %v845, %v844
  %v942 = vpack.c.b16 %v847, %v846
  %v943 = vpack.c.b16 %v849, %v848
  %v944 = vpack.c.b16 %v851, %v850
  %v945 = vpack.c.b16 %v853, %v852
  %v946 = vpack.c.b16 %v855, %v854
  %v947 = vpack.c.b16 %v857, %v856
  %v948 = vpack.c.b16 %v859, %v858
  %v949 = vpack.c.b16 %v861, %v860
  %v950 = vpack.c.b16 %v863, %v862
  %v951 = vpack.c.b16 %v865, %v864
  %v952 = vpack.c.b16 %v867, %v866
  %v953 = vpack.c.b16 %v869, %v868
  %v954 = vpack.c.b16 %v871, %v870
  %v955 = vpack.c.b16 %v873, %v872
  %v956 = vpack.c.b16 %v875, %v874
  %v957 = vpack.c.b16 %v877, %v876
  %v958 = vpack.c.b16 %v879, %v878
  %v959 = vpack.c.b16 %v881, %v880
  %v960 = vpack.c.b16 %v883, %v882
  %v961 = vpack.c.b16 %v885, %v884
  %v962 = vpack.c.b16 %v887, %v886
  %v963 = vpack.c.b16 %v889, %v888
  %v964 = vpack.c.b16 %v891, %v890
  %v965 = vpack.c.b16 %v893, %v892
  %1038 = vmatpush.bf16.msra.mxu0 %v901
  %1039 = vmatpush.bf16.msra.mxu0 %v900
  %1040 = vmatpush.bf16.msra.mxu0 %v899
  %1041 = vmatpush.bf16.msra.mxu0 %v898
  %1042 = vmatpush.bf16.msra.mxu0 %v897
  %1043 = vmatpush.bf16.msra.mxu0 %v896
  %1044 = vmatpush.bf16.msra.mxu0 %v895
  %1045 = vmatpush.bf16.msra.mxu0 %v894
  %1046 = vmatmul.bf16.gmra.mxu0 %v462
  %v1047 = vpop.f32.mrf.mxu0
  %v1048 = vadd.f32 0.0, %v1047
  %v1049 = vpop.f32.mrf.mxu0
  %v1050 = vadd.f32 0.0, %v1049
  %1051 = vmatmul.bf16.gmra.mxu0 %v471
  %v1052 = vpop.f32.mrf.mxu0
  %v1053 = vadd.f32 0.0, %v1052
  %v1054 = vpop.f32.mrf.mxu0
  %v1055 = vadd.f32 0.0, %v1054
  %1056 = vmatmul.bf16.gmra.mxu0 %v480
  %v1057 = vpop.f32.mrf.mxu0
  %v1058 = vadd.f32 0.0, %v1057
  %v1059 = vpop.f32.mrf.mxu0
  %v1060 = vadd.f32 0.0, %v1059
  %1061 = vmatmul.bf16.gmra.mxu0 %v489
  %v1062 = vpop.f32.mrf.mxu0
  %v1063 = vadd.f32 0.0, %v1062
  %v1064 = vpop.f32.mrf.mxu0
  %v1065 = vadd.f32 0.0, %v1064
  %1066 = vmatmul.bf16.gmra.mxu0 %v498
  %v1067 = vpop.f32.mrf.mxu0
  %v1068 = vadd.f32 0.0, %v1067
  %v1069 = vpop.f32.mrf.mxu0
  %v1070 = vadd.f32 0.0, %v1069
  %1071 = vmatmul.bf16.gmra.mxu0 %v507
  %v1072 = vpop.f32.mrf.mxu0
  %v1073 = vadd.f32 0.0, %v1072
  %v1074 = vpop.f32.mrf.mxu0
  %v1075 = vadd.f32 0.0, %v1074
  %1076 = vmatmul.bf16.gmra.mxu0 %v516
  %v1077 = vpop.f32.mrf.mxu0
  %v1078 = vadd.f32 0.0, %v1077
  %v1079 = vpop.f32.mrf.mxu0
  %v1080 = vadd.f32 0.0, %v1079
  %1081 = vmatmul.bf16.gmra.mxu0 %v525
  %v1082 = vpop.f32.mrf.mxu0
  %v1083 = vadd.f32 0.0, %v1082
  %v1084 = vpop.f32.mrf.mxu0
  %v1085 = vadd.f32 0.0, %v1084
  %1086 = vdwg.mxu0
  %1087 = vmatpush.bf16.msra.mxu0 %v909
  %1088 = vmatpush.bf16.msra.mxu0 %v908
  %1089 = vmatpush.bf16.msra.mxu0 %v907
  %1090 = vmatpush.bf16.msra.mxu0 %v906
  %1091 = vmatpush.bf16.msra.mxu0 %v905
  %1092 = vmatpush.bf16.msra.mxu0 %v904
  %1093 = vmatpush.bf16.msra.mxu0 %v903
  %1094 = vmatpush.bf16.msra.mxu0 %v902
  %1095 = vmatmul.bf16.gmra.mxu0 %v463
  %v1096 = vpop.f32.mrf.mxu0
  %v1097 = vadd.f32 %v1048, %v1096
  %v1098 = vpop.f32.mrf.mxu0
  %v1099 = vadd.f32 %v1050, %v1098
  %1100 = vmatmul.bf16.gmra.mxu0 %v472
  %v1101 = vpop.f32.mrf.mxu0
  %v1102 = vadd.f32 %v1053, %v1101
  %v1103 = vpop.f32.mrf.mxu0
  %v1104 = vadd.f32 %v1055, %v1103
  %1105 = vmatmul.bf16.gmra.mxu0 %v481
  %v1106 = vpop.f32.mrf.mxu0
  %v1107 = vadd.f32 %v1058, %v1106
  %v1108 = vpop.f32.mrf.mxu0
  %v1109 = vadd.f32 %v1060, %v1108
  %1110 = vmatmul.bf16.gmra.mxu0 %v490
  %v1111 = vpop.f32.mrf.mxu0
  %v1112 = vadd.f32 %v1063, %v1111
  %v1113 = vpop.f32.mrf.mxu0
  %v1114 = vadd.f32 %v1065, %v1113
  %1115 = vmatmul.bf16.gmra.mxu0 %v499
  %v1116 = vpop.f32.mrf.mxu0
  %v1117 = vadd.f32 %v1068, %v1116
  %v1118 = vpop.f32.mrf.mxu0
  %v1119 = vadd.f32 %v1070, %v1118
  %1120 = vmatmul.bf16.gmra.mxu0 %v508
  %v1121 = vpop.f32.mrf.mxu0
  %v1122 = vadd.f32 %v1073, %v1121
  %v1123 = vpop.f32.mrf.mxu0
  %v1124 = vadd.f32 %v1075, %v1123
  %1125 = vmatmul.bf16.gmra.mxu0 %v517
  %v1126 = vpop.f32.mrf.mxu0
  %v1127 = vadd.f32 %v1078, %v1126
  %v1128 = vpop.f32.mrf.mxu0
  %v1129 = vadd.f32 %v1080, %v1128
  %1130 = vmatmul.bf16.gmra.mxu0 %v526
  %v1131 = vpop.f32.mrf.mxu0
  %v1132 = vadd.f32 %v1083, %v1131
  %v1133 = vpop.f32.mrf.mxu0
  %v1134 = vadd.f32 %v1085, %v1133
  %1135 = vdwg.mxu0
  %1136 = vmatpush.bf16.msra.mxu0 %v917
  %1137 = vmatpush.bf16.msra.mxu0 %v916
  %1138 = vmatpush.bf16.msra.mxu0 %v915
  %1139 = vmatpush.bf16.msra.mxu0 %v914
  %1140 = vmatpush.bf16.msra.mxu0 %v913
  %1141 = vmatpush.bf16.msra.mxu0 %v912
  %1142 = vmatpush.bf16.msra.mxu0 %v911
  %1143 = vmatpush.bf16.msra.mxu0 %v910
  %1144 = vmatmul.bf16.gmra.mxu0 %v464
  %v1145 = vpop.f32.mrf.mxu0
  %v1146 = vadd.f32 %v1097, %v1145
  %v1147 = vpop.f32.mrf.mxu0
  %v1148 = vadd.f32 %v1099, %v1147
  %1149 = vmatmul.bf16.gmra.mxu0 %v473
  %v1150 = vpop.f32.mrf.mxu0
  %v1151 = vadd.f32 %v1102, %v1150
  %v1152 = vpop.f32.mrf.mxu0
  %v1153 = vadd.f32 %v1104, %v1152
  %1154 = vmatmul.bf16.gmra.mxu0 %v482
  %v1155 = vpop.f32.mrf.mxu0
  %v1156 = vadd.f32 %v1107, %v1155
  %v1157 = vpop.f32.mrf.mxu0
  %v1158 = vadd.f32 %v1109, %v1157
  %1159 = vmatmul.bf16.gmra.mxu0 %v491
  %v1160 = vpop.f32.mrf.mxu0
  %v1161 = vadd.f32 %v1112, %v1160
  %v1162 = vpop.f32.mrf.mxu0
  %v1163 = vadd.f32 %v1114, %v1162
  %1164 = vmatmul.bf16.gmra.mxu0 %v500
  %v1165 = vpop.f32.mrf.mxu0
  %v1166 = vadd.f32 %v1117, %v1165
  %v1167 = vpop.f32.mrf.mxu0
  %v1168 = vadd.f32 %v1119, %v1167
  %1169 = vmatmul.bf16.gmra.mxu0 %v509
  %v1170 = vpop.f32.mrf.mxu0
  %v1171 = vadd.f32 %v1122, %v1170
  %v1172 = vpop.f32.mrf.mxu0
  %v1173 = vadd.f32 %v1124, %v1172
  %1174 = vmatmul.bf16.gmra.mxu0 %v518
  %v1175 = vpop.f32.mrf.mxu0
  %v1176 = vadd.f32 %v1127, %v1175
  %v1177 = vpop.f32.mrf.mxu0
  %v1178 = vadd.f32 %v1129, %v1177
  %1179 = vmatmul.bf16.gmra.mxu0 %v527
  %v1180 = vpop.f32.mrf.mxu0
  %v1181 = vadd.f32 %v1132, %v1180
  %v1182 = vpop.f32.mrf.mxu0
  %v1183 = vadd.f32 %v1134, %v1182
  %1184 = vdwg.mxu0
  %1185 = vmatpush.bf16.msra.mxu0 %v925
  %1186 = vmatpush.bf16.msra.mxu0 %v924
  %1187 = vmatpush.bf16.msra.mxu0 %v923
  %1188 = vmatpush.bf16.msra.mxu0 %v922
  %1189 = vmatpush.bf16.msra.mxu0 %v921
  %1190 = vmatpush.bf16.msra.mxu0 %v920
  %1191 = vmatpush.bf16.msra.mxu0 %v919
  %1192 = vmatpush.bf16.msra.mxu0 %v918
  %1193 = vmatmul.bf16.gmra.mxu0 %v465
  %v1194 = vpop.f32.mrf.mxu0
  %v1195 = vadd.f32 %v1146, %v1194
  %v1196 = vpop.f32.mrf.mxu0
  %v1197 = vadd.f32 %v1148, %v1196
  %1198 = vmatmul.bf16.gmra.mxu0 %v474
  %v1199 = vpop.f32.mrf.mxu0
  %v1200 = vadd.f32 %v1151, %v1199
  %v1201 = vpop.f32.mrf.mxu0
  %v1202 = vadd.f32 %v1153, %v1201
  %1203 = vmatmul.bf16.gmra.mxu0 %v483
  %v1204 = vpop.f32.mrf.mxu0
  %v1205 = vadd.f32 %v1156, %v1204
  %v1206 = vpop.f32.mrf.mxu0
  %v1207 = vadd.f32 %v1158, %v1206
  %1208 = vmatmul.bf16.gmra.mxu0 %v492
  %v1209 = vpop.f32.mrf.mxu0
  %v1210 = vadd.f32 %v1161, %v1209
  %v1211 = vpop.f32.mrf.mxu0
  %v1212 = vadd.f32 %v1163, %v1211
  %1213 = vmatmul.bf16.gmra.mxu0 %v501
  %v1214 = vpop.f32.mrf.mxu0
  %v1215 = vadd.f32 %v1166, %v1214
  %v1216 = vpop.f32.mrf.mxu0
  %v1217 = vadd.f32 %v1168, %v1216
  %1218 = vmatmul.bf16.gmra.mxu0 %v510
  %v1219 = vpop.f32.mrf.mxu0
  %v1220 = vadd.f32 %v1171, %v1219
  %v1221 = vpop.f32.mrf.mxu0
  %v1222 = vadd.f32 %v1173, %v1221
  %1223 = vmatmul.bf16.gmra.mxu0 %v519
  %v1224 = vpop.f32.mrf.mxu0
  %v1225 = vadd.f32 %v1176, %v1224
  %v1226 = vpop.f32.mrf.mxu0
  %v1227 = vadd.f32 %v1178, %v1226
  %1228 = vmatmul.bf16.gmra.mxu0 %v528
  %v1229 = vpop.f32.mrf.mxu0
  %v1230 = vadd.f32 %v1181, %v1229
  %v1231 = vpop.f32.mrf.mxu0
  %v1232 = vadd.f32 %v1183, %v1231
  %1233 = vdwg.mxu0
  %1234 = vmatpush.bf16.msra.mxu0 %v933
  %1235 = vmatpush.bf16.msra.mxu0 %v932
  %1236 = vmatpush.bf16.msra.mxu0 %v931
  %1237 = vmatpush.bf16.msra.mxu0 %v930
  %1238 = vmatpush.bf16.msra.mxu0 %v929
  %1239 = vmatpush.bf16.msra.mxu0 %v928
  %1240 = vmatpush.bf16.msra.mxu0 %v927
  %1241 = vmatpush.bf16.msra.mxu0 %v926
  %1242 = vmatmul.bf16.gmra.mxu0 %v466
  %v1243 = vpop.f32.mrf.mxu0
  %v1244 = vadd.f32 %v1195, %v1243
  %v1245 = vpop.f32.mrf.mxu0
  %v1246 = vadd.f32 %v1197, %v1245
  %1247 = vmatmul.bf16.gmra.mxu0 %v475
  %v1248 = vpop.f32.mrf.mxu0
  %v1249 = vadd.f32 %v1200, %v1248
  %v1250 = vpop.f32.mrf.mxu0
  %v1251 = vadd.f32 %v1202, %v1250
  %1252 = vmatmul.bf16.gmra.mxu0 %v484
  %v1253 = vpop.f32.mrf.mxu0
  %v1254 = vadd.f32 %v1205, %v1253
  %v1255 = vpop.f32.mrf.mxu0
  %v1256 = vadd.f32 %v1207, %v1255
  %1257 = vmatmul.bf16.gmra.mxu0 %v493
  %v1258 = vpop.f32.mrf.mxu0
  %v1259 = vadd.f32 %v1210, %v1258
  %v1260 = vpop.f32.mrf.mxu0
  %v1261 = vadd.f32 %v1212, %v1260
  %1262 = vmatmul.bf16.gmra.mxu0 %v502
  %v1263 = vpop.f32.mrf.mxu0
  %v1264 = vadd.f32 %v1215, %v1263
  %v1265 = vpop.f32.mrf.mxu0
  %v1266 = vadd.f32 %v1217, %v1265
  %1267 = vmatmul.bf16.gmra.mxu0 %v511
  %v1268 = vpop.f32.mrf.mxu0
  %v1269 = vadd.f32 %v1220, %v1268
  %v1270 = vpop.f32.mrf.mxu0
  %v1271 = vadd.f32 %v1222, %v1270
  %1272 = vmatmul.bf16.gmra.mxu0 %v520
  %v1273 = vpop.f32.mrf.mxu0
  %v1274 = vadd.f32 %v1225, %v1273
  %v1275 = vpop.f32.mrf.mxu0
  %v1276 = vadd.f32 %v1227, %v1275
  %1277 = vmatmul.bf16.gmra.mxu0 %v529
  %v1278 = vpop.f32.mrf.mxu0
  %v1279 = vadd.f32 %v1230, %v1278
  %v1280 = vpop.f32.mrf.mxu0
  %v1281 = vadd.f32 %v1232, %v1280
  %1282 = vdwg.mxu0
  %1283 = vmatpush.bf16.msra.mxu0 %v941
  %1284 = vmatpush.bf16.msra.mxu0 %v940
  %1285 = vmatpush.bf16.msra.mxu0 %v939
  %1286 = vmatpush.bf16.msra.mxu0 %v938
  %1287 = vmatpush.bf16.msra.mxu0 %v937
  %1288 = vmatpush.bf16.msra.mxu0 %v936
  %1289 = vmatpush.bf16.msra.mxu0 %v935
  %1290 = vmatpush.bf16.msra.mxu0 %v934
  %1291 = vmatmul.bf16.gmra.mxu0 %v467
  %v1292 = vpop.f32.mrf.mxu0
  %v1293 = vadd.f32 %v1244, %v1292
  %v1294 = vpop.f32.mrf.mxu0
  %v1295 = vadd.f32 %v1246, %v1294
  %1296 = vmatmul.bf16.gmra.mxu0 %v476
  %v1297 = vpop.f32.mrf.mxu0
  %v1298 = vadd.f32 %v1249, %v1297
  %v1299 = vpop.f32.mrf.mxu0
  %v1300 = vadd.f32 %v1251, %v1299
  %1301 = vmatmul.bf16.gmra.mxu0 %v485
  %v1302 = vpop.f32.mrf.mxu0
  %v1303 = vadd.f32 %v1254, %v1302
  %v1304 = vpop.f32.mrf.mxu0
  %v1305 = vadd.f32 %v1256, %v1304
  %1306 = vmatmul.bf16.gmra.mxu0 %v494
  %v1307 = vpop.f32.mrf.mxu0
  %v1308 = vadd.f32 %v1259, %v1307
  %v1309 = vpop.f32.mrf.mxu0
  %v1310 = vadd.f32 %v1261, %v1309
  %1311 = vmatmul.bf16.gmra.mxu0 %v503
  %v1312 = vpop.f32.mrf.mxu0
  %v1313 = vadd.f32 %v1264, %v1312
  %v1314 = vpop.f32.mrf.mxu0
  %v1315 = vadd.f32 %v1266, %v1314
  %1316 = vmatmul.bf16.gmra.mxu0 %v512
  %v1317 = vpop.f32.mrf.mxu0
  %v1318 = vadd.f32 %v1269, %v1317
  %v1319 = vpop.f32.mrf.mxu0
  %v1320 = vadd.f32 %v1271, %v1319
  %1321 = vmatmul.bf16.gmra.mxu0 %v521
  %v1322 = vpop.f32.mrf.mxu0
  %v1323 = vadd.f32 %v1274, %v1322
  %v1324 = vpop.f32.mrf.mxu0
  %v1325 = vadd.f32 %v1276, %v1324
  %1326 = vmatmul.bf16.gmra.mxu0 %v530
  %v1327 = vpop.f32.mrf.mxu0
  %v1328 = vadd.f32 %v1279, %v1327
  %v1329 = vpop.f32.mrf.mxu0
  %v1330 = vadd.f32 %v1281, %v1329
  %1331 = vdwg.mxu0
  %1332 = vmatpush.bf16.msra.mxu0 %v949
  %1333 = vmatpush.bf16.msra.mxu0 %v948
  %1334 = vmatpush.bf16.msra.mxu0 %v947
  %1335 = vmatpush.bf16.msra.mxu0 %v946
  %1336 = vmatpush.bf16.msra.mxu0 %v945
  %1337 = vmatpush.bf16.msra.mxu0 %v944
  %1338 = vmatpush.bf16.msra.mxu0 %v943
  %1339 = vmatpush.bf16.msra.mxu0 %v942
  %1340 = vmatmul.bf16.gmra.mxu0 %v468
  %v1341 = vpop.f32.mrf.mxu0
  %v1342 = vadd.f32 %v1293, %v1341
  %v1343 = vpop.f32.mrf.mxu0
  %v1344 = vadd.f32 %v1295, %v1343
  %1345 = vmatmul.bf16.gmra.mxu0 %v477
  %v1346 = vpop.f32.mrf.mxu0
  %v1347 = vadd.f32 %v1298, %v1346
  %v1348 = vpop.f32.mrf.mxu0
  %v1349 = vadd.f32 %v1300, %v1348
  %1350 = vmatmul.bf16.gmra.mxu0 %v486
  %v1351 = vpop.f32.mrf.mxu0
  %v1352 = vadd.f32 %v1303, %v1351
  %v1353 = vpop.f32.mrf.mxu0
  %v1354 = vadd.f32 %v1305, %v1353
  %1355 = vmatmul.bf16.gmra.mxu0 %v495
  %v1356 = vpop.f32.mrf.mxu0
  %v1357 = vadd.f32 %v1308, %v1356
  %v1358 = vpop.f32.mrf.mxu0
  %v1359 = vadd.f32 %v1310, %v1358
  %1360 = vmatmul.bf16.gmra.mxu0 %v504
  %v1361 = vpop.f32.mrf.mxu0
  %v1362 = vadd.f32 %v1313, %v1361
  %v1363 = vpop.f32.mrf.mxu0
  %v1364 = vadd.f32 %v1315, %v1363
  %1365 = vmatmul.bf16.gmra.mxu0 %v513
  %v1366 = vpop.f32.mrf.mxu0
  %v1367 = vadd.f32 %v1318, %v1366
  %v1368 = vpop.f32.mrf.mxu0
  %v1369 = vadd.f32 %v1320, %v1368
  %1370 = vmatmul.bf16.gmra.mxu0 %v522
  %v1371 = vpop.f32.mrf.mxu0
  %v1372 = vadd.f32 %v1323, %v1371
  %v1373 = vpop.f32.mrf.mxu0
  %v1374 = vadd.f32 %v1325, %v1373
  %1375 = vmatmul.bf16.gmra.mxu0 %v531
  %v1376 = vpop.f32.mrf.mxu0
  %v1377 = vadd.f32 %v1328, %v1376
  %v1378 = vpop.f32.mrf.mxu0
  %v1379 = vadd.f32 %v1330, %v1378
  %1380 = vdwg.mxu0
  %1381 = vmatpush.bf16.msra.mxu0 %v957
  %1382 = vmatpush.bf16.msra.mxu0 %v956
  %1383 = vmatpush.bf16.msra.mxu0 %v955
  %1384 = vmatpush.bf16.msra.mxu0 %v954
  %1385 = vmatpush.bf16.msra.mxu0 %v953
  %1386 = vmatpush.bf16.msra.mxu0 %v952
  %1387 = vmatpush.bf16.msra.mxu0 %v951
  %1388 = vmatpush.bf16.msra.mxu0 %v950
  %1389 = vmatmul.bf16.gmra.mxu0 %v469
  %v1390 = vpop.f32.mrf.mxu0
  %v1391 = vadd.f32 %v1342, %v1390
  %v1392 = vpop.f32.mrf.mxu0
  %v1393 = vadd.f32 %v1344, %v1392
  %1394 = vmatmul.bf16.gmra.mxu0 %v478
  %v1395 = vpop.f32.mrf.mxu0
  %v1396 = vadd.f32 %v1347, %v1395
  %v1397 = vpop.f32.mrf.mxu0
  %v1398 = vadd.f32 %v1349, %v1397
  %1399 = vmatmul.bf16.gmra.mxu0 %v487
  %v1400 = vpop.f32.mrf.mxu0
  %v1401 = vadd.f32 %v1352, %v1400
  %v1402 = vpop.f32.mrf.mxu0
  %v1403 = vadd.f32 %v1354, %v1402
  %1404 = vmatmul.bf16.gmra.mxu0 %v496
  %v1405 = vpop.f32.mrf.mxu0
  %v1406 = vadd.f32 %v1357, %v1405
  %v1407 = vpop.f32.mrf.mxu0
  %v1408 = vadd.f32 %v1359, %v1407
  %1409 = vmatmul.bf16.gmra.mxu0 %v505
  %v1410 = vpop.f32.mrf.mxu0
  %v1411 = vadd.f32 %v1362, %v1410
  %v1412 = vpop.f32.mrf.mxu0
  %v1413 = vadd.f32 %v1364, %v1412
  %1414 = vmatmul.bf16.gmra.mxu0 %v514
  %v1415 = vpop.f32.mrf.mxu0
  %v1416 = vadd.f32 %v1367, %v1415
  %v1417 = vpop.f32.mrf.mxu0
  %v1418 = vadd.f32 %v1369, %v1417
  %1419 = vmatmul.bf16.gmra.mxu0 %v523
  %v1420 = vpop.f32.mrf.mxu0
  %v1421 = vadd.f32 %v1372, %v1420
  %v1422 = vpop.f32.mrf.mxu0
  %v1423 = vadd.f32 %v1374, %v1422
  %1424 = vmatmul.bf16.gmra.mxu0 %v532
  %v1425 = vpop.f32.mrf.mxu0
  %v1426 = vadd.f32 %v1377, %v1425
  %v1427 = vpop.f32.mrf.mxu0
  %v1428 = vadd.f32 %v1379, %v1427
  %1429 = vdwg.mxu0
  %1430 = vmatpush.bf16.msra.mxu0 %v965
  %1431 = vmatpush.bf16.msra.mxu0 %v964
  %1432 = vmatpush.bf16.msra.mxu0 %v963
  %1433 = vmatpush.bf16.msra.mxu0 %v962
  %1434 = vmatpush.bf16.msra.mxu0 %v961
  %1435 = vmatpush.bf16.msra.mxu0 %v960
  %1436 = vmatpush.bf16.msra.mxu0 %v959
  %1437 = vmatpush.bf16.msra.mxu0 %v958
  %1438 = vmatmul.bf16.gmra.mxu0 %v470
  %v1439 = vpop.f32.mrf.mxu0
  %v1440 = vadd.f32 %v1391, %v1439
  %v1441 = vpop.f32.mrf.mxu0
  %v1442 = vadd.f32 %v1393, %v1441
  %1443 = vmatmul.bf16.gmra.mxu0 %v479
  %v1444 = vpop.f32.mrf.mxu0
  %v1445 = vadd.f32 %v1396, %v1444
  %v1446 = vpop.f32.mrf.mxu0
  %v1447 = vadd.f32 %v1398, %v1446
  %1448 = vmatmul.bf16.gmra.mxu0 %v488
  %v1449 = vpop.f32.mrf.mxu0
  %v1450 = vadd.f32 %v1401, %v1449
  %v1451 = vpop.f32.mrf.mxu0
  %v1452 = vadd.f32 %v1403, %v1451
  %1453 = vmatmul.bf16.gmra.mxu0 %v497
  %v1454 = vpop.f32.mrf.mxu0
  %v1455 = vadd.f32 %v1406, %v1454
  %v1456 = vpop.f32.mrf.mxu0
  %v1457 = vadd.f32 %v1408, %v1456
  %1458 = vmatmul.bf16.gmra.mxu0 %v506
  %v1459 = vpop.f32.mrf.mxu0
  %v1460 = vadd.f32 %v1411, %v1459
  %v1461 = vpop.f32.mrf.mxu0
  %v1462 = vadd.f32 %v1413, %v1461
  %1463 = vmatmul.bf16.gmra.mxu0 %v515
  %v1464 = vpop.f32.mrf.mxu0
  %v1465 = vadd.f32 %v1416, %v1464
  %v1466 = vpop.f32.mrf.mxu0
  %v1467 = vadd.f32 %v1418, %v1466
  %1468 = vmatmul.bf16.gmra.mxu0 %v524
  %v1469 = vpop.f32.mrf.mxu0
  %v1470 = vadd.f32 %v1421, %v1469
  %v1471 = vpop.f32.mrf.mxu0
  %v1472 = vadd.f32 %v1423, %v1471
  %1473 = vmatmul.bf16.gmra.mxu0 %v533
  %v1474 = vpop.f32.mrf.mxu0
  %v1475 = vadd.f32 %v1426, %v1474
  %v1476 = vpop.f32.mrf.mxu0
  %v1477 = vadd.f32 %v1428, %v1476
  %1478 = vdwg.mxu0
  %v1479 = vmax.f32 %v1440, %v1450
  %v1480 = vmax.f32 %v1442, %v1452
  %v1481 = vmax.f32 %v1445, %v1455
  %v1482 = vmax.f32 %v1447, %v1457
  %v1483 = vmax.f32 %v1460, %v1470
  %v1484 = vmax.f32 %v1462, %v1472
  %v1485 = vmax.f32 %v1465, %v1475
  %v1486 = vmax.f32 %v1467, %v1477
  %v1487 = vmax.f32 %v1479, %v1483
  %v1488 = vmax.f32 %v1480, %v1484
  %v1489 = vmax.f32 %v1481, %v1485
  %v1490 = vmax.f32 %v1482, %v1486
  %v1491 = vld [vmem:[%s2] sm:$0xff]
  %v1492 = vld [vmem:[%s2 + $0x8] sm:$0xff]
  %v1493 = vld [vmem:[%s2 + $0x10] sm:$0xff]
  %v1494 = vld [vmem:[%s2 + $0x18] sm:$0xff]
  %1496 = vset.pattern.permute.xlu0 0
  %1497 = vperm.xlu0 %1496, %v1491
  %v1498 = vpop.permute.xlu0 %1497
  %1501 = vset.pattern.permute.xlu0 0
  %1502 = vperm.xlu0 %1501, %v1492
  %v1503 = vpop.permute.xlu0 %1502
  %1506 = vset.pattern.permute.xlu0 0
  %1507 = vperm.xlu0 %1506, %v1493
  %v1508 = vpop.permute.xlu0 %1507
  %1511 = vset.pattern.permute.xlu0 0
  %1512 = vperm.xlu0 %1511, %v1494
  %v1513 = vpop.permute.xlu0 %1512
  %v1515 = vadd.f32 %v1487, %v1498
  %v1516 = vadd.f32 %v1488, %v1503
  %v1517 = vadd.f32 %v1489, %v1508
  %v1518 = vadd.f32 %v1490, %v1513
  %v1519 = vmax.f32 %v1515, 0.0
  %v1520 = vmax.f32 %v1516, 0.0
  %v1521 = vmax.f32 %v1517, 0.0
  %v1522 = vmax.f32 %v1518, 0.0
  %1523 = vst [vmem:[%s3] sm:$0xff] %v1519
  %1524 = vst [vmem:[%s3 + $0x8] sm:$0xff] %v1520
  %1525 = vst [vmem:[%s3 + $0x10] sm:$0xff] %v1521
  %1526 = vst [vmem:[%s3 + $0x18] sm:$0xff] %v1522
  // Predicated region
  $region14: #{client_model_forward.7} parent=0 // pred_check
    _
  $region15: #{client_model_forward.7} parent=0 // pred_check_branch
    %1528 = sbr.rel (0) target = $region17
  $region16: #{client_model_forward.7} parent=0 // pred_region
    _
  $region17: #{client_model_forward.7} parent=0 // pred_fallthru
    _
  // Predicated region
  $region18: #{client_model_forward.7} parent=0 // pred_check
    _
  $region19: #{client_model_forward.7} parent=0 // pred_check_branch
    %1530 = sbr.rel (0) target = $region21
  $region20: #{client_model_forward.7} parent=0 // pred_region
    _
  $region21: #{client_model_forward.7} parent=0 // pred_fallthru
    _

</llo_original>
